<compile_context>
chip_gen: v7x
topology: tpu7x:2x2x1
jax: 0.10.0
libtpu: 0.0.40
codegen_flags: <defaults>
</compile_context>

<pallas_src>
import functools

import numpy as np
import jax
import jax.numpy as jnp
from jax.experimental import pallas as pl
from jax.experimental.pallas import tpu as pltpu


def _vmem():
    return pl.BlockSpec(memory_space=pltpu.MemorySpace.VMEM)


def _smem():
    return pl.BlockSpec(memory_space=pltpu.MemorySpace.SMEM)


# ----------------------------------------------------------------------------
# Fused NeuralMap forward kernel
# ----------------------------------------------------------------------------
def _neural_map_kernel(idx_ref, x_ref, s_ref, smat_ref,
                       w1_ref, b1_ref, w2_ref, b2_ref, w3_ref, b3_ref,
                       rw_ref, rb_ref, qwx_ref, qwr_ref, qb_ref,
                       wwx_ref, wwr_ref, wwc_ref, wwm_ref, wb_ref,
                       out_ref, ns_ref, *, map_w):
    # idx_ref : (B, 2) int32 in SMEM       s_ref : (B, C, P) state (P = H*W)
    # smat_ref: (9, P, P) constant 0/1 shift/zero-pad matrices (one per tap)
    # w{1,2,3}_ref: (HC, 9*Cin) packed conv weights, b*: (HC, 1)
    # rw_ref  : (HC, P, C) read weights (torch C-major flatten order)
    B, C, P = s_ref.shape
    HC = w1_ref.shape[0]
    CF = rb_ref.shape[-1]

    s = s_ref[...]                                   # (B, C, P)
    x = x_ref[...]                                   # (B, D_in)

    # Constant im2col shift matrices, loaded once and reused by all layers.
    smats = [smat_ref[t] for t in range(9)]          # 9 x (P, P)

    # ---- read path: 3 fused conv3x3 + ReLU layers (packed-K matmuls) -------
    acts = []
    for b in range(B):
        a = s[b]                                     # (Cin, P) channel-major
        for w_r, b_r in ((w1_ref, b1_ref), (w2_ref, b2_ref), (w3_ref, b3_ref)):
            # Shifted + zero-padded taps via MXU matmuls with 0/1 matrices.
            taps = [jnp.dot(a, smats[t], preferred_element_type=jnp.float32)
                    for t in range(9)]               # 9 x (Cin, P)
            patch = jnp.concatenate(taps, axis=0)    # (9*Cin, P)  im2col
            a = jnp.dot(w_r[...], patch,
                        preferred_element_type=jnp.float32)   # (HC, P)
            a = jnp.maximum(a + b_r[...], 0.0)
        acts.append(a)
    h3 = jnp.stack(acts, axis=0)                     # (B, HC, P)

    # Read linear + ReLU.  feat[b, c*P + p] == h3[b, c, p] is exactly the
    # torch NCHW flatten, so read_w keeps its original row order.
    racc = jnp.dot(h3[:, 0, :], rw_ref[0], preferred_element_type=jnp.float32)
    for ch in range(1, HC):
        racc = racc + jnp.dot(h3[:, ch, :], rw_ref[ch],
                              preferred_element_type=jnp.float32)
    r = jnp.maximum(racc + rb_ref[...], 0.0)         # (B, CF)

    # ---- query + context attention (softmax over map positions) ------------
    q = (jnp.dot(x, qwx_ref[...], preferred_element_type=jnp.float32)
         + jnp.dot(r, qwr_ref[...], preferred_element_type=jnp.float32)
         + qb_ref[...])                              # (B, C)
    logits = jnp.sum(q[:, :, None] * s, axis=1)      # (B, P)
    logits = logits - jnp.max(logits, axis=1, keepdims=True)
    e = jnp.exp(logits)
    att = e * pl.reciprocal(jnp.sum(e, axis=1, keepdims=True), approx=True)
    ctx = jnp.sum(att[:, None, :] * s, axis=2)       # (B, C)

    # ---- in-kernel gather of m (one-hot built from SMEM index) -------------
    bidx = jax.lax.broadcasted_iota(jnp.int32, (B, 1, P), 0)
    lidx = jax.lax.broadcasted_iota(jnp.int32, (B, 1, P), 2)
    flat = jnp.zeros((B, 1, P), jnp.int32)
    for b in range(B):
        pid = idx_ref[b, 0] * map_w + idx_ref[b, 1]
        flat = jnp.where(bidx == b, pid, flat)
    onehot = (lidx == flat).astype(jnp.float32)      # (B, 1, P)
    m = jnp.sum(s * onehot, axis=2)                  # (B, C)

    # ---- write linear (split-weight dots, no concat) ------------------------
    wvec = (jnp.dot(x, wwx_ref[...], preferred_element_type=jnp.float32)
            + jnp.dot(r, wwr_ref[...], preferred_element_type=jnp.float32)
            + jnp.dot(ctx, wwc_ref[...], preferred_element_type=jnp.float32)
            + jnp.dot(m, wwm_ref[...], preferred_element_type=jnp.float32)
            + wb_ref[...])                           # (B, C)

    # ---- outputs: [r | c | w] and in-kernel scatter into new_state ----------
    out_ref[:, 0:CF] = r
    out_ref[:, CF:2 * CF] = ctx
    out_ref[:, 2 * CF:3 * CF] = wvec
    ns_ref[...] = s * (1.0 - onehot) + wvec[:, :, None] * onehot


# ----------------------------------------------------------------------------
# One-time parameter repacking (layout plumbing folded into the weights)
# ----------------------------------------------------------------------------
def _conv_shift_matrices(H, W):
    """S[t, q, p] = 1 iff input pixel q feeds output pixel p for 3x3 tap t
    (zero rows/cols implement the 'same' zero padding)."""
    P = H * W
    S = np.zeros((9, P, P), np.float32)
    for kh in range(3):
        for kw in range(3):
            t = kh * 3 + kw
            dy, dx = kh - 1, kw - 1
            for h in range(H):
                for w in range(W):
                    hh, ww = h + dy, w + dx
                    if 0 <= hh < H and 0 <= ww < W:
                        S[t, hh * W + ww, h * W + w] = 1.0
    return jnp.asarray(S)


def prepare_kernel_params(params, map_shape, input_dim):
    H, W = map_shape
    P = H * W
    convs = params["convs"]
    hc = convs[0][0].shape[-1]
    C = params["read_w"].shape[-1]
    d = input_dim

    def pack_conv(wk, bk):
        cin = wk.shape[2]
        wt = wk.reshape(9 * cin, hc).T              # (hc, 9*cin), cols = (tap, cin)
        return wt, bk.reshape(hc, 1)

    w1t, b1 = pack_conv(*convs[0])
    w2t, b2 = pack_conv(*convs[1])
    w3t, b3 = pack_conv(*convs[2])
    q_w, w_w = params["q_w"], params["w_w"]
    return dict(
        smat=_conv_shift_matrices(H, W),
        w1t=w1t, b1=b1, w2t=w2t, b2=b2, w3t=w3t, b3=b3,
        rw3=params["read_w"].reshape(hc, P, C),     # rows stay in torch (c, p) order
        rb=params["read_b"].reshape(1, C),
        qwx=q_w[:d], qwr=q_w[d:], qb=params["q_b"].reshape(1, C),
        wwx=w_w[:d], wwr=w_w[d:d + C], wwc=w_w[d + C:d + 2 * C],
        wwm=w_w[d + 2 * C:], wb=params["w_b"].reshape(1, C),
    )


# ----------------------------------------------------------------------------
# NeuralMap forward (single pallas_call; glue = free reshapes only)
# ----------------------------------------------------------------------------
def neural_map_forward(kp, x, state, index):
    B, C, H, W = state.shape
    P = H * W
    s = state.reshape(B, C, P)                       # free, row-major
    idx = index.astype(jnp.int32)

    out, new_s = pl.pallas_call(
        functools.partial(_neural_map_kernel, map_w=W),
        out_shape=(jax.ShapeDtypeStruct((B, 3 * C), jnp.float32),
                   jax.ShapeDtypeStruct((B, C, P), jnp.float32)),
        in_specs=[_smem()] + [_vmem()] * 19,
        out_specs=(_vmem(), _vmem()),
        input_output_aliases={2: 1},                 # state buffer -> new_state
    )(idx, x, s, kp["smat"],
      kp["w1t"], kp["b1"], kp["w2t"], kp["b2"], kp["w3t"], kp["b3"],
      kp["rw3"], kp["rb"], kp["qwx"], kp["qwr"], kp["qb"],
      kp["wwx"], kp["wwr"], kp["wwc"], kp["wwm"], kp["wb"])
    return out, new_s.reshape(B, C, H, W)


# ----------------------------------------------------------------------------
# Pure-JAX reference (for correctness check)
# ----------------------------------------------------------------------------
def reference_forward(params, x, state, index):
    B, C, H, W = state.shape
    h = state  # NCHW
    for (wk, bk) in params["convs"]:
        h = jax.lax.conv_general_dilated(
            h, wk, window_strides=(1, 1), padding="SAME",
            dimension_numbers=("NCHW", "HWIO", "NCHW"))
        h = jnp.maximum(h + bk[None, :, None, None], 0.0)
    feat = h.reshape(B, -1)
    r = jnp.maximum(feat @ params["read_w"] + params["read_b"], 0.0)
    q = jnp.concatenate([x, r], axis=1) @ params["q_w"] + params["q_b"]
    s = state.reshape(B, C, H * W)
    a = jnp.einsum("bc,bcp->bp", q, s)
    a = jax.nn.softmax(a, axis=1)
    c = jnp.einsum("bp,bcp->bc", a, s)
    m = state[jnp.arange(B), :, index[:, 0], index[:, 1]]
    w = jnp.concatenate([x, r, c, m], axis=1) @ params["w_w"] + params["w_b"]
    new_state = state.at[jnp.arange(B), :, index[:, 0], index[:, 1]].set(w)
    return jnp.concatenate([r, c, w], axis=1), new_state


# ----------------------------------------------------------------------------
# Deterministic parameter init (synthetic; shapes match the PyTorch module)
# ----------------------------------------------------------------------------
def init_params(key, map_shape, input_dim, features_dim, hidden_channels=32):
    H, W = map_shape
    C = features_dim
    keys = jax.random.split(key, 12)
    scale = jnp.float32(0.05)
    convs = []
    cin = C
    for i in range(3):
        wk = scale * jax.random.normal(keys[2 * i], (3, 3, cin, hidden_channels),
                                       jnp.float32)
        bk = scale * jax.random.normal(keys[2 * i + 1], (hidden_channels,),
                                       jnp.float32)
        convs.append((wk, bk))
        cin = hidden_channels
    hidden_dim = H * W * hidden_channels
    return dict(
        convs=convs,
        read_w=scale * jax.random.normal(keys[6], (hidden_dim, C), jnp.float32),
        read_b=scale * jax.random.normal(keys[7], (C,), jnp.float32),
        q_w=scale * jax.random.normal(keys[8], (input_dim + C, C), jnp.float32),
        q_b=scale * jax.random.normal(keys[9], (C,), jnp.float32),
        w_w=scale * jax.random.normal(keys[10], (input_dim + 3 * C, C), jnp.float32),
        w_b=scale * jax.random.normal(keys[11], (C,), jnp.float32),
    )


if __name__ == "__main__":
    B, C, H, W, D_IN = 2, 16, 8, 8, 8   # batch, features_dim, map H, map W, input_dim
    key = jax.random.PRNGKey(0)
    kp_, kx, ks, ki = jax.random.split(key, 4)

    params = init_params(kp_, (H, W), D_IN, C)
    x = jax.random.normal(kx, (B, D_IN), jnp.float32)
    state = jax.random.normal(ks, (B, C, H, W), jnp.float32)
    index = jax.random.randint(ki, (B, 2), 0, H).astype(jnp.int32)

    kparams = prepare_kernel_params(params, (H, W), D_IN)

    fwd = jax.jit(neural_map_forward)
    out, new_state = fwd(kparams, x, state, index)
    out, new_state = jax.block_until_ready((out, new_state))

    ref_out, ref_state = reference_forward(params, x, state, index)
    assert out.shape == (B, 3 * C) and new_state.shape == state.shape
    assert jnp.allclose(out, ref_out, atol=2e-3, rtol=2e-3), \
        float(jnp.max(jnp.abs(out - ref_out)))
    assert jnp.allclose(new_state, ref_state, atol=2e-3, rtol=2e-3), \
        float(jnp.max(jnp.abs(new_state - ref_state)))

    print("KERNEL_OK")
</pallas_src>

<mosaic_0001>
module attributes {stable_mosaic.version = 11 : i64} {
  func.func @_neural_map_kernel(%arg0: memref<2x2xi32, #tpu.memory_space<smem>>, %arg1: memref<2x8xf32, #tpu.memory_space<vmem>>, %arg2: memref<2x16x64xf32, #tpu.memory_space<vmem>>, %arg3: memref<9x64x64xf32, #tpu.memory_space<vmem>>, %arg4: memref<32x144xf32, #tpu.memory_space<vmem>>, %arg5: memref<32x1xf32, #tpu.memory_space<vmem>>, %arg6: memref<32x288xf32, #tpu.memory_space<vmem>>, %arg7: memref<32x1xf32, #tpu.memory_space<vmem>>, %arg8: memref<32x288xf32, #tpu.memory_space<vmem>>, %arg9: memref<32x1xf32, #tpu.memory_space<vmem>>, %arg10: memref<32x64x16xf32, #tpu.memory_space<vmem>>, %arg11: memref<1x16xf32, #tpu.memory_space<vmem>>, %arg12: memref<8x16xf32, #tpu.memory_space<vmem>>, %arg13: memref<16x16xf32, #tpu.memory_space<vmem>>, %arg14: memref<1x16xf32, #tpu.memory_space<vmem>>, %arg15: memref<8x16xf32, #tpu.memory_space<vmem>>, %arg16: memref<16x16xf32, #tpu.memory_space<vmem>>, %arg17: memref<16x16xf32, #tpu.memory_space<vmem>>, %arg18: memref<16x16xf32, #tpu.memory_space<vmem>>, %arg19: memref<1x16xf32, #tpu.memory_space<vmem>>, %arg20: memref<2x48xf32, #tpu.memory_space<vmem>>, %arg21: memref<2x16x64xf32, #tpu.memory_space<vmem>>) attributes {dimension_semantics = [], scalar_prefetch = 0 : i64, scratch_operands = 0 : i64, tpu.core_type = #tpu.core_type<tc>} {
    %c0 = arith.constant 0 : index
    %c0_0 = arith.constant 0 : index
    %c0_1 = arith.constant 0 : index
    %0 = vector.load %arg2[%c0, %c0_0, %c0_1] : memref<2x16x64xf32, #tpu.memory_space<vmem>>, vector<2x16x64xf32>
    %c0_2 = arith.constant 0 : index
    %c0_3 = arith.constant 0 : index
    %1 = vector.load %arg1[%c0_2, %c0_3] : memref<2x8xf32, #tpu.memory_space<vmem>>, vector<2x8xf32>
    %c0_4 = arith.constant 0 : index
    %c0_5 = arith.constant 0 : index
    %c0_6 = arith.constant 0 : index
    %2 = vector.load %arg3[%c0_4, %c0_5, %c0_6] : memref<9x64x64xf32, #tpu.memory_space<vmem>>, vector<1x64x64xf32>
    %3 = vector.shape_cast %2 : vector<1x64x64xf32> to vector<64x64xf32>
    %c1 = arith.constant 1 : index
    %c0_7 = arith.constant 0 : index
    %c0_8 = arith.constant 0 : index
    %4 = vector.load %arg3[%c1, %c0_7, %c0_8] : memref<9x64x64xf32, #tpu.memory_space<vmem>>, vector<1x64x64xf32>
    %5 = vector.shape_cast %4 : vector<1x64x64xf32> to vector<64x64xf32>
    %c2 = arith.constant 2 : index
    %c0_9 = arith.constant 0 : index
    %c0_10 = arith.constant 0 : index
    %6 = vector.load %arg3[%c2, %c0_9, %c0_10] : memref<9x64x64xf32, #tpu.memory_space<vmem>>, vector<1x64x64xf32>
    %7 = vector.shape_cast %6 : vector<1x64x64xf32> to vector<64x64xf32>
    %c3 = arith.constant 3 : index
    %c0_11 = arith.constant 0 : index
    %c0_12 = arith.constant 0 : index
    %8 = vector.load %arg3[%c3, %c0_11, %c0_12] : memref<9x64x64xf32, #tpu.memory_space<vmem>>, vector<1x64x64xf32>
    %9 = vector.shape_cast %8 : vector<1x64x64xf32> to vector<64x64xf32>
    %c4 = arith.constant 4 : index
    %c0_13 = arith.constant 0 : index
    %c0_14 = arith.constant 0 : index
    %10 = vector.load %arg3[%c4, %c0_13, %c0_14] : memref<9x64x64xf32, #tpu.memory_space<vmem>>, vector<1x64x64xf32>
    %11 = vector.shape_cast %10 : vector<1x64x64xf32> to vector<64x64xf32>
    %c5 = arith.constant 5 : index
    %c0_15 = arith.constant 0 : index
    %c0_16 = arith.constant 0 : index
    %12 = vector.load %arg3[%c5, %c0_15, %c0_16] : memref<9x64x64xf32, #tpu.memory_space<vmem>>, vector<1x64x64xf32>
    %13 = vector.shape_cast %12 : vector<1x64x64xf32> to vector<64x64xf32>
    %c6 = arith.constant 6 : index
    %c0_17 = arith.constant 0 : index
    %c0_18 = arith.constant 0 : index
    %14 = vector.load %arg3[%c6, %c0_17, %c0_18] : memref<9x64x64xf32, #tpu.memory_space<vmem>>, vector<1x64x64xf32>
    %15 = vector.shape_cast %14 : vector<1x64x64xf32> to vector<64x64xf32>
    %c7 = arith.constant 7 : index
    %c0_19 = arith.constant 0 : index
    %c0_20 = arith.constant 0 : index
    %16 = vector.load %arg3[%c7, %c0_19, %c0_20] : memref<9x64x64xf32, #tpu.memory_space<vmem>>, vector<1x64x64xf32>
    %17 = vector.shape_cast %16 : vector<1x64x64xf32> to vector<64x64xf32>
    %c8 = arith.constant 8 : index
    %c0_21 = arith.constant 0 : index
    %c0_22 = arith.constant 0 : index
    %18 = vector.load %arg3[%c8, %c0_21, %c0_22] : memref<9x64x64xf32, #tpu.memory_space<vmem>>, vector<1x64x64xf32>
    %19 = vector.shape_cast %18 : vector<1x64x64xf32> to vector<64x64xf32>
    %20 = vector.extract_strided_slice %0 {offsets = [0, 0, 0], sizes = [1, 16, 64], strides = [1, 1, 1]} : vector<2x16x64xf32> to vector<1x16x64xf32>
    %21 = vector.shape_cast %20 : vector<1x16x64xf32> to vector<16x64xf32>
    %cst = arith.constant dense<0.000000e+00> : vector<16x64xf32>
    %22 = tpu.matmul %21, %3, %cst {dimension_numbers = #tpu.dot_dimension_numbers<[1], [0], [0], [1], [0, 0, 1, 1], [], []>} : vector<16x64xf32>, vector<64x64xf32>, vector<16x64xf32> -> vector<16x64xf32>
    %cst_23 = arith.constant dense<0.000000e+00> : vector<16x64xf32>
    %23 = tpu.matmul %21, %5, %cst_23 {dimension_numbers = #tpu.dot_dimension_numbers<[1], [0], [0], [1], [0, 0, 1, 1], [], []>} : vector<16x64xf32>, vector<64x64xf32>, vector<16x64xf32> -> vector<16x64xf32>
    %cst_24 = arith.constant dense<0.000000e+00> : vector<16x64xf32>
    %24 = tpu.matmul %21, %7, %cst_24 {dimension_numbers = #tpu.dot_dimension_numbers<[1], [0], [0], [1], [0, 0, 1, 1], [], []>} : vector<16x64xf32>, vector<64x64xf32>, vector<16x64xf32> -> vector<16x64xf32>
    %cst_25 = arith.constant dense<0.000000e+00> : vector<16x64xf32>
    %25 = tpu.matmul %21, %9, %cst_25 {dimension_numbers = #tpu.dot_dimension_numbers<[1], [0], [0], [1], [0, 0, 1, 1], [], []>} : vector<16x64xf32>, vector<64x64xf32>, vector<16x64xf32> -> vector<16x64xf32>
    %cst_26 = arith.constant dense<0.000000e+00> : vector<16x64xf32>
    %26 = tpu.matmul %21, %11, %cst_26 {dimension_numbers = #tpu.dot_dimension_numbers<[1], [0], [0], [1], [0, 0, 1, 1], [], []>} : vector<16x64xf32>, vector<64x64xf32>, vector<16x64xf32> -> vector<16x64xf32>
    %cst_27 = arith.constant dense<0.000000e+00> : vector<16x64xf32>
    %27 = tpu.matmul %21, %13, %cst_27 {dimension_numbers = #tpu.dot_dimension_numbers<[1], [0], [0], [1], [0, 0, 1, 1], [], []>} : vector<16x64xf32>, vector<64x64xf32>, vector<16x64xf32> -> vector<16x64xf32>
    %cst_28 = arith.constant dense<0.000000e+00> : vector<16x64xf32>
    %28 = tpu.matmul %21, %15, %cst_28 {dimension_numbers = #tpu.dot_dimension_numbers<[1], [0], [0], [1], [0, 0, 1, 1], [], []>} : vector<16x64xf32>, vector<64x64xf32>, vector<16x64xf32> -> vector<16x64xf32>
    %cst_29 = arith.constant dense<0.000000e+00> : vector<16x64xf32>
    %29 = tpu.matmul %21, %17, %cst_29 {dimension_numbers = #tpu.dot_dimension_numbers<[1], [0], [0], [1], [0, 0, 1, 1], [], []>} : vector<16x64xf32>, vector<64x64xf32>, vector<16x64xf32> -> vector<16x64xf32>
    %cst_30 = arith.constant dense<0.000000e+00> : vector<16x64xf32>
    %30 = tpu.matmul %21, %19, %cst_30 {dimension_numbers = #tpu.dot_dimension_numbers<[1], [0], [0], [1], [0, 0, 1, 1], [], []>} : vector<16x64xf32>, vector<64x64xf32>, vector<16x64xf32> -> vector<16x64xf32>
    %31 = tpu.concatenate %22, %23, %24, %25, %26, %27, %28, %29, %30 in 0 : vector<16x64xf32>, vector<16x64xf32>, vector<16x64xf32>, vector<16x64xf32>, vector<16x64xf32>, vector<16x64xf32>, vector<16x64xf32>, vector<16x64xf32>, vector<16x64xf32> -> vector<144x64xf32>
    %c0_31 = arith.constant 0 : index
    %c0_32 = arith.constant 0 : index
    %32 = vector.load %arg4[%c0_31, %c0_32] : memref<32x144xf32, #tpu.memory_space<vmem>>, vector<32x144xf32>
    %cst_33 = arith.constant dense<0.000000e+00> : vector<32x64xf32>
    %33 = tpu.matmul %32, %31, %cst_33 {dimension_numbers = #tpu.dot_dimension_numbers<[1], [0], [0], [1], [0, 0, 1, 1], [], []>} : vector<32x144xf32>, vector<144x64xf32>, vector<32x64xf32> -> vector<32x64xf32>
    %c0_34 = arith.constant 0 : index
    %c0_35 = arith.constant 0 : index
    %34 = vector.load %arg5[%c0_34, %c0_35] : memref<32x1xf32, #tpu.memory_space<vmem>>, vector<32x1xf32>
    %35 = vector.broadcast %34 : vector<32x1xf32> to vector<32x64xf32>
    %36 = arith.addf %33, %35 : vector<32x64xf32>
    %cst_36 = arith.constant 0.000000e+00 : f32
    %37 = vector.broadcast %cst_36 : f32 to vector<32x64xf32>
    %38 = arith.maximumf %36, %37 : vector<32x64xf32>
    %cst_37 = arith.constant dense<0.000000e+00> : vector<32x64xf32>
    %39 = tpu.matmul %38, %3, %cst_37 {dimension_numbers = #tpu.dot_dimension_numbers<[1], [0], [0], [1], [0, 0, 1, 1], [], []>} : vector<32x64xf32>, vector<64x64xf32>, vector<32x64xf32> -> vector<32x64xf32>
    %cst_38 = arith.constant dense<0.000000e+00> : vector<32x64xf32>
    %40 = tpu.matmul %38, %5, %cst_38 {dimension_numbers = #tpu.dot_dimension_numbers<[1], [0], [0], [1], [0, 0, 1, 1], [], []>} : vector<32x64xf32>, vector<64x64xf32>, vector<32x64xf32> -> vector<32x64xf32>
    %cst_39 = arith.constant dense<0.000000e+00> : vector<32x64xf32>
    %41 = tpu.matmul %38, %7, %cst_39 {dimension_numbers = #tpu.dot_dimension_numbers<[1], [0], [0], [1], [0, 0, 1, 1], [], []>} : vector<32x64xf32>, vector<64x64xf32>, vector<32x64xf32> -> vector<32x64xf32>
    %cst_40 = arith.constant dense<0.000000e+00> : vector<32x64xf32>
    %42 = tpu.matmul %38, %9, %cst_40 {dimension_numbers = #tpu.dot_dimension_numbers<[1], [0], [0], [1], [0, 0, 1, 1], [], []>} : vector<32x64xf32>, vector<64x64xf32>, vector<32x64xf32> -> vector<32x64xf32>
    %cst_41 = arith.constant dense<0.000000e+00> : vector<32x64xf32>
    %43 = tpu.matmul %38, %11, %cst_41 {dimension_numbers = #tpu.dot_dimension_numbers<[1], [0], [0], [1], [0, 0, 1, 1], [], []>} : vector<32x64xf32>, vector<64x64xf32>, vector<32x64xf32> -> vector<32x64xf32>
    %cst_42 = arith.constant dense<0.000000e+00> : vector<32x64xf32>
    %44 = tpu.matmul %38, %13, %cst_42 {dimension_numbers = #tpu.dot_dimension_numbers<[1], [0], [0], [1], [0, 0, 1, 1], [], []>} : vector<32x64xf32>, vector<64x64xf32>, vector<32x64xf32> -> vector<32x64xf32>
    %cst_43 = arith.constant dense<0.000000e+00> : vector<32x64xf32>
    %45 = tpu.matmul %38, %15, %cst_43 {dimension_numbers = #tpu.dot_dimension_numbers<[1], [0], [0], [1], [0, 0, 1, 1], [], []>} : vector<32x64xf32>, vector<64x64xf32>, vector<32x64xf32> -> vector<32x64xf32>
    %cst_44 = arith.constant dense<0.000000e+00> : vector<32x64xf32>
    %46 = tpu.matmul %38, %17, %cst_44 {dimension_numbers = #tpu.dot_dimension_numbers<[1], [0], [0], [1], [0, 0, 1, 1], [], []>} : vector<32x64xf32>, vector<64x64xf32>, vector<32x64xf32> -> vector<32x64xf32>
    %cst_45 = arith.constant dense<0.000000e+00> : vector<32x64xf32>
    %47 = tpu.matmul %38, %19, %cst_45 {dimension_numbers = #tpu.dot_dimension_numbers<[1], [0], [0], [1], [0, 0, 1, 1], [], []>} : vector<32x64xf32>, vector<64x64xf32>, vector<32x64xf32> -> vector<32x64xf32>
    %48 = tpu.concatenate %39, %40, %41, %42, %43, %44, %45, %46, %47 in 0 : vector<32x64xf32>, vector<32x64xf32>, vector<32x64xf32>, vector<32x64xf32>, vector<32x64xf32>, vector<32x64xf32>, vector<32x64xf32>, vector<32x64xf32>, vector<32x64xf32> -> vector<288x64xf32>
    %c0_46 = arith.constant 0 : index
    %c0_47 = arith.constant 0 : index
    %49 = vector.load %arg6[%c0_46, %c0_47] : memref<32x288xf32, #tpu.memory_space<vmem>>, vector<32x288xf32>
    %cst_48 = arith.constant dense<0.000000e+00> : vector<32x64xf32>
    %50 = tpu.matmul %49, %48, %cst_48 {dimension_numbers = #tpu.dot_dimension_numbers<[1], [0], [0], [1], [0, 0, 1, 1], [], []>} : vector<32x288xf32>, vector<288x64xf32>, vector<32x64xf32> -> vector<32x64xf32>
    %c0_49 = arith.constant 0 : index
    %c0_50 = arith.constant 0 : index
    %51 = vector.load %arg7[%c0_49, %c0_50] : memref<32x1xf32, #tpu.memory_space<vmem>>, vector<32x1xf32>
    %52 = vector.broadcast %51 : vector<32x1xf32> to vector<32x64xf32>
    %53 = arith.addf %50, %52 : vector<32x64xf32>
    %cst_51 = arith.constant 0.000000e+00 : f32
    %54 = vector.broadcast %cst_51 : f32 to vector<32x64xf32>
    %55 = arith.maximumf %53, %54 : vector<32x64xf32>
    %cst_52 = arith.constant dense<0.000000e+00> : vector<32x64xf32>
    %56 = tpu.matmul %55, %3, %cst_52 {dimension_numbers = #tpu.dot_dimension_numbers<[1], [0], [0], [1], [0, 0, 1, 1], [], []>} : vector<32x64xf32>, vector<64x64xf32>, vector<32x64xf32> -> vector<32x64xf32>
    %cst_53 = arith.constant dense<0.000000e+00> : vector<32x64xf32>
    %57 = tpu.matmul %55, %5, %cst_53 {dimension_numbers = #tpu.dot_dimension_numbers<[1], [0], [0], [1], [0, 0, 1, 1], [], []>} : vector<32x64xf32>, vector<64x64xf32>, vector<32x64xf32> -> vector<32x64xf32>
    %cst_54 = arith.constant dense<0.000000e+00> : vector<32x64xf32>
    %58 = tpu.matmul %55, %7, %cst_54 {dimension_numbers = #tpu.dot_dimension_numbers<[1], [0], [0], [1], [0, 0, 1, 1], [], []>} : vector<32x64xf32>, vector<64x64xf32>, vector<32x64xf32> -> vector<32x64xf32>
    %cst_55 = arith.constant dense<0.000000e+00> : vector<32x64xf32>
    %59 = tpu.matmul %55, %9, %cst_55 {dimension_numbers = #tpu.dot_dimension_numbers<[1], [0], [0], [1], [0, 0, 1, 1], [], []>} : vector<32x64xf32>, vector<64x64xf32>, vector<32x64xf32> -> vector<32x64xf32>
    %cst_56 = arith.constant dense<0.000000e+00> : vector<32x64xf32>
    %60 = tpu.matmul %55, %11, %cst_56 {dimension_numbers = #tpu.dot_dimension_numbers<[1], [0], [0], [1], [0, 0, 1, 1], [], []>} : vector<32x64xf32>, vector<64x64xf32>, vector<32x64xf32> -> vector<32x64xf32>
    %cst_57 = arith.constant dense<0.000000e+00> : vector<32x64xf32>
    %61 = tpu.matmul %55, %13, %cst_57 {dimension_numbers = #tpu.dot_dimension_numbers<[1], [0], [0], [1], [0, 0, 1, 1], [], []>} : vector<32x64xf32>, vector<64x64xf32>, vector<32x64xf32> -> vector<32x64xf32>
    %cst_58 = arith.constant dense<0.000000e+00> : vector<32x64xf32>
    %62 = tpu.matmul %55, %15, %cst_58 {dimension_numbers = #tpu.dot_dimension_numbers<[1], [0], [0], [1], [0, 0, 1, 1], [], []>} : vector<32x64xf32>, vector<64x64xf32>, vector<32x64xf32> -> vector<32x64xf32>
    %cst_59 = arith.constant dense<0.000000e+00> : vector<32x64xf32>
    %63 = tpu.matmul %55, %17, %cst_59 {dimension_numbers = #tpu.dot_dimension_numbers<[1], [0], [0], [1], [0, 0, 1, 1], [], []>} : vector<32x64xf32>, vector<64x64xf32>, vector<32x64xf32> -> vector<32x64xf32>
    %cst_60 = arith.constant dense<0.000000e+00> : vector<32x64xf32>
    %64 = tpu.matmul %55, %19, %cst_60 {dimension_numbers = #tpu.dot_dimension_numbers<[1], [0], [0], [1], [0, 0, 1, 1], [], []>} : vector<32x64xf32>, vector<64x64xf32>, vector<32x64xf32> -> vector<32x64xf32>
    %65 = tpu.concatenate %56, %57, %58, %59, %60, %61, %62, %63, %64 in 0 : vector<32x64xf32>, vector<32x64xf32>, vector<32x64xf32>, vector<32x64xf32>, vector<32x64xf32>, vector<32x64xf32>, vector<32x64xf32>, vector<32x64xf32>, vector<32x64xf32> -> vector<288x64xf32>
    %c0_61 = arith.constant 0 : index
    %c0_62 = arith.constant 0 : index
    %66 = vector.load %arg8[%c0_61, %c0_62] : memref<32x288xf32, #tpu.memory_space<vmem>>, vector<32x288xf32>
    %cst_63 = arith.constant dense<0.000000e+00> : vector<32x64xf32>
    %67 = tpu.matmul %66, %65, %cst_63 {dimension_numbers = #tpu.dot_dimension_numbers<[1], [0], [0], [1], [0, 0, 1, 1], [], []>} : vector<32x288xf32>, vector<288x64xf32>, vector<32x64xf32> -> vector<32x64xf32>
    %c0_64 = arith.constant 0 : index
    %c0_65 = arith.constant 0 : index
    %68 = vector.load %arg9[%c0_64, %c0_65] : memref<32x1xf32, #tpu.memory_space<vmem>>, vector<32x1xf32>
    %69 = vector.broadcast %68 : vector<32x1xf32> to vector<32x64xf32>
    %70 = arith.addf %67, %69 : vector<32x64xf32>
    %cst_66 = arith.constant 0.000000e+00 : f32
    %71 = vector.broadcast %cst_66 : f32 to vector<32x64xf32>
    %72 = arith.maximumf %70, %71 : vector<32x64xf32>
    %73 = vector.extract_strided_slice %0 {offsets = [1, 0, 0], sizes = [1, 16, 64], strides = [1, 1, 1]} : vector<2x16x64xf32> to vector<1x16x64xf32>
    %74 = vector.shape_cast %73 : vector<1x16x64xf32> to vector<16x64xf32>
    %cst_67 = arith.constant dense<0.000000e+00> : vector<16x64xf32>
    %75 = tpu.matmul %74, %3, %cst_67 {dimension_numbers = #tpu.dot_dimension_numbers<[1], [0], [0], [1], [0, 0, 1, 1], [], []>} : vector<16x64xf32>, vector<64x64xf32>, vector<16x64xf32> -> vector<16x64xf32>
    %cst_68 = arith.constant dense<0.000000e+00> : vector<16x64xf32>
    %76 = tpu.matmul %74, %5, %cst_68 {dimension_numbers = #tpu.dot_dimension_numbers<[1], [0], [0], [1], [0, 0, 1, 1], [], []>} : vector<16x64xf32>, vector<64x64xf32>, vector<16x64xf32> -> vector<16x64xf32>
    %cst_69 = arith.constant dense<0.000000e+00> : vector<16x64xf32>
    %77 = tpu.matmul %74, %7, %cst_69 {dimension_numbers = #tpu.dot_dimension_numbers<[1], [0], [0], [1], [0, 0, 1, 1], [], []>} : vector<16x64xf32>, vector<64x64xf32>, vector<16x64xf32> -> vector<16x64xf32>
    %cst_70 = arith.constant dense<0.000000e+00> : vector<16x64xf32>
    %78 = tpu.matmul %74, %9, %cst_70 {dimension_numbers = #tpu.dot_dimension_numbers<[1], [0], [0], [1], [0, 0, 1, 1], [], []>} : vector<16x64xf32>, vector<64x64xf32>, vector<16x64xf32> -> vector<16x64xf32>
    %cst_71 = arith.constant dense<0.000000e+00> : vector<16x64xf32>
    %79 = tpu.matmul %74, %11, %cst_71 {dimension_numbers = #tpu.dot_dimension_numbers<[1], [0], [0], [1], [0, 0, 1, 1], [], []>} : vector<16x64xf32>, vector<64x64xf32>, vector<16x64xf32> -> vector<16x64xf32>
    %cst_72 = arith.constant dense<0.000000e+00> : vector<16x64xf32>
    %80 = tpu.matmul %74, %13, %cst_72 {dimension_numbers = #tpu.dot_dimension_numbers<[1], [0], [0], [1], [0, 0, 1, 1], [], []>} : vector<16x64xf32>, vector<64x64xf32>, vector<16x64xf32> -> vector<16x64xf32>
    %cst_73 = arith.constant dense<0.000000e+00> : vector<16x64xf32>
    %81 = tpu.matmul %74, %15, %cst_73 {dimension_numbers = #tpu.dot_dimension_numbers<[1], [0], [0], [1], [0, 0, 1, 1], [], []>} : vector<16x64xf32>, vector<64x64xf32>, vector<16x64xf32> -> vector<16x64xf32>
    %cst_74 = arith.constant dense<0.000000e+00> : vector<16x64xf32>
    %82 = tpu.matmul %74, %17, %cst_74 {dimension_numbers = #tpu.dot_dimension_numbers<[1], [0], [0], [1], [0, 0, 1, 1], [], []>} : vector<16x64xf32>, vector<64x64xf32>, vector<16x64xf32> -> vector<16x64xf32>
    %cst_75 = arith.constant dense<0.000000e+00> : vector<16x64xf32>
    %83 = tpu.matmul %74, %19, %cst_75 {dimension_numbers = #tpu.dot_dimension_numbers<[1], [0], [0], [1], [0, 0, 1, 1], [], []>} : vector<16x64xf32>, vector<64x64xf32>, vector<16x64xf32> -> vector<16x64xf32>
    %84 = tpu.concatenate %75, %76, %77, %78, %79, %80, %81, %82, %83 in 0 : vector<16x64xf32>, vector<16x64xf32>, vector<16x64xf32>, vector<16x64xf32>, vector<16x64xf32>, vector<16x64xf32>, vector<16x64xf32>, vector<16x64xf32>, vector<16x64xf32> -> vector<144x64xf32>
    %c0_76 = arith.constant 0 : index
    %c0_77 = arith.constant 0 : index
    %85 = vector.load %arg4[%c0_76, %c0_77] : memref<32x144xf32, #tpu.memory_space<vmem>>, vector<32x144xf32>
    %cst_78 = arith.constant dense<0.000000e+00> : vector<32x64xf32>
    %86 = tpu.matmul %85, %84, %cst_78 {dimension_numbers = #tpu.dot_dimension_numbers<[1], [0], [0], [1], [0, 0, 1, 1], [], []>} : vector<32x144xf32>, vector<144x64xf32>, vector<32x64xf32> -> vector<32x64xf32>
    %c0_79 = arith.constant 0 : index
    %c0_80 = arith.constant 0 : index
    %87 = vector.load %arg5[%c0_79, %c0_80] : memref<32x1xf32, #tpu.memory_space<vmem>>, vector<32x1xf32>
    %88 = vector.broadcast %87 : vector<32x1xf32> to vector<32x64xf32>
    %89 = arith.addf %86, %88 : vector<32x64xf32>
    %cst_81 = arith.constant 0.000000e+00 : f32
    %90 = vector.broadcast %cst_81 : f32 to vector<32x64xf32>
    %91 = arith.maximumf %89, %90 : vector<32x64xf32>
    %cst_82 = arith.constant dense<0.000000e+00> : vector<32x64xf32>
    %92 = tpu.matmul %91, %3, %cst_82 {dimension_numbers = #tpu.dot_dimension_numbers<[1], [0], [0], [1], [0, 0, 1, 1], [], []>} : vector<32x64xf32>, vector<64x64xf32>, vector<32x64xf32> -> vector<32x64xf32>
    %cst_83 = arith.constant dense<0.000000e+00> : vector<32x64xf32>
    %93 = tpu.matmul %91, %5, %cst_83 {dimension_numbers = #tpu.dot_dimension_numbers<[1], [0], [0], [1], [0, 0, 1, 1], [], []>} : vector<32x64xf32>, vector<64x64xf32>, vector<32x64xf32> -> vector<32x64xf32>
    %cst_84 = arith.constant dense<0.000000e+00> : vector<32x64xf32>
    %94 = tpu.matmul %91, %7, %cst_84 {dimension_numbers = #tpu.dot_dimension_numbers<[1], [0], [0], [1], [0, 0, 1, 1], [], []>} : vector<32x64xf32>, vector<64x64xf32>, vector<32x64xf32> -> vector<32x64xf32>
    %cst_85 = arith.constant dense<0.000000e+00> : vector<32x64xf32>
    %95 = tpu.matmul %91, %9, %cst_85 {dimension_numbers = #tpu.dot_dimension_numbers<[1], [0], [0], [1], [0, 0, 1, 1], [], []>} : vector<32x64xf32>, vector<64x64xf32>, vector<32x64xf32> -> vector<32x64xf32>
    %cst_86 = arith.constant dense<0.000000e+00> : vector<32x64xf32>
    %96 = tpu.matmul %91, %11, %cst_86 {dimension_numbers = #tpu.dot_dimension_numbers<[1], [0], [0], [1], [0, 0, 1, 1], [], []>} : vector<32x64xf32>, vector<64x64xf32>, vector<32x64xf32> -> vector<32x64xf32>
    %cst_87 = arith.constant dense<0.000000e+00> : vector<32x64xf32>
    %97 = tpu.matmul %91, %13, %cst_87 {dimension_numbers = #tpu.dot_dimension_numbers<[1], [0], [0], [1], [0, 0, 1, 1], [], []>} : vector<32x64xf32>, vector<64x64xf32>, vector<32x64xf32> -> vector<32x64xf32>
    %cst_88 = arith.constant dense<0.000000e+00> : vector<32x64xf32>
    %98 = tpu.matmul %91, %15, %cst_88 {dimension_numbers = #tpu.dot_dimension_numbers<[1], [0], [0], [1], [0, 0, 1, 1], [], []>} : vector<32x64xf32>, vector<64x64xf32>, vector<32x64xf32> -> vector<32x64xf32>
    %cst_89 = arith.constant dense<0.000000e+00> : vector<32x64xf32>
    %99 = tpu.matmul %91, %17, %cst_89 {dimension_numbers = #tpu.dot_dimension_numbers<[1], [0], [0], [1], [0, 0, 1, 1], [], []>} : vector<32x64xf32>, vector<64x64xf32>, vector<32x64xf32> -> vector<32x64xf32>
    %cst_90 = arith.constant dense<0.000000e+00> : vector<32x64xf32>
    %100 = tpu.matmul %91, %19, %cst_90 {dimension_numbers = #tpu.dot_dimension_numbers<[1], [0], [0], [1], [0, 0, 1, 1], [], []>} : vector<32x64xf32>, vector<64x64xf32>, vector<32x64xf32> -> vector<32x64xf32>
    %101 = tpu.concatenate %92, %93, %94, %95, %96, %97, %98, %99, %100 in 0 : vector<32x64xf32>, vector<32x64xf32>, vector<32x64xf32>, vector<32x64xf32>, vector<32x64xf32>, vector<32x64xf32>, vector<32x64xf32>, vector<32x64xf32>, vector<32x64xf32> -> vector<288x64xf32>
    %c0_91 = arith.constant 0 : index
    %c0_92 = arith.constant 0 : index
    %102 = vector.load %arg6[%c0_91, %c0_92] : memref<32x288xf32, #tpu.memory_space<vmem>>, vector<32x288xf32>
    %cst_93 = arith.constant dense<0.000000e+00> : vector<32x64xf32>
    %103 = tpu.matmul %102, %101, %cst_93 {dimension_numbers = #tpu.dot_dimension_numbers<[1], [0], [0], [1], [0, 0, 1, 1], [], []>} : vector<32x288xf32>, vector<288x64xf32>, vector<32x64xf32> -> vector<32x64xf32>
    %c0_94 = arith.constant 0 : index
    %c0_95 = arith.constant 0 : index
    %104 = vector.load %arg7[%c0_94, %c0_95] : memref<32x1xf32, #tpu.memory_space<vmem>>, vector<32x1xf32>
    %105 = vector.broadcast %104 : vector<32x1xf32> to vector<32x64xf32>
    %106 = arith.addf %103, %105 : vector<32x64xf32>
    %cst_96 = arith.constant 0.000000e+00 : f32
    %107 = vector.broadcast %cst_96 : f32 to vector<32x64xf32>
    %108 = arith.maximumf %106, %107 : vector<32x64xf32>
    %cst_97 = arith.constant dense<0.000000e+00> : vector<32x64xf32>
    %109 = tpu.matmul %108, %3, %cst_97 {dimension_numbers = #tpu.dot_dimension_numbers<[1], [0], [0], [1], [0, 0, 1, 1], [], []>} : vector<32x64xf32>, vector<64x64xf32>, vector<32x64xf32> -> vector<32x64xf32>
    %cst_98 = arith.constant dense<0.000000e+00> : vector<32x64xf32>
    %110 = tpu.matmul %108, %5, %cst_98 {dimension_numbers = #tpu.dot_dimension_numbers<[1], [0], [0], [1], [0, 0, 1, 1], [], []>} : vector<32x64xf32>, vector<64x64xf32>, vector<32x64xf32> -> vector<32x64xf32>
    %cst_99 = arith.constant dense<0.000000e+00> : vector<32x64xf32>
    %111 = tpu.matmul %108, %7, %cst_99 {dimension_numbers = #tpu.dot_dimension_numbers<[1], [0], [0], [1], [0, 0, 1, 1], [], []>} : vector<32x64xf32>, vector<64x64xf32>, vector<32x64xf32> -> vector<32x64xf32>
    %cst_100 = arith.constant dense<0.000000e+00> : vector<32x64xf32>
    %112 = tpu.matmul %108, %9, %cst_100 {dimension_numbers = #tpu.dot_dimension_numbers<[1], [0], [0], [1], [0, 0, 1, 1], [], []>} : vector<32x64xf32>, vector<64x64xf32>, vector<32x64xf32> -> vector<32x64xf32>
    %cst_101 = arith.constant dense<0.000000e+00> : vector<32x64xf32>
    %113 = tpu.matmul %108, %11, %cst_101 {dimension_numbers = #tpu.dot_dimension_numbers<[1], [0], [0], [1], [0, 0, 1, 1], [], []>} : vector<32x64xf32>, vector<64x64xf32>, vector<32x64xf32> -> vector<32x64xf32>
    %cst_102 = arith.constant dense<0.000000e+00> : vector<32x64xf32>
    %114 = tpu.matmul %108, %13, %cst_102 {dimension_numbers = #tpu.dot_dimension_numbers<[1], [0], [0], [1], [0, 0, 1, 1], [], []>} : vector<32x64xf32>, vector<64x64xf32>, vector<32x64xf32> -> vector<32x64xf32>
    %cst_103 = arith.constant dense<0.000000e+00> : vector<32x64xf32>
    %115 = tpu.matmul %108, %15, %cst_103 {dimension_numbers = #tpu.dot_dimension_numbers<[1], [0], [0], [1], [0, 0, 1, 1], [], []>} : vector<32x64xf32>, vector<64x64xf32>, vector<32x64xf32> -> vector<32x64xf32>
    %cst_104 = arith.constant dense<0.000000e+00> : vector<32x64xf32>
    %116 = tpu.matmul %108, %17, %cst_104 {dimension_numbers = #tpu.dot_dimension_numbers<[1], [0], [0], [1], [0, 0, 1, 1], [], []>} : vector<32x64xf32>, vector<64x64xf32>, vector<32x64xf32> -> vector<32x64xf32>
    %cst_105 = arith.constant dense<0.000000e+00> : vector<32x64xf32>
    %117 = tpu.matmul %108, %19, %cst_105 {dimension_numbers = #tpu.dot_dimension_numbers<[1], [0], [0], [1], [0, 0, 1, 1], [], []>} : vector<32x64xf32>, vector<64x64xf32>, vector<32x64xf32> -> vector<32x64xf32>
    %118 = tpu.concatenate %109, %110, %111, %112, %113, %114, %115, %116, %117 in 0 : vector<32x64xf32>, vector<32x64xf32>, vector<32x64xf32>, vector<32x64xf32>, vector<32x64xf32>, vector<32x64xf32>, vector<32x64xf32>, vector<32x64xf32>, vector<32x64xf32> -> vector<288x64xf32>
    %c0_106 = arith.constant 0 : index
    %c0_107 = arith.constant 0 : index
    %119 = vector.load %arg8[%c0_106, %c0_107] : memref<32x288xf32, #tpu.memory_space<vmem>>, vector<32x288xf32>
    %cst_108 = arith.constant dense<0.000000e+00> : vector<32x64xf32>
    %120 = tpu.matmul %119, %118, %cst_108 {dimension_numbers = #tpu.dot_dimension_numbers<[1], [0], [0], [1], [0, 0, 1, 1], [], []>} : vector<32x288xf32>, vector<288x64xf32>, vector<32x64xf32> -> vector<32x64xf32>
    %c0_109 = arith.constant 0 : index
    %c0_110 = arith.constant 0 : index
    %121 = vector.load %arg9[%c0_109, %c0_110] : memref<32x1xf32, #tpu.memory_space<vmem>>, vector<32x1xf32>
    %122 = vector.broadcast %121 : vector<32x1xf32> to vector<32x64xf32>
    %123 = arith.addf %120, %122 : vector<32x64xf32>
    %cst_111 = arith.constant 0.000000e+00 : f32
    %124 = vector.broadcast %cst_111 : f32 to vector<32x64xf32>
    %125 = arith.maximumf %123, %124 : vector<32x64xf32>
    %126 = vector.shape_cast %72 : vector<32x64xf32> to vector<1x32x64xf32>
    %127 = vector.shape_cast %125 : vector<32x64xf32> to vector<1x32x64xf32>
    %128 = tpu.concatenate %126, %127 in 0 : vector<1x32x64xf32>, vector<1x32x64xf32> -> vector<2x32x64xf32>
    %129 = vector.extract_strided_slice %128 {offsets = [0, 0, 0], sizes = [2, 1, 64], strides = [1, 1, 1]} : vector<2x32x64xf32> to vector<2x1x64xf32>
    %130 = vector.shape_cast %129 : vector<2x1x64xf32> to vector<2x64xf32>
    %c0_112 = arith.constant 0 : index
    %c0_113 = arith.constant 0 : index
    %c0_114 = arith.constant 0 : index
    %131 = vector.load %arg10[%c0_112, %c0_113, %c0_114] : memref<32x64x16xf32, #tpu.memory_space<vmem>>, vector<1x64x16xf32>
    %132 = vector.shape_cast %131 : vector<1x64x16xf32> to vector<64x16xf32>
    %cst_115 = arith.constant dense<0.000000e+00> : vector<2x16xf32>
    %133 = tpu.matmul %130, %132, %cst_115 {dimension_numbers = #tpu.dot_dimension_numbers<[1], [0], [0], [1], [0, 0, 1, 1], [], []>} : vector<2x64xf32>, vector<64x16xf32>, vector<2x16xf32> -> vector<2x16xf32>
    %134 = vector.extract_strided_slice %128 {offsets = [0, 1, 0], sizes = [2, 1, 64], strides = [1, 1, 1]} : vector<2x32x64xf32> to vector<2x1x64xf32>
    %135 = vector.shape_cast %134 : vector<2x1x64xf32> to vector<2x64xf32>
    %c1_116 = arith.constant 1 : index
    %c0_117 = arith.constant 0 : index
    %c0_118 = arith.constant 0 : index
    %136 = vector.load %arg10[%c1_116, %c0_117, %c0_118] : memref<32x64x16xf32, #tpu.memory_space<vmem>>, vector<1x64x16xf32>
    %137 = vector.shape_cast %136 : vector<1x64x16xf32> to vector<64x16xf32>
    %cst_119 = arith.constant dense<0.000000e+00> : vector<2x16xf32>
    %138 = tpu.matmul %135, %137, %cst_119 {dimension_numbers = #tpu.dot_dimension_numbers<[1], [0], [0], [1], [0, 0, 1, 1], [], []>} : vector<2x64xf32>, vector<64x16xf32>, vector<2x16xf32> -> vector<2x16xf32>
    %139 = arith.addf %133, %138 : vector<2x16xf32>
    %140 = vector.extract_strided_slice %128 {offsets = [0, 2, 0], sizes = [2, 1, 64], strides = [1, 1, 1]} : vector<2x32x64xf32> to vector<2x1x64xf32>
    %141 = vector.shape_cast %140 : vector<2x1x64xf32> to vector<2x64xf32>
    %c2_120 = arith.constant 2 : index
    %c0_121 = arith.constant 0 : index
    %c0_122 = arith.constant 0 : index
    %142 = vector.load %arg10[%c2_120, %c0_121, %c0_122] : memref<32x64x16xf32, #tpu.memory_space<vmem>>, vector<1x64x16xf32>
    %143 = vector.shape_cast %142 : vector<1x64x16xf32> to vector<64x16xf32>
    %cst_123 = arith.constant dense<0.000000e+00> : vector<2x16xf32>
    %144 = tpu.matmul %141, %143, %cst_123 {dimension_numbers = #tpu.dot_dimension_numbers<[1], [0], [0], [1], [0, 0, 1, 1], [], []>} : vector<2x64xf32>, vector<64x16xf32>, vector<2x16xf32> -> vector<2x16xf32>
    %145 = arith.addf %139, %144 : vector<2x16xf32>
    %146 = vector.extract_strided_slice %128 {offsets = [0, 3, 0], sizes = [2, 1, 64], strides = [1, 1, 1]} : vector<2x32x64xf32> to vector<2x1x64xf32>
    %147 = vector.shape_cast %146 : vector<2x1x64xf32> to vector<2x64xf32>
    %c3_124 = arith.constant 3 : index
    %c0_125 = arith.constant 0 : index
    %c0_126 = arith.constant 0 : index
    %148 = vector.load %arg10[%c3_124, %c0_125, %c0_126] : memref<32x64x16xf32, #tpu.memory_space<vmem>>, vector<1x64x16xf32>
    %149 = vector.shape_cast %148 : vector<1x64x16xf32> to vector<64x16xf32>
    %cst_127 = arith.constant dense<0.000000e+00> : vector<2x16xf32>
    %150 = tpu.matmul %147, %149, %cst_127 {dimension_numbers = #tpu.dot_dimension_numbers<[1], [0], [0], [1], [0, 0, 1, 1], [], []>} : vector<2x64xf32>, vector<64x16xf32>, vector<2x16xf32> -> vector<2x16xf32>
    %151 = arith.addf %145, %150 : vector<2x16xf32>
    %152 = vector.extract_strided_slice %128 {offsets = [0, 4, 0], sizes = [2, 1, 64], strides = [1, 1, 1]} : vector<2x32x64xf32> to vector<2x1x64xf32>
    %153 = vector.shape_cast %152 : vector<2x1x64xf32> to vector<2x64xf32>
    %c4_128 = arith.constant 4 : index
    %c0_129 = arith.constant 0 : index
    %c0_130 = arith.constant 0 : index
    %154 = vector.load %arg10[%c4_128, %c0_129, %c0_130] : memref<32x64x16xf32, #tpu.memory_space<vmem>>, vector<1x64x16xf32>
    %155 = vector.shape_cast %154 : vector<1x64x16xf32> to vector<64x16xf32>
    %cst_131 = arith.constant dense<0.000000e+00> : vector<2x16xf32>
    %156 = tpu.matmul %153, %155, %cst_131 {dimension_numbers = #tpu.dot_dimension_numbers<[1], [0], [0], [1], [0, 0, 1, 1], [], []>} : vector<2x64xf32>, vector<64x16xf32>, vector<2x16xf32> -> vector<2x16xf32>
    %157 = arith.addf %151, %156 : vector<2x16xf32>
    %158 = vector.extract_strided_slice %128 {offsets = [0, 5, 0], sizes = [2, 1, 64], strides = [1, 1, 1]} : vector<2x32x64xf32> to vector<2x1x64xf32>
    %159 = vector.shape_cast %158 : vector<2x1x64xf32> to vector<2x64xf32>
    %c5_132 = arith.constant 5 : index
    %c0_133 = arith.constant 0 : index
    %c0_134 = arith.constant 0 : index
    %160 = vector.load %arg10[%c5_132, %c0_133, %c0_134] : memref<32x64x16xf32, #tpu.memory_space<vmem>>, vector<1x64x16xf32>
    %161 = vector.shape_cast %160 : vector<1x64x16xf32> to vector<64x16xf32>
    %cst_135 = arith.constant dense<0.000000e+00> : vector<2x16xf32>
    %162 = tpu.matmul %159, %161, %cst_135 {dimension_numbers = #tpu.dot_dimension_numbers<[1], [0], [0], [1], [0, 0, 1, 1], [], []>} : vector<2x64xf32>, vector<64x16xf32>, vector<2x16xf32> -> vector<2x16xf32>
    %163 = arith.addf %157, %162 : vector<2x16xf32>
    %164 = vector.extract_strided_slice %128 {offsets = [0, 6, 0], sizes = [2, 1, 64], strides = [1, 1, 1]} : vector<2x32x64xf32> to vector<2x1x64xf32>
    %165 = vector.shape_cast %164 : vector<2x1x64xf32> to vector<2x64xf32>
    %c6_136 = arith.constant 6 : index
    %c0_137 = arith.constant 0 : index
    %c0_138 = arith.constant 0 : index
    %166 = vector.load %arg10[%c6_136, %c0_137, %c0_138] : memref<32x64x16xf32, #tpu.memory_space<vmem>>, vector<1x64x16xf32>
    %167 = vector.shape_cast %166 : vector<1x64x16xf32> to vector<64x16xf32>
    %cst_139 = arith.constant dense<0.000000e+00> : vector<2x16xf32>
    %168 = tpu.matmul %165, %167, %cst_139 {dimension_numbers = #tpu.dot_dimension_numbers<[1], [0], [0], [1], [0, 0, 1, 1], [], []>} : vector<2x64xf32>, vector<64x16xf32>, vector<2x16xf32> -> vector<2x16xf32>
    %169 = arith.addf %163, %168 : vector<2x16xf32>
    %170 = vector.extract_strided_slice %128 {offsets = [0, 7, 0], sizes = [2, 1, 64], strides = [1, 1, 1]} : vector<2x32x64xf32> to vector<2x1x64xf32>
    %171 = vector.shape_cast %170 : vector<2x1x64xf32> to vector<2x64xf32>
    %c7_140 = arith.constant 7 : index
    %c0_141 = arith.constant 0 : index
    %c0_142 = arith.constant 0 : index
    %172 = vector.load %arg10[%c7_140, %c0_141, %c0_142] : memref<32x64x16xf32, #tpu.memory_space<vmem>>, vector<1x64x16xf32>
    %173 = vector.shape_cast %172 : vector<1x64x16xf32> to vector<64x16xf32>
    %cst_143 = arith.constant dense<0.000000e+00> : vector<2x16xf32>
    %174 = tpu.matmul %171, %173, %cst_143 {dimension_numbers = #tpu.dot_dimension_numbers<[1], [0], [0], [1], [0, 0, 1, 1], [], []>} : vector<2x64xf32>, vector<64x16xf32>, vector<2x16xf32> -> vector<2x16xf32>
    %175 = arith.addf %169, %174 : vector<2x16xf32>
    %176 = vector.extract_strided_slice %128 {offsets = [0, 8, 0], sizes = [2, 1, 64], strides = [1, 1, 1]} : vector<2x32x64xf32> to vector<2x1x64xf32>
    %177 = vector.shape_cast %176 : vector<2x1x64xf32> to vector<2x64xf32>
    %c8_144 = arith.constant 8 : index
    %c0_145 = arith.constant 0 : index
    %c0_146 = arith.constant 0 : index
    %178 = vector.load %arg10[%c8_144, %c0_145, %c0_146] : memref<32x64x16xf32, #tpu.memory_space<vmem>>, vector<1x64x16xf32>
    %179 = vector.shape_cast %178 : vector<1x64x16xf32> to vector<64x16xf32>
    %cst_147 = arith.constant dense<0.000000e+00> : vector<2x16xf32>
    %180 = tpu.matmul %177, %179, %cst_147 {dimension_numbers = #tpu.dot_dimension_numbers<[1], [0], [0], [1], [0, 0, 1, 1], [], []>} : vector<2x64xf32>, vector<64x16xf32>, vector<2x16xf32> -> vector<2x16xf32>
    %181 = arith.addf %175, %180 : vector<2x16xf32>
    %182 = vector.extract_strided_slice %128 {offsets = [0, 9, 0], sizes = [2, 1, 64], strides = [1, 1, 1]} : vector<2x32x64xf32> to vector<2x1x64xf32>
    %183 = vector.shape_cast %182 : vector<2x1x64xf32> to vector<2x64xf32>
    %c9 = arith.constant 9 : index
    %c0_148 = arith.constant 0 : index
    %c0_149 = arith.constant 0 : index
    %184 = vector.load %arg10[%c9, %c0_148, %c0_149] : memref<32x64x16xf32, #tpu.memory_space<vmem>>, vector<1x64x16xf32>
    %185 = vector.shape_cast %184 : vector<1x64x16xf32> to vector<64x16xf32>
    %cst_150 = arith.constant dense<0.000000e+00> : vector<2x16xf32>
    %186 = tpu.matmul %183, %185, %cst_150 {dimension_numbers = #tpu.dot_dimension_numbers<[1], [0], [0], [1], [0, 0, 1, 1], [], []>} : vector<2x64xf32>, vector<64x16xf32>, vector<2x16xf32> -> vector<2x16xf32>
    %187 = arith.addf %181, %186 : vector<2x16xf32>
    %188 = vector.extract_strided_slice %128 {offsets = [0, 10, 0], sizes = [2, 1, 64], strides = [1, 1, 1]} : vector<2x32x64xf32> to vector<2x1x64xf32>
    %189 = vector.shape_cast %188 : vector<2x1x64xf32> to vector<2x64xf32>
    %c10 = arith.constant 10 : index
    %c0_151 = arith.constant 0 : index
    %c0_152 = arith.constant 0 : index
    %190 = vector.load %arg10[%c10, %c0_151, %c0_152] : memref<32x64x16xf32, #tpu.memory_space<vmem>>, vector<1x64x16xf32>
    %191 = vector.shape_cast %190 : vector<1x64x16xf32> to vector<64x16xf32>
    %cst_153 = arith.constant dense<0.000000e+00> : vector<2x16xf32>
    %192 = tpu.matmul %189, %191, %cst_153 {dimension_numbers = #tpu.dot_dimension_numbers<[1], [0], [0], [1], [0, 0, 1, 1], [], []>} : vector<2x64xf32>, vector<64x16xf32>, vector<2x16xf32> -> vector<2x16xf32>
    %193 = arith.addf %187, %192 : vector<2x16xf32>
    %194 = vector.extract_strided_slice %128 {offsets = [0, 11, 0], sizes = [2, 1, 64], strides = [1, 1, 1]} : vector<2x32x64xf32> to vector<2x1x64xf32>
    %195 = vector.shape_cast %194 : vector<2x1x64xf32> to vector<2x64xf32>
    %c11 = arith.constant 11 : index
    %c0_154 = arith.constant 0 : index
    %c0_155 = arith.constant 0 : index
    %196 = vector.load %arg10[%c11, %c0_154, %c0_155] : memref<32x64x16xf32, #tpu.memory_space<vmem>>, vector<1x64x16xf32>
    %197 = vector.shape_cast %196 : vector<1x64x16xf32> to vector<64x16xf32>
    %cst_156 = arith.constant dense<0.000000e+00> : vector<2x16xf32>
    %198 = tpu.matmul %195, %197, %cst_156 {dimension_numbers = #tpu.dot_dimension_numbers<[1], [0], [0], [1], [0, 0, 1, 1], [], []>} : vector<2x64xf32>, vector<64x16xf32>, vector<2x16xf32> -> vector<2x16xf32>
    %199 = arith.addf %193, %198 : vector<2x16xf32>
    %200 = vector.extract_strided_slice %128 {offsets = [0, 12, 0], sizes = [2, 1, 64], strides = [1, 1, 1]} : vector<2x32x64xf32> to vector<2x1x64xf32>
    %201 = vector.shape_cast %200 : vector<2x1x64xf32> to vector<2x64xf32>
    %c12 = arith.constant 12 : index
    %c0_157 = arith.constant 0 : index
    %c0_158 = arith.constant 0 : index
    %202 = vector.load %arg10[%c12, %c0_157, %c0_158] : memref<32x64x16xf32, #tpu.memory_space<vmem>>, vector<1x64x16xf32>
    %203 = vector.shape_cast %202 : vector<1x64x16xf32> to vector<64x16xf32>
    %cst_159 = arith.constant dense<0.000000e+00> : vector<2x16xf32>
    %204 = tpu.matmul %201, %203, %cst_159 {dimension_numbers = #tpu.dot_dimension_numbers<[1], [0], [0], [1], [0, 0, 1, 1], [], []>} : vector<2x64xf32>, vector<64x16xf32>, vector<2x16xf32> -> vector<2x16xf32>
    %205 = arith.addf %199, %204 : vector<2x16xf32>
    %206 = vector.extract_strided_slice %128 {offsets = [0, 13, 0], sizes = [2, 1, 64], strides = [1, 1, 1]} : vector<2x32x64xf32> to vector<2x1x64xf32>
    %207 = vector.shape_cast %206 : vector<2x1x64xf32> to vector<2x64xf32>
    %c13 = arith.constant 13 : index
    %c0_160 = arith.constant 0 : index
    %c0_161 = arith.constant 0 : index
    %208 = vector.load %arg10[%c13, %c0_160, %c0_161] : memref<32x64x16xf32, #tpu.memory_space<vmem>>, vector<1x64x16xf32>
    %209 = vector.shape_cast %208 : vector<1x64x16xf32> to vector<64x16xf32>
    %cst_162 = arith.constant dense<0.000000e+00> : vector<2x16xf32>
    %210 = tpu.matmul %207, %209, %cst_162 {dimension_numbers = #tpu.dot_dimension_numbers<[1], [0], [0], [1], [0, 0, 1, 1], [], []>} : vector<2x64xf32>, vector<64x16xf32>, vector<2x16xf32> -> vector<2x16xf32>
    %211 = arith.addf %205, %210 : vector<2x16xf32>
    %212 = vector.extract_strided_slice %128 {offsets = [0, 14, 0], sizes = [2, 1, 64], strides = [1, 1, 1]} : vector<2x32x64xf32> to vector<2x1x64xf32>
    %213 = vector.shape_cast %212 : vector<2x1x64xf32> to vector<2x64xf32>
    %c14 = arith.constant 14 : index
    %c0_163 = arith.constant 0 : index
    %c0_164 = arith.constant 0 : index
    %214 = vector.load %arg10[%c14, %c0_163, %c0_164] : memref<32x64x16xf32, #tpu.memory_space<vmem>>, vector<1x64x16xf32>
    %215 = vector.shape_cast %214 : vector<1x64x16xf32> to vector<64x16xf32>
    %cst_165 = arith.constant dense<0.000000e+00> : vector<2x16xf32>
    %216 = tpu.matmul %213, %215, %cst_165 {dimension_numbers = #tpu.dot_dimension_numbers<[1], [0], [0], [1], [0, 0, 1, 1], [], []>} : vector<2x64xf32>, vector<64x16xf32>, vector<2x16xf32> -> vector<2x16xf32>
    %217 = arith.addf %211, %216 : vector<2x16xf32>
    %218 = vector.extract_strided_slice %128 {offsets = [0, 15, 0], sizes = [2, 1, 64], strides = [1, 1, 1]} : vector<2x32x64xf32> to vector<2x1x64xf32>
    %219 = vector.shape_cast %218 : vector<2x1x64xf32> to vector<2x64xf32>
    %c15 = arith.constant 15 : index
    %c0_166 = arith.constant 0 : index
    %c0_167 = arith.constant 0 : index
    %220 = vector.load %arg10[%c15, %c0_166, %c0_167] : memref<32x64x16xf32, #tpu.memory_space<vmem>>, vector<1x64x16xf32>
    %221 = vector.shape_cast %220 : vector<1x64x16xf32> to vector<64x16xf32>
    %cst_168 = arith.constant dense<0.000000e+00> : vector<2x16xf32>
    %222 = tpu.matmul %219, %221, %cst_168 {dimension_numbers = #tpu.dot_dimension_numbers<[1], [0], [0], [1], [0, 0, 1, 1], [], []>} : vector<2x64xf32>, vector<64x16xf32>, vector<2x16xf32> -> vector<2x16xf32>
    %223 = arith.addf %217, %222 : vector<2x16xf32>
    %224 = vector.extract_strided_slice %128 {offsets = [0, 16, 0], sizes = [2, 1, 64], strides = [1, 1, 1]} : vector<2x32x64xf32> to vector<2x1x64xf32>
    %225 = vector.shape_cast %224 : vector<2x1x64xf32> to vector<2x64xf32>
    %c16 = arith.constant 16 : index
    %c0_169 = arith.constant 0 : index
    %c0_170 = arith.constant 0 : index
    %226 = vector.load %arg10[%c16, %c0_169, %c0_170] : memref<32x64x16xf32, #tpu.memory_space<vmem>>, vector<1x64x16xf32>
    %227 = vector.shape_cast %226 : vector<1x64x16xf32> to vector<64x16xf32>
    %cst_171 = arith.constant dense<0.000000e+00> : vector<2x16xf32>
    %228 = tpu.matmul %225, %227, %cst_171 {dimension_numbers = #tpu.dot_dimension_numbers<[1], [0], [0], [1], [0, 0, 1, 1], [], []>} : vector<2x64xf32>, vector<64x16xf32>, vector<2x16xf32> -> vector<2x16xf32>
    %229 = arith.addf %223, %228 : vector<2x16xf32>
    %230 = vector.extract_strided_slice %128 {offsets = [0, 17, 0], sizes = [2, 1, 64], strides = [1, 1, 1]} : vector<2x32x64xf32> to vector<2x1x64xf32>
    %231 = vector.shape_cast %230 : vector<2x1x64xf32> to vector<2x64xf32>
    %c17 = arith.constant 17 : index
    %c0_172 = arith.constant 0 : index
    %c0_173 = arith.constant 0 : index
    %232 = vector.load %arg10[%c17, %c0_172, %c0_173] : memref<32x64x16xf32, #tpu.memory_space<vmem>>, vector<1x64x16xf32>
    %233 = vector.shape_cast %232 : vector<1x64x16xf32> to vector<64x16xf32>
    %cst_174 = arith.constant dense<0.000000e+00> : vector<2x16xf32>
    %234 = tpu.matmul %231, %233, %cst_174 {dimension_numbers = #tpu.dot_dimension_numbers<[1], [0], [0], [1], [0, 0, 1, 1], [], []>} : vector<2x64xf32>, vector<64x16xf32>, vector<2x16xf32> -> vector<2x16xf32>
    %235 = arith.addf %229, %234 : vector<2x16xf32>
    %236 = vector.extract_strided_slice %128 {offsets = [0, 18, 0], sizes = [2, 1, 64], strides = [1, 1, 1]} : vector<2x32x64xf32> to vector<2x1x64xf32>
    %237 = vector.shape_cast %236 : vector<2x1x64xf32> to vector<2x64xf32>
    %c18 = arith.constant 18 : index
    %c0_175 = arith.constant 0 : index
    %c0_176 = arith.constant 0 : index
    %238 = vector.load %arg10[%c18, %c0_175, %c0_176] : memref<32x64x16xf32, #tpu.memory_space<vmem>>, vector<1x64x16xf32>
    %239 = vector.shape_cast %238 : vector<1x64x16xf32> to vector<64x16xf32>
    %cst_177 = arith.constant dense<0.000000e+00> : vector<2x16xf32>
    %240 = tpu.matmul %237, %239, %cst_177 {dimension_numbers = #tpu.dot_dimension_numbers<[1], [0], [0], [1], [0, 0, 1, 1], [], []>} : vector<2x64xf32>, vector<64x16xf32>, vector<2x16xf32> -> vector<2x16xf32>
    %241 = arith.addf %235, %240 : vector<2x16xf32>
    %242 = vector.extract_strided_slice %128 {offsets = [0, 19, 0], sizes = [2, 1, 64], strides = [1, 1, 1]} : vector<2x32x64xf32> to vector<2x1x64xf32>
    %243 = vector.shape_cast %242 : vector<2x1x64xf32> to vector<2x64xf32>
    %c19 = arith.constant 19 : index
    %c0_178 = arith.constant 0 : index
    %c0_179 = arith.constant 0 : index
    %244 = vector.load %arg10[%c19, %c0_178, %c0_179] : memref<32x64x16xf32, #tpu.memory_space<vmem>>, vector<1x64x16xf32>
    %245 = vector.shape_cast %244 : vector<1x64x16xf32> to vector<64x16xf32>
    %cst_180 = arith.constant dense<0.000000e+00> : vector<2x16xf32>
    %246 = tpu.matmul %243, %245, %cst_180 {dimension_numbers = #tpu.dot_dimension_numbers<[1], [0], [0], [1], [0, 0, 1, 1], [], []>} : vector<2x64xf32>, vector<64x16xf32>, vector<2x16xf32> -> vector<2x16xf32>
    %247 = arith.addf %241, %246 : vector<2x16xf32>
    %248 = vector.extract_strided_slice %128 {offsets = [0, 20, 0], sizes = [2, 1, 64], strides = [1, 1, 1]} : vector<2x32x64xf32> to vector<2x1x64xf32>
    %249 = vector.shape_cast %248 : vector<2x1x64xf32> to vector<2x64xf32>
    %c20 = arith.constant 20 : index
    %c0_181 = arith.constant 0 : index
    %c0_182 = arith.constant 0 : index
    %250 = vector.load %arg10[%c20, %c0_181, %c0_182] : memref<32x64x16xf32, #tpu.memory_space<vmem>>, vector<1x64x16xf32>
    %251 = vector.shape_cast %250 : vector<1x64x16xf32> to vector<64x16xf32>
    %cst_183 = arith.constant dense<0.000000e+00> : vector<2x16xf32>
    %252 = tpu.matmul %249, %251, %cst_183 {dimension_numbers = #tpu.dot_dimension_numbers<[1], [0], [0], [1], [0, 0, 1, 1], [], []>} : vector<2x64xf32>, vector<64x16xf32>, vector<2x16xf32> -> vector<2x16xf32>
    %253 = arith.addf %247, %252 : vector<2x16xf32>
    %254 = vector.extract_strided_slice %128 {offsets = [0, 21, 0], sizes = [2, 1, 64], strides = [1, 1, 1]} : vector<2x32x64xf32> to vector<2x1x64xf32>
    %255 = vector.shape_cast %254 : vector<2x1x64xf32> to vector<2x64xf32>
    %c21 = arith.constant 21 : index
    %c0_184 = arith.constant 0 : index
    %c0_185 = arith.constant 0 : index
    %256 = vector.load %arg10[%c21, %c0_184, %c0_185] : memref<32x64x16xf32, #tpu.memory_space<vmem>>, vector<1x64x16xf32>
    %257 = vector.shape_cast %256 : vector<1x64x16xf32> to vector<64x16xf32>
    %cst_186 = arith.constant dense<0.000000e+00> : vector<2x16xf32>
    %258 = tpu.matmul %255, %257, %cst_186 {dimension_numbers = #tpu.dot_dimension_numbers<[1], [0], [0], [1], [0, 0, 1, 1], [], []>} : vector<2x64xf32>, vector<64x16xf32>, vector<2x16xf32> -> vector<2x16xf32>
    %259 = arith.addf %253, %258 : vector<2x16xf32>
    %260 = vector.extract_strided_slice %128 {offsets = [0, 22, 0], sizes = [2, 1, 64], strides = [1, 1, 1]} : vector<2x32x64xf32> to vector<2x1x64xf32>
    %261 = vector.shape_cast %260 : vector<2x1x64xf32> to vector<2x64xf32>
    %c22 = arith.constant 22 : index
    %c0_187 = arith.constant 0 : index
    %c0_188 = arith.constant 0 : index
    %262 = vector.load %arg10[%c22, %c0_187, %c0_188] : memref<32x64x16xf32, #tpu.memory_space<vmem>>, vector<1x64x16xf32>
    %263 = vector.shape_cast %262 : vector<1x64x16xf32> to vector<64x16xf32>
    %cst_189 = arith.constant dense<0.000000e+00> : vector<2x16xf32>
    %264 = tpu.matmul %261, %263, %cst_189 {dimension_numbers = #tpu.dot_dimension_numbers<[1], [0], [0], [1], [0, 0, 1, 1], [], []>} : vector<2x64xf32>, vector<64x16xf32>, vector<2x16xf32> -> vector<2x16xf32>
    %265 = arith.addf %259, %264 : vector<2x16xf32>
    %266 = vector.extract_strided_slice %128 {offsets = [0, 23, 0], sizes = [2, 1, 64], strides = [1, 1, 1]} : vector<2x32x64xf32> to vector<2x1x64xf32>
    %267 = vector.shape_cast %266 : vector<2x1x64xf32> to vector<2x64xf32>
    %c23 = arith.constant 23 : index
    %c0_190 = arith.constant 0 : index
    %c0_191 = arith.constant 0 : index
    %268 = vector.load %arg10[%c23, %c0_190, %c0_191] : memref<32x64x16xf32, #tpu.memory_space<vmem>>, vector<1x64x16xf32>
    %269 = vector.shape_cast %268 : vector<1x64x16xf32> to vector<64x16xf32>
    %cst_192 = arith.constant dense<0.000000e+00> : vector<2x16xf32>
    %270 = tpu.matmul %267, %269, %cst_192 {dimension_numbers = #tpu.dot_dimension_numbers<[1], [0], [0], [1], [0, 0, 1, 1], [], []>} : vector<2x64xf32>, vector<64x16xf32>, vector<2x16xf32> -> vector<2x16xf32>
    %271 = arith.addf %265, %270 : vector<2x16xf32>
    %272 = vector.extract_strided_slice %128 {offsets = [0, 24, 0], sizes = [2, 1, 64], strides = [1, 1, 1]} : vector<2x32x64xf32> to vector<2x1x64xf32>
    %273 = vector.shape_cast %272 : vector<2x1x64xf32> to vector<2x64xf32>
    %c24 = arith.constant 24 : index
    %c0_193 = arith.constant 0 : index
    %c0_194 = arith.constant 0 : index
    %274 = vector.load %arg10[%c24, %c0_193, %c0_194] : memref<32x64x16xf32, #tpu.memory_space<vmem>>, vector<1x64x16xf32>
    %275 = vector.shape_cast %274 : vector<1x64x16xf32> to vector<64x16xf32>
    %cst_195 = arith.constant dense<0.000000e+00> : vector<2x16xf32>
    %276 = tpu.matmul %273, %275, %cst_195 {dimension_numbers = #tpu.dot_dimension_numbers<[1], [0], [0], [1], [0, 0, 1, 1], [], []>} : vector<2x64xf32>, vector<64x16xf32>, vector<2x16xf32> -> vector<2x16xf32>
    %277 = arith.addf %271, %276 : vector<2x16xf32>
    %278 = vector.extract_strided_slice %128 {offsets = [0, 25, 0], sizes = [2, 1, 64], strides = [1, 1, 1]} : vector<2x32x64xf32> to vector<2x1x64xf32>
    %279 = vector.shape_cast %278 : vector<2x1x64xf32> to vector<2x64xf32>
    %c25 = arith.constant 25 : index
    %c0_196 = arith.constant 0 : index
    %c0_197 = arith.constant 0 : index
    %280 = vector.load %arg10[%c25, %c0_196, %c0_197] : memref<32x64x16xf32, #tpu.memory_space<vmem>>, vector<1x64x16xf32>
    %281 = vector.shape_cast %280 : vector<1x64x16xf32> to vector<64x16xf32>
    %cst_198 = arith.constant dense<0.000000e+00> : vector<2x16xf32>
    %282 = tpu.matmul %279, %281, %cst_198 {dimension_numbers = #tpu.dot_dimension_numbers<[1], [0], [0], [1], [0, 0, 1, 1], [], []>} : vector<2x64xf32>, vector<64x16xf32>, vector<2x16xf32> -> vector<2x16xf32>
    %283 = arith.addf %277, %282 : vector<2x16xf32>
    %284 = vector.extract_strided_slice %128 {offsets = [0, 26, 0], sizes = [2, 1, 64], strides = [1, 1, 1]} : vector<2x32x64xf32> to vector<2x1x64xf32>
    %285 = vector.shape_cast %284 : vector<2x1x64xf32> to vector<2x64xf32>
    %c26 = arith.constant 26 : index
    %c0_199 = arith.constant 0 : index
    %c0_200 = arith.constant 0 : index
    %286 = vector.load %arg10[%c26, %c0_199, %c0_200] : memref<32x64x16xf32, #tpu.memory_space<vmem>>, vector<1x64x16xf32>
    %287 = vector.shape_cast %286 : vector<1x64x16xf32> to vector<64x16xf32>
    %cst_201 = arith.constant dense<0.000000e+00> : vector<2x16xf32>
    %288 = tpu.matmul %285, %287, %cst_201 {dimension_numbers = #tpu.dot_dimension_numbers<[1], [0], [0], [1], [0, 0, 1, 1], [], []>} : vector<2x64xf32>, vector<64x16xf32>, vector<2x16xf32> -> vector<2x16xf32>
    %289 = arith.addf %283, %288 : vector<2x16xf32>
    %290 = vector.extract_strided_slice %128 {offsets = [0, 27, 0], sizes = [2, 1, 64], strides = [1, 1, 1]} : vector<2x32x64xf32> to vector<2x1x64xf32>
    %291 = vector.shape_cast %290 : vector<2x1x64xf32> to vector<2x64xf32>
    %c27 = arith.constant 27 : index
    %c0_202 = arith.constant 0 : index
    %c0_203 = arith.constant 0 : index
    %292 = vector.load %arg10[%c27, %c0_202, %c0_203] : memref<32x64x16xf32, #tpu.memory_space<vmem>>, vector<1x64x16xf32>
    %293 = vector.shape_cast %292 : vector<1x64x16xf32> to vector<64x16xf32>
    %cst_204 = arith.constant dense<0.000000e+00> : vector<2x16xf32>
    %294 = tpu.matmul %291, %293, %cst_204 {dimension_numbers = #tpu.dot_dimension_numbers<[1], [0], [0], [1], [0, 0, 1, 1], [], []>} : vector<2x64xf32>, vector<64x16xf32>, vector<2x16xf32> -> vector<2x16xf32>
    %295 = arith.addf %289, %294 : vector<2x16xf32>
    %296 = vector.extract_strided_slice %128 {offsets = [0, 28, 0], sizes = [2, 1, 64], strides = [1, 1, 1]} : vector<2x32x64xf32> to vector<2x1x64xf32>
    %297 = vector.shape_cast %296 : vector<2x1x64xf32> to vector<2x64xf32>
    %c28 = arith.constant 28 : index
    %c0_205 = arith.constant 0 : index
    %c0_206 = arith.constant 0 : index
    %298 = vector.load %arg10[%c28, %c0_205, %c0_206] : memref<32x64x16xf32, #tpu.memory_space<vmem>>, vector<1x64x16xf32>
    %299 = vector.shape_cast %298 : vector<1x64x16xf32> to vector<64x16xf32>
    %cst_207 = arith.constant dense<0.000000e+00> : vector<2x16xf32>
    %300 = tpu.matmul %297, %299, %cst_207 {dimension_numbers = #tpu.dot_dimension_numbers<[1], [0], [0], [1], [0, 0, 1, 1], [], []>} : vector<2x64xf32>, vector<64x16xf32>, vector<2x16xf32> -> vector<2x16xf32>
    %301 = arith.addf %295, %300 : vector<2x16xf32>
    %302 = vector.extract_strided_slice %128 {offsets = [0, 29, 0], sizes = [2, 1, 64], strides = [1, 1, 1]} : vector<2x32x64xf32> to vector<2x1x64xf32>
    %303 = vector.shape_cast %302 : vector<2x1x64xf32> to vector<2x64xf32>
    %c29 = arith.constant 29 : index
    %c0_208 = arith.constant 0 : index
    %c0_209 = arith.constant 0 : index
    %304 = vector.load %arg10[%c29, %c0_208, %c0_209] : memref<32x64x16xf32, #tpu.memory_space<vmem>>, vector<1x64x16xf32>
    %305 = vector.shape_cast %304 : vector<1x64x16xf32> to vector<64x16xf32>
    %cst_210 = arith.constant dense<0.000000e+00> : vector<2x16xf32>
    %306 = tpu.matmul %303, %305, %cst_210 {dimension_numbers = #tpu.dot_dimension_numbers<[1], [0], [0], [1], [0, 0, 1, 1], [], []>} : vector<2x64xf32>, vector<64x16xf32>, vector<2x16xf32> -> vector<2x16xf32>
    %307 = arith.addf %301, %306 : vector<2x16xf32>
    %308 = vector.extract_strided_slice %128 {offsets = [0, 30, 0], sizes = [2, 1, 64], strides = [1, 1, 1]} : vector<2x32x64xf32> to vector<2x1x64xf32>
    %309 = vector.shape_cast %308 : vector<2x1x64xf32> to vector<2x64xf32>
    %c30 = arith.constant 30 : index
    %c0_211 = arith.constant 0 : index
    %c0_212 = arith.constant 0 : index
    %310 = vector.load %arg10[%c30, %c0_211, %c0_212] : memref<32x64x16xf32, #tpu.memory_space<vmem>>, vector<1x64x16xf32>
    %311 = vector.shape_cast %310 : vector<1x64x16xf32> to vector<64x16xf32>
    %cst_213 = arith.constant dense<0.000000e+00> : vector<2x16xf32>
    %312 = tpu.matmul %309, %311, %cst_213 {dimension_numbers = #tpu.dot_dimension_numbers<[1], [0], [0], [1], [0, 0, 1, 1], [], []>} : vector<2x64xf32>, vector<64x16xf32>, vector<2x16xf32> -> vector<2x16xf32>
    %313 = arith.addf %307, %312 : vector<2x16xf32>
    %314 = vector.extract_strided_slice %128 {offsets = [0, 31, 0], sizes = [2, 1, 64], strides = [1, 1, 1]} : vector<2x32x64xf32> to vector<2x1x64xf32>
    %315 = vector.shape_cast %314 : vector<2x1x64xf32> to vector<2x64xf32>
    %c31 = arith.constant 31 : index
    %c0_214 = arith.constant 0 : index
    %c0_215 = arith.constant 0 : index
    %316 = vector.load %arg10[%c31, %c0_214, %c0_215] : memref<32x64x16xf32, #tpu.memory_space<vmem>>, vector<1x64x16xf32>
    %317 = vector.shape_cast %316 : vector<1x64x16xf32> to vector<64x16xf32>
    %cst_216 = arith.constant dense<0.000000e+00> : vector<2x16xf32>
    %318 = tpu.matmul %315, %317, %cst_216 {dimension_numbers = #tpu.dot_dimension_numbers<[1], [0], [0], [1], [0, 0, 1, 1], [], []>} : vector<2x64xf32>, vector<64x16xf32>, vector<2x16xf32> -> vector<2x16xf32>
    %319 = arith.addf %313, %318 : vector<2x16xf32>
    %c0_217 = arith.constant 0 : index
    %c0_218 = arith.constant 0 : index
    %320 = vector.load %arg11[%c0_217, %c0_218] : memref<1x16xf32, #tpu.memory_space<vmem>>, vector<1x16xf32>
    %321 = vector.broadcast %320 : vector<1x16xf32> to vector<2x16xf32>
    %322 = arith.addf %319, %321 : vector<2x16xf32>
    %cst_219 = arith.constant 0.000000e+00 : f32
    %323 = vector.broadcast %cst_219 : f32 to vector<2x16xf32>
    %324 = arith.maximumf %322, %323 : vector<2x16xf32>
    %c0_220 = arith.constant 0 : index
    %c0_221 = arith.constant 0 : index
    %325 = vector.load %arg12[%c0_220, %c0_221] : memref<8x16xf32, #tpu.memory_space<vmem>>, vector<8x16xf32>
    %cst_222 = arith.constant dense<0.000000e+00> : vector<2x16xf32>
    %326 = tpu.matmul %1, %325, %cst_222 {dimension_numbers = #tpu.dot_dimension_numbers<[1], [0], [0], [1], [0, 0, 1, 1], [], []>} : vector<2x8xf32>, vector<8x16xf32>, vector<2x16xf32> -> vector<2x16xf32>
    %c0_223 = arith.constant 0 : index
    %c0_224 = arith.constant 0 : index
    %327 = vector.load %arg13[%c0_223, %c0_224] : memref<16x16xf32, #tpu.memory_space<vmem>>, vector<16x16xf32>
    %cst_225 = arith.constant dense<0.000000e+00> : vector<2x16xf32>
    %328 = tpu.matmul %324, %327, %cst_225 {dimension_numbers = #tpu.dot_dimension_numbers<[1], [0], [0], [1], [0, 0, 1, 1], [], []>} : vector<2x16xf32>, vector<16x16xf32>, vector<2x16xf32> -> vector<2x16xf32>
    %329 = arith.addf %326, %328 : vector<2x16xf32>
    %c0_226 = arith.constant 0 : index
    %c0_227 = arith.constant 0 : index
    %330 = vector.load %arg14[%c0_226, %c0_227] : memref<1x16xf32, #tpu.memory_space<vmem>>, vector<1x16xf32>
    %331 = vector.broadcast %330 : vector<1x16xf32> to vector<2x16xf32>
    %332 = arith.addf %329, %331 : vector<2x16xf32>
    %333 = vector.shape_cast %332 : vector<2x16xf32> to vector<2x16x1xf32>
    %334 = vector.broadcast %333 : vector<2x16x1xf32> to vector<2x16x64xf32>
    %335 = arith.mulf %334, %0 : vector<2x16x64xf32>
    %cst_228 = arith.constant dense<0.000000e+00> : vector<2x64xf32>
    %336 = vector.multi_reduction <add>, %335, %cst_228 [1] : vector<2x16x64xf32> to vector<2x64xf32>
    %cst_229 = arith.constant dense<0xFF800000> : vector<2xf32>
    %337 = vector.multi_reduction <maximumf>, %336, %cst_229 [1] : vector<2x64xf32> to vector<2xf32>
    %338 = vector.shape_cast %337 : vector<2xf32> to vector<2x1xf32>
    %339 = vector.broadcast %338 : vector<2x1xf32> to vector<2x64xf32>
    %340 = arith.subf %336, %339 : vector<2x64xf32>
    %341 = math.exp %340 : vector<2x64xf32>
    %cst_230 = arith.constant dense<0.000000e+00> : vector<2xf32>
    %342 = vector.multi_reduction <add>, %341, %cst_230 [1] : vector<2x64xf32> to vector<2xf32>
    %343 = vector.shape_cast %342 : vector<2xf32> to vector<2x1xf32>
    %344 = tpu.reciprocal %343 {approx = true} : vector<2x1xf32> -> vector<2x1xf32>
    %345 = vector.broadcast %344 : vector<2x1xf32> to vector<2x64xf32>
    %346 = arith.mulf %341, %345 : vector<2x64xf32>
    %347 = vector.shape_cast %346 : vector<2x64xf32> to vector<2x1x64xf32>
    %348 = vector.broadcast %347 : vector<2x1x64xf32> to vector<2x16x64xf32>
    %349 = arith.mulf %348, %0 : vector<2x16x64xf32>
    %cst_231 = arith.constant dense<0.000000e+00> : vector<2x16xf32>
    %350 = vector.multi_reduction <add>, %349, %cst_231 [2] : vector<2x16x64xf32> to vector<2x16xf32>
    %351 = tpu.iota {dimensions = array<i32: 0>} : vector<2x1x64xi32>
    %352 = tpu.iota {dimensions = array<i32: 2>} : vector<2x1x64xi32>
    %c0_i32 = arith.constant 0 : i32
    %353 = vector.broadcast %c0_i32 : i32 to vector<2x1x64xi32>
    %c0_232 = arith.constant 0 : index
    %c0_233 = arith.constant 0 : index
    %354 = memref.load %arg0[%c0_232, %c0_233] : memref<2x2xi32, #tpu.memory_space<smem>>
    %c8_i32 = arith.constant 8 : i32
    %355 = arith.muli %354, %c8_i32 : i32
    %c0_234 = arith.constant 0 : index
    %c1_235 = arith.constant 1 : index
    %356 = memref.load %arg0[%c0_234, %c1_235] : memref<2x2xi32, #tpu.memory_space<smem>>
    %357 = arith.addi %355, %356 : i32
    %c0_i32_236 = arith.constant 0 : i32
    %358 = vector.broadcast %c0_i32_236 : i32 to vector<2x1x64xi32>
    %359 = arith.cmpi eq, %351, %358 : vector<2x1x64xi32>
    %360 = vector.broadcast %357 : i32 to vector<2x1x64xi32>
    %361 = arith.select %359, %360, %353 : vector<2x1x64xi1>, vector<2x1x64xi32>
    %c1_237 = arith.constant 1 : index
    %c0_238 = arith.constant 0 : index
    %362 = memref.load %arg0[%c1_237, %c0_238] : memref<2x2xi32, #tpu.memory_space<smem>>
    %c8_i32_239 = arith.constant 8 : i32
    %363 = arith.muli %362, %c8_i32_239 : i32
    %c1_240 = arith.constant 1 : index
    %c1_241 = arith.constant 1 : index
    %364 = memref.load %arg0[%c1_240, %c1_241] : memref<2x2xi32, #tpu.memory_space<smem>>
    %365 = arith.addi %363, %364 : i32
    %c1_i32 = arith.constant 1 : i32
    %366 = vector.broadcast %c1_i32 : i32 to vector<2x1x64xi32>
    %367 = arith.cmpi eq, %351, %366 : vector<2x1x64xi32>
    %368 = vector.broadcast %365 : i32 to vector<2x1x64xi32>
    %369 = arith.select %367, %368, %361 : vector<2x1x64xi1>, vector<2x1x64xi32>
    %370 = arith.cmpi eq, %352, %369 : vector<2x1x64xi32>
    %371 = arith.extui %370 : vector<2x1x64xi1> to vector<2x1x64xi32>
    %372 = arith.sitofp %371 : vector<2x1x64xi32> to vector<2x1x64xf32>
    %373 = vector.broadcast %372 : vector<2x1x64xf32> to vector<2x16x64xf32>
    %374 = arith.mulf %0, %373 : vector<2x16x64xf32>
    %cst_242 = arith.constant dense<0.000000e+00> : vector<2x16xf32>
    %375 = vector.multi_reduction <add>, %374, %cst_242 [2] : vector<2x16x64xf32> to vector<2x16xf32>
    %c0_243 = arith.constant 0 : index
    %c0_244 = arith.constant 0 : index
    %376 = vector.load %arg15[%c0_243, %c0_244] : memref<8x16xf32, #tpu.memory_space<vmem>>, vector<8x16xf32>
    %cst_245 = arith.constant dense<0.000000e+00> : vector<2x16xf32>
    %377 = tpu.matmul %1, %376, %cst_245 {dimension_numbers = #tpu.dot_dimension_numbers<[1], [0], [0], [1], [0, 0, 1, 1], [], []>} : vector<2x8xf32>, vector<8x16xf32>, vector<2x16xf32> -> vector<2x16xf32>
    %c0_246 = arith.constant 0 : index
    %c0_247 = arith.constant 0 : index
    %378 = vector.load %arg16[%c0_246, %c0_247] : memref<16x16xf32, #tpu.memory_space<vmem>>, vector<16x16xf32>
    %cst_248 = arith.constant dense<0.000000e+00> : vector<2x16xf32>
    %379 = tpu.matmul %324, %378, %cst_248 {dimension_numbers = #tpu.dot_dimension_numbers<[1], [0], [0], [1], [0, 0, 1, 1], [], []>} : vector<2x16xf32>, vector<16x16xf32>, vector<2x16xf32> -> vector<2x16xf32>
    %380 = arith.addf %377, %379 : vector<2x16xf32>
    %c0_249 = arith.constant 0 : index
    %c0_250 = arith.constant 0 : index
    %381 = vector.load %arg17[%c0_249, %c0_250] : memref<16x16xf32, #tpu.memory_space<vmem>>, vector<16x16xf32>
    %cst_251 = arith.constant dense<0.000000e+00> : vector<2x16xf32>
    %382 = tpu.matmul %350, %381, %cst_251 {dimension_numbers = #tpu.dot_dimension_numbers<[1], [0], [0], [1], [0, 0, 1, 1], [], []>} : vector<2x16xf32>, vector<16x16xf32>, vector<2x16xf32> -> vector<2x16xf32>
    %383 = arith.addf %380, %382 : vector<2x16xf32>
    %c0_252 = arith.constant 0 : index
    %c0_253 = arith.constant 0 : index
    %384 = vector.load %arg18[%c0_252, %c0_253] : memref<16x16xf32, #tpu.memory_space<vmem>>, vector<16x16xf32>
    %cst_254 = arith.constant dense<0.000000e+00> : vector<2x16xf32>
    %385 = tpu.matmul %375, %384, %cst_254 {dimension_numbers = #tpu.dot_dimension_numbers<[1], [0], [0], [1], [0, 0, 1, 1], [], []>} : vector<2x16xf32>, vector<16x16xf32>, vector<2x16xf32> -> vector<2x16xf32>
    %386 = arith.addf %383, %385 : vector<2x16xf32>
    %c0_255 = arith.constant 0 : index
    %c0_256 = arith.constant 0 : index
    %387 = vector.load %arg19[%c0_255, %c0_256] : memref<1x16xf32, #tpu.memory_space<vmem>>, vector<1x16xf32>
    %388 = vector.broadcast %387 : vector<1x16xf32> to vector<2x16xf32>
    %389 = arith.addf %386, %388 : vector<2x16xf32>
    %c0_257 = arith.constant 0 : index
    %c0_258 = arith.constant 0 : index
    %390 = vector.load %arg20[%c0_257, %c0_258] : memref<2x48xf32, #tpu.memory_space<vmem>>, vector<2x16xf32>
    tpu.vector_store %arg20[%c0_257, %c0_258], %324 {strides = array<i32>} : memref<2x48xf32, #tpu.memory_space<vmem>>, vector<2x16xf32>,
    %c0_259 = arith.constant 0 : index
    %c16_260 = arith.constant 16 : index
    %391 = vector.load %arg20[%c0_259, %c16_260] : memref<2x48xf32, #tpu.memory_space<vmem>>, vector<2x16xf32>
    tpu.vector_store %arg20[%c0_259, %c16_260], %350 {strides = array<i32>} : memref<2x48xf32, #tpu.memory_space<vmem>>, vector<2x16xf32>,
    %c0_261 = arith.constant 0 : index
    %c32 = arith.constant 32 : index
    %392 = vector.load %arg20[%c0_261, %c32] : memref<2x48xf32, #tpu.memory_space<vmem>>, vector<2x16xf32>
    tpu.vector_store %arg20[%c0_261, %c32], %389 {strides = array<i32>} : memref<2x48xf32, #tpu.memory_space<vmem>>, vector<2x16xf32>,
    %cst_262 = arith.constant 1.000000e+00 : f32
    %393 = vector.broadcast %cst_262 : f32 to vector<2x1x64xf32>
    %394 = arith.subf %393, %372 : vector<2x1x64xf32>
    %395 = vector.broadcast %394 : vector<2x1x64xf32> to vector<2x16x64xf32>
    %396 = arith.mulf %0, %395 : vector<2x16x64xf32>
    %397 = vector.shape_cast %389 : vector<2x16xf32> to vector<2x16x1xf32>
    %398 = vector.broadcast %397 : vector<2x16x1xf32> to vector<2x16x64xf32>
    %399 = vector.broadcast %372 : vector<2x1x64xf32> to vector<2x16x64xf32>
    %400 = arith.mulf %398, %399 : vector<2x16x64xf32>
    %401 = arith.addf %396, %400 : vector<2x16x64xf32>
    %c0_263 = arith.constant 0 : index
    %c0_264 = arith.constant 0 : index
    %c0_265 = arith.constant 0 : index
    %402 = vector.load %arg21[%c0_263, %c0_264, %c0_265] : memref<2x16x64xf32, #tpu.memory_space<vmem>>, vector<2x16x64xf32>
    tpu.vector_store %arg21[%c0_263, %c0_264, %c0_265], %401 {strides = array<i32>} : memref<2x16x64xf32, #tpu.memory_space<vmem>>, vector<2x16x64xf32>,
    return
  }
}

</mosaic_0001>

<llo_original>
// kernel: neural_map_forward.1
$region0: #{neural_map_forward.1}
  #allocation0 [shape = 'u32[]', space=smem, size = 0x4, offset = 0x4, fixed_abs, tag = 'smem constant byte address 0x4 - core index']
  #allocation1 [shape = 'u32[144,128]{1,0:T(1,128)}', space=vmem, size = 0x12000, scoped, tag = 'internal scratch']
  %s0 = inlined_call_operand.vmem [shape: s32[2,2], index: 0, kind: input, shape index: {}]
  %s1 = inlined_call_operand.vmem [shape: f32[2,8], index: 1, kind: input, shape index: {}]
  %s2 = inlined_call_operand.vmem [shape: f32[2,16,64], index: 2, kind: input, shape index: {}, may-alias: {2,21}]
  %s3 = inlined_call_operand.vmem [shape: f32[9,64,64], index: 3, kind: input, shape index: {}]
  %s4 = inlined_call_operand.vmem [shape: f32[32,144], index: 4, kind: input, shape index: {}]
  %s5 = inlined_call_operand.vmem [shape: f32[32,1], index: 5, kind: input, shape index: {}]
  %s6 = inlined_call_operand.vmem [shape: f32[32,288], index: 6, kind: input, shape index: {}]
  %s7 = inlined_call_operand.vmem [shape: f32[32,1], index: 7, kind: input, shape index: {}]
  %s8 = inlined_call_operand.vmem [shape: f32[32,288], index: 8, kind: input, shape index: {}]
  %s9 = inlined_call_operand.vmem [shape: f32[32,1], index: 9, kind: input, shape index: {}]
  %s10 = inlined_call_operand.vmem [shape: f32[32,64,16], index: 10, kind: input, shape index: {}]
  %s11 = inlined_call_operand.vmem [shape: f32[1,16], index: 11, kind: input, shape index: {}]
  %s12 = inlined_call_operand.vmem [shape: f32[8,16], index: 12, kind: input, shape index: {}]
  %s13 = inlined_call_operand.vmem [shape: f32[16,16], index: 13, kind: input, shape index: {}]
  %s14 = inlined_call_operand.vmem [shape: f32[1,16], index: 14, kind: input, shape index: {}]
  %s15 = inlined_call_operand.vmem [shape: f32[8,16], index: 15, kind: input, shape index: {}]
  %s16 = inlined_call_operand.vmem [shape: f32[16,16], index: 16, kind: input, shape index: {}]
  %s17 = inlined_call_operand.vmem [shape: f32[16,16], index: 17, kind: input, shape index: {}]
  %s18 = inlined_call_operand.vmem [shape: f32[16,16], index: 18, kind: input, shape index: {}]
  %s19 = inlined_call_operand.vmem [shape: f32[1,16], index: 19, kind: input, shape index: {}]
  %s20 = inlined_call_operand.hbm [shape: f32[2,48], index: 20, kind: output, shape index: {0}]
  %s21 = inlined_call_operand.vmem [shape: f32[2,16,64], index: 21, kind: output, shape index: {1}, may-alias: {2,21}]
  %22 = xla_tuple %s20, %s21
  %s23 = sld [smem:[#allocation0]]
  $region102: #{neural_map_forward.1} parent=0
    _
  %s25 = ssub.s32 1, %s23
  %s26 = scalar_select 0, %s25, %s23
  $region1: #{neural_map_forward.1} parent=0
    #allocation2 [shape = 'u8[1024]{0}', space=smem, size = 0x400, scoped, tag = 'input window, operand 0, single buffered']
    #allocation3 [shape = 's32[1]{0}', space=sflag, size = 0x4, scoped, tag = 'scoped memory for neural_map_forward.1']
    #allocation4 [shape = 's32[1]{0}', space=sflag, size = 0x4, scoped, tag = 'scoped memory for neural_map_forward.1']
    #allocation5 [shape = 'u8[1024]{0}', space=vmem, size = 0x400, scoped, tag = 'output window, operand 0, single buffered']
    %27 = vsyncpa [#allocation4], 0
    %28 = vsyncpa [#allocation3], 0
    // Predicated region
    $region2: #{neural_map_forward.1} parent=1 // pred_check
      _
    $region3: #{neural_map_forward.1} parent=1 // pred_check_branch
      %30 = sbr.rel (0) target = $region5
    $region4: #{neural_map_forward.1} parent=1 // pred_region
      %s32 = ssub.s32 32, 32
      %33 = vsyncadd [#allocation4], %s32
      %s35 = sshll.u32 %s0, 4
      %s36 = int_to_ptr.vmem [resolvable:$true] %s35
      %38 = dma.vmem_to_smem %s36, 32, [#allocation2], [#allocation4]
    $region5: #{neural_map_forward.1} parent=1 // pred_fallthru
      _
    // Predicated region
    $region6: #{neural_map_forward.1} parent=1 // pred_check
      _
    $region7: #{neural_map_forward.1} parent=1 // pred_check_branch
      %40 = sbr.rel (0) target = $region9
    $region8: #{neural_map_forward.1} parent=1 // pred_region
      _
    $region9: #{neural_map_forward.1} parent=1 // pred_fallthru
      _
    // Predicated region
    $region10: #{neural_map_forward.1} parent=1 // pred_check
      _
    $region11: #{neural_map_forward.1} parent=1 // pred_check_branch
      %42 = sbr.rel (0) target = $region13
    $region12: #{neural_map_forward.1} parent=1 // pred_region
      _
    $region13: #{neural_map_forward.1} parent=1 // pred_fallthru
      _
    // Predicated region
    $region14: #{neural_map_forward.1} parent=1 // pred_check
      _
    $region15: #{neural_map_forward.1} parent=1 // pred_check_branch
      %44 = sbr.rel (0) target = $region17
    $region16: #{neural_map_forward.1} parent=1 // pred_region
      _
    $region17: #{neural_map_forward.1} parent=1 // pred_fallthru
      _
    // Predicated region
    $region18: #{neural_map_forward.1} parent=1 // pred_check
      _
    $region19: #{neural_map_forward.1} parent=1 // pred_check_branch
      %46 = sbr.rel (0) target = $region21
    $region20: #{neural_map_forward.1} parent=1 // pred_region
      _
    $region21: #{neural_map_forward.1} parent=1 // pred_fallthru
      _
    // Predicated region
    $region22: #{neural_map_forward.1} parent=1 // pred_check
      _
    $region23: #{neural_map_forward.1} parent=1 // pred_check_branch
      %48 = sbr.rel (0) target = $region25
    $region24: #{neural_map_forward.1} parent=1 // pred_region
      _
    $region25: #{neural_map_forward.1} parent=1 // pred_fallthru
      _
    // Predicated region
    $region26: #{neural_map_forward.1} parent=1 // pred_check
      _
    $region27: #{neural_map_forward.1} parent=1 // pred_check_branch
      %50 = sbr.rel (0) target = $region29
    $region28: #{neural_map_forward.1} parent=1 // pred_region
      _
    $region29: #{neural_map_forward.1} parent=1 // pred_fallthru
      _
    // Predicated region
    $region30: #{neural_map_forward.1} parent=1 // pred_check
      _
    $region31: #{neural_map_forward.1} parent=1 // pred_check_branch
      %52 = sbr.rel (0) target = $region33
    $region32: #{neural_map_forward.1} parent=1 // pred_region
      _
    $region33: #{neural_map_forward.1} parent=1 // pred_fallthru
      _
    // Predicated region
    $region34: #{neural_map_forward.1} parent=1 // pred_check
      _
    $region35: #{neural_map_forward.1} parent=1 // pred_check_branch
      %54 = sbr.rel (0) target = $region37
    $region36: #{neural_map_forward.1} parent=1 // pred_region
      _
    $region37: #{neural_map_forward.1} parent=1 // pred_fallthru
      _
    // Predicated region
    $region38: #{neural_map_forward.1} parent=1 // pred_check
      _
    $region39: #{neural_map_forward.1} parent=1 // pred_check_branch
      %56 = sbr.rel (0) target = $region41
    $region40: #{neural_map_forward.1} parent=1 // pred_region
      _
    $region41: #{neural_map_forward.1} parent=1 // pred_fallthru
      _
    // Predicated region
    $region42: #{neural_map_forward.1} parent=1 // pred_check
      _
    $region43: #{neural_map_forward.1} parent=1 // pred_check_branch
      %58 = sbr.rel (0) target = $region45
    $region44: #{neural_map_forward.1} parent=1 // pred_region
      _
    $region45: #{neural_map_forward.1} parent=1 // pred_fallthru
      _
    // Predicated region
    $region46: #{neural_map_forward.1} parent=1 // pred_check
      _
    $region47: #{neural_map_forward.1} parent=1 // pred_check_branch
      %60 = sbr.rel (0) target = $region49
    $region48: #{neural_map_forward.1} parent=1 // pred_region
      _
    $region49: #{neural_map_forward.1} parent=1 // pred_fallthru
      _
    // Predicated region
    $region50: #{neural_map_forward.1} parent=1 // pred_check
      _
    $region51: #{neural_map_forward.1} parent=1 // pred_check_branch
      %62 = sbr.rel (0) target = $region53
    $region52: #{neural_map_forward.1} parent=1 // pred_region
      _
    $region53: #{neural_map_forward.1} parent=1 // pred_fallthru
      _
    // Predicated region
    $region54: #{neural_map_forward.1} parent=1 // pred_check
      _
    $region55: #{neural_map_forward.1} parent=1 // pred_check_branch
      %64 = sbr.rel (0) target = $region57
    $region56: #{neural_map_forward.1} parent=1 // pred_region
      _
    $region57: #{neural_map_forward.1} parent=1 // pred_fallthru
      _
    // Predicated region
    $region58: #{neural_map_forward.1} parent=1 // pred_check
      _
    $region59: #{neural_map_forward.1} parent=1 // pred_check_branch
      %66 = sbr.rel (0) target = $region61
    $region60: #{neural_map_forward.1} parent=1 // pred_region
      _
    $region61: #{neural_map_forward.1} parent=1 // pred_fallthru
      _
    // Predicated region
    $region62: #{neural_map_forward.1} parent=1 // pred_check
      _
    $region63: #{neural_map_forward.1} parent=1 // pred_check_branch
      %68 = sbr.rel (0) target = $region65
    $region64: #{neural_map_forward.1} parent=1 // pred_region
      _
    $region65: #{neural_map_forward.1} parent=1 // pred_fallthru
      _
    // Predicated region
    $region66: #{neural_map_forward.1} parent=1 // pred_check
      _
    $region67: #{neural_map_forward.1} parent=1 // pred_check_branch
      %70 = sbr.rel (0) target = $region69
    $region68: #{neural_map_forward.1} parent=1 // pred_region
      _
    $region69: #{neural_map_forward.1} parent=1 // pred_fallthru
      _
    // Predicated region
    $region70: #{neural_map_forward.1} parent=1 // pred_check
      _
    $region71: #{neural_map_forward.1} parent=1 // pred_check_branch
      %72 = sbr.rel (0) target = $region73
    $region72: #{neural_map_forward.1} parent=1 // pred_region
      _
    $region73: #{neural_map_forward.1} parent=1 // pred_fallthru
      _
    // Predicated region
    $region74: #{neural_map_forward.1} parent=1 // pred_check
      _
    $region75: #{neural_map_forward.1} parent=1 // pred_check_branch
      %74 = sbr.rel (0) target = $region77
    $region76: #{neural_map_forward.1} parent=1 // pred_region
      _
    $region77: #{neural_map_forward.1} parent=1 // pred_fallthru
      _
    // Predicated region
    $region78: #{neural_map_forward.1} parent=1 // pred_check
      _
    $region79: #{neural_map_forward.1} parent=1 // pred_check_branch
      %76 = sbr.rel (0) target = $region81
    $region80: #{neural_map_forward.1} parent=1 // pred_region
      _
    $region81: #{neural_map_forward.1} parent=1 // pred_fallthru
      _
    // Predicated region
    $region82: #{neural_map_forward.1} parent=1 // pred_check
      _
    $region83: #{neural_map_forward.1} parent=1 // pred_check_branch
      %78 = sbr.rel (0) target = $region85
    $region84: #{neural_map_forward.1} parent=1 // pred_region
      %79 = dma.done [#allocation4], 32
    $region85: #{neural_map_forward.1} parent=1 // pred_fallthru
      _
    %80 = sfence
    %v81 = vld [vmem:[%s2] sm:$0xff]
    %v82 = vld [vmem:[%s2 + $0x8] sm:$0xff]
    %v83 = vld [vmem:[%s2 + $0x10] sm:$0xff]
    %v84 = vld [vmem:[%s2 + $0x18] sm:$0xff]
    %v85 = vld [vmem:[%s1] sm:$0x3]
    %v86 = vld [vmem:[%s3] sm:$0xff]
    %v87 = vld [vmem:[%s3 + $0x8] sm:$0xff]
    %v88 = vld [vmem:[%s3 + $0x10] sm:$0xff]
    %v89 = vld [vmem:[%s3 + $0x18] sm:$0xff]
    %v90 = vld [vmem:[%s3 + $0x20] sm:$0xff]
    %v91 = vld [vmem:[%s3 + $0x28] sm:$0xff]
    %v92 = vld [vmem:[%s3 + $0x30] sm:$0xff]
    %v93 = vld [vmem:[%s3 + $0x38] sm:$0xff]
    %s94 = scalar_lea.vmem %s3, 64
    %v95 = vld [vmem:[%s94] sm:$0xff]
    %v96 = vld [vmem:[%s94 + $0x8] sm:$0xff]
    %v97 = vld [vmem:[%s94 + $0x10] sm:$0xff]
    %v98 = vld [vmem:[%s94 + $0x18] sm:$0xff]
    %v99 = vld [vmem:[%s94 + $0x20] sm:$0xff]
    %v100 = vld [vmem:[%s94 + $0x28] sm:$0xff]
    %v101 = vld [vmem:[%s94 + $0x30] sm:$0xff]
    %v102 = vld [vmem:[%s94 + $0x38] sm:$0xff]
    %s103 = scalar_lea.vmem %s3, 128
    %v104 = vld [vmem:[%s103] sm:$0xff]
    %v105 = vld [vmem:[%s103 + $0x8] sm:$0xff]
    %v106 = vld [vmem:[%s103 + $0x10] sm:$0xff]
    %v107 = vld [vmem:[%s103 + $0x18] sm:$0xff]
    %v108 = vld [vmem:[%s103 + $0x20] sm:$0xff]
    %v109 = vld [vmem:[%s103 + $0x28] sm:$0xff]
    %v110 = vld [vmem:[%s103 + $0x30] sm:$0xff]
    %v111 = vld [vmem:[%s103 + $0x38] sm:$0xff]
    %s112 = scalar_lea.vmem %s3, 192
    %v113 = vld [vmem:[%s112] sm:$0xff]
    %v114 = vld [vmem:[%s112 + $0x8] sm:$0xff]
    %v115 = vld [vmem:[%s112 + $0x10] sm:$0xff]
    %v116 = vld [vmem:[%s112 + $0x18] sm:$0xff]
    %v117 = vld [vmem:[%s112 + $0x20] sm:$0xff]
    %v118 = vld [vmem:[%s112 + $0x28] sm:$0xff]
    %v119 = vld [vmem:[%s112 + $0x30] sm:$0xff]
    %v120 = vld [vmem:[%s112 + $0x38] sm:$0xff]
    %s121 = scalar_lea.vmem %s3, 256
    %v122 = vld [vmem:[%s121] sm:$0xff]
    %v123 = vld [vmem:[%s121 + $0x8] sm:$0xff]
    %v124 = vld [vmem:[%s121 + $0x10] sm:$0xff]
    %v125 = vld [vmem:[%s121 + $0x18] sm:$0xff]
    %v126 = vld [vmem:[%s121 + $0x20] sm:$0xff]
    %v127 = vld [vmem:[%s121 + $0x28] sm:$0xff]
    %v128 = vld [vmem:[%s121 + $0x30] sm:$0xff]
    %v129 = vld [vmem:[%s121 + $0x38] sm:$0xff]
    %s130 = scalar_lea.vmem %s3, 320
    %v131 = vld [vmem:[%s130] sm:$0xff]
    %v132 = vld [vmem:[%s130 + $0x8] sm:$0xff]
    %v133 = vld [vmem:[%s130 + $0x10] sm:$0xff]
    %v134 = vld [vmem:[%s130 + $0x18] sm:$0xff]
    %v135 = vld [vmem:[%s130 + $0x20] sm:$0xff]
    %v136 = vld [vmem:[%s130 + $0x28] sm:$0xff]
    %v137 = vld [vmem:[%s130 + $0x30] sm:$0xff]
    %v138 = vld [vmem:[%s130 + $0x38] sm:$0xff]
    %s139 = scalar_lea.vmem %s3, 384
    %v140 = vld [vmem:[%s139] sm:$0xff]
    %v141 = vld [vmem:[%s139 + $0x8] sm:$0xff]
    %v142 = vld [vmem:[%s139 + $0x10] sm:$0xff]
    %v143 = vld [vmem:[%s139 + $0x18] sm:$0xff]
    %v144 = vld [vmem:[%s139 + $0x20] sm:$0xff]
    %v145 = vld [vmem:[%s139 + $0x28] sm:$0xff]
    %v146 = vld [vmem:[%s139 + $0x30] sm:$0xff]
    %v147 = vld [vmem:[%s139 + $0x38] sm:$0xff]
    %s148 = scalar_lea.vmem %s3, 448
    %v149 = vld [vmem:[%s148] sm:$0xff]
    %v150 = vld [vmem:[%s148 + $0x8] sm:$0xff]
    %v151 = vld [vmem:[%s148 + $0x10] sm:$0xff]
    %v152 = vld [vmem:[%s148 + $0x18] sm:$0xff]
    %v153 = vld [vmem:[%s148 + $0x20] sm:$0xff]
    %v154 = vld [vmem:[%s148 + $0x28] sm:$0xff]
    %v155 = vld [vmem:[%s148 + $0x30] sm:$0xff]
    %v156 = vld [vmem:[%s148 + $0x38] sm:$0xff]
    %s157 = scalar_lea.vmem %s3, 512
    %v158 = vld [vmem:[%s157] sm:$0xff]
    %v159 = vld [vmem:[%s157 + $0x8] sm:$0xff]
    %v160 = vld [vmem:[%s157 + $0x10] sm:$0xff]
    %v161 = vld [vmem:[%s157 + $0x18] sm:$0xff]
    %v162 = vld [vmem:[%s157 + $0x20] sm:$0xff]
    %v163 = vld [vmem:[%s157 + $0x28] sm:$0xff]
    %v164 = vld [vmem:[%s157 + $0x30] sm:$0xff]
    %v165 = vld [vmem:[%s157 + $0x38] sm:$0xff]
    %vm166 = vcmask 523264
    %v168 = vsel %vm166, %v81, 0
    %v171 = vsel %vm166, %v82, 0
    %173 = vmatprep.subr.mxu0 0.0
    %174 = vmatpush1.msra.mxu0 %v86
    %175 = vmatprep.subr.mxu0 0.0
    %176 = vmatpush1.msra.mxu0 %v87
    %177 = vmatprep.subr.mxu0 0.0
    %178 = vmatpush1.msra.mxu0 %v88
    %179 = vmatprep.subr.mxu0 0.0
    %180 = vmatpush1.msra.mxu0 %v89
    %181 = vmatprep.subr.mxu0 0.0
    %182 = vmatpush1.msra.mxu0 %v90
    %183 = vmatprep.subr.mxu0 0.0
    %184 = vmatpush1.msra.mxu0 %v91
    %185 = vmatprep.subr.mxu0 0.0
    %186 = vmatpush1.msra.mxu0 %v92
    %187 = vmatprep.subr.mxu0 0.0
    %188 = vmatpush1.msra.mxu0 %v93
    %189 = vmatprep.subr.mxu0 0.0
    %190 = vmatpush1.msra.mxu0 0.0
    %191 = vmatprep.subr.mxu0 0.0
    %192 = vmatpush1.msra.mxu0 0.0
    %193 = vmatprep.subr.mxu0 0.0
    %194 = vmatpush1.msra.mxu0 0.0
    %195 = vmatprep.subr.mxu0 0.0
    %196 = vmatpush1.msra.mxu0 0.0
    %197 = vmatprep.subr.mxu0 0.0
    %198 = vmatpush1.msra.mxu0 0.0
    %199 = vmatprep.subr.mxu0 0.0
    %200 = vmatpush1.msra.mxu0 0.0
    %201 = vmatprep.subr.mxu0 0.0
    %202 = vmatpush1.msra.mxu0 0.0
    %203 = vmatprep.subr.mxu0 0.0
    %204 = vmatpush1.msra.mxu0 0.0
    %205 = vmatprep.subr.mxu0 0.0
    %206 = vmatpush1.msra.mxu0 0.0
    %207 = vmatprep.subr.mxu0 0.0
    %208 = vmatpush1.msra.mxu0 0.0
    %209 = vmatprep.subr.mxu0 0.0
    %210 = vmatpush1.msra.mxu0 0.0
    %211 = vmatprep.subr.mxu0 0.0
    %212 = vmatpush1.msra.mxu0 0.0
    %213 = vmatprep.subr.mxu0 0.0
    %214 = vmatpush1.msra.mxu0 0.0
    %215 = vmatprep.subr.mxu0 0.0
    %216 = vmatpush1.msra.mxu0 0.0
    %217 = vmatprep.subr.mxu0 0.0
    %218 = vmatpush1.msra.mxu0 0.0
    %219 = vmatprep.subr.mxu0 0.0
    %220 = vmatpush1.msra.mxu0 0.0
    %221 = vmatprep.subr.mxu0 0.0
    %222 = vmatpush1.msra.mxu0 0.0
    %223 = vmatprep.subr.mxu0 0.0
    %224 = vmatpush1.msra.mxu0 0.0
    %225 = vmatprep.subr.mxu0 0.0
    %226 = vmatpush1.msra.mxu0 0.0
    %227 = vmatprep.subr.mxu0 0.0
    %228 = vmatpush1.msra.mxu0 0.0
    %229 = vmatprep.subr.mxu0 0.0
    %230 = vmatpush1.msra.mxu0 0.0
    %231 = vmatprep.subr.mxu0 0.0
    %232 = vmatpush1.msra.mxu0 0.0
    %233 = vmatprep.subr.mxu0 0.0
    %234 = vmatpush1.msra.mxu0 0.0
    %235 = vmatprep.subr.mxu0 0.0
    %236 = vmatpush1.msra.mxu0 0.0
    %237 = vmatprep.mubr.f32.mxu0 0.0
    %238 = vmatmul.mubr.f32.gmra.mrb[0].mxu0 %v168
    %v239 = vpop.f32.mrb[0].mxu0
    %v240 = vadd.f32 0.0, %v239
    %v241 = vpop.f32.mrb[0].mxu0
    %242 = vmatprep.mubr.f32.mxu0 0.0
    %243 = vmatmul.mubr.f32.gmra.mrb[0].mxu0 %v171
    %v244 = vpop.f32.mrb[0].mxu0
    %v245 = vadd.f32 0.0, %v244
    %v246 = vpop.f32.mrb[0].mxu0
    %247 = vdwg.mxu0
    %248 = vmatprep.subr.mxu0 0.0
    %249 = vmatpush1.msra.mxu0 %v95
    %250 = vmatprep.subr.mxu0 0.0
    %251 = vmatpush1.msra.mxu0 %v96
    %252 = vmatprep.subr.mxu0 0.0
    %253 = vmatpush1.msra.mxu0 %v97
    %254 = vmatprep.subr.mxu0 0.0
    %255 = vmatpush1.msra.mxu0 %v98
    %256 = vmatprep.subr.mxu0 0.0
    %257 = vmatpush1.msra.mxu0 %v99
    %258 = vmatprep.subr.mxu0 0.0
    %259 = vmatpush1.msra.mxu0 %v100
    %260 = vmatprep.subr.mxu0 0.0
    %261 = vmatpush1.msra.mxu0 %v101
    %262 = vmatprep.subr.mxu0 0.0
    %263 = vmatpush1.msra.mxu0 %v102
    %264 = vmatprep.subr.mxu0 0.0
    %265 = vmatpush1.msra.mxu0 0.0
    %266 = vmatprep.subr.mxu0 0.0
    %267 = vmatpush1.msra.mxu0 0.0
    %268 = vmatprep.subr.mxu0 0.0
    %269 = vmatpush1.msra.mxu0 0.0
    %270 = vmatprep.subr.mxu0 0.0
    %271 = vmatpush1.msra.mxu0 0.0
    %272 = vmatprep.subr.mxu0 0.0
    %273 = vmatpush1.msra.mxu0 0.0
    %274 = vmatprep.subr.mxu0 0.0
    %275 = vmatpush1.msra.mxu0 0.0
    %276 = vmatprep.subr.mxu0 0.0
    %277 = vmatpush1.msra.mxu0 0.0
    %278 = vmatprep.subr.mxu0 0.0
    %279 = vmatpush1.msra.mxu0 0.0
    %280 = vmatprep.subr.mxu0 0.0
    %281 = vmatpush1.msra.mxu0 0.0
    %282 = vmatprep.subr.mxu0 0.0
    %283 = vmatpush1.msra.mxu0 0.0
    %284 = vmatprep.subr.mxu0 0.0
    %285 = vmatpush1.msra.mxu0 0.0
    %286 = vmatprep.subr.mxu0 0.0
    %287 = vmatpush1.msra.mxu0 0.0
    %288 = vmatprep.subr.mxu0 0.0
    %289 = vmatpush1.msra.mxu0 0.0
    %290 = vmatprep.subr.mxu0 0.0
    %291 = vmatpush1.msra.mxu0 0.0
    %292 = vmatprep.subr.mxu0 0.0
    %293 = vmatpush1.msra.mxu0 0.0
    %294 = vmatprep.subr.mxu0 0.0
    %295 = vmatpush1.msra.mxu0 0.0
    %296 = vmatprep.subr.mxu0 0.0
    %297 = vmatpush1.msra.mxu0 0.0
    %298 = vmatprep.subr.mxu0 0.0
    %299 = vmatpush1.msra.mxu0 0.0
    %300 = vmatprep.subr.mxu0 0.0
    %301 = vmatpush1.msra.mxu0 0.0
    %302 = vmatprep.subr.mxu0 0.0
    %303 = vmatpush1.msra.mxu0 0.0
    %304 = vmatprep.subr.mxu0 0.0
    %305 = vmatpush1.msra.mxu0 0.0
    %306 = vmatprep.subr.mxu0 0.0
    %307 = vmatpush1.msra.mxu0 0.0
    %308 = vmatprep.subr.mxu0 0.0
    %309 = vmatpush1.msra.mxu0 0.0
    %310 = vmatprep.subr.mxu0 0.0
    %311 = vmatpush1.msra.mxu0 0.0
    %312 = vmatprep.mubr.f32.mxu0 0.0
    %313 = vmatmul.mubr.f32.gmra.mrb[0].mxu0 %v168
    %v314 = vpop.f32.mrb[0].mxu0
    %v315 = vadd.f32 0.0, %v314
    %v316 = vpop.f32.mrb[0].mxu0
    %317 = vmatprep.mubr.f32.mxu0 0.0
    %318 = vmatmul.mubr.f32.gmra.mrb[0].mxu0 %v171
    %v319 = vpop.f32.mrb[0].mxu0
    %v320 = vadd.f32 0.0, %v319
    %v321 = vpop.f32.mrb[0].mxu0
    %322 = vdwg.mxu0
    %323 = vmatprep.subr.mxu0 0.0
    %324 = vmatpush1.msra.mxu0 %v104
    %325 = vmatprep.subr.mxu0 0.0
    %326 = vmatpush1.msra.mxu0 %v105
    %327 = vmatprep.subr.mxu0 0.0
    %328 = vmatpush1.msra.mxu0 %v106
    %329 = vmatprep.subr.mxu0 0.0
    %330 = vmatpush1.msra.mxu0 %v107
    %331 = vmatprep.subr.mxu0 0.0
    %332 = vmatpush1.msra.mxu0 %v108
    %333 = vmatprep.subr.mxu0 0.0
    %334 = vmatpush1.msra.mxu0 %v109
    %335 = vmatprep.subr.mxu0 0.0
    %336 = vmatpush1.msra.mxu0 %v110
    %337 = vmatprep.subr.mxu0 0.0
    %338 = vmatpush1.msra.mxu0 %v111
    %339 = vmatprep.subr.mxu0 0.0
    %340 = vmatpush1.msra.mxu0 0.0
    %341 = vmatprep.subr.mxu0 0.0
    %342 = vmatpush1.msra.mxu0 0.0
    %343 = vmatprep.subr.mxu0 0.0
    %344 = vmatpush1.msra.mxu0 0.0
    %345 = vmatprep.subr.mxu0 0.0
    %346 = vmatpush1.msra.mxu0 0.0
    %347 = vmatprep.subr.mxu0 0.0
    %348 = vmatpush1.msra.mxu0 0.0
    %349 = vmatprep.subr.mxu0 0.0
    %350 = vmatpush1.msra.mxu0 0.0
    %351 = vmatprep.subr.mxu0 0.0
    %352 = vmatpush1.msra.mxu0 0.0
    %353 = vmatprep.subr.mxu0 0.0
    %354 = vmatpush1.msra.mxu0 0.0
    %355 = vmatprep.subr.mxu0 0.0
    %356 = vmatpush1.msra.mxu0 0.0
    %357 = vmatprep.subr.mxu0 0.0
    %358 = vmatpush1.msra.mxu0 0.0
    %359 = vmatprep.subr.mxu0 0.0
    %360 = vmatpush1.msra.mxu0 0.0
    %361 = vmatprep.subr.mxu0 0.0
    %362 = vmatpush1.msra.mxu0 0.0
    %363 = vmatprep.subr.mxu0 0.0
    %364 = vmatpush1.msra.mxu0 0.0
    %365 = vmatprep.subr.mxu0 0.0
    %366 = vmatpush1.msra.mxu0 0.0
    %367 = vmatprep.subr.mxu0 0.0
    %368 = vmatpush1.msra.mxu0 0.0
    %369 = vmatprep.subr.mxu0 0.0
    %370 = vmatpush1.msra.mxu0 0.0
    %371 = vmatprep.subr.mxu0 0.0
    %372 = vmatpush1.msra.mxu0 0.0
    %373 = vmatprep.subr.mxu0 0.0
    %374 = vmatpush1.msra.mxu0 0.0
    %375 = vmatprep.subr.mxu0 0.0
    %376 = vmatpush1.msra.mxu0 0.0
    %377 = vmatprep.subr.mxu0 0.0
    %378 = vmatpush1.msra.mxu0 0.0
    %379 = vmatprep.subr.mxu0 0.0
    %380 = vmatpush1.msra.mxu0 0.0
    %381 = vmatprep.subr.mxu0 0.0
    %382 = vmatpush1.msra.mxu0 0.0
    %383 = vmatprep.subr.mxu0 0.0
    %384 = vmatpush1.msra.mxu0 0.0
    %385 = vmatprep.subr.mxu0 0.0
    %386 = vmatpush1.msra.mxu0 0.0
    %387 = vmatprep.mubr.f32.mxu0 0.0
    %388 = vmatmul.mubr.f32.gmra.mrb[0].mxu0 %v168
    %v389 = vpop.f32.mrb[0].mxu0
    %v390 = vadd.f32 0.0, %v389
    %v391 = vpop.f32.mrb[0].mxu0
    %392 = vmatprep.mubr.f32.mxu0 0.0
    %393 = vmatmul.mubr.f32.gmra.mrb[0].mxu0 %v171
    %v394 = vpop.f32.mrb[0].mxu0
    %v395 = vadd.f32 0.0, %v394
    %v396 = vpop.f32.mrb[0].mxu0
    %397 = vdwg.mxu0
    %398 = vmatprep.subr.mxu0 0.0
    %399 = vmatpush1.msra.mxu0 %v113
    %400 = vmatprep.subr.mxu0 0.0
    %401 = vmatpush1.msra.mxu0 %v114
    %402 = vmatprep.subr.mxu0 0.0
    %403 = vmatpush1.msra.mxu0 %v115
    %404 = vmatprep.subr.mxu0 0.0
    %405 = vmatpush1.msra.mxu0 %v116
    %406 = vmatprep.subr.mxu0 0.0
    %407 = vmatpush1.msra.mxu0 %v117
    %408 = vmatprep.subr.mxu0 0.0
    %409 = vmatpush1.msra.mxu0 %v118
    %410 = vmatprep.subr.mxu0 0.0
    %411 = vmatpush1.msra.mxu0 %v119
    %412 = vmatprep.subr.mxu0 0.0
    %413 = vmatpush1.msra.mxu0 %v120
    %414 = vmatprep.subr.mxu0 0.0
    %415 = vmatpush1.msra.mxu0 0.0
    %416 = vmatprep.subr.mxu0 0.0
    %417 = vmatpush1.msra.mxu0 0.0
    %418 = vmatprep.subr.mxu0 0.0
    %419 = vmatpush1.msra.mxu0 0.0
    %420 = vmatprep.subr.mxu0 0.0
    %421 = vmatpush1.msra.mxu0 0.0
    %422 = vmatprep.subr.mxu0 0.0
    %423 = vmatpush1.msra.mxu0 0.0
    %424 = vmatprep.subr.mxu0 0.0
    %425 = vmatpush1.msra.mxu0 0.0
    %426 = vmatprep.subr.mxu0 0.0
    %427 = vmatpush1.msra.mxu0 0.0
    %428 = vmatprep.subr.mxu0 0.0
    %429 = vmatpush1.msra.mxu0 0.0
    %430 = vmatprep.subr.mxu0 0.0
    %431 = vmatpush1.msra.mxu0 0.0
    %432 = vmatprep.subr.mxu0 0.0
    %433 = vmatpush1.msra.mxu0 0.0
    %434 = vmatprep.subr.mxu0 0.0
    %435 = vmatpush1.msra.mxu0 0.0
    %436 = vmatprep.subr.mxu0 0.0
    %437 = vmatpush1.msra.mxu0 0.0
    %438 = vmatprep.subr.mxu0 0.0
    %439 = vmatpush1.msra.mxu0 0.0
    %440 = vmatprep.subr.mxu0 0.0
    %441 = vmatpush1.msra.mxu0 0.0
    %442 = vmatprep.subr.mxu0 0.0
    %443 = vmatpush1.msra.mxu0 0.0
    %444 = vmatprep.subr.mxu0 0.0
    %445 = vmatpush1.msra.mxu0 0.0
    %446 = vmatprep.subr.mxu0 0.0
    %447 = vmatpush1.msra.mxu0 0.0
    %448 = vmatprep.subr.mxu0 0.0
    %449 = vmatpush1.msra.mxu0 0.0
    %450 = vmatprep.subr.mxu0 0.0
    %451 = vmatpush1.msra.mxu0 0.0
    %452 = vmatprep.subr.mxu0 0.0
    %453 = vmatpush1.msra.mxu0 0.0
    %454 = vmatprep.subr.mxu0 0.0
    %455 = vmatpush1.msra.mxu0 0.0
    %456 = vmatprep.subr.mxu0 0.0
    %457 = vmatpush1.msra.mxu0 0.0
    %458 = vmatprep.subr.mxu0 0.0
    %459 = vmatpush1.msra.mxu0 0.0
    %460 = vmatprep.subr.mxu0 0.0
    %461 = vmatpush1.msra.mxu0 0.0
    %462 = vmatprep.mubr.f32.mxu0 0.0
    %463 = vmatmul.mubr.f32.gmra.mrb[0].mxu0 %v168
    %v464 = vpop.f32.mrb[0].mxu0
    %v465 = vadd.f32 0.0, %v464
    %v466 = vpop.f32.mrb[0].mxu0
    %467 = vmatprep.mubr.f32.mxu0 0.0
    %468 = vmatmul.mubr.f32.gmra.mrb[0].mxu0 %v171
    %v469 = vpop.f32.mrb[0].mxu0
    %v470 = vadd.f32 0.0, %v469
    %v471 = vpop.f32.mrb[0].mxu0
    %472 = vdwg.mxu0
    %473 = vmatprep.subr.mxu0 0.0
    %474 = vmatpush1.msra.mxu0 %v122
    %475 = vmatprep.subr.mxu0 0.0
    %476 = vmatpush1.msra.mxu0 %v123
    %477 = vmatprep.subr.mxu0 0.0
    %478 = vmatpush1.msra.mxu0 %v124
    %479 = vmatprep.subr.mxu0 0.0
    %480 = vmatpush1.msra.mxu0 %v125
    %481 = vmatprep.subr.mxu0 0.0
    %482 = vmatpush1.msra.mxu0 %v126
    %483 = vmatprep.subr.mxu0 0.0
    %484 = vmatpush1.msra.mxu0 %v127
    %485 = vmatprep.subr.mxu0 0.0
    %486 = vmatpush1.msra.mxu0 %v128
    %487 = vmatprep.subr.mxu0 0.0
    %488 = vmatpush1.msra.mxu0 %v129
    %489 = vmatprep.subr.mxu0 0.0
    %490 = vmatpush1.msra.mxu0 0.0
    %491 = vmatprep.subr.mxu0 0.0
    %492 = vmatpush1.msra.mxu0 0.0
    %493 = vmatprep.subr.mxu0 0.0
    %494 = vmatpush1.msra.mxu0 0.0
    %495 = vmatprep.subr.mxu0 0.0
    %496 = vmatpush1.msra.mxu0 0.0
    %497 = vmatprep.subr.mxu0 0.0
    %498 = vmatpush1.msra.mxu0 0.0
    %499 = vmatprep.subr.mxu0 0.0
    %500 = vmatpush1.msra.mxu0 0.0
    %501 = vmatprep.subr.mxu0 0.0
    %502 = vmatpush1.msra.mxu0 0.0
    %503 = vmatprep.subr.mxu0 0.0
    %504 = vmatpush1.msra.mxu0 0.0
    %505 = vmatprep.subr.mxu0 0.0
    %506 = vmatpush1.msra.mxu0 0.0
    %507 = vmatprep.subr.mxu0 0.0
    %508 = vmatpush1.msra.mxu0 0.0
    %509 = vmatprep.subr.mxu0 0.0
    %510 = vmatpush1.msra.mxu0 0.0
    %511 = vmatprep.subr.mxu0 0.0
    %512 = vmatpush1.msra.mxu0 0.0
    %513 = vmatprep.subr.mxu0 0.0
    %514 = vmatpush1.msra.mxu0 0.0
    %515 = vmatprep.subr.mxu0 0.0
    %516 = vmatpush1.msra.mxu0 0.0
    %517 = vmatprep.subr.mxu0 0.0
    %518 = vmatpush1.msra.mxu0 0.0
    %519 = vmatprep.subr.mxu0 0.0
    %520 = vmatpush1.msra.mxu0 0.0
    %521 = vmatprep.subr.mxu0 0.0
    %522 = vmatpush1.msra.mxu0 0.0
    %523 = vmatprep.subr.mxu0 0.0
    %524 = vmatpush1.msra.mxu0 0.0
    %525 = vmatprep.subr.mxu0 0.0
    %526 = vmatpush1.msra.mxu0 0.0
    %527 = vmatprep.subr.mxu0 0.0
    %528 = vmatpush1.msra.mxu0 0.0
    %529 = vmatprep.subr.mxu0 0.0
    %530 = vmatpush1.msra.mxu0 0.0
    %531 = vmatprep.subr.mxu0 0.0
    %532 = vmatpush1.msra.mxu0 0.0
    %533 = vmatprep.subr.mxu0 0.0
    %534 = vmatpush1.msra.mxu0 0.0
    %535 = vmatprep.subr.mxu0 0.0
    %536 = vmatpush1.msra.mxu0 0.0
    %537 = vmatprep.mubr.f32.mxu0 0.0
    %538 = vmatmul.mubr.f32.gmra.mrb[0].mxu0 %v168
    %v539 = vpop.f32.mrb[0].mxu0
    %v540 = vadd.f32 0.0, %v539
    %v541 = vpop.f32.mrb[0].mxu0
    %542 = vmatprep.mubr.f32.mxu0 0.0
    %543 = vmatmul.mubr.f32.gmra.mrb[0].mxu0 %v171
    %v544 = vpop.f32.mrb[0].mxu0
    %v545 = vadd.f32 0.0, %v544
    %v546 = vpop.f32.mrb[0].mxu0
    %547 = vdwg.mxu0
    %548 = vmatprep.subr.mxu0 0.0
    %549 = vmatpush1.msra.mxu0 %v131
    %550 = vmatprep.subr.mxu0 0.0
    %551 = vmatpush1.msra.mxu0 %v132
    %552 = vmatprep.subr.mxu0 0.0
    %553 = vmatpush1.msra.mxu0 %v133
    %554 = vmatprep.subr.mxu0 0.0
    %555 = vmatpush1.msra.mxu0 %v134
    %556 = vmatprep.subr.mxu0 0.0
    %557 = vmatpush1.msra.mxu0 %v135
    %558 = vmatprep.subr.mxu0 0.0
    %559 = vmatpush1.msra.mxu0 %v136
    %560 = vmatprep.subr.mxu0 0.0
    %561 = vmatpush1.msra.mxu0 %v137
    %562 = vmatprep.subr.mxu0 0.0
    %563 = vmatpush1.msra.mxu0 %v138
    %564 = vmatprep.subr.mxu0 0.0
    %565 = vmatpush1.msra.mxu0 0.0
    %566 = vmatprep.subr.mxu0 0.0
    %567 = vmatpush1.msra.mxu0 0.0
    %568 = vmatprep.subr.mxu0 0.0
    %569 = vmatpush1.msra.mxu0 0.0
    %570 = vmatprep.subr.mxu0 0.0
    %571 = vmatpush1.msra.mxu0 0.0
    %572 = vmatprep.subr.mxu0 0.0
    %573 = vmatpush1.msra.mxu0 0.0
    %574 = vmatprep.subr.mxu0 0.0
    %575 = vmatpush1.msra.mxu0 0.0
    %576 = vmatprep.subr.mxu0 0.0
    %577 = vmatpush1.msra.mxu0 0.0
    %578 = vmatprep.subr.mxu0 0.0
    %579 = vmatpush1.msra.mxu0 0.0
    %580 = vmatprep.subr.mxu0 0.0
    %581 = vmatpush1.msra.mxu0 0.0
    %582 = vmatprep.subr.mxu0 0.0
    %583 = vmatpush1.msra.mxu0 0.0
    %584 = vmatprep.subr.mxu0 0.0
    %585 = vmatpush1.msra.mxu0 0.0
    %586 = vmatprep.subr.mxu0 0.0
    %587 = vmatpush1.msra.mxu0 0.0
    %588 = vmatprep.subr.mxu0 0.0
    %589 = vmatpush1.msra.mxu0 0.0
    %590 = vmatprep.subr.mxu0 0.0
    %591 = vmatpush1.msra.mxu0 0.0
    %592 = vmatprep.subr.mxu0 0.0
    %593 = vmatpush1.msra.mxu0 0.0
    %594 = vmatprep.subr.mxu0 0.0
    %595 = vmatpush1.msra.mxu0 0.0
    %596 = vmatprep.subr.mxu0 0.0
    %597 = vmatpush1.msra.mxu0 0.0
    %598 = vmatprep.subr.mxu0 0.0
    %599 = vmatpush1.msra.mxu0 0.0
    %600 = vmatprep.subr.mxu0 0.0
    %601 = vmatpush1.msra.mxu0 0.0
    %602 = vmatprep.subr.mxu0 0.0
    %603 = vmatpush1.msra.mxu0 0.0
    %604 = vmatprep.subr.mxu0 0.0
    %605 = vmatpush1.msra.mxu0 0.0
    %606 = vmatprep.subr.mxu0 0.0
    %607 = vmatpush1.msra.mxu0 0.0
    %608 = vmatprep.subr.mxu0 0.0
    %609 = vmatpush1.msra.mxu0 0.0
    %610 = vmatprep.subr.mxu0 0.0
    %611 = vmatpush1.msra.mxu0 0.0
    %612 = vmatprep.mubr.f32.mxu0 0.0
    %613 = vmatmul.mubr.f32.gmra.mrb[0].mxu0 %v168
    %v614 = vpop.f32.mrb[0].mxu0
    %v615 = vadd.f32 0.0, %v614
    %v616 = vpop.f32.mrb[0].mxu0
    %617 = vmatprep.mubr.f32.mxu0 0.0
    %618 = vmatmul.mubr.f32.gmra.mrb[0].mxu0 %v171
    %v619 = vpop.f32.mrb[0].mxu0
    %v620 = vadd.f32 0.0, %v619
    %v621 = vpop.f32.mrb[0].mxu0
    %622 = vdwg.mxu0
    %623 = vmatprep.subr.mxu0 0.0
    %624 = vmatpush1.msra.mxu0 %v140
    %625 = vmatprep.subr.mxu0 0.0
    %626 = vmatpush1.msra.mxu0 %v141
    %627 = vmatprep.subr.mxu0 0.0
    %628 = vmatpush1.msra.mxu0 %v142
    %629 = vmatprep.subr.mxu0 0.0
    %630 = vmatpush1.msra.mxu0 %v143
    %631 = vmatprep.subr.mxu0 0.0
    %632 = vmatpush1.msra.mxu0 %v144
    %633 = vmatprep.subr.mxu0 0.0
    %634 = vmatpush1.msra.mxu0 %v145
    %635 = vmatprep.subr.mxu0 0.0
    %636 = vmatpush1.msra.mxu0 %v146
    %637 = vmatprep.subr.mxu0 0.0
    %638 = vmatpush1.msra.mxu0 %v147
    %639 = vmatprep.subr.mxu0 0.0
    %640 = vmatpush1.msra.mxu0 0.0
    %641 = vmatprep.subr.mxu0 0.0
    %642 = vmatpush1.msra.mxu0 0.0
    %643 = vmatprep.subr.mxu0 0.0
    %644 = vmatpush1.msra.mxu0 0.0
    %645 = vmatprep.subr.mxu0 0.0
    %646 = vmatpush1.msra.mxu0 0.0
    %647 = vmatprep.subr.mxu0 0.0
    %648 = vmatpush1.msra.mxu0 0.0
    %649 = vmatprep.subr.mxu0 0.0
    %650 = vmatpush1.msra.mxu0 0.0
    %651 = vmatprep.subr.mxu0 0.0
    %652 = vmatpush1.msra.mxu0 0.0
    %653 = vmatprep.subr.mxu0 0.0
    %654 = vmatpush1.msra.mxu0 0.0
    %655 = vmatprep.subr.mxu0 0.0
    %656 = vmatpush1.msra.mxu0 0.0
    %657 = vmatprep.subr.mxu0 0.0
    %658 = vmatpush1.msra.mxu0 0.0
    %659 = vmatprep.subr.mxu0 0.0
    %660 = vmatpush1.msra.mxu0 0.0
    %661 = vmatprep.subr.mxu0 0.0
    %662 = vmatpush1.msra.mxu0 0.0
    %663 = vmatprep.subr.mxu0 0.0
    %664 = vmatpush1.msra.mxu0 0.0
    %665 = vmatprep.subr.mxu0 0.0
    %666 = vmatpush1.msra.mxu0 0.0
    %667 = vmatprep.subr.mxu0 0.0
    %668 = vmatpush1.msra.mxu0 0.0
    %669 = vmatprep.subr.mxu0 0.0
    %670 = vmatpush1.msra.mxu0 0.0
    %671 = vmatprep.subr.mxu0 0.0
    %672 = vmatpush1.msra.mxu0 0.0
    %673 = vmatprep.subr.mxu0 0.0
    %674 = vmatpush1.msra.mxu0 0.0
    %675 = vmatprep.subr.mxu0 0.0
    %676 = vmatpush1.msra.mxu0 0.0
    %677 = vmatprep.subr.mxu0 0.0
    %678 = vmatpush1.msra.mxu0 0.0
    %679 = vmatprep.subr.mxu0 0.0
    %680 = vmatpush1.msra.mxu0 0.0
    %681 = vmatprep.subr.mxu0 0.0
    %682 = vmatpush1.msra.mxu0 0.0
    %683 = vmatprep.subr.mxu0 0.0
    %684 = vmatpush1.msra.mxu0 0.0
    %685 = vmatprep.subr.mxu0 0.0
    %686 = vmatpush1.msra.mxu0 0.0
    %687 = vmatprep.mubr.f32.mxu0 0.0
    %688 = vmatmul.mubr.f32.gmra.mrb[0].mxu0 %v168
    %v689 = vpop.f32.mrb[0].mxu0
    %v690 = vadd.f32 0.0, %v689
    %v691 = vpop.f32.mrb[0].mxu0
    %692 = vmatprep.mubr.f32.mxu0 0.0
    %693 = vmatmul.mubr.f32.gmra.mrb[0].mxu0 %v171
    %v694 = vpop.f32.mrb[0].mxu0
    %v695 = vadd.f32 0.0, %v694
    %v696 = vpop.f32.mrb[0].mxu0
    %697 = vdwg.mxu0
    %698 = vmatprep.subr.mxu0 0.0
    %699 = vmatpush1.msra.mxu0 %v149
    %700 = vmatprep.subr.mxu0 0.0
    %701 = vmatpush1.msra.mxu0 %v150
    %702 = vmatprep.subr.mxu0 0.0
    %703 = vmatpush1.msra.mxu0 %v151
    %704 = vmatprep.subr.mxu0 0.0
    %705 = vmatpush1.msra.mxu0 %v152
    %706 = vmatprep.subr.mxu0 0.0
    %707 = vmatpush1.msra.mxu0 %v153
    %708 = vmatprep.subr.mxu0 0.0
    %709 = vmatpush1.msra.mxu0 %v154
    %710 = vmatprep.subr.mxu0 0.0
    %711 = vmatpush1.msra.mxu0 %v155
    %712 = vmatprep.subr.mxu0 0.0
    %713 = vmatpush1.msra.mxu0 %v156
    %714 = vmatprep.subr.mxu0 0.0
    %715 = vmatpush1.msra.mxu0 0.0
    %716 = vmatprep.subr.mxu0 0.0
    %717 = vmatpush1.msra.mxu0 0.0
    %718 = vmatprep.subr.mxu0 0.0
    %719 = vmatpush1.msra.mxu0 0.0
    %720 = vmatprep.subr.mxu0 0.0
    %721 = vmatpush1.msra.mxu0 0.0
    %722 = vmatprep.subr.mxu0 0.0
    %723 = vmatpush1.msra.mxu0 0.0
    %724 = vmatprep.subr.mxu0 0.0
    %725 = vmatpush1.msra.mxu0 0.0
    %726 = vmatprep.subr.mxu0 0.0
    %727 = vmatpush1.msra.mxu0 0.0
    %728 = vmatprep.subr.mxu0 0.0
    %729 = vmatpush1.msra.mxu0 0.0
    %730 = vmatprep.subr.mxu0 0.0
    %731 = vmatpush1.msra.mxu0 0.0
    %732 = vmatprep.subr.mxu0 0.0
    %733 = vmatpush1.msra.mxu0 0.0
    %734 = vmatprep.subr.mxu0 0.0
    %735 = vmatpush1.msra.mxu0 0.0
    %736 = vmatprep.subr.mxu0 0.0
    %737 = vmatpush1.msra.mxu0 0.0
    %738 = vmatprep.subr.mxu0 0.0
    %739 = vmatpush1.msra.mxu0 0.0
    %740 = vmatprep.subr.mxu0 0.0
    %741 = vmatpush1.msra.mxu0 0.0
    %742 = vmatprep.subr.mxu0 0.0
    %743 = vmatpush1.msra.mxu0 0.0
    %744 = vmatprep.subr.mxu0 0.0
    %745 = vmatpush1.msra.mxu0 0.0
    %746 = vmatprep.subr.mxu0 0.0
    %747 = vmatpush1.msra.mxu0 0.0
    %748 = vmatprep.subr.mxu0 0.0
    %749 = vmatpush1.msra.mxu0 0.0
    %750 = vmatprep.subr.mxu0 0.0
    %751 = vmatpush1.msra.mxu0 0.0
    %752 = vmatprep.subr.mxu0 0.0
    %753 = vmatpush1.msra.mxu0 0.0
    %754 = vmatprep.subr.mxu0 0.0
    %755 = vmatpush1.msra.mxu0 0.0
    %756 = vmatprep.subr.mxu0 0.0
    %757 = vmatpush1.msra.mxu0 0.0
    %758 = vmatprep.subr.mxu0 0.0
    %759 = vmatpush1.msra.mxu0 0.0
    %760 = vmatprep.subr.mxu0 0.0
    %761 = vmatpush1.msra.mxu0 0.0
    %762 = vmatprep.mubr.f32.mxu0 0.0
    %763 = vmatmul.mubr.f32.gmra.mrb[0].mxu0 %v168
    %v764 = vpop.f32.mrb[0].mxu0
    %v765 = vadd.f32 0.0, %v764
    %v766 = vpop.f32.mrb[0].mxu0
    %767 = vmatprep.mubr.f32.mxu0 0.0
    %768 = vmatmul.mubr.f32.gmra.mrb[0].mxu0 %v171
    %v769 = vpop.f32.mrb[0].mxu0
    %v770 = vadd.f32 0.0, %v769
    %v771 = vpop.f32.mrb[0].mxu0
    %772 = vdwg.mxu0
    %773 = vmatprep.subr.mxu0 0.0
    %774 = vmatpush1.msra.mxu0 %v158
    %775 = vmatprep.subr.mxu0 0.0
    %776 = vmatpush1.msra.mxu0 %v159
    %777 = vmatprep.subr.mxu0 0.0
    %778 = vmatpush1.msra.mxu0 %v160
    %779 = vmatprep.subr.mxu0 0.0
    %780 = vmatpush1.msra.mxu0 %v161
    %781 = vmatprep.subr.mxu0 0.0
    %782 = vmatpush1.msra.mxu0 %v162
    %783 = vmatprep.subr.mxu0 0.0
    %784 = vmatpush1.msra.mxu0 %v163
    %785 = vmatprep.subr.mxu0 0.0
    %786 = vmatpush1.msra.mxu0 %v164
    %787 = vmatprep.subr.mxu0 0.0
    %788 = vmatpush1.msra.mxu0 %v165
    %789 = vmatprep.subr.mxu0 0.0
    %790 = vmatpush1.msra.mxu0 0.0
    %791 = vmatprep.subr.mxu0 0.0
    %792 = vmatpush1.msra.mxu0 0.0
    %793 = vmatprep.subr.mxu0 0.0
    %794 = vmatpush1.msra.mxu0 0.0
    %795 = vmatprep.subr.mxu0 0.0
    %796 = vmatpush1.msra.mxu0 0.0
    %797 = vmatprep.subr.mxu0 0.0
    %798 = vmatpush1.msra.mxu0 0.0
    %799 = vmatprep.subr.mxu0 0.0
    %800 = vmatpush1.msra.mxu0 0.0
    %801 = vmatprep.subr.mxu0 0.0
    %802 = vmatpush1.msra.mxu0 0.0
    %803 = vmatprep.subr.mxu0 0.0
    %804 = vmatpush1.msra.mxu0 0.0
    %805 = vmatprep.subr.mxu0 0.0
    %806 = vmatpush1.msra.mxu0 0.0
    %807 = vmatprep.subr.mxu0 0.0
    %808 = vmatpush1.msra.mxu0 0.0
    %809 = vmatprep.subr.mxu0 0.0
    %810 = vmatpush1.msra.mxu0 0.0
    %811 = vmatprep.subr.mxu0 0.0
    %812 = vmatpush1.msra.mxu0 0.0
    %813 = vmatprep.subr.mxu0 0.0
    %814 = vmatpush1.msra.mxu0 0.0
    %815 = vmatprep.subr.mxu0 0.0
    %816 = vmatpush1.msra.mxu0 0.0
    %817 = vmatprep.subr.mxu0 0.0
    %818 = vmatpush1.msra.mxu0 0.0
    %819 = vmatprep.subr.mxu0 0.0
    %820 = vmatpush1.msra.mxu0 0.0
    %821 = vmatprep.subr.mxu0 0.0
    %822 = vmatpush1.msra.mxu0 0.0
    %823 = vmatprep.subr.mxu0 0.0
    %824 = vmatpush1.msra.mxu0 0.0
    %825 = vmatprep.subr.mxu0 0.0
    %826 = vmatpush1.msra.mxu0 0.0
    %827 = vmatprep.subr.mxu0 0.0
    %828 = vmatpush1.msra.mxu0 0.0
    %829 = vmatprep.subr.mxu0 0.0
    %830 = vmatpush1.msra.mxu0 0.0
    %831 = vmatprep.subr.mxu0 0.0
    %832 = vmatpush1.msra.mxu0 0.0
    %833 = vmatprep.subr.mxu0 0.0
    %834 = vmatpush1.msra.mxu0 0.0
    %835 = vmatprep.subr.mxu0 0.0
    %836 = vmatpush1.msra.mxu0 0.0
    %837 = vmatprep.mubr.f32.mxu0 0.0
    %838 = vmatmul.mubr.f32.gmra.mrb[0].mxu0 %v168
    %v839 = vpop.f32.mrb[0].mxu0
    %v840 = vadd.f32 0.0, %v839
    %v841 = vpop.f32.mrb[0].mxu0
    %842 = vmatprep.mubr.f32.mxu0 0.0
    %843 = vmatmul.mubr.f32.gmra.mrb[0].mxu0 %v171
    %v844 = vpop.f32.mrb[0].mxu0
    %v845 = vadd.f32 0.0, %v844
    %v846 = vpop.f32.mrb[0].mxu0
    %847 = vdwg.mxu0
    %v848 = vld [vmem:[%s4] sm:$0xff]
    %v849 = vld [vmem:[%s4 + $0x8] sm:$0xff]
    %v850 = vld [vmem:[%s4 + $0x10] sm:$0xff]
    %v851 = vld [vmem:[%s4 + $0x18] sm:$0xff]
    %v852 = vld [vmem:[%s4 + $0x20] sm:$0xff]
    %v853 = vld [vmem:[%s4 + $0x28] sm:$0xff]
    %v854 = vld [vmem:[%s4 + $0x30] sm:$0xff]
    %v855 = vld [vmem:[%s4 + $0x38] sm:$0xff]
    %v856 = vld [vmem:[%s5] sm:$0xff]
    %v857 = vld [vmem:[%s5 + $0x8] sm:$0xff]
    %v858 = vld [vmem:[%s5 + $0x10] sm:$0xff]
    %v859 = vld [vmem:[%s5 + $0x18] sm:$0xff]
    %861 = vset.pattern.permute.xlu0 0
    %862 = vperm.xlu0 %861, %v856
    %v863 = vpop.permute.xlu0 %862
    %866 = vset.pattern.permute.xlu0 0
    %867 = vperm.xlu0 %866, %v857
    %v868 = vpop.permute.xlu0 %867
    %871 = vset.pattern.permute.xlu0 0
    %872 = vperm.xlu0 %871, %v858
    %v873 = vpop.permute.xlu0 %872
    %876 = vset.pattern.permute.xlu0 0
    %877 = vperm.xlu0 %876, %v859
    %v878 = vpop.permute.xlu0 %877
    %vm880 = vcmask 130048
    %v882 = vsel %vm880, %v849, 0
    %v885 = vsel %vm880, %v851, 0
    %v888 = vsel %vm880, %v853, 0
    %v891 = vsel %vm880, %v855, 0
    %893 = vmatprep.subr.mxu0 0.0
    %894 = vmatpush1.msra.mxu0 %v240
    %895 = vmatprep.subr.mxu0 0.0
    %896 = vmatpush1.msra.mxu0 %v245
    %897 = vmatprep.subr.mxu0 0.0
    %898 = vmatpush1.msra.mxu0 %v315
    %899 = vmatprep.subr.mxu0 0.0
    %900 = vmatpush1.msra.mxu0 %v320
    %901 = vmatprep.subr.mxu0 0.0
    %902 = vmatpush1.msra.mxu0 %v390
    %903 = vmatprep.subr.mxu0 0.0
    %904 = vmatpush1.msra.mxu0 %v395
    %905 = vmatprep.subr.mxu0 0.0
    %906 = vmatpush1.msra.mxu0 %v465
    %907 = vmatprep.subr.mxu0 0.0
    %908 = vmatpush1.msra.mxu0 %v470
    %909 = vmatprep.subr.mxu0 0.0
    %910 = vmatpush1.msra.mxu0 %v540
    %911 = vmatprep.subr.mxu0 0.0
    %912 = vmatpush1.msra.mxu0 %v545
    %913 = vmatprep.subr.mxu0 0.0
    %914 = vmatpush1.msra.mxu0 %v615
    %915 = vmatprep.subr.mxu0 0.0
    %916 = vmatpush1.msra.mxu0 %v620
    %917 = vmatprep.subr.mxu0 0.0
    %918 = vmatpush1.msra.mxu0 %v690
    %919 = vmatprep.subr.mxu0 0.0
    %920 = vmatpush1.msra.mxu0 %v695
    %921 = vmatprep.subr.mxu0 0.0
    %922 = vmatpush1.msra.mxu0 %v765
    %923 = vmatprep.subr.mxu0 0.0
    %924 = vmatpush1.msra.mxu0 %v770
    %925 = vmatprep.subr.mxu0 0.0
    %926 = vmatpush1.msra.mxu0 %v840
    %927 = vmatprep.subr.mxu0 0.0
    %928 = vmatpush1.msra.mxu0 %v845
    %929 = vmatprep.subr.mxu0 0.0
    %930 = vmatpush1.msra.mxu0 0.0
    %931 = vmatprep.subr.mxu0 0.0
    %932 = vmatpush1.msra.mxu0 0.0
    %933 = vmatprep.subr.mxu0 0.0
    %934 = vmatpush1.msra.mxu0 0.0
    %935 = vmatprep.subr.mxu0 0.0
    %936 = vmatpush1.msra.mxu0 0.0
    %937 = vmatprep.subr.mxu0 0.0
    %938 = vmatpush1.msra.mxu0 0.0
    %939 = vmatprep.subr.mxu0 0.0
    %940 = vmatpush1.msra.mxu0 0.0
    %941 = vmatprep.subr.mxu0 0.0
    %942 = vmatpush1.msra.mxu0 0.0
    %943 = vmatprep.subr.mxu0 0.0
    %944 = vmatpush1.msra.mxu0 0.0
    %945 = vmatprep.subr.mxu0 0.0
    %946 = vmatpush1.msra.mxu0 0.0
    %947 = vmatprep.subr.mxu0 0.0
    %948 = vmatpush1.msra.mxu0 0.0
    %949 = vmatprep.subr.mxu0 0.0
    %950 = vmatpush1.msra.mxu0 0.0
    %951 = vmatprep.subr.mxu0 0.0
    %952 = vmatpush1.msra.mxu0 0.0
    %953 = vmatprep.subr.mxu0 0.0
    %954 = vmatpush1.msra.mxu0 0.0
    %955 = vmatprep.subr.mxu0 0.0
    %956 = vmatpush1.msra.mxu0 0.0
    %957 = vmatprep.mubr.f32.mxu0 %v882
    %958 = vmatmul.mubr.f32.gmra.mrb[0].mxu0 %v848
    %v959 = vpop.f32.mrb[0].mxu0
    %v960 = vadd.f32 %v863, %v959
    %v961 = vpop.f32.mrb[0].mxu0
    %962 = vmatprep.mubr.f32.mxu0 %v885
    %963 = vmatmul.mubr.f32.gmra.mrb[0].mxu0 %v850
    %v964 = vpop.f32.mrb[0].mxu0
    %v965 = vadd.f32 %v868, %v964
    %v966 = vpop.f32.mrb[0].mxu0
    %967 = vmatprep.mubr.f32.mxu0 %v888
    %968 = vmatmul.mubr.f32.gmra.mrb[0].mxu0 %v852
    %v969 = vpop.f32.mrb[0].mxu0
    %v970 = vadd.f32 %v873, %v969
    %v971 = vpop.f32.mrb[0].mxu0
    %972 = vmatprep.mubr.f32.mxu0 %v891
    %973 = vmatmul.mubr.f32.gmra.mrb[0].mxu0 %v854
    %v974 = vpop.f32.mrb[0].mxu0
    %v975 = vadd.f32 %v878, %v974
    %v976 = vpop.f32.mrb[0].mxu0
    %977 = vdwg.mxu0
    %v978 = vmax.f32 %v960, 0.0
    %v979 = vmax.f32 %v965, 0.0
    %v980 = vmax.f32 %v970, 0.0
    %v981 = vmax.f32 %v975, 0.0
    %v983 = vsel %vm166, %v978, 0
    %v986 = vsel %vm166, %v979, 0
    %v989 = vsel %vm166, %v980, 0
    %v992 = vsel %vm166, %v981, 0
    %994 = vmatprep.subr.mxu0 0.0
    %995 = vmatpush1.msra.mxu0 %v86
    %996 = vmatprep.subr.mxu0 0.0
    %997 = vmatpush1.msra.mxu0 %v87
    %998 = vmatprep.subr.mxu0 0.0
    %999 = vmatpush1.msra.mxu0 %v88
    %1000 = vmatprep.subr.mxu0 0.0
    %1001 = vmatpush1.msra.mxu0 %v89
    %1002 = vmatprep.subr.mxu0 0.0
    %1003 = vmatpush1.msra.mxu0 %v90
    %1004 = vmatprep.subr.mxu0 0.0
    %1005 = vmatpush1.msra.mxu0 %v91
    %1006 = vmatprep.subr.mxu0 0.0
    %1007 = vmatpush1.msra.mxu0 %v92
    %1008 = vmatprep.subr.mxu0 0.0
    %1009 = vmatpush1.msra.mxu0 %v93
    %1010 = vmatprep.subr.mxu0 0.0
    %1011 = vmatpush1.msra.mxu0 0.0
    %1012 = vmatprep.subr.mxu0 0.0
    %1013 = vmatpush1.msra.mxu0 0.0
    %1014 = vmatprep.subr.mxu0 0.0
    %1015 = vmatpush1.msra.mxu0 0.0
    %1016 = vmatprep.subr.mxu0 0.0
    %1017 = vmatpush1.msra.mxu0 0.0
    %1018 = vmatprep.subr.mxu0 0.0
    %1019 = vmatpush1.msra.mxu0 0.0
    %1020 = vmatprep.subr.mxu0 0.0
    %1021 = vmatpush1.msra.mxu0 0.0
    %1022 = vmatprep.subr.mxu0 0.0
    %1023 = vmatpush1.msra.mxu0 0.0
    %1024 = vmatprep.subr.mxu0 0.0
    %1025 = vmatpush1.msra.mxu0 0.0
    %1026 = vmatprep.subr.mxu0 0.0
    %1027 = vmatpush1.msra.mxu0 0.0
    %1028 = vmatprep.subr.mxu0 0.0
    %1029 = vmatpush1.msra.mxu0 0.0
    %1030 = vmatprep.subr.mxu0 0.0
    %1031 = vmatpush1.msra.mxu0 0.0
    %1032 = vmatprep.subr.mxu0 0.0
    %1033 = vmatpush1.msra.mxu0 0.0
    %1034 = vmatprep.subr.mxu0 0.0
    %1035 = vmatpush1.msra.mxu0 0.0
    %1036 = vmatprep.subr.mxu0 0.0
    %1037 = vmatpush1.msra.mxu0 0.0
    %1038 = vmatprep.subr.mxu0 0.0
    %1039 = vmatpush1.msra.mxu0 0.0
    %1040 = vmatprep.subr.mxu0 0.0
    %1041 = vmatpush1.msra.mxu0 0.0
    %1042 = vmatprep.subr.mxu0 0.0
    %1043 = vmatpush1.msra.mxu0 0.0
    %1044 = vmatprep.subr.mxu0 0.0
    %1045 = vmatpush1.msra.mxu0 0.0
    %1046 = vmatprep.subr.mxu0 0.0
    %1047 = vmatpush1.msra.mxu0 0.0
    %1048 = vmatprep.subr.mxu0 0.0
    %1049 = vmatpush1.msra.mxu0 0.0
    %1050 = vmatprep.subr.mxu0 0.0
    %1051 = vmatpush1.msra.mxu0 0.0
    %1052 = vmatprep.subr.mxu0 0.0
    %1053 = vmatpush1.msra.mxu0 0.0
    %1054 = vmatprep.subr.mxu0 0.0
    %1055 = vmatpush1.msra.mxu0 0.0
    %1056 = vmatprep.subr.mxu0 0.0
    %1057 = vmatpush1.msra.mxu0 0.0
    %1058 = vmatprep.mubr.f32.mxu0 0.0
    %1059 = vmatmul.mubr.f32.gmra.mrb[0].mxu0 %v983
    %v1060 = vpop.f32.mrb[0].mxu0
    %v1061 = vadd.f32 0.0, %v1060
    %v1062 = vpop.f32.mrb[0].mxu0
    %1063 = vmatprep.mubr.f32.mxu0 0.0
    %1064 = vmatmul.mubr.f32.gmra.mrb[0].mxu0 %v986
    %v1065 = vpop.f32.mrb[0].mxu0
    %v1066 = vadd.f32 0.0, %v1065
    %v1067 = vpop.f32.mrb[0].mxu0
    %1068 = vmatprep.mubr.f32.mxu0 0.0
    %1069 = vmatmul.mubr.f32.gmra.mrb[0].mxu0 %v989
    %v1070 = vpop.f32.mrb[0].mxu0
    %v1071 = vadd.f32 0.0, %v1070
    %v1072 = vpop.f32.mrb[0].mxu0
    %1073 = vmatprep.mubr.f32.mxu0 0.0
    %1074 = vmatmul.mubr.f32.gmra.mrb[0].mxu0 %v992
    %v1075 = vpop.f32.mrb[0].mxu0
    %v1076 = vadd.f32 0.0, %v1075
    %v1077 = vpop.f32.mrb[0].mxu0
    %1078 = vdwg.mxu0
    %1079 = vmatprep.subr.mxu0 0.0
    %1080 = vmatpush1.msra.mxu0 %v95
    %1081 = vmatprep.subr.mxu0 0.0
    %1082 = vmatpush1.msra.mxu0 %v96
    %1083 = vmatprep.subr.mxu0 0.0
    %1084 = vmatpush1.msra.mxu0 %v97
    %1085 = vmatprep.subr.mxu0 0.0
    %1086 = vmatpush1.msra.mxu0 %v98
    %1087 = vmatprep.subr.mxu0 0.0
    %1088 = vmatpush1.msra.mxu0 %v99
    %1089 = vmatprep.subr.mxu0 0.0
    %1090 = vmatpush1.msra.mxu0 %v100
    %1091 = vmatprep.subr.mxu0 0.0
    %1092 = vmatpush1.msra.mxu0 %v101
    %1093 = vmatprep.subr.mxu0 0.0
    %1094 = vmatpush1.msra.mxu0 %v102
    %1095 = vmatprep.subr.mxu0 0.0
    %1096 = vmatpush1.msra.mxu0 0.0
    %1097 = vmatprep.subr.mxu0 0.0
    %1098 = vmatpush1.msra.mxu0 0.0
    %1099 = vmatprep.subr.mxu0 0.0
    %1100 = vmatpush1.msra.mxu0 0.0
    %1101 = vmatprep.subr.mxu0 0.0
    %1102 = vmatpush1.msra.mxu0 0.0
    %1103 = vmatprep.subr.mxu0 0.0
    %1104 = vmatpush1.msra.mxu0 0.0
    %1105 = vmatprep.subr.mxu0 0.0
    %1106 = vmatpush1.msra.mxu0 0.0
    %1107 = vmatprep.subr.mxu0 0.0
    %1108 = vmatpush1.msra.mxu0 0.0
    %1109 = vmatprep.subr.mxu0 0.0
    %1110 = vmatpush1.msra.mxu0 0.0
    %1111 = vmatprep.subr.mxu0 0.0
    %1112 = vmatpush1.msra.mxu0 0.0
    %1113 = vmatprep.subr.mxu0 0.0
    %1114 = vmatpush1.msra.mxu0 0.0
    %1115 = vmatprep.subr.mxu0 0.0
    %1116 = vmatpush1.msra.mxu0 0.0
    %1117 = vmatprep.subr.mxu0 0.0
    %1118 = vmatpush1.msra.mxu0 0.0
    %1119 = vmatprep.subr.mxu0 0.0
    %1120 = vmatpush1.msra.mxu0 0.0
    %1121 = vmatprep.subr.mxu0 0.0
    %1122 = vmatpush1.msra.mxu0 0.0
    %1123 = vmatprep.subr.mxu0 0.0
    %1124 = vmatpush1.msra.mxu0 0.0
    %1125 = vmatprep.subr.mxu0 0.0
    %1126 = vmatpush1.msra.mxu0 0.0
    %1127 = vmatprep.subr.mxu0 0.0
    %1128 = vmatpush1.msra.mxu0 0.0
    %1129 = vmatprep.subr.mxu0 0.0
    %1130 = vmatpush1.msra.mxu0 0.0
    %1131 = vmatprep.subr.mxu0 0.0
    %1132 = vmatpush1.msra.mxu0 0.0
    %1133 = vmatprep.subr.mxu0 0.0
    %1134 = vmatpush1.msra.mxu0 0.0
    %1135 = vmatprep.subr.mxu0 0.0
    %1136 = vmatpush1.msra.mxu0 0.0
    %1137 = vmatprep.subr.mxu0 0.0
    %1138 = vmatpush1.msra.mxu0 0.0
    %1139 = vmatprep.subr.mxu0 0.0
    %1140 = vmatpush1.msra.mxu0 0.0
    %1141 = vmatprep.subr.mxu0 0.0
    %1142 = vmatpush1.msra.mxu0 0.0
    %1143 = vmatprep.mubr.f32.mxu0 0.0
    %1144 = vmatmul.mubr.f32.gmra.mrb[0].mxu0 %v983
    %v1145 = vpop.f32.mrb[0].mxu0
    %v1146 = vadd.f32 0.0, %v1145
    %v1147 = vpop.f32.mrb[0].mxu0
    %1148 = vmatprep.mubr.f32.mxu0 0.0
    %1149 = vmatmul.mubr.f32.gmra.mrb[0].mxu0 %v986
    %v1150 = vpop.f32.mrb[0].mxu0
    %v1151 = vadd.f32 0.0, %v1150
    %v1152 = vpop.f32.mrb[0].mxu0
    %1153 = vmatprep.mubr.f32.mxu0 0.0
    %1154 = vmatmul.mubr.f32.gmra.mrb[0].mxu0 %v989
    %v1155 = vpop.f32.mrb[0].mxu0
    %v1156 = vadd.f32 0.0, %v1155
    %v1157 = vpop.f32.mrb[0].mxu0
    %1158 = vmatprep.mubr.f32.mxu0 0.0
    %1159 = vmatmul.mubr.f32.gmra.mrb[0].mxu0 %v992
    %v1160 = vpop.f32.mrb[0].mxu0
    %v1161 = vadd.f32 0.0, %v1160
    %v1162 = vpop.f32.mrb[0].mxu0
    %1163 = vdwg.mxu0
    %1164 = vmatprep.subr.mxu0 0.0
    %1165 = vmatpush1.msra.mxu0 %v104
    %1166 = vmatprep.subr.mxu0 0.0
    %1167 = vmatpush1.msra.mxu0 %v105
    %1168 = vmatprep.subr.mxu0 0.0
    %1169 = vmatpush1.msra.mxu0 %v106
    %1170 = vmatprep.subr.mxu0 0.0
    %1171 = vmatpush1.msra.mxu0 %v107
    %1172 = vmatprep.subr.mxu0 0.0
    %1173 = vmatpush1.msra.mxu0 %v108
    %1174 = vmatprep.subr.mxu0 0.0
    %1175 = vmatpush1.msra.mxu0 %v109
    %1176 = vmatprep.subr.mxu0 0.0
    %1177 = vmatpush1.msra.mxu0 %v110
    %1178 = vmatprep.subr.mxu0 0.0
    %1179 = vmatpush1.msra.mxu0 %v111
    %1180 = vmatprep.subr.mxu0 0.0
    %1181 = vmatpush1.msra.mxu0 0.0
    %1182 = vmatprep.subr.mxu0 0.0
    %1183 = vmatpush1.msra.mxu0 0.0
    %1184 = vmatprep.subr.mxu0 0.0
    %1185 = vmatpush1.msra.mxu0 0.0
    %1186 = vmatprep.subr.mxu0 0.0
    %1187 = vmatpush1.msra.mxu0 0.0
    %1188 = vmatprep.subr.mxu0 0.0
    %1189 = vmatpush1.msra.mxu0 0.0
    %1190 = vmatprep.subr.mxu0 0.0
    %1191 = vmatpush1.msra.mxu0 0.0
    %1192 = vmatprep.subr.mxu0 0.0
    %1193 = vmatpush1.msra.mxu0 0.0
    %1194 = vmatprep.subr.mxu0 0.0
    %1195 = vmatpush1.msra.mxu0 0.0
    %1196 = vmatprep.subr.mxu0 0.0
    %1197 = vmatpush1.msra.mxu0 0.0
    %1198 = vmatprep.subr.mxu0 0.0
    %1199 = vmatpush1.msra.mxu0 0.0
    %1200 = vmatprep.subr.mxu0 0.0
    %1201 = vmatpush1.msra.mxu0 0.0
    %1202 = vmatprep.subr.mxu0 0.0
    %1203 = vmatpush1.msra.mxu0 0.0
    %1204 = vmatprep.subr.mxu0 0.0
    %1205 = vmatpush1.msra.mxu0 0.0
    %1206 = vmatprep.subr.mxu0 0.0
    %1207 = vmatpush1.msra.mxu0 0.0
    %1208 = vmatprep.subr.mxu0 0.0
    %1209 = vmatpush1.msra.mxu0 0.0
    %1210 = vmatprep.subr.mxu0 0.0
    %1211 = vmatpush1.msra.mxu0 0.0
    %1212 = vmatprep.subr.mxu0 0.0
    %1213 = vmatpush1.msra.mxu0 0.0
    %1214 = vmatprep.subr.mxu0 0.0
    %1215 = vmatpush1.msra.mxu0 0.0
    %1216 = vmatprep.subr.mxu0 0.0
    %1217 = vmatpush1.msra.mxu0 0.0
    %1218 = vmatprep.subr.mxu0 0.0
    %1219 = vmatpush1.msra.mxu0 0.0
    %1220 = vmatprep.subr.mxu0 0.0
    %1221 = vmatpush1.msra.mxu0 0.0
    %1222 = vmatprep.subr.mxu0 0.0
    %1223 = vmatpush1.msra.mxu0 0.0
    %1224 = vmatprep.subr.mxu0 0.0
    %1225 = vmatpush1.msra.mxu0 0.0
    %1226 = vmatprep.subr.mxu0 0.0
    %1227 = vmatpush1.msra.mxu0 0.0
    %1228 = vmatprep.mubr.f32.mxu0 0.0
    %1229 = vmatmul.mubr.f32.gmra.mrb[0].mxu0 %v983
    %v1230 = vpop.f32.mrb[0].mxu0
    %v1231 = vadd.f32 0.0, %v1230
    %v1232 = vpop.f32.mrb[0].mxu0
    %1233 = vmatprep.mubr.f32.mxu0 0.0
    %1234 = vmatmul.mubr.f32.gmra.mrb[0].mxu0 %v986
    %v1235 = vpop.f32.mrb[0].mxu0
    %v1236 = vadd.f32 0.0, %v1235
    %v1237 = vpop.f32.mrb[0].mxu0
    %1238 = vmatprep.mubr.f32.mxu0 0.0
    %1239 = vmatmul.mubr.f32.gmra.mrb[0].mxu0 %v989
    %v1240 = vpop.f32.mrb[0].mxu0
    %v1241 = vadd.f32 0.0, %v1240
    %v1242 = vpop.f32.mrb[0].mxu0
    %1243 = vmatprep.mubr.f32.mxu0 0.0
    %1244 = vmatmul.mubr.f32.gmra.mrb[0].mxu0 %v992
    %v1245 = vpop.f32.mrb[0].mxu0
    %v1246 = vadd.f32 0.0, %v1245
    %v1247 = vpop.f32.mrb[0].mxu0
    %1248 = vdwg.mxu0
    %1249 = vmatprep.subr.mxu0 0.0
    %1250 = vmatpush1.msra.mxu0 %v113
    %1251 = vmatprep.subr.mxu0 0.0
    %1252 = vmatpush1.msra.mxu0 %v114
    %1253 = vmatprep.subr.mxu0 0.0
    %1254 = vmatpush1.msra.mxu0 %v115
    %1255 = vmatprep.subr.mxu0 0.0
    %1256 = vmatpush1.msra.mxu0 %v116
    %1257 = vmatprep.subr.mxu0 0.0
    %1258 = vmatpush1.msra.mxu0 %v117
    %1259 = vmatprep.subr.mxu0 0.0
    %1260 = vmatpush1.msra.mxu0 %v118
    %1261 = vmatprep.subr.mxu0 0.0
    %1262 = vmatpush1.msra.mxu0 %v119
    %1263 = vmatprep.subr.mxu0 0.0
    %1264 = vmatpush1.msra.mxu0 %v120
    %1265 = vmatprep.subr.mxu0 0.0
    %1266 = vmatpush1.msra.mxu0 0.0
    %1267 = vmatprep.subr.mxu0 0.0
    %1268 = vmatpush1.msra.mxu0 0.0
    %1269 = vmatprep.subr.mxu0 0.0
    %1270 = vmatpush1.msra.mxu0 0.0
    %1271 = vmatprep.subr.mxu0 0.0
    %1272 = vmatpush1.msra.mxu0 0.0
    %1273 = vmatprep.subr.mxu0 0.0
    %1274 = vmatpush1.msra.mxu0 0.0
    %1275 = vmatprep.subr.mxu0 0.0
    %1276 = vmatpush1.msra.mxu0 0.0
    %1277 = vmatprep.subr.mxu0 0.0
    %1278 = vmatpush1.msra.mxu0 0.0
    %1279 = vmatprep.subr.mxu0 0.0
    %1280 = vmatpush1.msra.mxu0 0.0
    %1281 = vmatprep.subr.mxu0 0.0
    %1282 = vmatpush1.msra.mxu0 0.0
    %1283 = vmatprep.subr.mxu0 0.0
    %1284 = vmatpush1.msra.mxu0 0.0
    %1285 = vmatprep.subr.mxu0 0.0
    %1286 = vmatpush1.msra.mxu0 0.0
    %1287 = vmatprep.subr.mxu0 0.0
    %1288 = vmatpush1.msra.mxu0 0.0
    %1289 = vmatprep.subr.mxu0 0.0
    %1290 = vmatpush1.msra.mxu0 0.0
    %1291 = vmatprep.subr.mxu0 0.0
    %1292 = vmatpush1.msra.mxu0 0.0
    %1293 = vmatprep.subr.mxu0 0.0
    %1294 = vmatpush1.msra.mxu0 0.0
    %1295 = vmatprep.subr.mxu0 0.0
    %1296 = vmatpush1.msra.mxu0 0.0
    %1297 = vmatprep.subr.mxu0 0.0
    %1298 = vmatpush1.msra.mxu0 0.0
    %1299 = vmatprep.subr.mxu0 0.0
    %1300 = vmatpush1.msra.mxu0 0.0
    %1301 = vmatprep.subr.mxu0 0.0
    %1302 = vmatpush1.msra.mxu0 0.0
    %1303 = vmatprep.subr.mxu0 0.0
    %1304 = vmatpush1.msra.mxu0 0.0
    %1305 = vmatprep.subr.mxu0 0.0
    %1306 = vmatpush1.msra.mxu0 0.0
    %1307 = vmatprep.subr.mxu0 0.0
    %1308 = vmatpush1.msra.mxu0 0.0
    %1309 = vmatprep.subr.mxu0 0.0
    %1310 = vmatpush1.msra.mxu0 0.0
    %1311 = vmatprep.subr.mxu0 0.0
    %1312 = vmatpush1.msra.mxu0 0.0
    %1313 = vmatprep.mubr.f32.mxu0 0.0
    %1314 = vmatmul.mubr.f32.gmra.mrb[0].mxu0 %v983
    %v1315 = vpop.f32.mrb[0].mxu0
    %v1316 = vadd.f32 0.0, %v1315
    %v1317 = vpop.f32.mrb[0].mxu0
    %1318 = vmatprep.mubr.f32.mxu0 0.0
    %1319 = vmatmul.mubr.f32.gmra.mrb[0].mxu0 %v986
    %v1320 = vpop.f32.mrb[0].mxu0
    %v1321 = vadd.f32 0.0, %v1320
    %v1322 = vpop.f32.mrb[0].mxu0
    %1323 = vmatprep.mubr.f32.mxu0 0.0
    %1324 = vmatmul.mubr.f32.gmra.mrb[0].mxu0 %v989
    %v1325 = vpop.f32.mrb[0].mxu0
    %v1326 = vadd.f32 0.0, %v1325
    %v1327 = vpop.f32.mrb[0].mxu0
    %1328 = vmatprep.mubr.f32.mxu0 0.0
    %1329 = vmatmul.mubr.f32.gmra.mrb[0].mxu0 %v992
    %v1330 = vpop.f32.mrb[0].mxu0
    %v1331 = vadd.f32 0.0, %v1330
    %v1332 = vpop.f32.mrb[0].mxu0
    %1333 = vdwg.mxu0
    %1334 = vmatprep.subr.mxu0 0.0
    %1335 = vmatpush1.msra.mxu0 %v122
    %1336 = vmatprep.subr.mxu0 0.0
    %1337 = vmatpush1.msra.mxu0 %v123
    %1338 = vmatprep.subr.mxu0 0.0
    %1339 = vmatpush1.msra.mxu0 %v124
    %1340 = vmatprep.subr.mxu0 0.0
    %1341 = vmatpush1.msra.mxu0 %v125
    %1342 = vmatprep.subr.mxu0 0.0
    %1343 = vmatpush1.msra.mxu0 %v126
    %1344 = vmatprep.subr.mxu0 0.0
    %1345 = vmatpush1.msra.mxu0 %v127
    %1346 = vmatprep.subr.mxu0 0.0
    %1347 = vmatpush1.msra.mxu0 %v128
    %1348 = vmatprep.subr.mxu0 0.0
    %1349 = vmatpush1.msra.mxu0 %v129
    %1350 = vmatprep.subr.mxu0 0.0
    %1351 = vmatpush1.msra.mxu0 0.0
    %1352 = vmatprep.subr.mxu0 0.0
    %1353 = vmatpush1.msra.mxu0 0.0
    %1354 = vmatprep.subr.mxu0 0.0
    %1355 = vmatpush1.msra.mxu0 0.0
    %1356 = vmatprep.subr.mxu0 0.0
    %1357 = vmatpush1.msra.mxu0 0.0
    %1358 = vmatprep.subr.mxu0 0.0
    %1359 = vmatpush1.msra.mxu0 0.0
    %1360 = vmatprep.subr.mxu0 0.0
    %1361 = vmatpush1.msra.mxu0 0.0
    %1362 = vmatprep.subr.mxu0 0.0
    %1363 = vmatpush1.msra.mxu0 0.0
    %1364 = vmatprep.subr.mxu0 0.0
    %1365 = vmatpush1.msra.mxu0 0.0
    %1366 = vmatprep.subr.mxu0 0.0
    %1367 = vmatpush1.msra.mxu0 0.0
    %1368 = vmatprep.subr.mxu0 0.0
    %1369 = vmatpush1.msra.mxu0 0.0
    %1370 = vmatprep.subr.mxu0 0.0
    %1371 = vmatpush1.msra.mxu0 0.0
    %1372 = vmatprep.subr.mxu0 0.0
    %1373 = vmatpush1.msra.mxu0 0.0
    %1374 = vmatprep.subr.mxu0 0.0
    %1375 = vmatpush1.msra.mxu0 0.0
    %1376 = vmatprep.subr.mxu0 0.0
    %1377 = vmatpush1.msra.mxu0 0.0
    %1378 = vmatprep.subr.mxu0 0.0
    %1379 = vmatpush1.msra.mxu0 0.0
    %1380 = vmatprep.subr.mxu0 0.0
    %1381 = vmatpush1.msra.mxu0 0.0
    %1382 = vmatprep.subr.mxu0 0.0
    %1383 = vmatpush1.msra.mxu0 0.0
    %1384 = vmatprep.subr.mxu0 0.0
    %1385 = vmatpush1.msra.mxu0 0.0
    %1386 = vmatprep.subr.mxu0 0.0
    %1387 = vmatpush1.msra.mxu0 0.0
    %1388 = vmatprep.subr.mxu0 0.0
    %1389 = vmatpush1.msra.mxu0 0.0
    %1390 = vmatprep.subr.mxu0 0.0
    %1391 = vmatpush1.msra.mxu0 0.0
    %1392 = vmatprep.subr.mxu0 0.0
    %1393 = vmatpush1.msra.mxu0 0.0
    %1394 = vmatprep.subr.mxu0 0.0
    %1395 = vmatpush1.msra.mxu0 0.0
    %1396 = vmatprep.subr.mxu0 0.0
    %1397 = vmatpush1.msra.mxu0 0.0
    %1398 = vmatprep.mubr.f32.mxu0 0.0
    %1399 = vmatmul.mubr.f32.gmra.mrb[0].mxu0 %v983
    %v1400 = vpop.f32.mrb[0].mxu0
    %v1401 = vadd.f32 0.0, %v1400
    %v1402 = vpop.f32.mrb[0].mxu0
    %1403 = vmatprep.mubr.f32.mxu0 0.0
    %1404 = vmatmul.mubr.f32.gmra.mrb[0].mxu0 %v986
    %v1405 = vpop.f32.mrb[0].mxu0
    %v1406 = vadd.f32 0.0, %v1405
    %v1407 = vpop.f32.mrb[0].mxu0
    %1408 = vmatprep.mubr.f32.mxu0 0.0
    %1409 = vmatmul.mubr.f32.gmra.mrb[0].mxu0 %v989
    %v1410 = vpop.f32.mrb[0].mxu0
    %v1411 = vadd.f32 0.0, %v1410
    %v1412 = vpop.f32.mrb[0].mxu0
    %1413 = vmatprep.mubr.f32.mxu0 0.0
    %1414 = vmatmul.mubr.f32.gmra.mrb[0].mxu0 %v992
    %v1415 = vpop.f32.mrb[0].mxu0
    %v1416 = vadd.f32 0.0, %v1415
    %v1417 = vpop.f32.mrb[0].mxu0
    %1418 = vdwg.mxu0
    %1419 = vmatprep.subr.mxu0 0.0
    %1420 = vmatpush1.msra.mxu0 %v131
    %1421 = vmatprep.subr.mxu0 0.0
    %1422 = vmatpush1.msra.mxu0 %v132
    %1423 = vmatprep.subr.mxu0 0.0
    %1424 = vmatpush1.msra.mxu0 %v133
    %1425 = vmatprep.subr.mxu0 0.0
    %1426 = vmatpush1.msra.mxu0 %v134
    %1427 = vmatprep.subr.mxu0 0.0
    %1428 = vmatpush1.msra.mxu0 %v135
    %1429 = vmatprep.subr.mxu0 0.0
    %1430 = vmatpush1.msra.mxu0 %v136
    %1431 = vmatprep.subr.mxu0 0.0
    %1432 = vmatpush1.msra.mxu0 %v137
    %1433 = vmatprep.subr.mxu0 0.0
    %1434 = vmatpush1.msra.mxu0 %v138
    %1435 = vmatprep.subr.mxu0 0.0
    %1436 = vmatpush1.msra.mxu0 0.0
    %1437 = vmatprep.subr.mxu0 0.0
    %1438 = vmatpush1.msra.mxu0 0.0
    %1439 = vmatprep.subr.mxu0 0.0
    %1440 = vmatpush1.msra.mxu0 0.0
    %1441 = vmatprep.subr.mxu0 0.0
    %1442 = vmatpush1.msra.mxu0 0.0
    %1443 = vmatprep.subr.mxu0 0.0
    %1444 = vmatpush1.msra.mxu0 0.0
    %1445 = vmatprep.subr.mxu0 0.0
    %1446 = vmatpush1.msra.mxu0 0.0
    %1447 = vmatprep.subr.mxu0 0.0
    %1448 = vmatpush1.msra.mxu0 0.0
    %1449 = vmatprep.subr.mxu0 0.0
    %1450 = vmatpush1.msra.mxu0 0.0
    %1451 = vmatprep.subr.mxu0 0.0
    %1452 = vmatpush1.msra.mxu0 0.0
    %1453 = vmatprep.subr.mxu0 0.0
    %1454 = vmatpush1.msra.mxu0 0.0
    %1455 = vmatprep.subr.mxu0 0.0
    %1456 = vmatpush1.msra.mxu0 0.0
    %1457 = vmatprep.subr.mxu0 0.0
    %1458 = vmatpush1.msra.mxu0 0.0
    %1459 = vmatprep.subr.mxu0 0.0
    %1460 = vmatpush1.msra.mxu0 0.0
    %1461 = vmatprep.subr.mxu0 0.0
    %1462 = vmatpush1.msra.mxu0 0.0
    %1463 = vmatprep.subr.mxu0 0.0
    %1464 = vmatpush1.msra.mxu0 0.0
    %1465 = vmatprep.subr.mxu0 0.0
    %1466 = vmatpush1.msra.mxu0 0.0
    %1467 = vmatprep.subr.mxu0 0.0
    %1468 = vmatpush1.msra.mxu0 0.0
    %1469 = vmatprep.subr.mxu0 0.0
    %1470 = vmatpush1.msra.mxu0 0.0
    %1471 = vmatprep.subr.mxu0 0.0
    %1472 = vmatpush1.msra.mxu0 0.0
    %1473 = vmatprep.subr.mxu0 0.0
    %1474 = vmatpush1.msra.mxu0 0.0
    %1475 = vmatprep.subr.mxu0 0.0
    %1476 = vmatpush1.msra.mxu0 0.0
    %1477 = vmatprep.subr.mxu0 0.0
    %1478 = vmatpush1.msra.mxu0 0.0
    %1479 = vmatprep.subr.mxu0 0.0
    %1480 = vmatpush1.msra.mxu0 0.0
    %1481 = vmatprep.subr.mxu0 0.0
    %1482 = vmatpush1.msra.mxu0 0.0
    %1483 = vmatprep.mubr.f32.mxu0 0.0
    %1484 = vmatmul.mubr.f32.gmra.mrb[0].mxu0 %v983
    %v1485 = vpop.f32.mrb[0].mxu0
    %v1486 = vadd.f32 0.0, %v1485
    %v1487 = vpop.f32.mrb[0].mxu0
    %1488 = vmatprep.mubr.f32.mxu0 0.0
    %1489 = vmatmul.mubr.f32.gmra.mrb[0].mxu0 %v986
    %v1490 = vpop.f32.mrb[0].mxu0
    %v1491 = vadd.f32 0.0, %v1490
    %v1492 = vpop.f32.mrb[0].mxu0
    %1493 = vmatprep.mubr.f32.mxu0 0.0
    %1494 = vmatmul.mubr.f32.gmra.mrb[0].mxu0 %v989
    %v1495 = vpop.f32.mrb[0].mxu0
    %v1496 = vadd.f32 0.0, %v1495
    %v1497 = vpop.f32.mrb[0].mxu0
    %1498 = vmatprep.mubr.f32.mxu0 0.0
    %1499 = vmatmul.mubr.f32.gmra.mrb[0].mxu0 %v992
    %v1500 = vpop.f32.mrb[0].mxu0
    %v1501 = vadd.f32 0.0, %v1500
    %v1502 = vpop.f32.mrb[0].mxu0
    %1503 = vdwg.mxu0
    %1504 = vmatprep.subr.mxu0 0.0
    %1505 = vmatpush1.msra.mxu0 %v140
    %1506 = vmatprep.subr.mxu0 0.0
    %1507 = vmatpush1.msra.mxu0 %v141
    %1508 = vmatprep.subr.mxu0 0.0
    %1509 = vmatpush1.msra.mxu0 %v142
    %1510 = vmatprep.subr.mxu0 0.0
    %1511 = vmatpush1.msra.mxu0 %v143
    %1512 = vmatprep.subr.mxu0 0.0
    %1513 = vmatpush1.msra.mxu0 %v144
    %1514 = vmatprep.subr.mxu0 0.0
    %1515 = vmatpush1.msra.mxu0 %v145
    %1516 = vmatprep.subr.mxu0 0.0
    %1517 = vmatpush1.msra.mxu0 %v146
    %1518 = vmatprep.subr.mxu0 0.0
    %1519 = vmatpush1.msra.mxu0 %v147
    %1520 = vmatprep.subr.mxu0 0.0
    %1521 = vmatpush1.msra.mxu0 0.0
    %1522 = vmatprep.subr.mxu0 0.0
    %1523 = vmatpush1.msra.mxu0 0.0
    %1524 = vmatprep.subr.mxu0 0.0
    %1525 = vmatpush1.msra.mxu0 0.0
    %1526 = vmatprep.subr.mxu0 0.0
    %1527 = vmatpush1.msra.mxu0 0.0
    %1528 = vmatprep.subr.mxu0 0.0
    %1529 = vmatpush1.msra.mxu0 0.0
    %1530 = vmatprep.subr.mxu0 0.0
    %1531 = vmatpush1.msra.mxu0 0.0
    %1532 = vmatprep.subr.mxu0 0.0
    %1533 = vmatpush1.msra.mxu0 0.0
    %1534 = vmatprep.subr.mxu0 0.0
    %1535 = vmatpush1.msra.mxu0 0.0
    %1536 = vmatprep.subr.mxu0 0.0
    %1537 = vmatpush1.msra.mxu0 0.0
    %1538 = vmatprep.subr.mxu0 0.0
    %1539 = vmatpush1.msra.mxu0 0.0
    %1540 = vmatprep.subr.mxu0 0.0
    %1541 = vmatpush1.msra.mxu0 0.0
    %1542 = vmatprep.subr.mxu0 0.0
    %1543 = vmatpush1.msra.mxu0 0.0
    %1544 = vmatprep.subr.mxu0 0.0
    %1545 = vmatpush1.msra.mxu0 0.0
    %1546 = vmatprep.subr.mxu0 0.0
    %1547 = vmatpush1.msra.mxu0 0.0
    %1548 = vmatprep.subr.mxu0 0.0
    %1549 = vmatpush1.msra.mxu0 0.0
    %1550 = vmatprep.subr.mxu0 0.0
    %1551 = vmatpush1.msra.mxu0 0.0
    %1552 = vmatprep.subr.mxu0 0.0
    %1553 = vmatpush1.msra.mxu0 0.0
    %1554 = vmatprep.subr.mxu0 0.0
    %1555 = vmatpush1.msra.mxu0 0.0
    %1556 = vmatprep.subr.mxu0 0.0
    %1557 = vmatpush1.msra.mxu0 0.0
    %1558 = vmatprep.subr.mxu0 0.0
    %1559 = vmatpush1.msra.mxu0 0.0
    %1560 = vmatprep.subr.mxu0 0.0
    %1561 = vmatpush1.msra.mxu0 0.0
    %1562 = vmatprep.subr.mxu0 0.0
    %1563 = vmatpush1.msra.mxu0 0.0
    %1564 = vmatprep.subr.mxu0 0.0
    %1565 = vmatpush1.msra.mxu0 0.0
    %1566 = vmatprep.subr.mxu0 0.0
    %1567 = vmatpush1.msra.mxu0 0.0
    %1568 = vmatprep.mubr.f32.mxu0 0.0
    %1569 = vmatmul.mubr.f32.gmra.mrb[0].mxu0 %v983
    %v1570 = vpop.f32.mrb[0].mxu0
    %v1571 = vadd.f32 0.0, %v1570
    %v1572 = vpop.f32.mrb[0].mxu0
    %1573 = vmatprep.mubr.f32.mxu0 0.0
    %1574 = vmatmul.mubr.f32.gmra.mrb[0].mxu0 %v986
    %v1575 = vpop.f32.mrb[0].mxu0
    %v1576 = vadd.f32 0.0, %v1575
    %v1577 = vpop.f32.mrb[0].mxu0
    %1578 = vmatprep.mubr.f32.mxu0 0.0
    %1579 = vmatmul.mubr.f32.gmra.mrb[0].mxu0 %v989
    %v1580 = vpop.f32.mrb[0].mxu0
    %v1581 = vadd.f32 0.0, %v1580
    %v1582 = vpop.f32.mrb[0].mxu0
    %1583 = vmatprep.mubr.f32.mxu0 0.0
    %1584 = vmatmul.mubr.f32.gmra.mrb[0].mxu0 %v992
    %v1585 = vpop.f32.mrb[0].mxu0
    %v1586 = vadd.f32 0.0, %v1585
    %v1587 = vpop.f32.mrb[0].mxu0
    %1588 = vdwg.mxu0
    %1589 = vmatprep.subr.mxu0 0.0
    %1590 = vmatpush1.msra.mxu0 %v149
    %1591 = vmatprep.subr.mxu0 0.0
    %1592 = vmatpush1.msra.mxu0 %v150
    %1593 = vmatprep.subr.mxu0 0.0
    %1594 = vmatpush1.msra.mxu0 %v151
    %1595 = vmatprep.subr.mxu0 0.0
    %1596 = vmatpush1.msra.mxu0 %v152
    %1597 = vmatprep.subr.mxu0 0.0
    %1598 = vmatpush1.msra.mxu0 %v153
    %1599 = vmatprep.subr.mxu0 0.0
    %1600 = vmatpush1.msra.mxu0 %v154
    %1601 = vmatprep.subr.mxu0 0.0
    %1602 = vmatpush1.msra.mxu0 %v155
    %1603 = vmatprep.subr.mxu0 0.0
    %1604 = vmatpush1.msra.mxu0 %v156
    %1605 = vmatprep.subr.mxu0 0.0
    %1606 = vmatpush1.msra.mxu0 0.0
    %1607 = vmatprep.subr.mxu0 0.0
    %1608 = vmatpush1.msra.mxu0 0.0
    %1609 = vmatprep.subr.mxu0 0.0
    %1610 = vmatpush1.msra.mxu0 0.0
    %1611 = vmatprep.subr.mxu0 0.0
    %1612 = vmatpush1.msra.mxu0 0.0
    %1613 = vmatprep.subr.mxu0 0.0
    %1614 = vmatpush1.msra.mxu0 0.0
    %1615 = vmatprep.subr.mxu0 0.0
    %1616 = vmatpush1.msra.mxu0 0.0
    %1617 = vmatprep.subr.mxu0 0.0
    %1618 = vmatpush1.msra.mxu0 0.0
    %1619 = vmatprep.subr.mxu0 0.0
    %1620 = vmatpush1.msra.mxu0 0.0
    %1621 = vmatprep.subr.mxu0 0.0
    %1622 = vmatpush1.msra.mxu0 0.0
    %1623 = vmatprep.subr.mxu0 0.0
    %1624 = vmatpush1.msra.mxu0 0.0
    %1625 = vmatprep.subr.mxu0 0.0
    %1626 = vmatpush1.msra.mxu0 0.0
    %1627 = vmatprep.subr.mxu0 0.0
    %1628 = vmatpush1.msra.mxu0 0.0
    %1629 = vmatprep.subr.mxu0 0.0
    %1630 = vmatpush1.msra.mxu0 0.0
    %1631 = vmatprep.subr.mxu0 0.0
    %1632 = vmatpush1.msra.mxu0 0.0
    %1633 = vmatprep.subr.mxu0 0.0
    %1634 = vmatpush1.msra.mxu0 0.0
    %1635 = vmatprep.subr.mxu0 0.0
    %1636 = vmatpush1.msra.mxu0 0.0
    %1637 = vmatprep.subr.mxu0 0.0
    %1638 = vmatpush1.msra.mxu0 0.0
    %1639 = vmatprep.subr.mxu0 0.0
    %1640 = vmatpush1.msra.mxu0 0.0
    %1641 = vmatprep.subr.mxu0 0.0
    %1642 = vmatpush1.msra.mxu0 0.0
    %1643 = vmatprep.subr.mxu0 0.0
    %1644 = vmatpush1.msra.mxu0 0.0
    %1645 = vmatprep.subr.mxu0 0.0
    %1646 = vmatpush1.msra.mxu0 0.0
    %1647 = vmatprep.subr.mxu0 0.0
    %1648 = vmatpush1.msra.mxu0 0.0
    %1649 = vmatprep.subr.mxu0 0.0
    %1650 = vmatpush1.msra.mxu0 0.0
    %1651 = vmatprep.subr.mxu0 0.0
    %1652 = vmatpush1.msra.mxu0 0.0
    %1653 = vmatprep.mubr.f32.mxu0 0.0
    %1654 = vmatmul.mubr.f32.gmra.mrb[0].mxu0 %v983
    %v1655 = vpop.f32.mrb[0].mxu0
    %v1656 = vadd.f32 0.0, %v1655
    %v1657 = vpop.f32.mrb[0].mxu0
    %1658 = vmatprep.mubr.f32.mxu0 0.0
    %1659 = vmatmul.mubr.f32.gmra.mrb[0].mxu0 %v986
    %v1660 = vpop.f32.mrb[0].mxu0
    %v1661 = vadd.f32 0.0, %v1660
    %v1662 = vpop.f32.mrb[0].mxu0
    %1663 = vmatprep.mubr.f32.mxu0 0.0
    %1664 = vmatmul.mubr.f32.gmra.mrb[0].mxu0 %v989
    %v1665 = vpop.f32.mrb[0].mxu0
    %v1666 = vadd.f32 0.0, %v1665
    %v1667 = vpop.f32.mrb[0].mxu0
    %1668 = vmatprep.mubr.f32.mxu0 0.0
    %1669 = vmatmul.mubr.f32.gmra.mrb[0].mxu0 %v992
    %v1670 = vpop.f32.mrb[0].mxu0
    %v1671 = vadd.f32 0.0, %v1670
    %v1672 = vpop.f32.mrb[0].mxu0
    %1673 = vdwg.mxu0
    %1674 = vmatprep.subr.mxu0 0.0
    %1675 = vmatpush1.msra.mxu0 %v158
    %1676 = vmatprep.subr.mxu0 0.0
    %1677 = vmatpush1.msra.mxu0 %v159
    %1678 = vmatprep.subr.mxu0 0.0
    %1679 = vmatpush1.msra.mxu0 %v160
    %1680 = vmatprep.subr.mxu0 0.0
    %1681 = vmatpush1.msra.mxu0 %v161
    %1682 = vmatprep.subr.mxu0 0.0
    %1683 = vmatpush1.msra.mxu0 %v162
    %1684 = vmatprep.subr.mxu0 0.0
    %1685 = vmatpush1.msra.mxu0 %v163
    %1686 = vmatprep.subr.mxu0 0.0
    %1687 = vmatpush1.msra.mxu0 %v164
    %1688 = vmatprep.subr.mxu0 0.0
    %1689 = vmatpush1.msra.mxu0 %v165
    %1690 = vmatprep.subr.mxu0 0.0
    %1691 = vmatpush1.msra.mxu0 0.0
    %1692 = vmatprep.subr.mxu0 0.0
    %1693 = vmatpush1.msra.mxu0 0.0
    %1694 = vmatprep.subr.mxu0 0.0
    %1695 = vmatpush1.msra.mxu0 0.0
    %1696 = vmatprep.subr.mxu0 0.0
    %1697 = vmatpush1.msra.mxu0 0.0
    %1698 = vmatprep.subr.mxu0 0.0
    %1699 = vmatpush1.msra.mxu0 0.0
    %1700 = vmatprep.subr.mxu0 0.0
    %1701 = vmatpush1.msra.mxu0 0.0
    %1702 = vmatprep.subr.mxu0 0.0
    %1703 = vmatpush1.msra.mxu0 0.0
    %1704 = vmatprep.subr.mxu0 0.0
    %1705 = vmatpush1.msra.mxu0 0.0
    %1706 = vmatprep.subr.mxu0 0.0
    %1707 = vmatpush1.msra.mxu0 0.0
    %1708 = vmatprep.subr.mxu0 0.0
    %1709 = vmatpush1.msra.mxu0 0.0
    %1710 = vmatprep.subr.mxu0 0.0
    %1711 = vmatpush1.msra.mxu0 0.0
    %1712 = vmatprep.subr.mxu0 0.0
    %1713 = vmatpush1.msra.mxu0 0.0
    %1714 = vmatprep.subr.mxu0 0.0
    %1715 = vmatpush1.msra.mxu0 0.0
    %1716 = vmatprep.subr.mxu0 0.0
    %1717 = vmatpush1.msra.mxu0 0.0
    %1718 = vmatprep.subr.mxu0 0.0
    %1719 = vmatpush1.msra.mxu0 0.0
    %1720 = vmatprep.subr.mxu0 0.0
    %1721 = vmatpush1.msra.mxu0 0.0
    %1722 = vmatprep.subr.mxu0 0.0
    %1723 = vmatpush1.msra.mxu0 0.0
    %1724 = vmatprep.subr.mxu0 0.0
    %1725 = vmatpush1.msra.mxu0 0.0
    %1726 = vmatprep.subr.mxu0 0.0
    %1727 = vmatpush1.msra.mxu0 0.0
    %1728 = vmatprep.subr.mxu0 0.0
    %1729 = vmatpush1.msra.mxu0 0.0
    %1730 = vmatprep.subr.mxu0 0.0
    %1731 = vmatpush1.msra.mxu0 0.0
    %1732 = vmatprep.subr.mxu0 0.0
    %1733 = vmatpush1.msra.mxu0 0.0
    %1734 = vmatprep.subr.mxu0 0.0
    %1735 = vmatpush1.msra.mxu0 0.0
    %1736 = vmatprep.subr.mxu0 0.0
    %1737 = vmatpush1.msra.mxu0 0.0
    %1738 = vmatprep.mubr.f32.mxu0 0.0
    %1739 = vmatmul.mubr.f32.gmra.mrb[0].mxu0 %v983
    %v1740 = vpop.f32.mrb[0].mxu0
    %v1741 = vadd.f32 0.0, %v1740
    %v1742 = vpop.f32.mrb[0].mxu0
    %1743 = vmatprep.mubr.f32.mxu0 0.0
    %1744 = vmatmul.mubr.f32.gmra.mrb[0].mxu0 %v986
    %v1745 = vpop.f32.mrb[0].mxu0
    %v1746 = vadd.f32 0.0, %v1745
    %v1747 = vpop.f32.mrb[0].mxu0
    %1748 = vmatprep.mubr.f32.mxu0 0.0
    %1749 = vmatmul.mubr.f32.gmra.mrb[0].mxu0 %v989
    %v1750 = vpop.f32.mrb[0].mxu0
    %v1751 = vadd.f32 0.0, %v1750
    %v1752 = vpop.f32.mrb[0].mxu0
    %1753 = vmatprep.mubr.f32.mxu0 0.0
    %1754 = vmatmul.mubr.f32.gmra.mrb[0].mxu0 %v992
    %v1755 = vpop.f32.mrb[0].mxu0
    %v1756 = vadd.f32 0.0, %v1755
    %v1757 = vpop.f32.mrb[0].mxu0
    %1758 = vdwg.mxu0
    %v1759 = vld [vmem:[%s6] sm:$0xff]
    %v1760 = vld [vmem:[%s6 + $0x8] sm:$0xff]
    %v1761 = vld [vmem:[%s6 + $0x10] sm:$0xff]
    %v1762 = vld [vmem:[%s6 + $0x18] sm:$0xff]
    %v1763 = vld [vmem:[%s6 + $0x20] sm:$0xff]
    %v1764 = vld [vmem:[%s6 + $0x28] sm:$0xff]
    %v1765 = vld [vmem:[%s6 + $0x30] sm:$0xff]
    %v1766 = vld [vmem:[%s6 + $0x38] sm:$0xff]
    %v1767 = vld [vmem:[%s6 + $0x40] sm:$0xff]
    %v1768 = vld [vmem:[%s6 + $0x48] sm:$0xff]
    %v1769 = vld [vmem:[%s6 + $0x50] sm:$0xff]
    %v1770 = vld [vmem:[%s6 + $0x58] sm:$0xff]
    %v1771 = vld [vmem:[%s7] sm:$0xff]
    %v1772 = vld [vmem:[%s7 + $0x8] sm:$0xff]
    %v1773 = vld [vmem:[%s7 + $0x10] sm:$0xff]
    %v1774 = vld [vmem:[%s7 + $0x18] sm:$0xff]
    %1776 = vset.pattern.permute.xlu0 0
    %1777 = vperm.xlu0 %1776, %v1771
    %v1778 = vpop.permute.xlu0 %1777
    %1781 = vset.pattern.permute.xlu0 0
    %1782 = vperm.xlu0 %1781, %v1772
    %v1783 = vpop.permute.xlu0 %1782
    %1786 = vset.pattern.permute.xlu0 0
    %1787 = vperm.xlu0 %1786, %v1773
    %v1788 = vpop.permute.xlu0 %1787
    %1791 = vset.pattern.permute.xlu0 0
    %1792 = vperm.xlu0 %1791, %v1774
    %v1793 = vpop.permute.xlu0 %1792
    %vm1795 = vcmask 261120
    %v1797 = vsel %vm1795, %v1761, 0
    %v1800 = vsel %vm1795, %v1764, 0
    %v1803 = vsel %vm1795, %v1767, 0
    %v1806 = vsel %vm1795, %v1770, 0
    %1808 = vmatprep.subr.mxu0 0.0
    %1809 = vmatpush1.msra.mxu0 %v1061
    %1810 = vmatprep.subr.mxu0 0.0
    %1811 = vmatpush1.msra.mxu0 %v1066
    %1812 = vmatprep.subr.mxu0 0.0
    %1813 = vmatpush1.msra.mxu0 %v1071
    %1814 = vmatprep.subr.mxu0 0.0
    %1815 = vmatpush1.msra.mxu0 %v1076
    %1816 = vmatprep.subr.mxu0 0.0
    %1817 = vmatpush1.msra.mxu0 %v1146
    %1818 = vmatprep.subr.mxu0 0.0
    %1819 = vmatpush1.msra.mxu0 %v1151
    %1820 = vmatprep.subr.mxu0 0.0
    %1821 = vmatpush1.msra.mxu0 %v1156
    %1822 = vmatprep.subr.mxu0 0.0
    %1823 = vmatpush1.msra.mxu0 %v1161
    %1824 = vmatprep.subr.mxu0 0.0
    %1825 = vmatpush1.msra.mxu0 %v1231
    %1826 = vmatprep.subr.mxu0 0.0
    %1827 = vmatpush1.msra.mxu0 %v1236
    %1828 = vmatprep.subr.mxu0 0.0
    %1829 = vmatpush1.msra.mxu0 %v1241
    %1830 = vmatprep.subr.mxu0 0.0
    %1831 = vmatpush1.msra.mxu0 %v1246
    %1832 = vmatprep.subr.mxu0 0.0
    %1833 = vmatpush1.msra.mxu0 %v1316
    %1834 = vmatprep.subr.mxu0 0.0
    %1835 = vmatpush1.msra.mxu0 %v1321
    %1836 = vmatprep.subr.mxu0 0.0
    %1837 = vmatpush1.msra.mxu0 %v1326
    %1838 = vmatprep.subr.mxu0 0.0
    %1839 = vmatpush1.msra.mxu0 %v1331
    %1840 = vmatprep.subr.mxu0 0.0
    %1841 = vmatpush1.msra.mxu0 %v1401
    %1842 = vmatprep.subr.mxu0 0.0
    %1843 = vmatpush1.msra.mxu0 %v1406
    %1844 = vmatprep.subr.mxu0 0.0
    %1845 = vmatpush1.msra.mxu0 %v1411
    %1846 = vmatprep.subr.mxu0 0.0
    %1847 = vmatpush1.msra.mxu0 %v1416
    %1848 = vmatprep.subr.mxu0 0.0
    %1849 = vmatpush1.msra.mxu0 %v1486
    %1850 = vmatprep.subr.mxu0 0.0
    %1851 = vmatpush1.msra.mxu0 %v1491
    %1852 = vmatprep.subr.mxu0 0.0
    %1853 = vmatpush1.msra.mxu0 %v1496
    %1854 = vmatprep.subr.mxu0 0.0
    %1855 = vmatpush1.msra.mxu0 %v1501
    %1856 = vmatprep.subr.mxu0 0.0
    %1857 = vmatpush1.msra.mxu0 %v1571
    %1858 = vmatprep.subr.mxu0 0.0
    %1859 = vmatpush1.msra.mxu0 %v1576
    %1860 = vmatprep.subr.mxu0 0.0
    %1861 = vmatpush1.msra.mxu0 %v1581
    %1862 = vmatprep.subr.mxu0 0.0
    %1863 = vmatpush1.msra.mxu0 %v1586
    %1864 = vmatprep.subr.mxu0 0.0
    %1865 = vmatpush1.msra.mxu0 %v1656
    %1866 = vmatprep.subr.mxu0 0.0
    %1867 = vmatpush1.msra.mxu0 %v1661
    %1868 = vmatprep.subr.mxu0 0.0
    %1869 = vmatpush1.msra.mxu0 %v1666
    %1870 = vmatprep.subr.mxu0 0.0
    %1871 = vmatpush1.msra.mxu0 %v1671
    %1872 = vmatprep.mubr.f32.mxu0 %v1760
    %1873 = vmatmul.mubr.f32.gmra.mrb[0].mxu0 %v1759
    %v1874 = vpop.f32.mrb[0].mxu0
    %v1875 = vadd.f32 %v1778, %v1874
    %v1876 = vpop.f32.mrb[0].mxu0
    %1877 = vmatprep.mubr.f32.mxu0 %v1763
    %1878 = vmatmul.mubr.f32.gmra.mrb[0].mxu0 %v1762
    %v1879 = vpop.f32.mrb[0].mxu0
    %v1880 = vadd.f32 %v1783, %v1879
    %v1881 = vpop.f32.mrb[0].mxu0
    %1882 = vmatprep.mubr.f32.mxu0 %v1766
    %1883 = vmatmul.mubr.f32.gmra.mrb[0].mxu0 %v1765
    %v1884 = vpop.f32.mrb[0].mxu0
    %v1885 = vadd.f32 %v1788, %v1884
    %v1886 = vpop.f32.mrb[0].mxu0
    %1887 = vmatprep.mubr.f32.mxu0 %v1769
    %1888 = vmatmul.mubr.f32.gmra.mrb[0].mxu0 %v1768
    %v1889 = vpop.f32.mrb[0].mxu0
    %v1890 = vadd.f32 %v1793, %v1889
    %v1891 = vpop.f32.mrb[0].mxu0
    %1892 = vdwg.mxu0
    %1893 = vmatprep.subr.mxu0 0.0
    %1894 = vmatpush1.msra.mxu0 %v1741
    %1895 = vmatprep.subr.mxu0 0.0
    %1896 = vmatpush1.msra.mxu0 %v1746
    %1897 = vmatprep.subr.mxu0 0.0
    %1898 = vmatpush1.msra.mxu0 %v1751
    %1899 = vmatprep.subr.mxu0 0.0
    %1900 = vmatpush1.msra.mxu0 %v1756
    %1901 = vmatprep.subr.mxu0 0.0
    %1902 = vmatpush1.msra.mxu0 0.0
    %1903 = vmatprep.subr.mxu0 0.0
    %1904 = vmatpush1.msra.mxu0 0.0
    %1905 = vmatprep.subr.mxu0 0.0
    %1906 = vmatpush1.msra.mxu0 0.0
    %1907 = vmatprep.subr.mxu0 0.0
    %1908 = vmatpush1.msra.mxu0 0.0
    %1909 = vmatprep.subr.mxu0 0.0
    %1910 = vmatpush1.msra.mxu0 0.0
    %1911 = vmatprep.subr.mxu0 0.0
    %1912 = vmatpush1.msra.mxu0 0.0
    %1913 = vmatprep.subr.mxu0 0.0
    %1914 = vmatpush1.msra.mxu0 0.0
    %1915 = vmatprep.subr.mxu0 0.0
    %1916 = vmatpush1.msra.mxu0 0.0
    %1917 = vmatprep.subr.mxu0 0.0
    %1918 = vmatpush1.msra.mxu0 0.0
    %1919 = vmatprep.subr.mxu0 0.0
    %1920 = vmatpush1.msra.mxu0 0.0
    %1921 = vmatprep.subr.mxu0 0.0
    %1922 = vmatpush1.msra.mxu0 0.0
    %1923 = vmatprep.subr.mxu0 0.0
    %1924 = vmatpush1.msra.mxu0 0.0
    %1925 = vmatprep.subr.mxu0 0.0
    %1926 = vmatpush1.msra.mxu0 0.0
    %1927 = vmatprep.subr.mxu0 0.0
    %1928 = vmatpush1.msra.mxu0 0.0
    %1929 = vmatprep.subr.mxu0 0.0
    %1930 = vmatpush1.msra.mxu0 0.0
    %1931 = vmatprep.subr.mxu0 0.0
    %1932 = vmatpush1.msra.mxu0 0.0
    %1933 = vmatprep.subr.mxu0 0.0
    %1934 = vmatpush1.msra.mxu0 0.0
    %1935 = vmatprep.subr.mxu0 0.0
    %1936 = vmatpush1.msra.mxu0 0.0
    %1937 = vmatprep.subr.mxu0 0.0
    %1938 = vmatpush1.msra.mxu0 0.0
    %1939 = vmatprep.subr.mxu0 0.0
    %1940 = vmatpush1.msra.mxu0 0.0
    %1941 = vmatprep.subr.mxu0 0.0
    %1942 = vmatpush1.msra.mxu0 0.0
    %1943 = vmatprep.subr.mxu0 0.0
    %1944 = vmatpush1.msra.mxu0 0.0
    %1945 = vmatprep.subr.mxu0 0.0
    %1946 = vmatpush1.msra.mxu0 0.0
    %1947 = vmatprep.subr.mxu0 0.0
    %1948 = vmatpush1.msra.mxu0 0.0
    %1949 = vmatprep.subr.mxu0 0.0
    %1950 = vmatpush1.msra.mxu0 0.0
    %1951 = vmatprep.subr.mxu0 0.0
    %1952 = vmatpush1.msra.mxu0 0.0
    %1953 = vmatprep.subr.mxu0 0.0
    %1954 = vmatpush1.msra.mxu0 0.0
    %1955 = vmatprep.subr.mxu0 0.0
    %1956 = vmatpush1.msra.mxu0 0.0
    %1957 = vmatprep.mubr.f32.mxu0 0.0
    %1958 = vmatmul.mubr.f32.gmra.mrb[0].mxu0 %v1797
    %v1959 = vpop.f32.mrb[0].mxu0
    %v1960 = vadd.f32 %v1875, %v1959
    %v1961 = vpop.f32.mrb[0].mxu0
    %1962 = vmatprep.mubr.f32.mxu0 0.0
    %1963 = vmatmul.mubr.f32.gmra.mrb[0].mxu0 %v1800
    %v1964 = vpop.f32.mrb[0].mxu0
    %v1965 = vadd.f32 %v1880, %v1964
    %v1966 = vpop.f32.mrb[0].mxu0
    %1967 = vmatprep.mubr.f32.mxu0 0.0
    %1968 = vmatmul.mubr.f32.gmra.mrb[0].mxu0 %v1803
    %v1969 = vpop.f32.mrb[0].mxu0
    %v1970 = vadd.f32 %v1885, %v1969
    %v1971 = vpop.f32.mrb[0].mxu0
    %1972 = vmatprep.mubr.f32.mxu0 0.0
    %1973 = vmatmul.mubr.f32.gmra.mrb[0].mxu0 %v1806
    %v1974 = vpop.f32.mrb[0].mxu0
    %v1975 = vadd.f32 %v1890, %v1974
    %v1976 = vpop.f32.mrb[0].mxu0
    %1977 = vdwg.mxu0
    %v1978 = vmax.f32 %v1960, 0.0
    %v1979 = vmax.f32 %v1965, 0.0
    %v1980 = vmax.f32 %v1970, 0.0
    %v1981 = vmax.f32 %v1975, 0.0
    %v1983 = vsel %vm166, %v1978, 0
    %v1986 = vsel %vm166, %v1979, 0
    %v1989 = vsel %vm166, %v1980, 0
    %v1992 = vsel %vm166, %v1981, 0
    %1994 = vmatprep.subr.mxu0 0.0
    %1995 = vmatpush1.msra.mxu0 %v86
    %1996 = vmatprep.subr.mxu0 0.0
    %1997 = vmatpush1.msra.mxu0 %v87
    %1998 = vmatprep.subr.mxu0 0.0
    %1999 = vmatpush1.msra.mxu0 %v88
    %2000 = vmatprep.subr.mxu0 0.0
    %2001 = vmatpush1.msra.mxu0 %v89
    %2002 = vmatprep.subr.mxu0 0.0
    %2003 = vmatpush1.msra.mxu0 %v90
    %2004 = vmatprep.subr.mxu0 0.0
    %2005 = vmatpush1.msra.mxu0 %v91
    %2006 = vmatprep.subr.mxu0 0.0
    %2007 = vmatpush1.msra.mxu0 %v92
    %2008 = vmatprep.subr.mxu0 0.0
    %2009 = vmatpush1.msra.mxu0 %v93
    %2010 = vmatprep.subr.mxu0 0.0
    %2011 = vmatpush1.msra.mxu0 0.0
    %2012 = vmatprep.subr.mxu0 0.0
    %2013 = vmatpush1.msra.mxu0 0.0
    %2014 = vmatprep.subr.mxu0 0.0
    %2015 = vmatpush1.msra.mxu0 0.0
    %2016 = vmatprep.subr.mxu0 0.0
    %2017 = vmatpush1.msra.mxu0 0.0
    %2018 = vmatprep.subr.mxu0 0.0
    %2019 = vmatpush1.msra.mxu0 0.0
    %2020 = vmatprep.subr.mxu0 0.0
    %2021 = vmatpush1.msra.mxu0 0.0
    %2022 = vmatprep.subr.mxu0 0.0
    %2023 = vmatpush1.msra.mxu0 0.0
    %2024 = vmatprep.subr.mxu0 0.0
    %2025 = vmatpush1.msra.mxu0 0.0
    %2026 = vmatprep.subr.mxu0 0.0
    %2027 = vmatpush1.msra.mxu0 0.0
    %2028 = vmatprep.subr.mxu0 0.0
    %2029 = vmatpush1.msra.mxu0 0.0
    %2030 = vmatprep.subr.mxu0 0.0
    %2031 = vmatpush1.msra.mxu0 0.0
    %2032 = vmatprep.subr.mxu0 0.0
    %2033 = vmatpush1.msra.mxu0 0.0
    %2034 = vmatprep.subr.mxu0 0.0
    %2035 = vmatpush1.msra.mxu0 0.0
    %2036 = vmatprep.subr.mxu0 0.0
    %2037 = vmatpush1.msra.mxu0 0.0
    %2038 = vmatprep.subr.mxu0 0.0
    %2039 = vmatpush1.msra.mxu0 0.0
    %2040 = vmatprep.subr.mxu0 0.0
    %2041 = vmatpush1.msra.mxu0 0.0
    %2042 = vmatprep.subr.mxu0 0.0
    %2043 = vmatpush1.msra.mxu0 0.0
    %2044 = vmatprep.subr.mxu0 0.0
    %2045 = vmatpush1.msra.mxu0 0.0
    %2046 = vmatprep.subr.mxu0 0.0
    %2047 = vmatpush1.msra.mxu0 0.0
    %2048 = vmatprep.subr.mxu0 0.0
    %2049 = vmatpush1.msra.mxu0 0.0
    %2050 = vmatprep.subr.mxu0 0.0
    %2051 = vmatpush1.msra.mxu0 0.0
    %2052 = vmatprep.subr.mxu0 0.0
    %2053 = vmatpush1.msra.mxu0 0.0
    %2054 = vmatprep.subr.mxu0 0.0
    %2055 = vmatpush1.msra.mxu0 0.0
    %2056 = vmatprep.subr.mxu0 0.0
    %2057 = vmatpush1.msra.mxu0 0.0
    %2058 = vmatprep.mubr.f32.mxu0 0.0
    %2059 = vmatmul.mubr.f32.gmra.mrb[0].mxu0 %v1983
    %v2060 = vpop.f32.mrb[0].mxu0
    %v2061 = vadd.f32 0.0, %v2060
    %v2062 = vpop.f32.mrb[0].mxu0
    %2063 = vmatprep.mubr.f32.mxu0 0.0
    %2064 = vmatmul.mubr.f32.gmra.mrb[0].mxu0 %v1986
    %v2065 = vpop.f32.mrb[0].mxu0
    %v2066 = vadd.f32 0.0, %v2065
    %v2067 = vpop.f32.mrb[0].mxu0
    %2068 = vmatprep.mubr.f32.mxu0 0.0
    %2069 = vmatmul.mubr.f32.gmra.mrb[0].mxu0 %v1989
    %v2070 = vpop.f32.mrb[0].mxu0
    %v2071 = vadd.f32 0.0, %v2070
    %v2072 = vpop.f32.mrb[0].mxu0
    %2073 = vmatprep.mubr.f32.mxu0 0.0
    %2074 = vmatmul.mubr.f32.gmra.mrb[0].mxu0 %v1992
    %v2075 = vpop.f32.mrb[0].mxu0
    %v2076 = vadd.f32 0.0, %v2075
    %v2077 = vpop.f32.mrb[0].mxu0
    %2078 = vdwg.mxu0
    %2079 = vmatprep.subr.mxu0 0.0
    %2080 = vmatpush1.msra.mxu0 %v95
    %2081 = vmatprep.subr.mxu0 0.0
    %2082 = vmatpush1.msra.mxu0 %v96
    %2083 = vmatprep.subr.mxu0 0.0
    %2084 = vmatpush1.msra.mxu0 %v97
    %2085 = vmatprep.subr.mxu0 0.0
    %2086 = vmatpush1.msra.mxu0 %v98
    %2087 = vmatprep.subr.mxu0 0.0
    %2088 = vmatpush1.msra.mxu0 %v99
    %2089 = vmatprep.subr.mxu0 0.0
    %2090 = vmatpush1.msra.mxu0 %v100
    %2091 = vmatprep.subr.mxu0 0.0
    %2092 = vmatpush1.msra.mxu0 %v101
    %2093 = vmatprep.subr.mxu0 0.0
    %2094 = vmatpush1.msra.mxu0 %v102
    %2095 = vmatprep.subr.mxu0 0.0
    %2096 = vmatpush1.msra.mxu0 0.0
    %2097 = vmatprep.subr.mxu0 0.0
    %2098 = vmatpush1.msra.mxu0 0.0
    %2099 = vmatprep.subr.mxu0 0.0
    %2100 = vmatpush1.msra.mxu0 0.0
    %2101 = vmatprep.subr.mxu0 0.0
    %2102 = vmatpush1.msra.mxu0 0.0
    %2103 = vmatprep.subr.mxu0 0.0
    %2104 = vmatpush1.msra.mxu0 0.0
    %2105 = vmatprep.subr.mxu0 0.0
    %2106 = vmatpush1.msra.mxu0 0.0
    %2107 = vmatprep.subr.mxu0 0.0
    %2108 = vmatpush1.msra.mxu0 0.0
    %2109 = vmatprep.subr.mxu0 0.0
    %2110 = vmatpush1.msra.mxu0 0.0
    %2111 = vmatprep.subr.mxu0 0.0
    %2112 = vmatpush1.msra.mxu0 0.0
    %2113 = vmatprep.subr.mxu0 0.0
    %2114 = vmatpush1.msra.mxu0 0.0
    %2115 = vmatprep.subr.mxu0 0.0
    %2116 = vmatpush1.msra.mxu0 0.0
    %2117 = vmatprep.subr.mxu0 0.0
    %2118 = vmatpush1.msra.mxu0 0.0
    %2119 = vmatprep.subr.mxu0 0.0
    %2120 = vmatpush1.msra.mxu0 0.0
    %2121 = vmatprep.subr.mxu0 0.0
    %2122 = vmatpush1.msra.mxu0 0.0
    %2123 = vmatprep.subr.mxu0 0.0
    %2124 = vmatpush1.msra.mxu0 0.0
    %2125 = vmatprep.subr.mxu0 0.0
    %2126 = vmatpush1.msra.mxu0 0.0
    %2127 = vmatprep.subr.mxu0 0.0
    %2128 = vmatpush1.msra.mxu0 0.0
    %2129 = vmatprep.subr.mxu0 0.0
    %2130 = vmatpush1.msra.mxu0 0.0
    %2131 = vmatprep.subr.mxu0 0.0
    %2132 = vmatpush1.msra.mxu0 0.0
    %2133 = vmatprep.subr.mxu0 0.0
    %2134 = vmatpush1.msra.mxu0 0.0
    %2135 = vmatprep.subr.mxu0 0.0
    %2136 = vmatpush1.msra.mxu0 0.0
    %2137 = vmatprep.subr.mxu0 0.0
    %2138 = vmatpush1.msra.mxu0 0.0
    %2139 = vmatprep.subr.mxu0 0.0
    %2140 = vmatpush1.msra.mxu0 0.0
    %2141 = vmatprep.subr.mxu0 0.0
    %2142 = vmatpush1.msra.mxu0 0.0
    %2143 = vmatprep.mubr.f32.mxu0 0.0
    %2144 = vmatmul.mubr.f32.gmra.mrb[0].mxu0 %v1983
    %v2145 = vpop.f32.mrb[0].mxu0
    %v2146 = vadd.f32 0.0, %v2145
    %v2147 = vpop.f32.mrb[0].mxu0
    %2148 = vmatprep.mubr.f32.mxu0 0.0
    %2149 = vmatmul.mubr.f32.gmra.mrb[0].mxu0 %v1986
    %v2150 = vpop.f32.mrb[0].mxu0
    %v2151 = vadd.f32 0.0, %v2150
    %v2152 = vpop.f32.mrb[0].mxu0
    %2153 = vmatprep.mubr.f32.mxu0 0.0
    %2154 = vmatmul.mubr.f32.gmra.mrb[0].mxu0 %v1989
    %v2155 = vpop.f32.mrb[0].mxu0
    %v2156 = vadd.f32 0.0, %v2155
    %v2157 = vpop.f32.mrb[0].mxu0
    %2158 = vmatprep.mubr.f32.mxu0 0.0
    %2159 = vmatmul.mubr.f32.gmra.mrb[0].mxu0 %v1992
    %v2160 = vpop.f32.mrb[0].mxu0
    %v2161 = vadd.f32 0.0, %v2160
    %v2162 = vpop.f32.mrb[0].mxu0
    %2163 = vdwg.mxu0
    %2164 = vmatprep.subr.mxu0 0.0
    %2165 = vmatpush1.msra.mxu0 %v104
    %2166 = vmatprep.subr.mxu0 0.0
    %2167 = vmatpush1.msra.mxu0 %v105
    %2168 = vmatprep.subr.mxu0 0.0
    %2169 = vmatpush1.msra.mxu0 %v106
    %2170 = vmatprep.subr.mxu0 0.0
    %2171 = vmatpush1.msra.mxu0 %v107
    %2172 = vmatprep.subr.mxu0 0.0
    %2173 = vmatpush1.msra.mxu0 %v108
    %2174 = vmatprep.subr.mxu0 0.0
    %2175 = vmatpush1.msra.mxu0 %v109
    %2176 = vmatprep.subr.mxu0 0.0
    %2177 = vmatpush1.msra.mxu0 %v110
    %2178 = vmatprep.subr.mxu0 0.0
    %2179 = vmatpush1.msra.mxu0 %v111
    %2180 = vmatprep.subr.mxu0 0.0
    %2181 = vmatpush1.msra.mxu0 0.0
    %2182 = vmatprep.subr.mxu0 0.0
    %2183 = vmatpush1.msra.mxu0 0.0
    %2184 = vmatprep.subr.mxu0 0.0
    %2185 = vmatpush1.msra.mxu0 0.0
    %2186 = vmatprep.subr.mxu0 0.0
    %2187 = vmatpush1.msra.mxu0 0.0
    %2188 = vmatprep.subr.mxu0 0.0
    %2189 = vmatpush1.msra.mxu0 0.0
    %2190 = vmatprep.subr.mxu0 0.0
    %2191 = vmatpush1.msra.mxu0 0.0
    %2192 = vmatprep.subr.mxu0 0.0
    %2193 = vmatpush1.msra.mxu0 0.0
    %2194 = vmatprep.subr.mxu0 0.0
    %2195 = vmatpush1.msra.mxu0 0.0
    %2196 = vmatprep.subr.mxu0 0.0
    %2197 = vmatpush1.msra.mxu0 0.0
    %2198 = vmatprep.subr.mxu0 0.0
    %2199 = vmatpush1.msra.mxu0 0.0
    %2200 = vmatprep.subr.mxu0 0.0
    %2201 = vmatpush1.msra.mxu0 0.0
    %2202 = vmatprep.subr.mxu0 0.0
    %2203 = vmatpush1.msra.mxu0 0.0
    %2204 = vmatprep.subr.mxu0 0.0
    %2205 = vmatpush1.msra.mxu0 0.0
    %2206 = vmatprep.subr.mxu0 0.0
    %2207 = vmatpush1.msra.mxu0 0.0
    %2208 = vmatprep.subr.mxu0 0.0
    %2209 = vmatpush1.msra.mxu0 0.0
    %2210 = vmatprep.subr.mxu0 0.0
    %2211 = vmatpush1.msra.mxu0 0.0
    %2212 = vmatprep.subr.mxu0 0.0
    %2213 = vmatpush1.msra.mxu0 0.0
    %2214 = vmatprep.subr.mxu0 0.0
    %2215 = vmatpush1.msra.mxu0 0.0
    %2216 = vmatprep.subr.mxu0 0.0
    %2217 = vmatpush1.msra.mxu0 0.0
    %2218 = vmatprep.subr.mxu0 0.0
    %2219 = vmatpush1.msra.mxu0 0.0
    %2220 = vmatprep.subr.mxu0 0.0
    %2221 = vmatpush1.msra.mxu0 0.0
    %2222 = vmatprep.subr.mxu0 0.0
    %2223 = vmatpush1.msra.mxu0 0.0
    %2224 = vmatprep.subr.mxu0 0.0
    %2225 = vmatpush1.msra.mxu0 0.0
    %2226 = vmatprep.subr.mxu0 0.0
    %2227 = vmatpush1.msra.mxu0 0.0
    %2228 = vmatprep.mubr.f32.mxu0 0.0
    %2229 = vmatmul.mubr.f32.gmra.mrb[0].mxu0 %v1983
    %v2230 = vpop.f32.mrb[0].mxu0
    %v2231 = vadd.f32 0.0, %v2230
    %v2232 = vpop.f32.mrb[0].mxu0
    %2233 = vmatprep.mubr.f32.mxu0 0.0
    %2234 = vmatmul.mubr.f32.gmra.mrb[0].mxu0 %v1986
    %v2235 = vpop.f32.mrb[0].mxu0
    %v2236 = vadd.f32 0.0, %v2235
    %v2237 = vpop.f32.mrb[0].mxu0
    %2238 = vmatprep.mubr.f32.mxu0 0.0
    %2239 = vmatmul.mubr.f32.gmra.mrb[0].mxu0 %v1989
    %v2240 = vpop.f32.mrb[0].mxu0
    %v2241 = vadd.f32 0.0, %v2240
    %v2242 = vpop.f32.mrb[0].mxu0
    %2243 = vmatprep.mubr.f32.mxu0 0.0
    %2244 = vmatmul.mubr.f32.gmra.mrb[0].mxu0 %v1992
    %v2245 = vpop.f32.mrb[0].mxu0
    %v2246 = vadd.f32 0.0, %v2245
    %v2247 = vpop.f32.mrb[0].mxu0
    %2248 = vdwg.mxu0
    %2249 = vmatprep.subr.mxu0 0.0
    %2250 = vmatpush1.msra.mxu0 %v113
    %2251 = vmatprep.subr.mxu0 0.0
    %2252 = vmatpush1.msra.mxu0 %v114
    %2253 = vmatprep.subr.mxu0 0.0
    %2254 = vmatpush1.msra.mxu0 %v115
    %2255 = vmatprep.subr.mxu0 0.0
    %2256 = vmatpush1.msra.mxu0 %v116
    %2257 = vmatprep.subr.mxu0 0.0
    %2258 = vmatpush1.msra.mxu0 %v117
    %2259 = vmatprep.subr.mxu0 0.0
    %2260 = vmatpush1.msra.mxu0 %v118
    %2261 = vmatprep.subr.mxu0 0.0
    %2262 = vmatpush1.msra.mxu0 %v119
    %2263 = vmatprep.subr.mxu0 0.0
    %2264 = vmatpush1.msra.mxu0 %v120
    %2265 = vmatprep.subr.mxu0 0.0
    %2266 = vmatpush1.msra.mxu0 0.0
    %2267 = vmatprep.subr.mxu0 0.0
    %2268 = vmatpush1.msra.mxu0 0.0
    %2269 = vmatprep.subr.mxu0 0.0
    %2270 = vmatpush1.msra.mxu0 0.0
    %2271 = vmatprep.subr.mxu0 0.0
    %2272 = vmatpush1.msra.mxu0 0.0
    %2273 = vmatprep.subr.mxu0 0.0
    %2274 = vmatpush1.msra.mxu0 0.0
    %2275 = vmatprep.subr.mxu0 0.0
    %2276 = vmatpush1.msra.mxu0 0.0
    %2277 = vmatprep.subr.mxu0 0.0
    %2278 = vmatpush1.msra.mxu0 0.0
    %2279 = vmatprep.subr.mxu0 0.0
    %2280 = vmatpush1.msra.mxu0 0.0
    %2281 = vmatprep.subr.mxu0 0.0
    %2282 = vmatpush1.msra.mxu0 0.0
    %2283 = vmatprep.subr.mxu0 0.0
    %2284 = vmatpush1.msra.mxu0 0.0
    %2285 = vmatprep.subr.mxu0 0.0
    %2286 = vmatpush1.msra.mxu0 0.0
    %2287 = vmatprep.subr.mxu0 0.0
    %2288 = vmatpush1.msra.mxu0 0.0
    %2289 = vmatprep.subr.mxu0 0.0
    %2290 = vmatpush1.msra.mxu0 0.0
    %2291 = vmatprep.subr.mxu0 0.0
    %2292 = vmatpush1.msra.mxu0 0.0
    %2293 = vmatprep.subr.mxu0 0.0
    %2294 = vmatpush1.msra.mxu0 0.0
    %2295 = vmatprep.subr.mxu0 0.0
    %2296 = vmatpush1.msra.mxu0 0.0
    %2297 = vmatprep.subr.mxu0 0.0
    %2298 = vmatpush1.msra.mxu0 0.0
    %2299 = vmatprep.subr.mxu0 0.0
    %2300 = vmatpush1.msra.mxu0 0.0
    %2301 = vmatprep.subr.mxu0 0.0
    %2302 = vmatpush1.msra.mxu0 0.0
    %2303 = vmatprep.subr.mxu0 0.0
    %2304 = vmatpush1.msra.mxu0 0.0
    %2305 = vmatprep.subr.mxu0 0.0
    %2306 = vmatpush1.msra.mxu0 0.0
    %2307 = vmatprep.subr.mxu0 0.0
    %2308 = vmatpush1.msra.mxu0 0.0
    %2309 = vmatprep.subr.mxu0 0.0
    %2310 = vmatpush1.msra.mxu0 0.0
    %2311 = vmatprep.subr.mxu0 0.0
    %2312 = vmatpush1.msra.mxu0 0.0
    %2313 = vmatprep.mubr.f32.mxu0 0.0
    %2314 = vmatmul.mubr.f32.gmra.mrb[0].mxu0 %v1983
    %v2315 = vpop.f32.mrb[0].mxu0
    %v2316 = vadd.f32 0.0, %v2315
    %v2317 = vpop.f32.mrb[0].mxu0
    %2318 = vmatprep.mubr.f32.mxu0 0.0
    %2319 = vmatmul.mubr.f32.gmra.mrb[0].mxu0 %v1986
    %v2320 = vpop.f32.mrb[0].mxu0
    %v2321 = vadd.f32 0.0, %v2320
    %v2322 = vpop.f32.mrb[0].mxu0
    %2323 = vmatprep.mubr.f32.mxu0 0.0
    %2324 = vmatmul.mubr.f32.gmra.mrb[0].mxu0 %v1989
    %v2325 = vpop.f32.mrb[0].mxu0
    %v2326 = vadd.f32 0.0, %v2325
    %v2327 = vpop.f32.mrb[0].mxu0
    %2328 = vmatprep.mubr.f32.mxu0 0.0
    %2329 = vmatmul.mubr.f32.gmra.mrb[0].mxu0 %v1992
    %v2330 = vpop.f32.mrb[0].mxu0
    %v2331 = vadd.f32 0.0, %v2330
    %v2332 = vpop.f32.mrb[0].mxu0
    %2333 = vdwg.mxu0
    %2334 = vmatprep.subr.mxu0 0.0
    %2335 = vmatpush1.msra.mxu0 %v122
    %2336 = vmatprep.subr.mxu0 0.0
    %2337 = vmatpush1.msra.mxu0 %v123
    %2338 = vmatprep.subr.mxu0 0.0
    %2339 = vmatpush1.msra.mxu0 %v124
    %2340 = vmatprep.subr.mxu0 0.0
    %2341 = vmatpush1.msra.mxu0 %v125
    %2342 = vmatprep.subr.mxu0 0.0
    %2343 = vmatpush1.msra.mxu0 %v126
    %2344 = vmatprep.subr.mxu0 0.0
    %2345 = vmatpush1.msra.mxu0 %v127
    %2346 = vmatprep.subr.mxu0 0.0
    %2347 = vmatpush1.msra.mxu0 %v128
    %2348 = vmatprep.subr.mxu0 0.0
    %2349 = vmatpush1.msra.mxu0 %v129
    %2350 = vmatprep.subr.mxu0 0.0
    %2351 = vmatpush1.msra.mxu0 0.0
    %2352 = vmatprep.subr.mxu0 0.0
    %2353 = vmatpush1.msra.mxu0 0.0
    %2354 = vmatprep.subr.mxu0 0.0
    %2355 = vmatpush1.msra.mxu0 0.0
    %2356 = vmatprep.subr.mxu0 0.0
    %2357 = vmatpush1.msra.mxu0 0.0
    %2358 = vmatprep.subr.mxu0 0.0
    %2359 = vmatpush1.msra.mxu0 0.0
    %2360 = vmatprep.subr.mxu0 0.0
    %2361 = vmatpush1.msra.mxu0 0.0
    %2362 = vmatprep.subr.mxu0 0.0
    %2363 = vmatpush1.msra.mxu0 0.0
    %2364 = vmatprep.subr.mxu0 0.0
    %2365 = vmatpush1.msra.mxu0 0.0
    %2366 = vmatprep.subr.mxu0 0.0
    %2367 = vmatpush1.msra.mxu0 0.0
    %2368 = vmatprep.subr.mxu0 0.0
    %2369 = vmatpush1.msra.mxu0 0.0
    %2370 = vmatprep.subr.mxu0 0.0
    %2371 = vmatpush1.msra.mxu0 0.0
    %2372 = vmatprep.subr.mxu0 0.0
    %2373 = vmatpush1.msra.mxu0 0.0
    %2374 = vmatprep.subr.mxu0 0.0
    %2375 = vmatpush1.msra.mxu0 0.0
    %2376 = vmatprep.subr.mxu0 0.0
    %2377 = vmatpush1.msra.mxu0 0.0
    %2378 = vmatprep.subr.mxu0 0.0
    %2379 = vmatpush1.msra.mxu0 0.0
    %2380 = vmatprep.subr.mxu0 0.0
    %2381 = vmatpush1.msra.mxu0 0.0
    %2382 = vmatprep.subr.mxu0 0.0
    %2383 = vmatpush1.msra.mxu0 0.0
    %2384 = vmatprep.subr.mxu0 0.0
    %2385 = vmatpush1.msra.mxu0 0.0
    %2386 = vmatprep.subr.mxu0 0.0
    %2387 = vmatpush1.msra.mxu0 0.0
    %2388 = vmatprep.subr.mxu0 0.0
    %2389 = vmatpush1.msra.mxu0 0.0
    %2390 = vmatprep.subr.mxu0 0.0
    %2391 = vmatpush1.msra.mxu0 0.0
    %2392 = vmatprep.subr.mxu0 0.0
    %2393 = vmatpush1.msra.mxu0 0.0
    %2394 = vmatprep.subr.mxu0 0.0
    %2395 = vmatpush1.msra.mxu0 0.0
    %2396 = vmatprep.subr.mxu0 0.0
    %2397 = vmatpush1.msra.mxu0 0.0
    %2398 = vmatprep.mubr.f32.mxu0 0.0
    %2399 = vmatmul.mubr.f32.gmra.mrb[0].mxu0 %v1983
    %v2400 = vpop.f32.mrb[0].mxu0
    %v2401 = vadd.f32 0.0, %v2400
    %v2402 = vpop.f32.mrb[0].mxu0
    %2403 = vmatprep.mubr.f32.mxu0 0.0
    %2404 = vmatmul.mubr.f32.gmra.mrb[0].mxu0 %v1986
    %v2405 = vpop.f32.mrb[0].mxu0
    %v2406 = vadd.f32 0.0, %v2405
    %v2407 = vpop.f32.mrb[0].mxu0
    %2408 = vmatprep.mubr.f32.mxu0 0.0
    %2409 = vmatmul.mubr.f32.gmra.mrb[0].mxu0 %v1989
    %v2410 = vpop.f32.mrb[0].mxu0
    %v2411 = vadd.f32 0.0, %v2410
    %v2412 = vpop.f32.mrb[0].mxu0
    %2413 = vmatprep.mubr.f32.mxu0 0.0
    %2414 = vmatmul.mubr.f32.gmra.mrb[0].mxu0 %v1992
    %v2415 = vpop.f32.mrb[0].mxu0
    %v2416 = vadd.f32 0.0, %v2415
    %v2417 = vpop.f32.mrb[0].mxu0
    %2418 = vdwg.mxu0
    %2419 = vmatprep.subr.mxu0 0.0
    %2420 = vmatpush1.msra.mxu0 %v131
    %2421 = vmatprep.subr.mxu0 0.0
    %2422 = vmatpush1.msra.mxu0 %v132
    %2423 = vmatprep.subr.mxu0 0.0
    %2424 = vmatpush1.msra.mxu0 %v133
    %2425 = vmatprep.subr.mxu0 0.0
    %2426 = vmatpush1.msra.mxu0 %v134
    %2427 = vmatprep.subr.mxu0 0.0
    %2428 = vmatpush1.msra.mxu0 %v135
    %2429 = vmatprep.subr.mxu0 0.0
    %2430 = vmatpush1.msra.mxu0 %v136
    %2431 = vmatprep.subr.mxu0 0.0
    %2432 = vmatpush1.msra.mxu0 %v137
    %2433 = vmatprep.subr.mxu0 0.0
    %2434 = vmatpush1.msra.mxu0 %v138
    %2435 = vmatprep.subr.mxu0 0.0
    %2436 = vmatpush1.msra.mxu0 0.0
    %2437 = vmatprep.subr.mxu0 0.0
    %2438 = vmatpush1.msra.mxu0 0.0
    %2439 = vmatprep.subr.mxu0 0.0
    %2440 = vmatpush1.msra.mxu0 0.0
    %2441 = vmatprep.subr.mxu0 0.0
    %2442 = vmatpush1.msra.mxu0 0.0
    %2443 = vmatprep.subr.mxu0 0.0
    %2444 = vmatpush1.msra.mxu0 0.0
    %2445 = vmatprep.subr.mxu0 0.0
    %2446 = vmatpush1.msra.mxu0 0.0
    %2447 = vmatprep.subr.mxu0 0.0
    %2448 = vmatpush1.msra.mxu0 0.0
    %2449 = vmatprep.subr.mxu0 0.0
    %2450 = vmatpush1.msra.mxu0 0.0
    %2451 = vmatprep.subr.mxu0 0.0
    %2452 = vmatpush1.msra.mxu0 0.0
    %2453 = vmatprep.subr.mxu0 0.0
    %2454 = vmatpush1.msra.mxu0 0.0
    %2455 = vmatprep.subr.mxu0 0.0
    %2456 = vmatpush1.msra.mxu0 0.0
    %2457 = vmatprep.subr.mxu0 0.0
    %2458 = vmatpush1.msra.mxu0 0.0
    %2459 = vmatprep.subr.mxu0 0.0
    %2460 = vmatpush1.msra.mxu0 0.0
    %2461 = vmatprep.subr.mxu0 0.0
    %2462 = vmatpush1.msra.mxu0 0.0
    %2463 = vmatprep.subr.mxu0 0.0
    %2464 = vmatpush1.msra.mxu0 0.0
    %2465 = vmatprep.subr.mxu0 0.0
    %2466 = vmatpush1.msra.mxu0 0.0
    %2467 = vmatprep.subr.mxu0 0.0
    %2468 = vmatpush1.msra.mxu0 0.0
    %2469 = vmatprep.subr.mxu0 0.0
    %2470 = vmatpush1.msra.mxu0 0.0
    %2471 = vmatprep.subr.mxu0 0.0
    %2472 = vmatpush1.msra.mxu0 0.0
    %2473 = vmatprep.subr.mxu0 0.0
    %2474 = vmatpush1.msra.mxu0 0.0
    %2475 = vmatprep.subr.mxu0 0.0
    %2476 = vmatpush1.msra.mxu0 0.0
    %2477 = vmatprep.subr.mxu0 0.0
    %2478 = vmatpush1.msra.mxu0 0.0
    %2479 = vmatprep.subr.mxu0 0.0
    %2480 = vmatpush1.msra.mxu0 0.0
    %2481 = vmatprep.subr.mxu0 0.0
    %2482 = vmatpush1.msra.mxu0 0.0
    %2483 = vmatprep.mubr.f32.mxu0 0.0
    %2484 = vmatmul.mubr.f32.gmra.mrb[0].mxu0 %v1983
    %v2485 = vpop.f32.mrb[0].mxu0
    %v2486 = vadd.f32 0.0, %v2485
    %v2487 = vpop.f32.mrb[0].mxu0
    %2488 = vmatprep.mubr.f32.mxu0 0.0
    %2489 = vmatmul.mubr.f32.gmra.mrb[0].mxu0 %v1986
    %v2490 = vpop.f32.mrb[0].mxu0
    %v2491 = vadd.f32 0.0, %v2490
    %v2492 = vpop.f32.mrb[0].mxu0
    %2493 = vmatprep.mubr.f32.mxu0 0.0
    %2494 = vmatmul.mubr.f32.gmra.mrb[0].mxu0 %v1989
    %v2495 = vpop.f32.mrb[0].mxu0
    %v2496 = vadd.f32 0.0, %v2495
    %v2497 = vpop.f32.mrb[0].mxu0
    %2498 = vmatprep.mubr.f32.mxu0 0.0
    %2499 = vmatmul.mubr.f32.gmra.mrb[0].mxu0 %v1992
    %v2500 = vpop.f32.mrb[0].mxu0
    %v2501 = vadd.f32 0.0, %v2500
    %v2502 = vpop.f32.mrb[0].mxu0
    %2503 = vdwg.mxu0
    %2504 = vmatprep.subr.mxu0 0.0
    %2505 = vmatpush1.msra.mxu0 %v140
    %2506 = vmatprep.subr.mxu0 0.0
    %2507 = vmatpush1.msra.mxu0 %v141
    %2508 = vmatprep.subr.mxu0 0.0
    %2509 = vmatpush1.msra.mxu0 %v142
    %2510 = vmatprep.subr.mxu0 0.0
    %2511 = vmatpush1.msra.mxu0 %v143
    %2512 = vmatprep.subr.mxu0 0.0
    %2513 = vmatpush1.msra.mxu0 %v144
    %2514 = vmatprep.subr.mxu0 0.0
    %2515 = vmatpush1.msra.mxu0 %v145
    %2516 = vmatprep.subr.mxu0 0.0
    %2517 = vmatpush1.msra.mxu0 %v146
    %2518 = vmatprep.subr.mxu0 0.0
    %2519 = vmatpush1.msra.mxu0 %v147
    %2520 = vmatprep.subr.mxu0 0.0
    %2521 = vmatpush1.msra.mxu0 0.0
    %2522 = vmatprep.subr.mxu0 0.0
    %2523 = vmatpush1.msra.mxu0 0.0
    %2524 = vmatprep.subr.mxu0 0.0
    %2525 = vmatpush1.msra.mxu0 0.0
    %2526 = vmatprep.subr.mxu0 0.0
    %2527 = vmatpush1.msra.mxu0 0.0
    %2528 = vmatprep.subr.mxu0 0.0
    %2529 = vmatpush1.msra.mxu0 0.0
    %2530 = vmatprep.subr.mxu0 0.0
    %2531 = vmatpush1.msra.mxu0 0.0
    %2532 = vmatprep.subr.mxu0 0.0
    %2533 = vmatpush1.msra.mxu0 0.0
    %2534 = vmatprep.subr.mxu0 0.0
    %2535 = vmatpush1.msra.mxu0 0.0
    %2536 = vmatprep.subr.mxu0 0.0
    %2537 = vmatpush1.msra.mxu0 0.0
    %2538 = vmatprep.subr.mxu0 0.0
    %2539 = vmatpush1.msra.mxu0 0.0
    %2540 = vmatprep.subr.mxu0 0.0
    %2541 = vmatpush1.msra.mxu0 0.0
    %2542 = vmatprep.subr.mxu0 0.0
    %2543 = vmatpush1.msra.mxu0 0.0
    %2544 = vmatprep.subr.mxu0 0.0
    %2545 = vmatpush1.msra.mxu0 0.0
    %2546 = vmatprep.subr.mxu0 0.0
    %2547 = vmatpush1.msra.mxu0 0.0
    %2548 = vmatprep.subr.mxu0 0.0
    %2549 = vmatpush1.msra.mxu0 0.0
    %2550 = vmatprep.subr.mxu0 0.0
    %2551 = vmatpush1.msra.mxu0 0.0
    %2552 = vmatprep.subr.mxu0 0.0
    %2553 = vmatpush1.msra.mxu0 0.0
    %2554 = vmatprep.subr.mxu0 0.0
    %2555 = vmatpush1.msra.mxu0 0.0
    %2556 = vmatprep.subr.mxu0 0.0
    %2557 = vmatpush1.msra.mxu0 0.0
    %2558 = vmatprep.subr.mxu0 0.0
    %2559 = vmatpush1.msra.mxu0 0.0
    %2560 = vmatprep.subr.mxu0 0.0
    %2561 = vmatpush1.msra.mxu0 0.0
    %2562 = vmatprep.subr.mxu0 0.0
    %2563 = vmatpush1.msra.mxu0 0.0
    %2564 = vmatprep.subr.mxu0 0.0
    %2565 = vmatpush1.msra.mxu0 0.0
    %2566 = vmatprep.subr.mxu0 0.0
    %2567 = vmatpush1.msra.mxu0 0.0
    %2568 = vmatprep.mubr.f32.mxu0 0.0
    %2569 = vmatmul.mubr.f32.gmra.mrb[0].mxu0 %v1983
    %v2570 = vpop.f32.mrb[0].mxu0
    %v2571 = vadd.f32 0.0, %v2570
    %v2572 = vpop.f32.mrb[0].mxu0
    %2573 = vmatprep.mubr.f32.mxu0 0.0
    %2574 = vmatmul.mubr.f32.gmra.mrb[0].mxu0 %v1986
    %v2575 = vpop.f32.mrb[0].mxu0
    %v2576 = vadd.f32 0.0, %v2575
    %v2577 = vpop.f32.mrb[0].mxu0
    %2578 = vmatprep.mubr.f32.mxu0 0.0
    %2579 = vmatmul.mubr.f32.gmra.mrb[0].mxu0 %v1989
    %v2580 = vpop.f32.mrb[0].mxu0
    %v2581 = vadd.f32 0.0, %v2580
    %v2582 = vpop.f32.mrb[0].mxu0
    %2583 = vmatprep.mubr.f32.mxu0 0.0
    %2584 = vmatmul.mubr.f32.gmra.mrb[0].mxu0 %v1992
    %v2585 = vpop.f32.mrb[0].mxu0
    %v2586 = vadd.f32 0.0, %v2585
    %v2587 = vpop.f32.mrb[0].mxu0
    %2588 = vdwg.mxu0
    %2589 = vmatprep.subr.mxu0 0.0
    %2590 = vmatpush1.msra.mxu0 %v149
    %2591 = vmatprep.subr.mxu0 0.0
    %2592 = vmatpush1.msra.mxu0 %v150
    %2593 = vmatprep.subr.mxu0 0.0
    %2594 = vmatpush1.msra.mxu0 %v151
    %2595 = vmatprep.subr.mxu0 0.0
    %2596 = vmatpush1.msra.mxu0 %v152
    %2597 = vmatprep.subr.mxu0 0.0
    %2598 = vmatpush1.msra.mxu0 %v153
    %2599 = vmatprep.subr.mxu0 0.0
    %2600 = vmatpush1.msra.mxu0 %v154
    %2601 = vmatprep.subr.mxu0 0.0
    %2602 = vmatpush1.msra.mxu0 %v155
    %2603 = vmatprep.subr.mxu0 0.0
    %2604 = vmatpush1.msra.mxu0 %v156
    %2605 = vmatprep.subr.mxu0 0.0
    %2606 = vmatpush1.msra.mxu0 0.0
    %2607 = vmatprep.subr.mxu0 0.0
    %2608 = vmatpush1.msra.mxu0 0.0
    %2609 = vmatprep.subr.mxu0 0.0
    %2610 = vmatpush1.msra.mxu0 0.0
    %2611 = vmatprep.subr.mxu0 0.0
    %2612 = vmatpush1.msra.mxu0 0.0
    %2613 = vmatprep.subr.mxu0 0.0
    %2614 = vmatpush1.msra.mxu0 0.0
    %2615 = vmatprep.subr.mxu0 0.0
    %2616 = vmatpush1.msra.mxu0 0.0
    %2617 = vmatprep.subr.mxu0 0.0
    %2618 = vmatpush1.msra.mxu0 0.0
    %2619 = vmatprep.subr.mxu0 0.0
    %2620 = vmatpush1.msra.mxu0 0.0
    %2621 = vmatprep.subr.mxu0 0.0
    %2622 = vmatpush1.msra.mxu0 0.0
    %2623 = vmatprep.subr.mxu0 0.0
    %2624 = vmatpush1.msra.mxu0 0.0
    %2625 = vmatprep.subr.mxu0 0.0
    %2626 = vmatpush1.msra.mxu0 0.0
    %2627 = vmatprep.subr.mxu0 0.0
    %2628 = vmatpush1.msra.mxu0 0.0
    %2629 = vmatprep.subr.mxu0 0.0
    %2630 = vmatpush1.msra.mxu0 0.0
    %2631 = vmatprep.subr.mxu0 0.0
    %2632 = vmatpush1.msra.mxu0 0.0
    %2633 = vmatprep.subr.mxu0 0.0
    %2634 = vmatpush1.msra.mxu0 0.0
    %2635 = vmatprep.subr.mxu0 0.0
    %2636 = vmatpush1.msra.mxu0 0.0
    %2637 = vmatprep.subr.mxu0 0.0
    %2638 = vmatpush1.msra.mxu0 0.0
    %2639 = vmatprep.subr.mxu0 0.0
    %2640 = vmatpush1.msra.mxu0 0.0
    %2641 = vmatprep.subr.mxu0 0.0
    %2642 = vmatpush1.msra.mxu0 0.0
    %2643 = vmatprep.subr.mxu0 0.0
    %2644 = vmatpush1.msra.mxu0 0.0
    %2645 = vmatprep.subr.mxu0 0.0
    %2646 = vmatpush1.msra.mxu0 0.0
    %2647 = vmatprep.subr.mxu0 0.0
    %2648 = vmatpush1.msra.mxu0 0.0
    %2649 = vmatprep.subr.mxu0 0.0
    %2650 = vmatpush1.msra.mxu0 0.0
    %2651 = vmatprep.subr.mxu0 0.0
    %2652 = vmatpush1.msra.mxu0 0.0
    %2653 = vmatprep.mubr.f32.mxu0 0.0
    %2654 = vmatmul.mubr.f32.gmra.mrb[0].mxu0 %v1983
    %v2655 = vpop.f32.mrb[0].mxu0
    %v2656 = vadd.f32 0.0, %v2655
    %v2657 = vpop.f32.mrb[0].mxu0
    %2658 = vmatprep.mubr.f32.mxu0 0.0
    %2659 = vmatmul.mubr.f32.gmra.mrb[0].mxu0 %v1986
    %v2660 = vpop.f32.mrb[0].mxu0
    %v2661 = vadd.f32 0.0, %v2660
    %v2662 = vpop.f32.mrb[0].mxu0
    %2663 = vmatprep.mubr.f32.mxu0 0.0
    %2664 = vmatmul.mubr.f32.gmra.mrb[0].mxu0 %v1989
    %v2665 = vpop.f32.mrb[0].mxu0
    %v2666 = vadd.f32 0.0, %v2665
    %v2667 = vpop.f32.mrb[0].mxu0
    %2668 = vmatprep.mubr.f32.mxu0 0.0
    %2669 = vmatmul.mubr.f32.gmra.mrb[0].mxu0 %v1992
    %v2670 = vpop.f32.mrb[0].mxu0
    %v2671 = vadd.f32 0.0, %v2670
    %v2672 = vpop.f32.mrb[0].mxu0
    %2673 = vdwg.mxu0
    %2674 = vmatprep.subr.mxu0 0.0
    %2675 = vmatpush1.msra.mxu0 %v158
    %2676 = vmatprep.subr.mxu0 0.0
    %2677 = vmatpush1.msra.mxu0 %v159
    %2678 = vmatprep.subr.mxu0 0.0
    %2679 = vmatpush1.msra.mxu0 %v160
    %2680 = vmatprep.subr.mxu0 0.0
    %2681 = vmatpush1.msra.mxu0 %v161
    %2682 = vmatprep.subr.mxu0 0.0
    %2683 = vmatpush1.msra.mxu0 %v162
    %2684 = vmatprep.subr.mxu0 0.0
    %2685 = vmatpush1.msra.mxu0 %v163
    %2686 = vmatprep.subr.mxu0 0.0
    %2687 = vmatpush1.msra.mxu0 %v164
    %2688 = vmatprep.subr.mxu0 0.0
    %2689 = vmatpush1.msra.mxu0 %v165
    %2690 = vmatprep.subr.mxu0 0.0
    %2691 = vmatpush1.msra.mxu0 0.0
    %2692 = vmatprep.subr.mxu0 0.0
    %2693 = vmatpush1.msra.mxu0 0.0
    %2694 = vmatprep.subr.mxu0 0.0
    %2695 = vmatpush1.msra.mxu0 0.0
    %2696 = vmatprep.subr.mxu0 0.0
    %2697 = vmatpush1.msra.mxu0 0.0
    %2698 = vmatprep.subr.mxu0 0.0
    %2699 = vmatpush1.msra.mxu0 0.0
    %2700 = vmatprep.subr.mxu0 0.0
    %2701 = vmatpush1.msra.mxu0 0.0
    %2702 = vmatprep.subr.mxu0 0.0
    %2703 = vmatpush1.msra.mxu0 0.0
    %2704 = vmatprep.subr.mxu0 0.0
    %2705 = vmatpush1.msra.mxu0 0.0
    %2706 = vmatprep.subr.mxu0 0.0
    %2707 = vmatpush1.msra.mxu0 0.0
    %2708 = vmatprep.subr.mxu0 0.0
    %2709 = vmatpush1.msra.mxu0 0.0
    %2710 = vmatprep.subr.mxu0 0.0
    %2711 = vmatpush1.msra.mxu0 0.0
    %2712 = vmatprep.subr.mxu0 0.0
    %2713 = vmatpush1.msra.mxu0 0.0
    %2714 = vmatprep.subr.mxu0 0.0
    %2715 = vmatpush1.msra.mxu0 0.0
    %2716 = vmatprep.subr.mxu0 0.0
    %2717 = vmatpush1.msra.mxu0 0.0
    %2718 = vmatprep.subr.mxu0 0.0
    %2719 = vmatpush1.msra.mxu0 0.0
    %2720 = vmatprep.subr.mxu0 0.0
    %2721 = vmatpush1.msra.mxu0 0.0
    %2722 = vmatprep.subr.mxu0 0.0
    %2723 = vmatpush1.msra.mxu0 0.0
    %2724 = vmatprep.subr.mxu0 0.0
    %2725 = vmatpush1.msra.mxu0 0.0
    %2726 = vmatprep.subr.mxu0 0.0
    %2727 = vmatpush1.msra.mxu0 0.0
    %2728 = vmatprep.subr.mxu0 0.0
    %2729 = vmatpush1.msra.mxu0 0.0
    %2730 = vmatprep.subr.mxu0 0.0
    %2731 = vmatpush1.msra.mxu0 0.0
    %2732 = vmatprep.subr.mxu0 0.0
    %2733 = vmatpush1.msra.mxu0 0.0
    %2734 = vmatprep.subr.mxu0 0.0
    %2735 = vmatpush1.msra.mxu0 0.0
    %2736 = vmatprep.subr.mxu0 0.0
    %2737 = vmatpush1.msra.mxu0 0.0
    %2738 = vmatprep.mubr.f32.mxu0 0.0
    %2739 = vmatmul.mubr.f32.gmra.mrb[0].mxu0 %v1983
    %v2740 = vpop.f32.mrb[0].mxu0
    %v2741 = vadd.f32 0.0, %v2740
    %v2742 = vpop.f32.mrb[0].mxu0
    %2743 = vmatprep.mubr.f32.mxu0 0.0
    %2744 = vmatmul.mubr.f32.gmra.mrb[0].mxu0 %v1986
    %v2745 = vpop.f32.mrb[0].mxu0
    %v2746 = vadd.f32 0.0, %v2745
    %v2747 = vpop.f32.mrb[0].mxu0
    %2748 = vmatprep.mubr.f32.mxu0 0.0
    %2749 = vmatmul.mubr.f32.gmra.mrb[0].mxu0 %v1989
    %v2750 = vpop.f32.mrb[0].mxu0
    %v2751 = vadd.f32 0.0, %v2750
    %v2752 = vpop.f32.mrb[0].mxu0
    %2753 = vmatprep.mubr.f32.mxu0 0.0
    %2754 = vmatmul.mubr.f32.gmra.mrb[0].mxu0 %v1992
    %v2755 = vpop.f32.mrb[0].mxu0
    %v2756 = vadd.f32 0.0, %v2755
    %v2757 = vpop.f32.mrb[0].mxu0
    %2758 = vdwg.mxu0
    %v2759 = vld [vmem:[%s8] sm:$0xff]
    %v2760 = vld [vmem:[%s8 + $0x8] sm:$0xff]
    %v2761 = vld [vmem:[%s8 + $0x10] sm:$0xff]
    %v2762 = vld [vmem:[%s8 + $0x18] sm:$0xff]
    %v2763 = vld [vmem:[%s8 + $0x20] sm:$0xff]
    %v2764 = vld [vmem:[%s8 + $0x28] sm:$0xff]
    %v2765 = vld [vmem:[%s8 + $0x30] sm:$0xff]
    %v2766 = vld [vmem:[%s8 + $0x38] sm:$0xff]
    %v2767 = vld [vmem:[%s8 + $0x40] sm:$0xff]
    %v2768 = vld [vmem:[%s8 + $0x48] sm:$0xff]
    %v2769 = vld [vmem:[%s8 + $0x50] sm:$0xff]
    %v2770 = vld [vmem:[%s8 + $0x58] sm:$0xff]
    %v2771 = vld [vmem:[%s9] sm:$0xff]
    %v2772 = vld [vmem:[%s9 + $0x8] sm:$0xff]
    %v2773 = vld [vmem:[%s9 + $0x10] sm:$0xff]
    %v2774 = vld [vmem:[%s9 + $0x18] sm:$0xff]
    %2776 = vset.pattern.permute.xlu0 0
    %2777 = vperm.xlu0 %2776, %v2771
    %v2778 = vpop.permute.xlu0 %2777
    %2781 = vset.pattern.permute.xlu0 0
    %2782 = vperm.xlu0 %2781, %v2772
    %v2783 = vpop.permute.xlu0 %2782
    %2786 = vset.pattern.permute.xlu0 0
    %2787 = vperm.xlu0 %2786, %v2773
    %v2788 = vpop.permute.xlu0 %2787
    %2791 = vset.pattern.permute.xlu0 0
    %2792 = vperm.xlu0 %2791, %v2774
    %v2793 = vpop.permute.xlu0 %2792
    %v2796 = vsel %vm1795, %v2761, 0
    %v2799 = vsel %vm1795, %v2764, 0
    %v2802 = vsel %vm1795, %v2767, 0
    %v2805 = vsel %vm1795, %v2770, 0
    %2807 = vmatprep.subr.mxu0 0.0
    %2808 = vmatpush1.msra.mxu0 %v2061
    %2809 = vmatprep.subr.mxu0 0.0
    %2810 = vmatpush1.msra.mxu0 %v2066
    %2811 = vmatprep.subr.mxu0 0.0
    %2812 = vmatpush1.msra.mxu0 %v2071
    %2813 = vmatprep.subr.mxu0 0.0
    %2814 = vmatpush1.msra.mxu0 %v2076
    %2815 = vmatprep.subr.mxu0 0.0
    %2816 = vmatpush1.msra.mxu0 %v2146
    %2817 = vmatprep.subr.mxu0 0.0
    %2818 = vmatpush1.msra.mxu0 %v2151
    %2819 = vmatprep.subr.mxu0 0.0
    %2820 = vmatpush1.msra.mxu0 %v2156
    %2821 = vmatprep.subr.mxu0 0.0
    %2822 = vmatpush1.msra.mxu0 %v2161
    %2823 = vmatprep.subr.mxu0 0.0
    %2824 = vmatpush1.msra.mxu0 %v2231
    %2825 = vmatprep.subr.mxu0 0.0
    %2826 = vmatpush1.msra.mxu0 %v2236
    %2827 = vmatprep.subr.mxu0 0.0
    %2828 = vmatpush1.msra.mxu0 %v2241
    %2829 = vmatprep.subr.mxu0 0.0
    %2830 = vmatpush1.msra.mxu0 %v2246
    %2831 = vmatprep.subr.mxu0 0.0
    %2832 = vmatpush1.msra.mxu0 %v2316
    %2833 = vmatprep.subr.mxu0 0.0
    %2834 = vmatpush1.msra.mxu0 %v2321
    %2835 = vmatprep.subr.mxu0 0.0
    %2836 = vmatpush1.msra.mxu0 %v2326
    %2837 = vmatprep.subr.mxu0 0.0
    %2838 = vmatpush1.msra.mxu0 %v2331
    %2839 = vmatprep.subr.mxu0 0.0
    %2840 = vmatpush1.msra.mxu0 %v2401
    %2841 = vmatprep.subr.mxu0 0.0
    %2842 = vmatpush1.msra.mxu0 %v2406
    %2843 = vmatprep.subr.mxu0 0.0
    %2844 = vmatpush1.msra.mxu0 %v2411
    %2845 = vmatprep.subr.mxu0 0.0
    %2846 = vmatpush1.msra.mxu0 %v2416
    %2847 = vmatprep.subr.mxu0 0.0
    %2848 = vmatpush1.msra.mxu0 %v2486
    %2849 = vmatprep.subr.mxu0 0.0
    %2850 = vmatpush1.msra.mxu0 %v2491
    %2851 = vmatprep.subr.mxu0 0.0
    %2852 = vmatpush1.msra.mxu0 %v2496
    %2853 = vmatprep.subr.mxu0 0.0
    %2854 = vmatpush1.msra.mxu0 %v2501
    %2855 = vmatprep.subr.mxu0 0.0
    %2856 = vmatpush1.msra.mxu0 %v2571
    %2857 = vmatprep.subr.mxu0 0.0
    %2858 = vmatpush1.msra.mxu0 %v2576
    %2859 = vmatprep.subr.mxu0 0.0
    %2860 = vmatpush1.msra.mxu0 %v2581
    %2861 = vmatprep.subr.mxu0 0.0
    %2862 = vmatpush1.msra.mxu0 %v2586
    %2863 = vmatprep.subr.mxu0 0.0
    %2864 = vmatpush1.msra.mxu0 %v2656
    %2865 = vmatprep.subr.mxu0 0.0
    %2866 = vmatpush1.msra.mxu0 %v2661
    %2867 = vmatprep.subr.mxu0 0.0
    %2868 = vmatpush1.msra.mxu0 %v2666
    %2869 = vmatprep.subr.mxu0 0.0
    %2870 = vmatpush1.msra.mxu0 %v2671
    %2871 = vmatprep.mubr.f32.mxu0 %v2760
    %2872 = vmatmul.mubr.f32.gmra.mrb[0].mxu0 %v2759
    %v2873 = vpop.f32.mrb[0].mxu0
    %v2874 = vadd.f32 %v2778, %v2873
    %v2875 = vpop.f32.mrb[0].mxu0
    %2876 = vmatprep.mubr.f32.mxu0 %v2763
    %2877 = vmatmul.mubr.f32.gmra.mrb[0].mxu0 %v2762
    %v2878 = vpop.f32.mrb[0].mxu0
    %v2879 = vadd.f32 %v2783, %v2878
    %v2880 = vpop.f32.mrb[0].mxu0
    %2881 = vmatprep.mubr.f32.mxu0 %v2766
    %2882 = vmatmul.mubr.f32.gmra.mrb[0].mxu0 %v2765
    %v2883 = vpop.f32.mrb[0].mxu0
    %v2884 = vadd.f32 %v2788, %v2883
    %v2885 = vpop.f32.mrb[0].mxu0
    %2886 = vmatprep.mubr.f32.mxu0 %v2769
    %2887 = vmatmul.mubr.f32.gmra.mrb[0].mxu0 %v2768
    %v2888 = vpop.f32.mrb[0].mxu0
    %v2889 = vadd.f32 %v2793, %v2888
    %v2890 = vpop.f32.mrb[0].mxu0
    %2891 = vdwg.mxu0
    %2892 = vmatprep.subr.mxu0 0.0
    %2893 = vmatpush1.msra.mxu0 %v2741
    %2894 = vmatprep.subr.mxu0 0.0
    %2895 = vmatpush1.msra.mxu0 %v2746
    %2896 = vmatprep.subr.mxu0 0.0
    %2897 = vmatpush1.msra.mxu0 %v2751
    %2898 = vmatprep.subr.mxu0 0.0
    %2899 = vmatpush1.msra.mxu0 %v2756
    %2900 = vmatprep.subr.mxu0 0.0
    %2901 = vmatpush1.msra.mxu0 0.0
    %2902 = vmatprep.subr.mxu0 0.0
    %2903 = vmatpush1.msra.mxu0 0.0
    %2904 = vmatprep.subr.mxu0 0.0
    %2905 = vmatpush1.msra.mxu0 0.0
    %2906 = vmatprep.subr.mxu0 0.0
    %2907 = vmatpush1.msra.mxu0 0.0
    %2908 = vmatprep.subr.mxu0 0.0
    %2909 = vmatpush1.msra.mxu0 0.0
    %2910 = vmatprep.subr.mxu0 0.0
    %2911 = vmatpush1.msra.mxu0 0.0
    %2912 = vmatprep.subr.mxu0 0.0
    %2913 = vmatpush1.msra.mxu0 0.0
    %2914 = vmatprep.subr.mxu0 0.0
    %2915 = vmatpush1.msra.mxu0 0.0
    %2916 = vmatprep.subr.mxu0 0.0
    %2917 = vmatpush1.msra.mxu0 0.0
    %2918 = vmatprep.subr.mxu0 0.0
    %2919 = vmatpush1.msra.mxu0 0.0
    %2920 = vmatprep.subr.mxu0 0.0
    %2921 = vmatpush1.msra.mxu0 0.0
    %2922 = vmatprep.subr.mxu0 0.0
    %2923 = vmatpush1.msra.mxu0 0.0
    %2924 = vmatprep.subr.mxu0 0.0
    %2925 = vmatpush1.msra.mxu0 0.0
    %2926 = vmatprep.subr.mxu0 0.0
    %2927 = vmatpush1.msra.mxu0 0.0
    %2928 = vmatprep.subr.mxu0 0.0
    %2929 = vmatpush1.msra.mxu0 0.0
    %2930 = vmatprep.subr.mxu0 0.0
    %2931 = vmatpush1.msra.mxu0 0.0
    %2932 = vmatprep.subr.mxu0 0.0
    %2933 = vmatpush1.msra.mxu0 0.0
    %2934 = vmatprep.subr.mxu0 0.0
    %2935 = vmatpush1.msra.mxu0 0.0
    %2936 = vmatprep.subr.mxu0 0.0
    %2937 = vmatpush1.msra.mxu0 0.0
    %2938 = vmatprep.subr.mxu0 0.0
    %2939 = vmatpush1.msra.mxu0 0.0
    %2940 = vmatprep.subr.mxu0 0.0
    %2941 = vmatpush1.msra.mxu0 0.0
    %2942 = vmatprep.subr.mxu0 0.0
    %2943 = vmatpush1.msra.mxu0 0.0
    %2944 = vmatprep.subr.mxu0 0.0
    %2945 = vmatpush1.msra.mxu0 0.0
    %2946 = vmatprep.subr.mxu0 0.0
    %2947 = vmatpush1.msra.mxu0 0.0
    %2948 = vmatprep.subr.mxu0 0.0
    %2949 = vmatpush1.msra.mxu0 0.0
    %2950 = vmatprep.subr.mxu0 0.0
    %2951 = vmatpush1.msra.mxu0 0.0
    %2952 = vmatprep.subr.mxu0 0.0
    %2953 = vmatpush1.msra.mxu0 0.0
    %2954 = vmatprep.subr.mxu0 0.0
    %2955 = vmatpush1.msra.mxu0 0.0
    %2956 = vmatprep.mubr.f32.mxu0 0.0
    %2957 = vmatmul.mubr.f32.gmra.mrb[0].mxu0 %v2796
    %v2958 = vpop.f32.mrb[0].mxu0
    %v2959 = vadd.f32 %v2874, %v2958
    %v2960 = vpop.f32.mrb[0].mxu0
    %2961 = vmatprep.mubr.f32.mxu0 0.0
    %2962 = vmatmul.mubr.f32.gmra.mrb[0].mxu0 %v2799
    %v2963 = vpop.f32.mrb[0].mxu0
    %v2964 = vadd.f32 %v2879, %v2963
    %v2965 = vpop.f32.mrb[0].mxu0
    %2966 = vmatprep.mubr.f32.mxu0 0.0
    %2967 = vmatmul.mubr.f32.gmra.mrb[0].mxu0 %v2802
    %v2968 = vpop.f32.mrb[0].mxu0
    %v2969 = vadd.f32 %v2884, %v2968
    %v2970 = vpop.f32.mrb[0].mxu0
    %2971 = vmatprep.mubr.f32.mxu0 0.0
    %2972 = vmatmul.mubr.f32.gmra.mrb[0].mxu0 %v2805
    %v2973 = vpop.f32.mrb[0].mxu0
    %v2974 = vadd.f32 %v2889, %v2973
    %v2975 = vpop.f32.mrb[0].mxu0
    %2976 = vdwg.mxu0
    %v2977 = vmax.f32 %v2959, 0.0
    %v2978 = vmax.f32 %v2964, 0.0
    %v2979 = vmax.f32 %v2969, 0.0
    %v2980 = vmax.f32 %v2974, 0.0
    %v2982 = vsel %vm166, %v83, 0
    %v2985 = vsel %vm166, %v84, 0
    %2987 = vmatprep.subr.mxu0 0.0
    %2988 = vmatpush1.msra.mxu0 %v86
    %2989 = vmatprep.subr.mxu0 0.0
    %2990 = vmatpush1.msra.mxu0 %v87
    %2991 = vmatprep.subr.mxu0 0.0
    %2992 = vmatpush1.msra.mxu0 %v88
    %2993 = vmatprep.subr.mxu0 0.0
    %2994 = vmatpush1.msra.mxu0 %v89
    %2995 = vmatprep.subr.mxu0 0.0
    %2996 = vmatpush1.msra.mxu0 %v90
    %2997 = vmatprep.subr.mxu0 0.0
    %2998 = vmatpush1.msra.mxu0 %v91
    %2999 = vmatprep.subr.mxu0 0.0
    %3000 = vmatpush1.msra.mxu0 %v92
    %3001 = vmatprep.subr.mxu0 0.0
    %3002 = vmatpush1.msra.mxu0 %v93
    %3003 = vmatprep.subr.mxu0 0.0
    %3004 = vmatpush1.msra.mxu0 0.0
    %3005 = vmatprep.subr.mxu0 0.0
    %3006 = vmatpush1.msra.mxu0 0.0
    %3007 = vmatprep.subr.mxu0 0.0
    %3008 = vmatpush1.msra.mxu0 0.0
    %3009 = vmatprep.subr.mxu0 0.0
    %3010 = vmatpush1.msra.mxu0 0.0
    %3011 = vmatprep.subr.mxu0 0.0
    %3012 = vmatpush1.msra.mxu0 0.0
    %3013 = vmatprep.subr.mxu0 0.0
    %3014 = vmatpush1.msra.mxu0 0.0
    %3015 = vmatprep.subr.mxu0 0.0
    %3016 = vmatpush1.msra.mxu0 0.0
    %3017 = vmatprep.subr.mxu0 0.0
    %3018 = vmatpush1.msra.mxu0 0.0
    %3019 = vmatprep.subr.mxu0 0.0
    %3020 = vmatpush1.msra.mxu0 0.0
    %3021 = vmatprep.subr.mxu0 0.0
    %3022 = vmatpush1.msra.mxu0 0.0
    %3023 = vmatprep.subr.mxu0 0.0
    %3024 = vmatpush1.msra.mxu0 0.0
    %3025 = vmatprep.subr.mxu0 0.0
    %3026 = vmatpush1.msra.mxu0 0.0
    %3027 = vmatprep.subr.mxu0 0.0
    %3028 = vmatpush1.msra.mxu0 0.0
    %3029 = vmatprep.subr.mxu0 0.0
    %3030 = vmatpush1.msra.mxu0 0.0
    %3031 = vmatprep.subr.mxu0 0.0
    %3032 = vmatpush1.msra.mxu0 0.0
    %3033 = vmatprep.subr.mxu0 0.0
    %3034 = vmatpush1.msra.mxu0 0.0
    %3035 = vmatprep.subr.mxu0 0.0
    %3036 = vmatpush1.msra.mxu0 0.0
    %3037 = vmatprep.subr.mxu0 0.0
    %3038 = vmatpush1.msra.mxu0 0.0
    %3039 = vmatprep.subr.mxu0 0.0
    %3040 = vmatpush1.msra.mxu0 0.0
    %3041 = vmatprep.subr.mxu0 0.0
    %3042 = vmatpush1.msra.mxu0 0.0
    %3043 = vmatprep.subr.mxu0 0.0
    %3044 = vmatpush1.msra.mxu0 0.0
    %3045 = vmatprep.subr.mxu0 0.0
    %3046 = vmatpush1.msra.mxu0 0.0
    %3047 = vmatprep.subr.mxu0 0.0
    %3048 = vmatpush1.msra.mxu0 0.0
    %3049 = vmatprep.subr.mxu0 0.0
    %3050 = vmatpush1.msra.mxu0 0.0
    %3051 = vmatprep.mubr.f32.mxu0 0.0
    %3052 = vmatmul.mubr.f32.gmra.mrb[0].mxu0 %v2982
    %v3053 = vpop.f32.mrb[0].mxu0
    %v3054 = vadd.f32 0.0, %v3053
    %v3055 = vpop.f32.mrb[0].mxu0
    %3056 = vmatprep.mubr.f32.mxu0 0.0
    %3057 = vmatmul.mubr.f32.gmra.mrb[0].mxu0 %v2985
    %v3058 = vpop.f32.mrb[0].mxu0
    %v3059 = vadd.f32 0.0, %v3058
    %v3060 = vpop.f32.mrb[0].mxu0
    %3061 = vdwg.mxu0
    %3062 = vmatprep.subr.mxu0 0.0
    %3063 = vmatpush1.msra.mxu0 %v95
    %3064 = vmatprep.subr.mxu0 0.0
    %3065 = vmatpush1.msra.mxu0 %v96
    %3066 = vmatprep.subr.mxu0 0.0
    %3067 = vmatpush1.msra.mxu0 %v97
    %3068 = vmatprep.subr.mxu0 0.0
    %3069 = vmatpush1.msra.mxu0 %v98
    %3070 = vmatprep.subr.mxu0 0.0
    %3071 = vmatpush1.msra.mxu0 %v99
    %3072 = vmatprep.subr.mxu0 0.0
    %3073 = vmatpush1.msra.mxu0 %v100
    %3074 = vmatprep.subr.mxu0 0.0
    %3075 = vmatpush1.msra.mxu0 %v101
    %3076 = vmatprep.subr.mxu0 0.0
    %3077 = vmatpush1.msra.mxu0 %v102
    %3078 = vmatprep.subr.mxu0 0.0
    %3079 = vmatpush1.msra.mxu0 0.0
    %3080 = vmatprep.subr.mxu0 0.0
    %3081 = vmatpush1.msra.mxu0 0.0
    %3082 = vmatprep.subr.mxu0 0.0
    %3083 = vmatpush1.msra.mxu0 0.0
    %3084 = vmatprep.subr.mxu0 0.0
    %3085 = vmatpush1.msra.mxu0 0.0
    %3086 = vmatprep.subr.mxu0 0.0
    %3087 = vmatpush1.msra.mxu0 0.0
    %3088 = vmatprep.subr.mxu0 0.0
    %3089 = vmatpush1.msra.mxu0 0.0
    %3090 = vmatprep.subr.mxu0 0.0
    %3091 = vmatpush1.msra.mxu0 0.0
    %3092 = vmatprep.subr.mxu0 0.0
    %3093 = vmatpush1.msra.mxu0 0.0
    %3094 = vmatprep.subr.mxu0 0.0
    %3095 = vmatpush1.msra.mxu0 0.0
    %3096 = vmatprep.subr.mxu0 0.0
    %3097 = vmatpush1.msra.mxu0 0.0
    %3098 = vmatprep.subr.mxu0 0.0
    %3099 = vmatpush1.msra.mxu0 0.0
    %3100 = vmatprep.subr.mxu0 0.0
    %3101 = vmatpush1.msra.mxu0 0.0
    %3102 = vmatprep.subr.mxu0 0.0
    %3103 = vmatpush1.msra.mxu0 0.0
    %3104 = vmatprep.subr.mxu0 0.0
    %3105 = vmatpush1.msra.mxu0 0.0
    %3106 = vmatprep.subr.mxu0 0.0
    %3107 = vmatpush1.msra.mxu0 0.0
    %3108 = vmatprep.subr.mxu0 0.0
    %3109 = vmatpush1.msra.mxu0 0.0
    %3110 = vmatprep.subr.mxu0 0.0
    %3111 = vmatpush1.msra.mxu0 0.0
    %3112 = vmatprep.subr.mxu0 0.0
    %3113 = vmatpush1.msra.mxu0 0.0
    %3114 = vmatprep.subr.mxu0 0.0
    %3115 = vmatpush1.msra.mxu0 0.0
    %3116 = vmatprep.subr.mxu0 0.0
    %3117 = vmatpush1.msra.mxu0 0.0
    %3118 = vmatprep.subr.mxu0 0.0
    %3119 = vmatpush1.msra.mxu0 0.0
    %3120 = vmatprep.subr.mxu0 0.0
    %3121 = vmatpush1.msra.mxu0 0.0
    %3122 = vmatprep.subr.mxu0 0.0
    %3123 = vmatpush1.msra.mxu0 0.0
    %3124 = vmatprep.subr.mxu0 0.0
    %3125 = vmatpush1.msra.mxu0 0.0
    %3126 = vmatprep.mubr.f32.mxu0 0.0
    %3127 = vmatmul.mubr.f32.gmra.mrb[0].mxu0 %v2982
    %v3128 = vpop.f32.mrb[0].mxu0
    %v3129 = vadd.f32 0.0, %v3128
    %v3130 = vpop.f32.mrb[0].mxu0
    %3131 = vmatprep.mubr.f32.mxu0 0.0
    %3132 = vmatmul.mubr.f32.gmra.mrb[0].mxu0 %v2985
    %v3133 = vpop.f32.mrb[0].mxu0
    %v3134 = vadd.f32 0.0, %v3133
    %v3135 = vpop.f32.mrb[0].mxu0
    %3136 = vdwg.mxu0
    %3137 = vmatprep.subr.mxu0 0.0
    %3138 = vmatpush1.msra.mxu0 %v104
    %3139 = vmatprep.subr.mxu0 0.0
    %3140 = vmatpush1.msra.mxu0 %v105
    %3141 = vmatprep.subr.mxu0 0.0
    %3142 = vmatpush1.msra.mxu0 %v106
    %3143 = vmatprep.subr.mxu0 0.0
    %3144 = vmatpush1.msra.mxu0 %v107
    %3145 = vmatprep.subr.mxu0 0.0
    %3146 = vmatpush1.msra.mxu0 %v108
    %3147 = vmatprep.subr.mxu0 0.0
    %3148 = vmatpush1.msra.mxu0 %v109
    %3149 = vmatprep.subr.mxu0 0.0
    %3150 = vmatpush1.msra.mxu0 %v110
    %3151 = vmatprep.subr.mxu0 0.0
    %3152 = vmatpush1.msra.mxu0 %v111
    %3153 = vmatprep.subr.mxu0 0.0
    %3154 = vmatpush1.msra.mxu0 0.0
    %3155 = vmatprep.subr.mxu0 0.0
    %3156 = vmatpush1.msra.mxu0 0.0
    %3157 = vmatprep.subr.mxu0 0.0
    %3158 = vmatpush1.msra.mxu0 0.0
    %3159 = vmatprep.subr.mxu0 0.0
    %3160 = vmatpush1.msra.mxu0 0.0
    %3161 = vmatprep.subr.mxu0 0.0
    %3162 = vmatpush1.msra.mxu0 0.0
    %3163 = vmatprep.subr.mxu0 0.0
    %3164 = vmatpush1.msra.mxu0 0.0
    %3165 = vmatprep.subr.mxu0 0.0
    %3166 = vmatpush1.msra.mxu0 0.0
    %3167 = vmatprep.subr.mxu0 0.0
    %3168 = vmatpush1.msra.mxu0 0.0
    %3169 = vmatprep.subr.mxu0 0.0
    %3170 = vmatpush1.msra.mxu0 0.0
    %3171 = vmatprep.subr.mxu0 0.0
    %3172 = vmatpush1.msra.mxu0 0.0
    %3173 = vmatprep.subr.mxu0 0.0
    %3174 = vmatpush1.msra.mxu0 0.0
    %3175 = vmatprep.subr.mxu0 0.0
    %3176 = vmatpush1.msra.mxu0 0.0
    %3177 = vmatprep.subr.mxu0 0.0
    %3178 = vmatpush1.msra.mxu0 0.0
    %3179 = vmatprep.subr.mxu0 0.0
    %3180 = vmatpush1.msra.mxu0 0.0
    %3181 = vmatprep.subr.mxu0 0.0
    %3182 = vmatpush1.msra.mxu0 0.0
    %3183 = vmatprep.subr.mxu0 0.0
    %3184 = vmatpush1.msra.mxu0 0.0
    %3185 = vmatprep.subr.mxu0 0.0
    %3186 = vmatpush1.msra.mxu0 0.0
    %3187 = vmatprep.subr.mxu0 0.0
    %3188 = vmatpush1.msra.mxu0 0.0
    %3189 = vmatprep.subr.mxu0 0.0
    %3190 = vmatpush1.msra.mxu0 0.0
    %3191 = vmatprep.subr.mxu0 0.0
    %3192 = vmatpush1.msra.mxu0 0.0
    %3193 = vmatprep.subr.mxu0 0.0
    %3194 = vmatpush1.msra.mxu0 0.0
    %3195 = vmatprep.subr.mxu0 0.0
    %3196 = vmatpush1.msra.mxu0 0.0
    %3197 = vmatprep.subr.mxu0 0.0
    %3198 = vmatpush1.msra.mxu0 0.0
    %3199 = vmatprep.subr.mxu0 0.0
    %3200 = vmatpush1.msra.mxu0 0.0
    %3201 = vmatprep.mubr.f32.mxu0 0.0
    %3202 = vmatmul.mubr.f32.gmra.mrb[0].mxu0 %v2982
    %v3203 = vpop.f32.mrb[0].mxu0
    %v3204 = vadd.f32 0.0, %v3203
    %v3205 = vpop.f32.mrb[0].mxu0
    %3206 = vmatprep.mubr.f32.mxu0 0.0
    %3207 = vmatmul.mubr.f32.gmra.mrb[0].mxu0 %v2985
    %v3208 = vpop.f32.mrb[0].mxu0
    %v3209 = vadd.f32 0.0, %v3208
    %v3210 = vpop.f32.mrb[0].mxu0
    %3211 = vdwg.mxu0
    %3212 = vmatprep.subr.mxu0 0.0
    %3213 = vmatpush1.msra.mxu0 %v113
    %3214 = vmatprep.subr.mxu0 0.0
    %3215 = vmatpush1.msra.mxu0 %v114
    %3216 = vmatprep.subr.mxu0 0.0
    %3217 = vmatpush1.msra.mxu0 %v115
    %3218 = vmatprep.subr.mxu0 0.0
    %3219 = vmatpush1.msra.mxu0 %v116
    %3220 = vmatprep.subr.mxu0 0.0
    %3221 = vmatpush1.msra.mxu0 %v117
    %3222 = vmatprep.subr.mxu0 0.0
    %3223 = vmatpush1.msra.mxu0 %v118
    %3224 = vmatprep.subr.mxu0 0.0
    %3225 = vmatpush1.msra.mxu0 %v119
    %3226 = vmatprep.subr.mxu0 0.0
    %3227 = vmatpush1.msra.mxu0 %v120
    %3228 = vmatprep.subr.mxu0 0.0
    %3229 = vmatpush1.msra.mxu0 0.0
    %3230 = vmatprep.subr.mxu0 0.0
    %3231 = vmatpush1.msra.mxu0 0.0
    %3232 = vmatprep.subr.mxu0 0.0
    %3233 = vmatpush1.msra.mxu0 0.0
    %3234 = vmatprep.subr.mxu0 0.0
    %3235 = vmatpush1.msra.mxu0 0.0
    %3236 = vmatprep.subr.mxu0 0.0
    %3237 = vmatpush1.msra.mxu0 0.0
    %3238 = vmatprep.subr.mxu0 0.0
    %3239 = vmatpush1.msra.mxu0 0.0
    %3240 = vmatprep.subr.mxu0 0.0
    %3241 = vmatpush1.msra.mxu0 0.0
    %3242 = vmatprep.subr.mxu0 0.0
    %3243 = vmatpush1.msra.mxu0 0.0
    %3244 = vmatprep.subr.mxu0 0.0
    %3245 = vmatpush1.msra.mxu0 0.0
    %3246 = vmatprep.subr.mxu0 0.0
    %3247 = vmatpush1.msra.mxu0 0.0
    %3248 = vmatprep.subr.mxu0 0.0
    %3249 = vmatpush1.msra.mxu0 0.0
    %3250 = vmatprep.subr.mxu0 0.0
    %3251 = vmatpush1.msra.mxu0 0.0
    %3252 = vmatprep.subr.mxu0 0.0
    %3253 = vmatpush1.msra.mxu0 0.0
    %3254 = vmatprep.subr.mxu0 0.0
    %3255 = vmatpush1.msra.mxu0 0.0
    %3256 = vmatprep.subr.mxu0 0.0
    %3257 = vmatpush1.msra.mxu0 0.0
    %3258 = vmatprep.subr.mxu0 0.0
    %3259 = vmatpush1.msra.mxu0 0.0
    %3260 = vmatprep.subr.mxu0 0.0
    %3261 = vmatpush1.msra.mxu0 0.0
    %3262 = vmatprep.subr.mxu0 0.0
    %3263 = vmatpush1.msra.mxu0 0.0
    %3264 = vmatprep.subr.mxu0 0.0
    %3265 = vmatpush1.msra.mxu0 0.0
    %3266 = vmatprep.subr.mxu0 0.0
    %3267 = vmatpush1.msra.mxu0 0.0
    %3268 = vmatprep.subr.mxu0 0.0
    %3269 = vmatpush1.msra.mxu0 0.0
    %3270 = vmatprep.subr.mxu0 0.0
    %3271 = vmatpush1.msra.mxu0 0.0
    %3272 = vmatprep.subr.mxu0 0.0
    %3273 = vmatpush1.msra.mxu0 0.0
    %3274 = vmatprep.subr.mxu0 0.0
    %3275 = vmatpush1.msra.mxu0 0.0
    %3276 = vmatprep.mubr.f32.mxu0 0.0
    %3277 = vmatmul.mubr.f32.gmra.mrb[0].mxu0 %v2982
    %v3278 = vpop.f32.mrb[0].mxu0
    %v3279 = vadd.f32 0.0, %v3278
    %v3280 = vpop.f32.mrb[0].mxu0
    %3281 = vmatprep.mubr.f32.mxu0 0.0
    %3282 = vmatmul.mubr.f32.gmra.mrb[0].mxu0 %v2985
    %v3283 = vpop.f32.mrb[0].mxu0
    %v3284 = vadd.f32 0.0, %v3283
    %v3285 = vpop.f32.mrb[0].mxu0
    %3286 = vdwg.mxu0
    %3287 = vmatprep.subr.mxu0 0.0
    %3288 = vmatpush1.msra.mxu0 %v122
    %3289 = vmatprep.subr.mxu0 0.0
    %3290 = vmatpush1.msra.mxu0 %v123
    %3291 = vmatprep.subr.mxu0 0.0
    %3292 = vmatpush1.msra.mxu0 %v124
    %3293 = vmatprep.subr.mxu0 0.0
    %3294 = vmatpush1.msra.mxu0 %v125
    %3295 = vmatprep.subr.mxu0 0.0
    %3296 = vmatpush1.msra.mxu0 %v126
    %3297 = vmatprep.subr.mxu0 0.0
    %3298 = vmatpush1.msra.mxu0 %v127
    %3299 = vmatprep.subr.mxu0 0.0
    %3300 = vmatpush1.msra.mxu0 %v128
    %3301 = vmatprep.subr.mxu0 0.0
    %3302 = vmatpush1.msra.mxu0 %v129
    %3303 = vmatprep.subr.mxu0 0.0
    %3304 = vmatpush1.msra.mxu0 0.0
    %3305 = vmatprep.subr.mxu0 0.0
    %3306 = vmatpush1.msra.mxu0 0.0
    %3307 = vmatprep.subr.mxu0 0.0
    %3308 = vmatpush1.msra.mxu0 0.0
    %3309 = vmatprep.subr.mxu0 0.0
    %3310 = vmatpush1.msra.mxu0 0.0
    %3311 = vmatprep.subr.mxu0 0.0
    %3312 = vmatpush1.msra.mxu0 0.0
    %3313 = vmatprep.subr.mxu0 0.0
    %3314 = vmatpush1.msra.mxu0 0.0
    %3315 = vmatprep.subr.mxu0 0.0
    %3316 = vmatpush1.msra.mxu0 0.0
    %3317 = vmatprep.subr.mxu0 0.0
    %3318 = vmatpush1.msra.mxu0 0.0
    %3319 = vmatprep.subr.mxu0 0.0
    %3320 = vmatpush1.msra.mxu0 0.0
    %3321 = vmatprep.subr.mxu0 0.0
    %3322 = vmatpush1.msra.mxu0 0.0
    %3323 = vmatprep.subr.mxu0 0.0
    %3324 = vmatpush1.msra.mxu0 0.0
    %3325 = vmatprep.subr.mxu0 0.0
    %3326 = vmatpush1.msra.mxu0 0.0
    %3327 = vmatprep.subr.mxu0 0.0
    %3328 = vmatpush1.msra.mxu0 0.0
    %3329 = vmatprep.subr.mxu0 0.0
    %3330 = vmatpush1.msra.mxu0 0.0
    %3331 = vmatprep.subr.mxu0 0.0
    %3332 = vmatpush1.msra.mxu0 0.0
    %3333 = vmatprep.subr.mxu0 0.0
    %3334 = vmatpush1.msra.mxu0 0.0
    %3335 = vmatprep.subr.mxu0 0.0
    %3336 = vmatpush1.msra.mxu0 0.0
    %3337 = vmatprep.subr.mxu0 0.0
    %3338 = vmatpush1.msra.mxu0 0.0
    %3339 = vmatprep.subr.mxu0 0.0
    %3340 = vmatpush1.msra.mxu0 0.0
    %3341 = vmatprep.subr.mxu0 0.0
    %3342 = vmatpush1.msra.mxu0 0.0
    %3343 = vmatprep.subr.mxu0 0.0
    %3344 = vmatpush1.msra.mxu0 0.0
    %3345 = vmatprep.subr.mxu0 0.0
    %3346 = vmatpush1.msra.mxu0 0.0
    %3347 = vmatprep.subr.mxu0 0.0
    %3348 = vmatpush1.msra.mxu0 0.0
    %3349 = vmatprep.subr.mxu0 0.0
    %3350 = vmatpush1.msra.mxu0 0.0
    %3351 = vmatprep.mubr.f32.mxu0 0.0
    %3352 = vmatmul.mubr.f32.gmra.mrb[0].mxu0 %v2982
    %v3353 = vpop.f32.mrb[0].mxu0
    %v3354 = vadd.f32 0.0, %v3353
    %v3355 = vpop.f32.mrb[0].mxu0
    %3356 = vmatprep.mubr.f32.mxu0 0.0
    %3357 = vmatmul.mubr.f32.gmra.mrb[0].mxu0 %v2985
    %v3358 = vpop.f32.mrb[0].mxu0
    %v3359 = vadd.f32 0.0, %v3358
    %v3360 = vpop.f32.mrb[0].mxu0
    %3361 = vdwg.mxu0
    %3362 = vmatprep.subr.mxu0 0.0
    %3363 = vmatpush1.msra.mxu0 %v131
    %3364 = vmatprep.subr.mxu0 0.0
    %3365 = vmatpush1.msra.mxu0 %v132
    %3366 = vmatprep.subr.mxu0 0.0
    %3367 = vmatpush1.msra.mxu0 %v133
    %3368 = vmatprep.subr.mxu0 0.0
    %3369 = vmatpush1.msra.mxu0 %v134
    %3370 = vmatprep.subr.mxu0 0.0
    %3371 = vmatpush1.msra.mxu0 %v135
    %3372 = vmatprep.subr.mxu0 0.0
    %3373 = vmatpush1.msra.mxu0 %v136
    %3374 = vmatprep.subr.mxu0 0.0
    %3375 = vmatpush1.msra.mxu0 %v137
    %3376 = vmatprep.subr.mxu0 0.0
    %3377 = vmatpush1.msra.mxu0 %v138
    %3378 = vmatprep.subr.mxu0 0.0
    %3379 = vmatpush1.msra.mxu0 0.0
    %3380 = vmatprep.subr.mxu0 0.0
    %3381 = vmatpush1.msra.mxu0 0.0
    %3382 = vmatprep.subr.mxu0 0.0
    %3383 = vmatpush1.msra.mxu0 0.0
    %3384 = vmatprep.subr.mxu0 0.0
    %3385 = vmatpush1.msra.mxu0 0.0
    %3386 = vmatprep.subr.mxu0 0.0
    %3387 = vmatpush1.msra.mxu0 0.0
    %3388 = vmatprep.subr.mxu0 0.0
    %3389 = vmatpush1.msra.mxu0 0.0
    %3390 = vmatprep.subr.mxu0 0.0
    %3391 = vmatpush1.msra.mxu0 0.0
    %3392 = vmatprep.subr.mxu0 0.0
    %3393 = vmatpush1.msra.mxu0 0.0
    %3394 = vmatprep.subr.mxu0 0.0
    %3395 = vmatpush1.msra.mxu0 0.0
    %3396 = vmatprep.subr.mxu0 0.0
    %3397 = vmatpush1.msra.mxu0 0.0
    %3398 = vmatprep.subr.mxu0 0.0
    %3399 = vmatpush1.msra.mxu0 0.0
    %3400 = vmatprep.subr.mxu0 0.0
    %3401 = vmatpush1.msra.mxu0 0.0
    %3402 = vmatprep.subr.mxu0 0.0
    %3403 = vmatpush1.msra.mxu0 0.0
    %3404 = vmatprep.subr.mxu0 0.0
    %3405 = vmatpush1.msra.mxu0 0.0
    %3406 = vmatprep.subr.mxu0 0.0
    %3407 = vmatpush1.msra.mxu0 0.0
    %3408 = vmatprep.subr.mxu0 0.0
    %3409 = vmatpush1.msra.mxu0 0.0
    %3410 = vmatprep.subr.mxu0 0.0
    %3411 = vmatpush1.msra.mxu0 0.0
    %3412 = vmatprep.subr.mxu0 0.0
    %3413 = vmatpush1.msra.mxu0 0.0
    %3414 = vmatprep.subr.mxu0 0.0
    %3415 = vmatpush1.msra.mxu0 0.0
    %3416 = vmatprep.subr.mxu0 0.0
    %3417 = vmatpush1.msra.mxu0 0.0
    %3418 = vmatprep.subr.mxu0 0.0
    %3419 = vmatpush1.msra.mxu0 0.0
    %3420 = vmatprep.subr.mxu0 0.0
    %3421 = vmatpush1.msra.mxu0 0.0
    %3422 = vmatprep.subr.mxu0 0.0
    %3423 = vmatpush1.msra.mxu0 0.0
    %3424 = vmatprep.subr.mxu0 0.0
    %3425 = vmatpush1.msra.mxu0 0.0
    %3426 = vmatprep.mubr.f32.mxu0 0.0
    %3427 = vmatmul.mubr.f32.gmra.mrb[0].mxu0 %v2982
    %v3428 = vpop.f32.mrb[0].mxu0
    %v3429 = vadd.f32 0.0, %v3428
    %v3430 = vpop.f32.mrb[0].mxu0
    %3431 = vmatprep.mubr.f32.mxu0 0.0
    %3432 = vmatmul.mubr.f32.gmra.mrb[0].mxu0 %v2985
    %v3433 = vpop.f32.mrb[0].mxu0
    %v3434 = vadd.f32 0.0, %v3433
    %v3435 = vpop.f32.mrb[0].mxu0
    %3436 = vdwg.mxu0
    %3437 = vmatprep.subr.mxu0 0.0
    %3438 = vmatpush1.msra.mxu0 %v140
    %3439 = vmatprep.subr.mxu0 0.0
    %3440 = vmatpush1.msra.mxu0 %v141
    %3441 = vmatprep.subr.mxu0 0.0
    %3442 = vmatpush1.msra.mxu0 %v142
    %3443 = vmatprep.subr.mxu0 0.0
    %3444 = vmatpush1.msra.mxu0 %v143
    %3445 = vmatprep.subr.mxu0 0.0
    %3446 = vmatpush1.msra.mxu0 %v144
    %3447 = vmatprep.subr.mxu0 0.0
    %3448 = vmatpush1.msra.mxu0 %v145
    %3449 = vmatprep.subr.mxu0 0.0
    %3450 = vmatpush1.msra.mxu0 %v146
    %3451 = vmatprep.subr.mxu0 0.0
    %3452 = vmatpush1.msra.mxu0 %v147
    %3453 = vmatprep.subr.mxu0 0.0
    %3454 = vmatpush1.msra.mxu0 0.0
    %3455 = vmatprep.subr.mxu0 0.0
    %3456 = vmatpush1.msra.mxu0 0.0
    %3457 = vmatprep.subr.mxu0 0.0
    %3458 = vmatpush1.msra.mxu0 0.0
    %3459 = vmatprep.subr.mxu0 0.0
    %3460 = vmatpush1.msra.mxu0 0.0
    %3461 = vmatprep.subr.mxu0 0.0
    %3462 = vmatpush1.msra.mxu0 0.0
    %3463 = vmatprep.subr.mxu0 0.0
    %3464 = vmatpush1.msra.mxu0 0.0
    %3465 = vmatprep.subr.mxu0 0.0
    %3466 = vmatpush1.msra.mxu0 0.0
    %3467 = vmatprep.subr.mxu0 0.0
    %3468 = vmatpush1.msra.mxu0 0.0
    %3469 = vmatprep.subr.mxu0 0.0
    %3470 = vmatpush1.msra.mxu0 0.0
    %3471 = vmatprep.subr.mxu0 0.0
    %3472 = vmatpush1.msra.mxu0 0.0
    %3473 = vmatprep.subr.mxu0 0.0
    %3474 = vmatpush1.msra.mxu0 0.0
    %3475 = vmatprep.subr.mxu0 0.0
    %3476 = vmatpush1.msra.mxu0 0.0
    %3477 = vmatprep.subr.mxu0 0.0
    %3478 = vmatpush1.msra.mxu0 0.0
    %3479 = vmatprep.subr.mxu0 0.0
    %3480 = vmatpush1.msra.mxu0 0.0
    %3481 = vmatprep.subr.mxu0 0.0
    %3482 = vmatpush1.msra.mxu0 0.0
    %3483 = vmatprep.subr.mxu0 0.0
    %3484 = vmatpush1.msra.mxu0 0.0
    %3485 = vmatprep.subr.mxu0 0.0
    %3486 = vmatpush1.msra.mxu0 0.0
    %3487 = vmatprep.subr.mxu0 0.0
    %3488 = vmatpush1.msra.mxu0 0.0
    %3489 = vmatprep.subr.mxu0 0.0
    %3490 = vmatpush1.msra.mxu0 0.0
    %3491 = vmatprep.subr.mxu0 0.0
    %3492 = vmatpush1.msra.mxu0 0.0
    %3493 = vmatprep.subr.mxu0 0.0
    %3494 = vmatpush1.msra.mxu0 0.0
    %3495 = vmatprep.subr.mxu0 0.0
    %3496 = vmatpush1.msra.mxu0 0.0
    %3497 = vmatprep.subr.mxu0 0.0
    %3498 = vmatpush1.msra.mxu0 0.0
    %3499 = vmatprep.subr.mxu0 0.0
    %3500 = vmatpush1.msra.mxu0 0.0
    %3501 = vmatprep.mubr.f32.mxu0 0.0
    %3502 = vmatmul.mubr.f32.gmra.mrb[0].mxu0 %v2982
    %v3503 = vpop.f32.mrb[0].mxu0
    %v3504 = vadd.f32 0.0, %v3503
    %v3505 = vpop.f32.mrb[0].mxu0
    %3506 = vmatprep.mubr.f32.mxu0 0.0
    %3507 = vmatmul.mubr.f32.gmra.mrb[0].mxu0 %v2985
    %v3508 = vpop.f32.mrb[0].mxu0
    %v3509 = vadd.f32 0.0, %v3508
    %v3510 = vpop.f32.mrb[0].mxu0
    %3511 = vdwg.mxu0
    %3512 = vmatprep.subr.mxu0 0.0
    %3513 = vmatpush1.msra.mxu0 %v149
    %3514 = vmatprep.subr.mxu0 0.0
    %3515 = vmatpush1.msra.mxu0 %v150
    %3516 = vmatprep.subr.mxu0 0.0
    %3517 = vmatpush1.msra.mxu0 %v151
    %3518 = vmatprep.subr.mxu0 0.0
    %3519 = vmatpush1.msra.mxu0 %v152
    %3520 = vmatprep.subr.mxu0 0.0
    %3521 = vmatpush1.msra.mxu0 %v153
    %3522 = vmatprep.subr.mxu0 0.0
    %3523 = vmatpush1.msra.mxu0 %v154
    %3524 = vmatprep.subr.mxu0 0.0
    %3525 = vmatpush1.msra.mxu0 %v155
    %3526 = vmatprep.subr.mxu0 0.0
    %3527 = vmatpush1.msra.mxu0 %v156
    %3528 = vmatprep.subr.mxu0 0.0
    %3529 = vmatpush1.msra.mxu0 0.0
    %3530 = vmatprep.subr.mxu0 0.0
    %3531 = vmatpush1.msra.mxu0 0.0
    %3532 = vmatprep.subr.mxu0 0.0
    %3533 = vmatpush1.msra.mxu0 0.0
    %3534 = vmatprep.subr.mxu0 0.0
    %3535 = vmatpush1.msra.mxu0 0.0
    %3536 = vmatprep.subr.mxu0 0.0
    %3537 = vmatpush1.msra.mxu0 0.0
    %3538 = vmatprep.subr.mxu0 0.0
    %3539 = vmatpush1.msra.mxu0 0.0
    %3540 = vmatprep.subr.mxu0 0.0
    %3541 = vmatpush1.msra.mxu0 0.0
    %3542 = vmatprep.subr.mxu0 0.0
    %3543 = vmatpush1.msra.mxu0 0.0
    %3544 = vmatprep.subr.mxu0 0.0
    %3545 = vmatpush1.msra.mxu0 0.0
    %3546 = vmatprep.subr.mxu0 0.0
    %3547 = vmatpush1.msra.mxu0 0.0
    %3548 = vmatprep.subr.mxu0 0.0
    %3549 = vmatpush1.msra.mxu0 0.0
    %3550 = vmatprep.subr.mxu0 0.0
    %3551 = vmatpush1.msra.mxu0 0.0
    %3552 = vmatprep.subr.mxu0 0.0
    %3553 = vmatpush1.msra.mxu0 0.0
    %3554 = vmatprep.subr.mxu0 0.0
    %3555 = vmatpush1.msra.mxu0 0.0
    %3556 = vmatprep.subr.mxu0 0.0
    %3557 = vmatpush1.msra.mxu0 0.0
    %3558 = vmatprep.subr.mxu0 0.0
    %3559 = vmatpush1.msra.mxu0 0.0
    %3560 = vmatprep.subr.mxu0 0.0
    %3561 = vmatpush1.msra.mxu0 0.0
    %3562 = vmatprep.subr.mxu0 0.0
    %3563 = vmatpush1.msra.mxu0 0.0
    %3564 = vmatprep.subr.mxu0 0.0
    %3565 = vmatpush1.msra.mxu0 0.0
    %3566 = vmatprep.subr.mxu0 0.0
    %3567 = vmatpush1.msra.mxu0 0.0
    %3568 = vmatprep.subr.mxu0 0.0
    %3569 = vmatpush1.msra.mxu0 0.0
    %3570 = vmatprep.subr.mxu0 0.0
    %3571 = vmatpush1.msra.mxu0 0.0
    %3572 = vmatprep.subr.mxu0 0.0
    %3573 = vmatpush1.msra.mxu0 0.0
    %3574 = vmatprep.subr.mxu0 0.0
    %3575 = vmatpush1.msra.mxu0 0.0
    %3576 = vmatprep.mubr.f32.mxu0 0.0
    %3577 = vmatmul.mubr.f32.gmra.mrb[0].mxu0 %v2982
    %v3578 = vpop.f32.mrb[0].mxu0
    %v3579 = vadd.f32 0.0, %v3578
    %v3580 = vpop.f32.mrb[0].mxu0
    %3581 = vmatprep.mubr.f32.mxu0 0.0
    %3582 = vmatmul.mubr.f32.gmra.mrb[0].mxu0 %v2985
    %v3583 = vpop.f32.mrb[0].mxu0
    %v3584 = vadd.f32 0.0, %v3583
    %v3585 = vpop.f32.mrb[0].mxu0
    %3586 = vdwg.mxu0
    %3587 = vmatprep.subr.mxu0 0.0
    %3588 = vmatpush1.msra.mxu0 %v158
    %3589 = vmatprep.subr.mxu0 0.0
    %3590 = vmatpush1.msra.mxu0 %v159
    %3591 = vmatprep.subr.mxu0 0.0
    %3592 = vmatpush1.msra.mxu0 %v160
    %3593 = vmatprep.subr.mxu0 0.0
    %3594 = vmatpush1.msra.mxu0 %v161
    %3595 = vmatprep.subr.mxu0 0.0
    %3596 = vmatpush1.msra.mxu0 %v162
    %3597 = vmatprep.subr.mxu0 0.0
    %3598 = vmatpush1.msra.mxu0 %v163
    %3599 = vmatprep.subr.mxu0 0.0
    %3600 = vmatpush1.msra.mxu0 %v164
    %3601 = vmatprep.subr.mxu0 0.0
    %3602 = vmatpush1.msra.mxu0 %v165
    %3603 = vmatprep.subr.mxu0 0.0
    %3604 = vmatpush1.msra.mxu0 0.0
    %3605 = vmatprep.subr.mxu0 0.0
    %3606 = vmatpush1.msra.mxu0 0.0
    %3607 = vmatprep.subr.mxu0 0.0
    %3608 = vmatpush1.msra.mxu0 0.0
    %3609 = vmatprep.subr.mxu0 0.0
    %3610 = vmatpush1.msra.mxu0 0.0
    %3611 = vmatprep.subr.mxu0 0.0
    %3612 = vmatpush1.msra.mxu0 0.0
    %3613 = vmatprep.subr.mxu0 0.0
    %3614 = vmatpush1.msra.mxu0 0.0
    %3615 = vmatprep.subr.mxu0 0.0
    %3616 = vmatpush1.msra.mxu0 0.0
    %3617 = vmatprep.subr.mxu0 0.0
    %3618 = vmatpush1.msra.mxu0 0.0
    %3619 = vmatprep.subr.mxu0 0.0
    %3620 = vmatpush1.msra.mxu0 0.0
    %3621 = vmatprep.subr.mxu0 0.0
    %3622 = vmatpush1.msra.mxu0 0.0
    %3623 = vmatprep.subr.mxu0 0.0
    %3624 = vmatpush1.msra.mxu0 0.0
    %3625 = vmatprep.subr.mxu0 0.0
    %3626 = vmatpush1.msra.mxu0 0.0
    %3627 = vmatprep.subr.mxu0 0.0
    %3628 = vmatpush1.msra.mxu0 0.0
    %3629 = vmatprep.subr.mxu0 0.0
    %3630 = vmatpush1.msra.mxu0 0.0
    %3631 = vmatprep.subr.mxu0 0.0
    %3632 = vmatpush1.msra.mxu0 0.0
    %3633 = vmatprep.subr.mxu0 0.0
    %3634 = vmatpush1.msra.mxu0 0.0
    %3635 = vmatprep.subr.mxu0 0.0
    %3636 = vmatpush1.msra.mxu0 0.0
    %3637 = vmatprep.subr.mxu0 0.0
    %3638 = vmatpush1.msra.mxu0 0.0
    %3639 = vmatprep.subr.mxu0 0.0
    %3640 = vmatpush1.msra.mxu0 0.0
    %3641 = vmatprep.subr.mxu0 0.0
    %3642 = vmatpush1.msra.mxu0 0.0
    %3643 = vmatprep.subr.mxu0 0.0
    %3644 = vmatpush1.msra.mxu0 0.0
    %3645 = vmatprep.subr.mxu0 0.0
    %3646 = vmatpush1.msra.mxu0 0.0
    %3647 = vmatprep.subr.mxu0 0.0
    %3648 = vmatpush1.msra.mxu0 0.0
    %3649 = vmatprep.subr.mxu0 0.0
    %3650 = vmatpush1.msra.mxu0 0.0
    %3651 = vmatprep.mubr.f32.mxu0 0.0
    %3652 = vmatmul.mubr.f32.gmra.mrb[0].mxu0 %v2982
    %v3653 = vpop.f32.mrb[0].mxu0
    %v3654 = vadd.f32 0.0, %v3653
    %v3655 = vpop.f32.mrb[0].mxu0
    %3656 = vmatprep.mubr.f32.mxu0 0.0
    %3657 = vmatmul.mubr.f32.gmra.mrb[0].mxu0 %v2985
    %v3658 = vpop.f32.mrb[0].mxu0
    %v3659 = vadd.f32 0.0, %v3658
    %v3660 = vpop.f32.mrb[0].mxu0
    %3661 = vdwg.mxu0
    %3662 = vmatprep.subr.mxu0 0.0
    %3663 = vmatpush1.msra.mxu0 %v3054
    %3664 = vmatprep.subr.mxu0 0.0
    %3665 = vmatpush1.msra.mxu0 %v3059
    %3666 = vmatprep.subr.mxu0 0.0
    %3667 = vmatpush1.msra.mxu0 %v3129
    %3668 = vmatprep.subr.mxu0 0.0
    %3669 = vmatpush1.msra.mxu0 %v3134
    %3670 = vmatprep.subr.mxu0 0.0
    %3671 = vmatpush1.msra.mxu0 %v3204
    %3672 = vmatprep.subr.mxu0 0.0
    %3673 = vmatpush1.msra.mxu0 %v3209
    %3674 = vmatprep.subr.mxu0 0.0
    %3675 = vmatpush1.msra.mxu0 %v3279
    %3676 = vmatprep.subr.mxu0 0.0
    %3677 = vmatpush1.msra.mxu0 %v3284
    %3678 = vmatprep.subr.mxu0 0.0
    %3679 = vmatpush1.msra.mxu0 %v3354
    %3680 = vmatprep.subr.mxu0 0.0
    %3681 = vmatpush1.msra.mxu0 %v3359
    %3682 = vmatprep.subr.mxu0 0.0
    %3683 = vmatpush1.msra.mxu0 %v3429
    %3684 = vmatprep.subr.mxu0 0.0
    %3685 = vmatpush1.msra.mxu0 %v3434
    %3686 = vmatprep.subr.mxu0 0.0
    %3687 = vmatpush1.msra.mxu0 %v3504
    %3688 = vmatprep.subr.mxu0 0.0
    %3689 = vmatpush1.msra.mxu0 %v3509
    %3690 = vmatprep.subr.mxu0 0.0
    %3691 = vmatpush1.msra.mxu0 %v3579
    %3692 = vmatprep.subr.mxu0 0.0
    %3693 = vmatpush1.msra.mxu0 %v3584
    %3694 = vmatprep.subr.mxu0 0.0
    %3695 = vmatpush1.msra.mxu0 %v3654
    %3696 = vmatprep.subr.mxu0 0.0
    %3697 = vmatpush1.msra.mxu0 %v3659
    %3698 = vmatprep.subr.mxu0 0.0
    %3699 = vmatpush1.msra.mxu0 0.0
    %3700 = vmatprep.subr.mxu0 0.0
    %3701 = vmatpush1.msra.mxu0 0.0
    %3702 = vmatprep.subr.mxu0 0.0
    %3703 = vmatpush1.msra.mxu0 0.0
    %3704 = vmatprep.subr.mxu0 0.0
    %3705 = vmatpush1.msra.mxu0 0.0
    %3706 = vmatprep.subr.mxu0 0.0
    %3707 = vmatpush1.msra.mxu0 0.0
    %3708 = vmatprep.subr.mxu0 0.0
    %3709 = vmatpush1.msra.mxu0 0.0
    %3710 = vmatprep.subr.mxu0 0.0
    %3711 = vmatpush1.msra.mxu0 0.0
    %3712 = vmatprep.subr.mxu0 0.0
    %3713 = vmatpush1.msra.mxu0 0.0
    %3714 = vmatprep.subr.mxu0 0.0
    %3715 = vmatpush1.msra.mxu0 0.0
    %3716 = vmatprep.subr.mxu0 0.0
    %3717 = vmatpush1.msra.mxu0 0.0
    %3718 = vmatprep.subr.mxu0 0.0
    %3719 = vmatpush1.msra.mxu0 0.0
    %3720 = vmatprep.subr.mxu0 0.0
    %3721 = vmatpush1.msra.mxu0 0.0
    %3722 = vmatprep.subr.mxu0 0.0
    %3723 = vmatpush1.msra.mxu0 0.0
    %3724 = vmatprep.subr.mxu0 0.0
    %3725 = vmatpush1.msra.mxu0 0.0
    %3726 = vmatprep.mubr.f32.mxu0 %v882
    %3727 = vmatmul.mubr.f32.gmra.mrb[0].mxu0 %v848
    %v3728 = vpop.f32.mrb[0].mxu0
    %v3729 = vadd.f32 %v863, %v3728
    %v3730 = vpop.f32.mrb[0].mxu0
    %3731 = vmatprep.mubr.f32.mxu0 %v885
    %3732 = vmatmul.mubr.f32.gmra.mrb[0].mxu0 %v850
    %v3733 = vpop.f32.mrb[0].mxu0
    %v3734 = vadd.f32 %v868, %v3733
    %v3735 = vpop.f32.mrb[0].mxu0
    %3736 = vmatprep.mubr.f32.mxu0 %v888
    %3737 = vmatmul.mubr.f32.gmra.mrb[0].mxu0 %v852
    %v3738 = vpop.f32.mrb[0].mxu0
    %v3739 = vadd.f32 %v873, %v3738
    %v3740 = vpop.f32.mrb[0].mxu0
    %3741 = vmatprep.mubr.f32.mxu0 %v891
    %3742 = vmatmul.mubr.f32.gmra.mrb[0].mxu0 %v854
    %v3743 = vpop.f32.mrb[0].mxu0
    %v3744 = vadd.f32 %v878, %v3743
    %v3745 = vpop.f32.mrb[0].mxu0
    %3746 = vdwg.mxu0
    %v3747 = vmax.f32 %v3729, 0.0
    %v3748 = vmax.f32 %v3734, 0.0
    %v3749 = vmax.f32 %v3739, 0.0
    %v3750 = vmax.f32 %v3744, 0.0
    %v3752 = vsel %vm166, %v3747, 0
    %v3755 = vsel %vm166, %v3748, 0
    %v3758 = vsel %vm166, %v3749, 0
    %v3761 = vsel %vm166, %v3750, 0
    %3763 = vmatprep.subr.mxu0 0.0
    %3764 = vmatpush1.msra.mxu0 %v86
    %3765 = vmatprep.subr.mxu0 0.0
    %3766 = vmatpush1.msra.mxu0 %v87
    %3767 = vmatprep.subr.mxu0 0.0
    %3768 = vmatpush1.msra.mxu0 %v88
    %3769 = vmatprep.subr.mxu0 0.0
    %3770 = vmatpush1.msra.mxu0 %v89
    %3771 = vmatprep.subr.mxu0 0.0
    %3772 = vmatpush1.msra.mxu0 %v90
    %3773 = vmatprep.subr.mxu0 0.0
    %3774 = vmatpush1.msra.mxu0 %v91
    %3775 = vmatprep.subr.mxu0 0.0
    %3776 = vmatpush1.msra.mxu0 %v92
    %3777 = vmatprep.subr.mxu0 0.0
    %3778 = vmatpush1.msra.mxu0 %v93
    %3779 = vmatprep.subr.mxu0 0.0
    %3780 = vmatpush1.msra.mxu0 0.0
    %3781 = vmatprep.subr.mxu0 0.0
    %3782 = vmatpush1.msra.mxu0 0.0
    %3783 = vmatprep.subr.mxu0 0.0
    %3784 = vmatpush1.msra.mxu0 0.0
    %3785 = vmatprep.subr.mxu0 0.0
    %3786 = vmatpush1.msra.mxu0 0.0
    %3787 = vmatprep.subr.mxu0 0.0
    %3788 = vmatpush1.msra.mxu0 0.0
    %3789 = vmatprep.subr.mxu0 0.0
    %3790 = vmatpush1.msra.mxu0 0.0
    %3791 = vmatprep.subr.mxu0 0.0
    %3792 = vmatpush1.msra.mxu0 0.0
    %3793 = vmatprep.subr.mxu0 0.0
    %3794 = vmatpush1.msra.mxu0 0.0
    %3795 = vmatprep.subr.mxu0 0.0
    %3796 = vmatpush1.msra.mxu0 0.0
    %3797 = vmatprep.subr.mxu0 0.0
    %3798 = vmatpush1.msra.mxu0 0.0
    %3799 = vmatprep.subr.mxu0 0.0
    %3800 = vmatpush1.msra.mxu0 0.0
    %3801 = vmatprep.subr.mxu0 0.0
    %3802 = vmatpush1.msra.mxu0 0.0
    %3803 = vmatprep.subr.mxu0 0.0
    %3804 = vmatpush1.msra.mxu0 0.0
    %3805 = vmatprep.subr.mxu0 0.0
    %3806 = vmatpush1.msra.mxu0 0.0
    %3807 = vmatprep.subr.mxu0 0.0
    %3808 = vmatpush1.msra.mxu0 0.0
    %3809 = vmatprep.subr.mxu0 0.0
    %3810 = vmatpush1.msra.mxu0 0.0
    %3811 = vmatprep.subr.mxu0 0.0
    %3812 = vmatpush1.msra.mxu0 0.0
    %3813 = vmatprep.subr.mxu0 0.0
    %3814 = vmatpush1.msra.mxu0 0.0
    %3815 = vmatprep.subr.mxu0 0.0
    %3816 = vmatpush1.msra.mxu0 0.0
    %3817 = vmatprep.subr.mxu0 0.0
    %3818 = vmatpush1.msra.mxu0 0.0
    %3819 = vmatprep.subr.mxu0 0.0
    %3820 = vmatpush1.msra.mxu0 0.0
    %3821 = vmatprep.subr.mxu0 0.0
    %3822 = vmatpush1.msra.mxu0 0.0
    %3823 = vmatprep.subr.mxu0 0.0
    %3824 = vmatpush1.msra.mxu0 0.0
    %3825 = vmatprep.subr.mxu0 0.0
    %3826 = vmatpush1.msra.mxu0 0.0
    %3827 = vmatprep.mubr.f32.mxu0 0.0
    %3828 = vmatmul.mubr.f32.gmra.mrb[0].mxu0 %v3752
    %v3829 = vpop.f32.mrb[0].mxu0
    %v3830 = vadd.f32 0.0, %v3829
    %v3831 = vpop.f32.mrb[0].mxu0
    %3832 = vmatprep.mubr.f32.mxu0 0.0
    %3833 = vmatmul.mubr.f32.gmra.mrb[0].mxu0 %v3755
    %v3834 = vpop.f32.mrb[0].mxu0
    %v3835 = vadd.f32 0.0, %v3834
    %v3836 = vpop.f32.mrb[0].mxu0
    %3837 = vmatprep.mubr.f32.mxu0 0.0
    %3838 = vmatmul.mubr.f32.gmra.mrb[0].mxu0 %v3758
    %v3839 = vpop.f32.mrb[0].mxu0
    %v3840 = vadd.f32 0.0, %v3839
    %v3841 = vpop.f32.mrb[0].mxu0
    %3842 = vmatprep.mubr.f32.mxu0 0.0
    %3843 = vmatmul.mubr.f32.gmra.mrb[0].mxu0 %v3761
    %v3844 = vpop.f32.mrb[0].mxu0
    %v3845 = vadd.f32 0.0, %v3844
    %v3846 = vpop.f32.mrb[0].mxu0
    %3847 = vdwg.mxu0
    %3848 = vmatprep.subr.mxu0 0.0
    %3849 = vmatpush1.msra.mxu0 %v95
    %3850 = vmatprep.subr.mxu0 0.0
    %3851 = vmatpush1.msra.mxu0 %v96
    %3852 = vmatprep.subr.mxu0 0.0
    %3853 = vmatpush1.msra.mxu0 %v97
    %3854 = vmatprep.subr.mxu0 0.0
    %3855 = vmatpush1.msra.mxu0 %v98
    %3856 = vmatprep.subr.mxu0 0.0
    %3857 = vmatpush1.msra.mxu0 %v99
    %3858 = vmatprep.subr.mxu0 0.0
    %3859 = vmatpush1.msra.mxu0 %v100
    %3860 = vmatprep.subr.mxu0 0.0
    %3861 = vmatpush1.msra.mxu0 %v101
    %3862 = vmatprep.subr.mxu0 0.0
    %3863 = vmatpush1.msra.mxu0 %v102
    %3864 = vmatprep.subr.mxu0 0.0
    %3865 = vmatpush1.msra.mxu0 0.0
    %3866 = vmatprep.subr.mxu0 0.0
    %3867 = vmatpush1.msra.mxu0 0.0
    %3868 = vmatprep.subr.mxu0 0.0
    %3869 = vmatpush1.msra.mxu0 0.0
    %3870 = vmatprep.subr.mxu0 0.0
    %3871 = vmatpush1.msra.mxu0 0.0
    %3872 = vmatprep.subr.mxu0 0.0
    %3873 = vmatpush1.msra.mxu0 0.0
    %3874 = vmatprep.subr.mxu0 0.0
    %3875 = vmatpush1.msra.mxu0 0.0
    %3876 = vmatprep.subr.mxu0 0.0
    %3877 = vmatpush1.msra.mxu0 0.0
    %3878 = vmatprep.subr.mxu0 0.0
    %3879 = vmatpush1.msra.mxu0 0.0
    %3880 = vmatprep.subr.mxu0 0.0
    %3881 = vmatpush1.msra.mxu0 0.0
    %3882 = vmatprep.subr.mxu0 0.0
    %3883 = vmatpush1.msra.mxu0 0.0
    %3884 = vmatprep.subr.mxu0 0.0
    %3885 = vmatpush1.msra.mxu0 0.0
    %3886 = vmatprep.subr.mxu0 0.0
    %3887 = vmatpush1.msra.mxu0 0.0
    %3888 = vmatprep.subr.mxu0 0.0
    %3889 = vmatpush1.msra.mxu0 0.0
    %3890 = vmatprep.subr.mxu0 0.0
    %3891 = vmatpush1.msra.mxu0 0.0
    %3892 = vmatprep.subr.mxu0 0.0
    %3893 = vmatpush1.msra.mxu0 0.0
    %3894 = vmatprep.subr.mxu0 0.0
    %3895 = vmatpush1.msra.mxu0 0.0
    %3896 = vmatprep.subr.mxu0 0.0
    %3897 = vmatpush1.msra.mxu0 0.0
    %3898 = vmatprep.subr.mxu0 0.0
    %3899 = vmatpush1.msra.mxu0 0.0
    %3900 = vmatprep.subr.mxu0 0.0
    %3901 = vmatpush1.msra.mxu0 0.0
    %3902 = vmatprep.subr.mxu0 0.0
    %3903 = vmatpush1.msra.mxu0 0.0
    %3904 = vmatprep.subr.mxu0 0.0
    %3905 = vmatpush1.msra.mxu0 0.0
    %3906 = vmatprep.subr.mxu0 0.0
    %3907 = vmatpush1.msra.mxu0 0.0
    %3908 = vmatprep.subr.mxu0 0.0
    %3909 = vmatpush1.msra.mxu0 0.0
    %3910 = vmatprep.subr.mxu0 0.0
    %3911 = vmatpush1.msra.mxu0 0.0
    %3912 = vmatprep.mubr.f32.mxu0 0.0
    %3913 = vmatmul.mubr.f32.gmra.mrb[0].mxu0 %v3752
    %v3914 = vpop.f32.mrb[0].mxu0
    %v3915 = vadd.f32 0.0, %v3914
    %v3916 = vpop.f32.mrb[0].mxu0
    %3917 = vmatprep.mubr.f32.mxu0 0.0
    %3918 = vmatmul.mubr.f32.gmra.mrb[0].mxu0 %v3755
    %v3919 = vpop.f32.mrb[0].mxu0
    %v3920 = vadd.f32 0.0, %v3919
    %v3921 = vpop.f32.mrb[0].mxu0
    %3922 = vmatprep.mubr.f32.mxu0 0.0
    %3923 = vmatmul.mubr.f32.gmra.mrb[0].mxu0 %v3758
    %v3924 = vpop.f32.mrb[0].mxu0
    %v3925 = vadd.f32 0.0, %v3924
    %v3926 = vpop.f32.mrb[0].mxu0
    %3927 = vmatprep.mubr.f32.mxu0 0.0
    %3928 = vmatmul.mubr.f32.gmra.mrb[0].mxu0 %v3761
    %v3929 = vpop.f32.mrb[0].mxu0
    %v3930 = vadd.f32 0.0, %v3929
    %v3931 = vpop.f32.mrb[0].mxu0
    %3932 = vdwg.mxu0
    %3933 = vmatprep.subr.mxu0 0.0
    %3934 = vmatpush1.msra.mxu0 %v104
    %3935 = vmatprep.subr.mxu0 0.0
    %3936 = vmatpush1.msra.mxu0 %v105
    %3937 = vmatprep.subr.mxu0 0.0
    %3938 = vmatpush1.msra.mxu0 %v106
    %3939 = vmatprep.subr.mxu0 0.0
    %3940 = vmatpush1.msra.mxu0 %v107
    %3941 = vmatprep.subr.mxu0 0.0
    %3942 = vmatpush1.msra.mxu0 %v108
    %3943 = vmatprep.subr.mxu0 0.0
    %3944 = vmatpush1.msra.mxu0 %v109
    %3945 = vmatprep.subr.mxu0 0.0
    %3946 = vmatpush1.msra.mxu0 %v110
    %3947 = vmatprep.subr.mxu0 0.0
    %3948 = vmatpush1.msra.mxu0 %v111
    %3949 = vmatprep.subr.mxu0 0.0
    %3950 = vmatpush1.msra.mxu0 0.0
    %3951 = vmatprep.subr.mxu0 0.0
    %3952 = vmatpush1.msra.mxu0 0.0
    %3953 = vmatprep.subr.mxu0 0.0
    %3954 = vmatpush1.msra.mxu0 0.0
    %3955 = vmatprep.subr.mxu0 0.0
    %3956 = vmatpush1.msra.mxu0 0.0
    %3957 = vmatprep.subr.mxu0 0.0
    %3958 = vmatpush1.msra.mxu0 0.0
    %3959 = vmatprep.subr.mxu0 0.0
    %3960 = vmatpush1.msra.mxu0 0.0
    %3961 = vmatprep.subr.mxu0 0.0
    %3962 = vmatpush1.msra.mxu0 0.0
    %3963 = vmatprep.subr.mxu0 0.0
    %3964 = vmatpush1.msra.mxu0 0.0
    %3965 = vmatprep.subr.mxu0 0.0
    %3966 = vmatpush1.msra.mxu0 0.0
    %3967 = vmatprep.subr.mxu0 0.0
    %3968 = vmatpush1.msra.mxu0 0.0
    %3969 = vmatprep.subr.mxu0 0.0
    %3970 = vmatpush1.msra.mxu0 0.0
    %3971 = vmatprep.subr.mxu0 0.0
    %3972 = vmatpush1.msra.mxu0 0.0
    %3973 = vmatprep.subr.mxu0 0.0
    %3974 = vmatpush1.msra.mxu0 0.0
    %3975 = vmatprep.subr.mxu0 0.0
    %3976 = vmatpush1.msra.mxu0 0.0
    %3977 = vmatprep.subr.mxu0 0.0
    %3978 = vmatpush1.msra.mxu0 0.0
    %3979 = vmatprep.subr.mxu0 0.0
    %3980 = vmatpush1.msra.mxu0 0.0
    %3981 = vmatprep.subr.mxu0 0.0
    %3982 = vmatpush1.msra.mxu0 0.0
    %3983 = vmatprep.subr.mxu0 0.0
    %3984 = vmatpush1.msra.mxu0 0.0
    %3985 = vmatprep.subr.mxu0 0.0
    %3986 = vmatpush1.msra.mxu0 0.0
    %3987 = vmatprep.subr.mxu0 0.0
    %3988 = vmatpush1.msra.mxu0 0.0
    %3989 = vmatprep.subr.mxu0 0.0
    %3990 = vmatpush1.msra.mxu0 0.0
    %3991 = vmatprep.subr.mxu0 0.0
    %3992 = vmatpush1.msra.mxu0 0.0
    %3993 = vmatprep.subr.mxu0 0.0
    %3994 = vmatpush1.msra.mxu0 0.0
    %3995 = vmatprep.subr.mxu0 0.0
    %3996 = vmatpush1.msra.mxu0 0.0
    %3997 = vmatprep.mubr.f32.mxu0 0.0
    %3998 = vmatmul.mubr.f32.gmra.mrb[0].mxu0 %v3752
    %v3999 = vpop.f32.mrb[0].mxu0
    %v4000 = vadd.f32 0.0, %v3999
    %v4001 = vpop.f32.mrb[0].mxu0
    %4002 = vmatprep.mubr.f32.mxu0 0.0
    %4003 = vmatmul.mubr.f32.gmra.mrb[0].mxu0 %v3755
    %v4004 = vpop.f32.mrb[0].mxu0
    %v4005 = vadd.f32 0.0, %v4004
    %v4006 = vpop.f32.mrb[0].mxu0
    %4007 = vmatprep.mubr.f32.mxu0 0.0
    %4008 = vmatmul.mubr.f32.gmra.mrb[0].mxu0 %v3758
    %v4009 = vpop.f32.mrb[0].mxu0
    %v4010 = vadd.f32 0.0, %v4009
    %v4011 = vpop.f32.mrb[0].mxu0
    %4012 = vmatprep.mubr.f32.mxu0 0.0
    %4013 = vmatmul.mubr.f32.gmra.mrb[0].mxu0 %v3761
    %v4014 = vpop.f32.mrb[0].mxu0
    %v4015 = vadd.f32 0.0, %v4014
    %v4016 = vpop.f32.mrb[0].mxu0
    %4017 = vdwg.mxu0
    %4018 = vmatprep.subr.mxu0 0.0
    %4019 = vmatpush1.msra.mxu0 %v113
    %4020 = vmatprep.subr.mxu0 0.0
    %4021 = vmatpush1.msra.mxu0 %v114
    %4022 = vmatprep.subr.mxu0 0.0
    %4023 = vmatpush1.msra.mxu0 %v115
    %4024 = vmatprep.subr.mxu0 0.0
    %4025 = vmatpush1.msra.mxu0 %v116
    %4026 = vmatprep.subr.mxu0 0.0
    %4027 = vmatpush1.msra.mxu0 %v117
    %4028 = vmatprep.subr.mxu0 0.0
    %4029 = vmatpush1.msra.mxu0 %v118
    %4030 = vmatprep.subr.mxu0 0.0
    %4031 = vmatpush1.msra.mxu0 %v119
    %4032 = vmatprep.subr.mxu0 0.0
    %4033 = vmatpush1.msra.mxu0 %v120
    %4034 = vmatprep.subr.mxu0 0.0
    %4035 = vmatpush1.msra.mxu0 0.0
    %4036 = vmatprep.subr.mxu0 0.0
    %4037 = vmatpush1.msra.mxu0 0.0
    %4038 = vmatprep.subr.mxu0 0.0
    %4039 = vmatpush1.msra.mxu0 0.0
    %4040 = vmatprep.subr.mxu0 0.0
    %4041 = vmatpush1.msra.mxu0 0.0
    %4042 = vmatprep.subr.mxu0 0.0
    %4043 = vmatpush1.msra.mxu0 0.0
    %4044 = vmatprep.subr.mxu0 0.0
    %4045 = vmatpush1.msra.mxu0 0.0
    %4046 = vmatprep.subr.mxu0 0.0
    %4047 = vmatpush1.msra.mxu0 0.0
    %4048 = vmatprep.subr.mxu0 0.0
    %4049 = vmatpush1.msra.mxu0 0.0
    %4050 = vmatprep.subr.mxu0 0.0
    %4051 = vmatpush1.msra.mxu0 0.0
    %4052 = vmatprep.subr.mxu0 0.0
    %4053 = vmatpush1.msra.mxu0 0.0
    %4054 = vmatprep.subr.mxu0 0.0
    %4055 = vmatpush1.msra.mxu0 0.0
    %4056 = vmatprep.subr.mxu0 0.0
    %4057 = vmatpush1.msra.mxu0 0.0
    %4058 = vmatprep.subr.mxu0 0.0
    %4059 = vmatpush1.msra.mxu0 0.0
    %4060 = vmatprep.subr.mxu0 0.0
    %4061 = vmatpush1.msra.mxu0 0.0
    %4062 = vmatprep.subr.mxu0 0.0
    %4063 = vmatpush1.msra.mxu0 0.0
    %4064 = vmatprep.subr.mxu0 0.0
    %4065 = vmatpush1.msra.mxu0 0.0
    %4066 = vmatprep.subr.mxu0 0.0
    %4067 = vmatpush1.msra.mxu0 0.0
    %4068 = vmatprep.subr.mxu0 0.0
    %4069 = vmatpush1.msra.mxu0 0.0
    %4070 = vmatprep.subr.mxu0 0.0
    %4071 = vmatpush1.msra.mxu0 0.0
    %4072 = vmatprep.subr.mxu0 0.0
    %4073 = vmatpush1.msra.mxu0 0.0
    %4074 = vmatprep.subr.mxu0 0.0
    %4075 = vmatpush1.msra.mxu0 0.0
    %4076 = vmatprep.subr.mxu0 0.0
    %4077 = vmatpush1.msra.mxu0 0.0
    %4078 = vmatprep.subr.mxu0 0.0
    %4079 = vmatpush1.msra.mxu0 0.0
    %4080 = vmatprep.subr.mxu0 0.0
    %4081 = vmatpush1.msra.mxu0 0.0
    %4082 = vmatprep.mubr.f32.mxu0 0.0
    %4083 = vmatmul.mubr.f32.gmra.mrb[0].mxu0 %v3752
    %v4084 = vpop.f32.mrb[0].mxu0
    %v4085 = vadd.f32 0.0, %v4084
    %v4086 = vpop.f32.mrb[0].mxu0
    %4087 = vmatprep.mubr.f32.mxu0 0.0
    %4088 = vmatmul.mubr.f32.gmra.mrb[0].mxu0 %v3755
    %v4089 = vpop.f32.mrb[0].mxu0
    %v4090 = vadd.f32 0.0, %v4089
    %v4091 = vpop.f32.mrb[0].mxu0
    %4092 = vmatprep.mubr.f32.mxu0 0.0
    %4093 = vmatmul.mubr.f32.gmra.mrb[0].mxu0 %v3758
    %v4094 = vpop.f32.mrb[0].mxu0
    %v4095 = vadd.f32 0.0, %v4094
    %v4096 = vpop.f32.mrb[0].mxu0
    %4097 = vmatprep.mubr.f32.mxu0 0.0
    %4098 = vmatmul.mubr.f32.gmra.mrb[0].mxu0 %v3761
    %v4099 = vpop.f32.mrb[0].mxu0
    %v4100 = vadd.f32 0.0, %v4099
    %v4101 = vpop.f32.mrb[0].mxu0
    %4102 = vdwg.mxu0
    %4103 = vmatprep.subr.mxu0 0.0
    %4104 = vmatpush1.msra.mxu0 %v122
    %4105 = vmatprep.subr.mxu0 0.0
    %4106 = vmatpush1.msra.mxu0 %v123
    %4107 = vmatprep.subr.mxu0 0.0
    %4108 = vmatpush1.msra.mxu0 %v124
    %4109 = vmatprep.subr.mxu0 0.0
    %4110 = vmatpush1.msra.mxu0 %v125
    %4111 = vmatprep.subr.mxu0 0.0
    %4112 = vmatpush1.msra.mxu0 %v126
    %4113 = vmatprep.subr.mxu0 0.0
    %4114 = vmatpush1.msra.mxu0 %v127
    %4115 = vmatprep.subr.mxu0 0.0
    %4116 = vmatpush1.msra.mxu0 %v128
    %4117 = vmatprep.subr.mxu0 0.0
    %4118 = vmatpush1.msra.mxu0 %v129
    %4119 = vmatprep.subr.mxu0 0.0
    %4120 = vmatpush1.msra.mxu0 0.0
    %4121 = vmatprep.subr.mxu0 0.0
    %4122 = vmatpush1.msra.mxu0 0.0
    %4123 = vmatprep.subr.mxu0 0.0
    %4124 = vmatpush1.msra.mxu0 0.0
    %4125 = vmatprep.subr.mxu0 0.0
    %4126 = vmatpush1.msra.mxu0 0.0
    %4127 = vmatprep.subr.mxu0 0.0
    %4128 = vmatpush1.msra.mxu0 0.0
    %4129 = vmatprep.subr.mxu0 0.0
    %4130 = vmatpush1.msra.mxu0 0.0
    %4131 = vmatprep.subr.mxu0 0.0
    %4132 = vmatpush1.msra.mxu0 0.0
    %4133 = vmatprep.subr.mxu0 0.0
    %4134 = vmatpush1.msra.mxu0 0.0
    %4135 = vmatprep.subr.mxu0 0.0
    %4136 = vmatpush1.msra.mxu0 0.0
    %4137 = vmatprep.subr.mxu0 0.0
    %4138 = vmatpush1.msra.mxu0 0.0
    %4139 = vmatprep.subr.mxu0 0.0
    %4140 = vmatpush1.msra.mxu0 0.0
    %4141 = vmatprep.subr.mxu0 0.0
    %4142 = vmatpush1.msra.mxu0 0.0
    %4143 = vmatprep.subr.mxu0 0.0
    %4144 = vmatpush1.msra.mxu0 0.0
    %4145 = vmatprep.subr.mxu0 0.0
    %4146 = vmatpush1.msra.mxu0 0.0
    %4147 = vmatprep.subr.mxu0 0.0
    %4148 = vmatpush1.msra.mxu0 0.0
    %4149 = vmatprep.subr.mxu0 0.0
    %4150 = vmatpush1.msra.mxu0 0.0
    %4151 = vmatprep.subr.mxu0 0.0
    %4152 = vmatpush1.msra.mxu0 0.0
    %4153 = vmatprep.subr.mxu0 0.0
    %4154 = vmatpush1.msra.mxu0 0.0
    %4155 = vmatprep.subr.mxu0 0.0
    %4156 = vmatpush1.msra.mxu0 0.0
    %4157 = vmatprep.subr.mxu0 0.0
    %4158 = vmatpush1.msra.mxu0 0.0
    %4159 = vmatprep.subr.mxu0 0.0
    %4160 = vmatpush1.msra.mxu0 0.0
    %4161 = vmatprep.subr.mxu0 0.0
    %4162 = vmatpush1.msra.mxu0 0.0
    %4163 = vmatprep.subr.mxu0 0.0
    %4164 = vmatpush1.msra.mxu0 0.0
    %4165 = vmatprep.subr.mxu0 0.0
    %4166 = vmatpush1.msra.mxu0 0.0
    %4167 = vmatprep.mubr.f32.mxu0 0.0
    %4168 = vmatmul.mubr.f32.gmra.mrb[0].mxu0 %v3752
    %v4169 = vpop.f32.mrb[0].mxu0
    %v4170 = vadd.f32 0.0, %v4169
    %v4171 = vpop.f32.mrb[0].mxu0
    %4172 = vmatprep.mubr.f32.mxu0 0.0
    %4173 = vmatmul.mubr.f32.gmra.mrb[0].mxu0 %v3755
    %v4174 = vpop.f32.mrb[0].mxu0
    %v4175 = vadd.f32 0.0, %v4174
    %v4176 = vpop.f32.mrb[0].mxu0
    %4177 = vmatprep.mubr.f32.mxu0 0.0
    %4178 = vmatmul.mubr.f32.gmra.mrb[0].mxu0 %v3758
    %v4179 = vpop.f32.mrb[0].mxu0
    %v4180 = vadd.f32 0.0, %v4179
    %v4181 = vpop.f32.mrb[0].mxu0
    %4182 = vmatprep.mubr.f32.mxu0 0.0
    %4183 = vmatmul.mubr.f32.gmra.mrb[0].mxu0 %v3761
    %v4184 = vpop.f32.mrb[0].mxu0
    %v4185 = vadd.f32 0.0, %v4184
    %v4186 = vpop.f32.mrb[0].mxu0
    %4187 = vdwg.mxu0
    %4188 = vmatprep.subr.mxu0 0.0
    %4189 = vmatpush1.msra.mxu0 %v131
    %4190 = vmatprep.subr.mxu0 0.0
    %4191 = vmatpush1.msra.mxu0 %v132
    %4192 = vmatprep.subr.mxu0 0.0
    %4193 = vmatpush1.msra.mxu0 %v133
    %4194 = vmatprep.subr.mxu0 0.0
    %4195 = vmatpush1.msra.mxu0 %v134
    %4196 = vmatprep.subr.mxu0 0.0
    %4197 = vmatpush1.msra.mxu0 %v135
    %4198 = vmatprep.subr.mxu0 0.0
    %4199 = vmatpush1.msra.mxu0 %v136
    %4200 = vmatprep.subr.mxu0 0.0
    %4201 = vmatpush1.msra.mxu0 %v137
    %4202 = vmatprep.subr.mxu0 0.0
    %4203 = vmatpush1.msra.mxu0 %v138
    %4204 = vmatprep.subr.mxu0 0.0
    %4205 = vmatpush1.msra.mxu0 0.0
    %4206 = vmatprep.subr.mxu0 0.0
    %4207 = vmatpush1.msra.mxu0 0.0
    %4208 = vmatprep.subr.mxu0 0.0
    %4209 = vmatpush1.msra.mxu0 0.0
    %4210 = vmatprep.subr.mxu0 0.0
    %4211 = vmatpush1.msra.mxu0 0.0
    %4212 = vmatprep.subr.mxu0 0.0
    %4213 = vmatpush1.msra.mxu0 0.0
    %4214 = vmatprep.subr.mxu0 0.0
    %4215 = vmatpush1.msra.mxu0 0.0
    %4216 = vmatprep.subr.mxu0 0.0
    %4217 = vmatpush1.msra.mxu0 0.0
    %4218 = vmatprep.subr.mxu0 0.0
    %4219 = vmatpush1.msra.mxu0 0.0
    %4220 = vmatprep.subr.mxu0 0.0
    %4221 = vmatpush1.msra.mxu0 0.0
    %4222 = vmatprep.subr.mxu0 0.0
    %4223 = vmatpush1.msra.mxu0 0.0
    %4224 = vmatprep.subr.mxu0 0.0
    %4225 = vmatpush1.msra.mxu0 0.0
    %4226 = vmatprep.subr.mxu0 0.0
    %4227 = vmatpush1.msra.mxu0 0.0
    %4228 = vmatprep.subr.mxu0 0.0
    %4229 = vmatpush1.msra.mxu0 0.0
    %4230 = vmatprep.subr.mxu0 0.0
    %4231 = vmatpush1.msra.mxu0 0.0
    %4232 = vmatprep.subr.mxu0 0.0
    %4233 = vmatpush1.msra.mxu0 0.0
    %4234 = vmatprep.subr.mxu0 0.0
    %4235 = vmatpush1.msra.mxu0 0.0
    %4236 = vmatprep.subr.mxu0 0.0
    %4237 = vmatpush1.msra.mxu0 0.0
    %4238 = vmatprep.subr.mxu0 0.0
    %4239 = vmatpush1.msra.mxu0 0.0
    %4240 = vmatprep.subr.mxu0 0.0
    %4241 = vmatpush1.msra.mxu0 0.0
    %4242 = vmatprep.subr.mxu0 0.0
    %4243 = vmatpush1.msra.mxu0 0.0
    %4244 = vmatprep.subr.mxu0 0.0
    %4245 = vmatpush1.msra.mxu0 0.0
    %4246 = vmatprep.subr.mxu0 0.0
    %4247 = vmatpush1.msra.mxu0 0.0
    %4248 = vmatprep.subr.mxu0 0.0
    %4249 = vmatpush1.msra.mxu0 0.0
    %4250 = vmatprep.subr.mxu0 0.0
    %4251 = vmatpush1.msra.mxu0 0.0
    %4252 = vmatprep.mubr.f32.mxu0 0.0
    %4253 = vmatmul.mubr.f32.gmra.mrb[0].mxu0 %v3752
    %v4254 = vpop.f32.mrb[0].mxu0
    %v4255 = vadd.f32 0.0, %v4254
    %v4256 = vpop.f32.mrb[0].mxu0
    %4257 = vmatprep.mubr.f32.mxu0 0.0
    %4258 = vmatmul.mubr.f32.gmra.mrb[0].mxu0 %v3755
    %v4259 = vpop.f32.mrb[0].mxu0
    %v4260 = vadd.f32 0.0, %v4259
    %v4261 = vpop.f32.mrb[0].mxu0
    %4262 = vmatprep.mubr.f32.mxu0 0.0
    %4263 = vmatmul.mubr.f32.gmra.mrb[0].mxu0 %v3758
    %v4264 = vpop.f32.mrb[0].mxu0
    %v4265 = vadd.f32 0.0, %v4264
    %v4266 = vpop.f32.mrb[0].mxu0
    %4267 = vmatprep.mubr.f32.mxu0 0.0
    %4268 = vmatmul.mubr.f32.gmra.mrb[0].mxu0 %v3761
    %v4269 = vpop.f32.mrb[0].mxu0
    %v4270 = vadd.f32 0.0, %v4269
    %v4271 = vpop.f32.mrb[0].mxu0
    %4272 = vdwg.mxu0
    %4273 = vmatprep.subr.mxu0 0.0
    %4274 = vmatpush1.msra.mxu0 %v140
    %4275 = vmatprep.subr.mxu0 0.0
    %4276 = vmatpush1.msra.mxu0 %v141
    %4277 = vmatprep.subr.mxu0 0.0
    %4278 = vmatpush1.msra.mxu0 %v142
    %4279 = vmatprep.subr.mxu0 0.0
    %4280 = vmatpush1.msra.mxu0 %v143
    %4281 = vmatprep.subr.mxu0 0.0
    %4282 = vmatpush1.msra.mxu0 %v144
    %4283 = vmatprep.subr.mxu0 0.0
    %4284 = vmatpush1.msra.mxu0 %v145
    %4285 = vmatprep.subr.mxu0 0.0
    %4286 = vmatpush1.msra.mxu0 %v146
    %4287 = vmatprep.subr.mxu0 0.0
    %4288 = vmatpush1.msra.mxu0 %v147
    %4289 = vmatprep.subr.mxu0 0.0
    %4290 = vmatpush1.msra.mxu0 0.0
    %4291 = vmatprep.subr.mxu0 0.0
    %4292 = vmatpush1.msra.mxu0 0.0
    %4293 = vmatprep.subr.mxu0 0.0
    %4294 = vmatpush1.msra.mxu0 0.0
    %4295 = vmatprep.subr.mxu0 0.0
    %4296 = vmatpush1.msra.mxu0 0.0
    %4297 = vmatprep.subr.mxu0 0.0
    %4298 = vmatpush1.msra.mxu0 0.0
    %4299 = vmatprep.subr.mxu0 0.0
    %4300 = vmatpush1.msra.mxu0 0.0
    %4301 = vmatprep.subr.mxu0 0.0
    %4302 = vmatpush1.msra.mxu0 0.0
    %4303 = vmatprep.subr.mxu0 0.0
    %4304 = vmatpush1.msra.mxu0 0.0
    %4305 = vmatprep.subr.mxu0 0.0
    %4306 = vmatpush1.msra.mxu0 0.0
    %4307 = vmatprep.subr.mxu0 0.0
    %4308 = vmatpush1.msra.mxu0 0.0
    %4309 = vmatprep.subr.mxu0 0.0
    %4310 = vmatpush1.msra.mxu0 0.0
    %4311 = vmatprep.subr.mxu0 0.0
    %4312 = vmatpush1.msra.mxu0 0.0
    %4313 = vmatprep.subr.mxu0 0.0
    %4314 = vmatpush1.msra.mxu0 0.0
    %4315 = vmatprep.subr.mxu0 0.0
    %4316 = vmatpush1.msra.mxu0 0.0
    %4317 = vmatprep.subr.mxu0 0.0
    %4318 = vmatpush1.msra.mxu0 0.0
    %4319 = vmatprep.subr.mxu0 0.0
    %4320 = vmatpush1.msra.mxu0 0.0
    %4321 = vmatprep.subr.mxu0 0.0
    %4322 = vmatpush1.msra.mxu0 0.0
    %4323 = vmatprep.subr.mxu0 0.0
    %4324 = vmatpush1.msra.mxu0 0.0
    %4325 = vmatprep.subr.mxu0 0.0
    %4326 = vmatpush1.msra.mxu0 0.0
    %4327 = vmatprep.subr.mxu0 0.0
    %4328 = vmatpush1.msra.mxu0 0.0
    %4329 = vmatprep.subr.mxu0 0.0
    %4330 = vmatpush1.msra.mxu0 0.0
    %4331 = vmatprep.subr.mxu0 0.0
    %4332 = vmatpush1.msra.mxu0 0.0
    %4333 = vmatprep.subr.mxu0 0.0
    %4334 = vmatpush1.msra.mxu0 0.0
    %4335 = vmatprep.subr.mxu0 0.0
    %4336 = vmatpush1.msra.mxu0 0.0
    %4337 = vmatprep.mubr.f32.mxu0 0.0
    %4338 = vmatmul.mubr.f32.gmra.mrb[0].mxu0 %v3752
    %v4339 = vpop.f32.mrb[0].mxu0
    %v4340 = vadd.f32 0.0, %v4339
    %v4341 = vpop.f32.mrb[0].mxu0
    %4342 = vmatprep.mubr.f32.mxu0 0.0
    %4343 = vmatmul.mubr.f32.gmra.mrb[0].mxu0 %v3755
    %v4344 = vpop.f32.mrb[0].mxu0
    %v4345 = vadd.f32 0.0, %v4344
    %v4346 = vpop.f32.mrb[0].mxu0
    %4347 = vmatprep.mubr.f32.mxu0 0.0
    %4348 = vmatmul.mubr.f32.gmra.mrb[0].mxu0 %v3758
    %v4349 = vpop.f32.mrb[0].mxu0
    %v4350 = vadd.f32 0.0, %v4349
    %v4351 = vpop.f32.mrb[0].mxu0
    %4352 = vmatprep.mubr.f32.mxu0 0.0
    %4353 = vmatmul.mubr.f32.gmra.mrb[0].mxu0 %v3761
    %v4354 = vpop.f32.mrb[0].mxu0
    %v4355 = vadd.f32 0.0, %v4354
    %v4356 = vpop.f32.mrb[0].mxu0
    %4357 = vdwg.mxu0
    %4358 = vmatprep.subr.mxu0 0.0
    %4359 = vmatpush1.msra.mxu0 %v149
    %4360 = vmatprep.subr.mxu0 0.0
    %4361 = vmatpush1.msra.mxu0 %v150
    %4362 = vmatprep.subr.mxu0 0.0
    %4363 = vmatpush1.msra.mxu0 %v151
    %4364 = vmatprep.subr.mxu0 0.0
    %4365 = vmatpush1.msra.mxu0 %v152
    %4366 = vmatprep.subr.mxu0 0.0
    %4367 = vmatpush1.msra.mxu0 %v153
    %4368 = vmatprep.subr.mxu0 0.0
    %4369 = vmatpush1.msra.mxu0 %v154
    %4370 = vmatprep.subr.mxu0 0.0
    %4371 = vmatpush1.msra.mxu0 %v155
    %4372 = vmatprep.subr.mxu0 0.0
    %4373 = vmatpush1.msra.mxu0 %v156
    %4374 = vmatprep.subr.mxu0 0.0
    %4375 = vmatpush1.msra.mxu0 0.0
    %4376 = vmatprep.subr.mxu0 0.0
    %4377 = vmatpush1.msra.mxu0 0.0
    %4378 = vmatprep.subr.mxu0 0.0
    %4379 = vmatpush1.msra.mxu0 0.0
    %4380 = vmatprep.subr.mxu0 0.0
    %4381 = vmatpush1.msra.mxu0 0.0
    %4382 = vmatprep.subr.mxu0 0.0
    %4383 = vmatpush1.msra.mxu0 0.0
    %4384 = vmatprep.subr.mxu0 0.0
    %4385 = vmatpush1.msra.mxu0 0.0
    %4386 = vmatprep.subr.mxu0 0.0
    %4387 = vmatpush1.msra.mxu0 0.0
    %4388 = vmatprep.subr.mxu0 0.0
    %4389 = vmatpush1.msra.mxu0 0.0
    %4390 = vmatprep.subr.mxu0 0.0
    %4391 = vmatpush1.msra.mxu0 0.0
    %4392 = vmatprep.subr.mxu0 0.0
    %4393 = vmatpush1.msra.mxu0 0.0
    %4394 = vmatprep.subr.mxu0 0.0
    %4395 = vmatpush1.msra.mxu0 0.0
    %4396 = vmatprep.subr.mxu0 0.0
    %4397 = vmatpush1.msra.mxu0 0.0
    %4398 = vmatprep.subr.mxu0 0.0
    %4399 = vmatpush1.msra.mxu0 0.0
    %4400 = vmatprep.subr.mxu0 0.0
    %4401 = vmatpush1.msra.mxu0 0.0
    %4402 = vmatprep.subr.mxu0 0.0
    %4403 = vmatpush1.msra.mxu0 0.0
    %4404 = vmatprep.subr.mxu0 0.0
    %4405 = vmatpush1.msra.mxu0 0.0
    %4406 = vmatprep.subr.mxu0 0.0
    %4407 = vmatpush1.msra.mxu0 0.0
    %4408 = vmatprep.subr.mxu0 0.0
    %4409 = vmatpush1.msra.mxu0 0.0
    %4410 = vmatprep.subr.mxu0 0.0
    %4411 = vmatpush1.msra.mxu0 0.0
    %4412 = vmatprep.subr.mxu0 0.0
    %4413 = vmatpush1.msra.mxu0 0.0
    %4414 = vmatprep.subr.mxu0 0.0
    %4415 = vmatpush1.msra.mxu0 0.0
    %4416 = vmatprep.subr.mxu0 0.0
    %4417 = vmatpush1.msra.mxu0 0.0
    %4418 = vmatprep.subr.mxu0 0.0
    %4419 = vmatpush1.msra.mxu0 0.0
    %4420 = vmatprep.subr.mxu0 0.0
    %4421 = vmatpush1.msra.mxu0 0.0
    %4422 = vmatprep.mubr.f32.mxu0 0.0
    %4423 = vmatmul.mubr.f32.gmra.mrb[0].mxu0 %v3752
    %v4424 = vpop.f32.mrb[0].mxu0
    %v4425 = vadd.f32 0.0, %v4424
    %v4426 = vpop.f32.mrb[0].mxu0
    %4427 = vmatprep.mubr.f32.mxu0 0.0
    %4428 = vmatmul.mubr.f32.gmra.mrb[0].mxu0 %v3755
    %v4429 = vpop.f32.mrb[0].mxu0
    %v4430 = vadd.f32 0.0, %v4429
    %v4431 = vpop.f32.mrb[0].mxu0
    %4432 = vmatprep.mubr.f32.mxu0 0.0
    %4433 = vmatmul.mubr.f32.gmra.mrb[0].mxu0 %v3758
    %v4434 = vpop.f32.mrb[0].mxu0
    %v4435 = vadd.f32 0.0, %v4434
    %v4436 = vpop.f32.mrb[0].mxu0
    %4437 = vmatprep.mubr.f32.mxu0 0.0
    %4438 = vmatmul.mubr.f32.gmra.mrb[0].mxu0 %v3761
    %v4439 = vpop.f32.mrb[0].mxu0
    %v4440 = vadd.f32 0.0, %v4439
    %v4441 = vpop.f32.mrb[0].mxu0
    %4442 = vdwg.mxu0
    %4443 = vmatprep.subr.mxu0 0.0
    %4444 = vmatpush1.msra.mxu0 %v158
    %4445 = vmatprep.subr.mxu0 0.0
    %4446 = vmatpush1.msra.mxu0 %v159
    %4447 = vmatprep.subr.mxu0 0.0
    %4448 = vmatpush1.msra.mxu0 %v160
    %4449 = vmatprep.subr.mxu0 0.0
    %4450 = vmatpush1.msra.mxu0 %v161
    %4451 = vmatprep.subr.mxu0 0.0
    %4452 = vmatpush1.msra.mxu0 %v162
    %4453 = vmatprep.subr.mxu0 0.0
    %4454 = vmatpush1.msra.mxu0 %v163
    %4455 = vmatprep.subr.mxu0 0.0
    %4456 = vmatpush1.msra.mxu0 %v164
    %4457 = vmatprep.subr.mxu0 0.0
    %4458 = vmatpush1.msra.mxu0 %v165
    %4459 = vmatprep.subr.mxu0 0.0
    %4460 = vmatpush1.msra.mxu0 0.0
    %4461 = vmatprep.subr.mxu0 0.0
    %4462 = vmatpush1.msra.mxu0 0.0
    %4463 = vmatprep.subr.mxu0 0.0
    %4464 = vmatpush1.msra.mxu0 0.0
    %4465 = vmatprep.subr.mxu0 0.0
    %4466 = vmatpush1.msra.mxu0 0.0
    %4467 = vmatprep.subr.mxu0 0.0
    %4468 = vmatpush1.msra.mxu0 0.0
    %4469 = vmatprep.subr.mxu0 0.0
    %4470 = vmatpush1.msra.mxu0 0.0
    %4471 = vmatprep.subr.mxu0 0.0
    %4472 = vmatpush1.msra.mxu0 0.0
    %4473 = vmatprep.subr.mxu0 0.0
    %4474 = vmatpush1.msra.mxu0 0.0
    %4475 = vmatprep.subr.mxu0 0.0
    %4476 = vmatpush1.msra.mxu0 0.0
    %4477 = vmatprep.subr.mxu0 0.0
    %4478 = vmatpush1.msra.mxu0 0.0
    %4479 = vmatprep.subr.mxu0 0.0
    %4480 = vmatpush1.msra.mxu0 0.0
    %4481 = vmatprep.subr.mxu0 0.0
    %4482 = vmatpush1.msra.mxu0 0.0
    %4483 = vmatprep.subr.mxu0 0.0
    %4484 = vmatpush1.msra.mxu0 0.0
    %4485 = vmatprep.subr.mxu0 0.0
    %4486 = vmatpush1.msra.mxu0 0.0
    %4487 = vmatprep.subr.mxu0 0.0
    %4488 = vmatpush1.msra.mxu0 0.0
    %4489 = vmatprep.subr.mxu0 0.0
    %4490 = vmatpush1.msra.mxu0 0.0
    %4491 = vmatprep.subr.mxu0 0.0
    %4492 = vmatpush1.msra.mxu0 0.0
    %4493 = vmatprep.subr.mxu0 0.0
    %4494 = vmatpush1.msra.mxu0 0.0
    %4495 = vmatprep.subr.mxu0 0.0
    %4496 = vmatpush1.msra.mxu0 0.0
    %4497 = vmatprep.subr.mxu0 0.0
    %4498 = vmatpush1.msra.mxu0 0.0
    %4499 = vmatprep.subr.mxu0 0.0
    %4500 = vmatpush1.msra.mxu0 0.0
    %4501 = vmatprep.subr.mxu0 0.0
    %4502 = vmatpush1.msra.mxu0 0.0
    %4503 = vmatprep.subr.mxu0 0.0
    %4504 = vmatpush1.msra.mxu0 0.0
    %4505 = vmatprep.subr.mxu0 0.0
    %4506 = vmatpush1.msra.mxu0 0.0
    %4507 = vmatprep.mubr.f32.mxu0 0.0
    %4508 = vmatmul.mubr.f32.gmra.mrb[0].mxu0 %v3752
    %v4509 = vpop.f32.mrb[0].mxu0
    %v4510 = vadd.f32 0.0, %v4509
    %v4511 = vpop.f32.mrb[0].mxu0
    %4512 = vmatprep.mubr.f32.mxu0 0.0
    %4513 = vmatmul.mubr.f32.gmra.mrb[0].mxu0 %v3755
    %v4514 = vpop.f32.mrb[0].mxu0
    %v4515 = vadd.f32 0.0, %v4514
    %v4516 = vpop.f32.mrb[0].mxu0
    %4517 = vmatprep.mubr.f32.mxu0 0.0
    %4518 = vmatmul.mubr.f32.gmra.mrb[0].mxu0 %v3758
    %v4519 = vpop.f32.mrb[0].mxu0
    %v4520 = vadd.f32 0.0, %v4519
    %v4521 = vpop.f32.mrb[0].mxu0
    %4522 = vmatprep.mubr.f32.mxu0 0.0
    %4523 = vmatmul.mubr.f32.gmra.mrb[0].mxu0 %v3761
    %v4524 = vpop.f32.mrb[0].mxu0
    %v4525 = vadd.f32 0.0, %v4524
    %v4526 = vpop.f32.mrb[0].mxu0
    %4527 = vdwg.mxu0
    %4528 = vmatprep.subr.mxu0 0.0
    %4529 = vmatpush1.msra.mxu0 %v3830
    %4530 = vmatprep.subr.mxu0 0.0
    %4531 = vmatpush1.msra.mxu0 %v3835
    %4532 = vmatprep.subr.mxu0 0.0
    %4533 = vmatpush1.msra.mxu0 %v3840
    %4534 = vmatprep.subr.mxu0 0.0
    %4535 = vmatpush1.msra.mxu0 %v3845
    %4536 = vmatprep.subr.mxu0 0.0
    %4537 = vmatpush1.msra.mxu0 %v3915
    %4538 = vmatprep.subr.mxu0 0.0
    %4539 = vmatpush1.msra.mxu0 %v3920
    %4540 = vmatprep.subr.mxu0 0.0
    %4541 = vmatpush1.msra.mxu0 %v3925
    %4542 = vmatprep.subr.mxu0 0.0
    %4543 = vmatpush1.msra.mxu0 %v3930
    %4544 = vmatprep.subr.mxu0 0.0
    %4545 = vmatpush1.msra.mxu0 %v4000
    %4546 = vmatprep.subr.mxu0 0.0
    %4547 = vmatpush1.msra.mxu0 %v4005
    %4548 = vmatprep.subr.mxu0 0.0
    %4549 = vmatpush1.msra.mxu0 %v4010
    %4550 = vmatprep.subr.mxu0 0.0
    %4551 = vmatpush1.msra.mxu0 %v4015
    %4552 = vmatprep.subr.mxu0 0.0
    %4553 = vmatpush1.msra.mxu0 %v4085
    %4554 = vmatprep.subr.mxu0 0.0
    %4555 = vmatpush1.msra.mxu0 %v4090
    %4556 = vmatprep.subr.mxu0 0.0
    %4557 = vmatpush1.msra.mxu0 %v4095
    %4558 = vmatprep.subr.mxu0 0.0
    %4559 = vmatpush1.msra.mxu0 %v4100
    %4560 = vmatprep.subr.mxu0 0.0
    %4561 = vmatpush1.msra.mxu0 %v4170
    %4562 = vmatprep.subr.mxu0 0.0
    %4563 = vmatpush1.msra.mxu0 %v4175
    %4564 = vmatprep.subr.mxu0 0.0
    %4565 = vmatpush1.msra.mxu0 %v4180
    %4566 = vmatprep.subr.mxu0 0.0
    %4567 = vmatpush1.msra.mxu0 %v4185
    %4568 = vmatprep.subr.mxu0 0.0
    %4569 = vmatpush1.msra.mxu0 %v4255
    %4570 = vmatprep.subr.mxu0 0.0
    %4571 = vmatpush1.msra.mxu0 %v4260
    %4572 = vmatprep.subr.mxu0 0.0
    %4573 = vmatpush1.msra.mxu0 %v4265
    %4574 = vmatprep.subr.mxu0 0.0
    %4575 = vmatpush1.msra.mxu0 %v4270
    %4576 = vmatprep.subr.mxu0 0.0
    %4577 = vmatpush1.msra.mxu0 %v4340
    %4578 = vmatprep.subr.mxu0 0.0
    %4579 = vmatpush1.msra.mxu0 %v4345
    %4580 = vmatprep.subr.mxu0 0.0
    %4581 = vmatpush1.msra.mxu0 %v4350
    %4582 = vmatprep.subr.mxu0 0.0
    %4583 = vmatpush1.msra.mxu0 %v4355
    %4584 = vmatprep.subr.mxu0 0.0
    %4585 = vmatpush1.msra.mxu0 %v4425
    %4586 = vmatprep.subr.mxu0 0.0
    %4587 = vmatpush1.msra.mxu0 %v4430
    %4588 = vmatprep.subr.mxu0 0.0
    %4589 = vmatpush1.msra.mxu0 %v4435
    %4590 = vmatprep.subr.mxu0 0.0
    %4591 = vmatpush1.msra.mxu0 %v4440
    %4592 = vmatprep.mubr.f32.mxu0 %v1760
    %4593 = vmatmul.mubr.f32.gmra.mrb[0].mxu0 %v1759
    %v4594 = vpop.f32.mrb[0].mxu0
    %v4595 = vadd.f32 %v1778, %v4594
    %v4596 = vpop.f32.mrb[0].mxu0
    %4597 = vmatprep.mubr.f32.mxu0 %v1763
    %4598 = vmatmul.mubr.f32.gmra.mrb[0].mxu0 %v1762
    %v4599 = vpop.f32.mrb[0].mxu0
    %v4600 = vadd.f32 %v1783, %v4599
    %v4601 = vpop.f32.mrb[0].mxu0
    %4602 = vmatprep.mubr.f32.mxu0 %v1766
    %4603 = vmatmul.mubr.f32.gmra.mrb[0].mxu0 %v1765
    %v4604 = vpop.f32.mrb[0].mxu0
    %v4605 = vadd.f32 %v1788, %v4604
    %v4606 = vpop.f32.mrb[0].mxu0
    %4607 = vmatprep.mubr.f32.mxu0 %v1769
    %4608 = vmatmul.mubr.f32.gmra.mrb[0].mxu0 %v1768
    %v4609 = vpop.f32.mrb[0].mxu0
    %v4610 = vadd.f32 %v1793, %v4609
    %v4611 = vpop.f32.mrb[0].mxu0
    %4612 = vdwg.mxu0
    %4613 = vmatprep.subr.mxu0 0.0
    %4614 = vmatpush1.msra.mxu0 %v4510
    %4615 = vmatprep.subr.mxu0 0.0
    %4616 = vmatpush1.msra.mxu0 %v4515
    %4617 = vmatprep.subr.mxu0 0.0
    %4618 = vmatpush1.msra.mxu0 %v4520
    %4619 = vmatprep.subr.mxu0 0.0
    %4620 = vmatpush1.msra.mxu0 %v4525
    %4621 = vmatprep.subr.mxu0 0.0
    %4622 = vmatpush1.msra.mxu0 0.0
    %4623 = vmatprep.subr.mxu0 0.0
    %4624 = vmatpush1.msra.mxu0 0.0
    %4625 = vmatprep.subr.mxu0 0.0
    %4626 = vmatpush1.msra.mxu0 0.0
    %4627 = vmatprep.subr.mxu0 0.0
    %4628 = vmatpush1.msra.mxu0 0.0
    %4629 = vmatprep.subr.mxu0 0.0
    %4630 = vmatpush1.msra.mxu0 0.0
    %4631 = vmatprep.subr.mxu0 0.0
    %4632 = vmatpush1.msra.mxu0 0.0
    %4633 = vmatprep.subr.mxu0 0.0
    %4634 = vmatpush1.msra.mxu0 0.0
    %4635 = vmatprep.subr.mxu0 0.0
    %4636 = vmatpush1.msra.mxu0 0.0
    %4637 = vmatprep.subr.mxu0 0.0
    %4638 = vmatpush1.msra.mxu0 0.0
    %4639 = vmatprep.subr.mxu0 0.0
    %4640 = vmatpush1.msra.mxu0 0.0
    %4641 = vmatprep.subr.mxu0 0.0
    %4642 = vmatpush1.msra.mxu0 0.0
    %4643 = vmatprep.subr.mxu0 0.0
    %4644 = vmatpush1.msra.mxu0 0.0
    %4645 = vmatprep.subr.mxu0 0.0
    %4646 = vmatpush1.msra.mxu0 0.0
    %4647 = vmatprep.subr.mxu0 0.0
    %4648 = vmatpush1.msra.mxu0 0.0
    %4649 = vmatprep.subr.mxu0 0.0
    %4650 = vmatpush1.msra.mxu0 0.0
    %4651 = vmatprep.subr.mxu0 0.0
    %4652 = vmatpush1.msra.mxu0 0.0
    %4653 = vmatprep.subr.mxu0 0.0
    %4654 = vmatpush1.msra.mxu0 0.0
    %4655 = vmatprep.subr.mxu0 0.0
    %4656 = vmatpush1.msra.mxu0 0.0
    %4657 = vmatprep.subr.mxu0 0.0
    %4658 = vmatpush1.msra.mxu0 0.0
    %4659 = vmatprep.subr.mxu0 0.0
    %4660 = vmatpush1.msra.mxu0 0.0
    %4661 = vmatprep.subr.mxu0 0.0
    %4662 = vmatpush1.msra.mxu0 0.0
    %4663 = vmatprep.subr.mxu0 0.0
    %4664 = vmatpush1.msra.mxu0 0.0
    %4665 = vmatprep.subr.mxu0 0.0
    %4666 = vmatpush1.msra.mxu0 0.0
    %4667 = vmatprep.subr.mxu0 0.0
    %4668 = vmatpush1.msra.mxu0 0.0
    %4669 = vmatprep.subr.mxu0 0.0
    %4670 = vmatpush1.msra.mxu0 0.0
    %4671 = vmatprep.subr.mxu0 0.0
    %4672 = vmatpush1.msra.mxu0 0.0
    %4673 = vmatprep.subr.mxu0 0.0
    %4674 = vmatpush1.msra.mxu0 0.0
    %4675 = vmatprep.subr.mxu0 0.0
    %4676 = vmatpush1.msra.mxu0 0.0
    %4677 = vmatprep.mubr.f32.mxu0 0.0
    %4678 = vmatmul.mubr.f32.gmra.mrb[0].mxu0 %v1797
    %v4679 = vpop.f32.mrb[0].mxu0
    %v4680 = vadd.f32 %v4595, %v4679
    %v4681 = vpop.f32.mrb[0].mxu0
    %4682 = vmatprep.mubr.f32.mxu0 0.0
    %4683 = vmatmul.mubr.f32.gmra.mrb[0].mxu0 %v1800
    %v4684 = vpop.f32.mrb[0].mxu0
    %v4685 = vadd.f32 %v4600, %v4684
    %v4686 = vpop.f32.mrb[0].mxu0
    %4687 = vmatprep.mubr.f32.mxu0 0.0
    %4688 = vmatmul.mubr.f32.gmra.mrb[0].mxu0 %v1803
    %v4689 = vpop.f32.mrb[0].mxu0
    %v4690 = vadd.f32 %v4605, %v4689
    %v4691 = vpop.f32.mrb[0].mxu0
    %4692 = vmatprep.mubr.f32.mxu0 0.0
    %4693 = vmatmul.mubr.f32.gmra.mrb[0].mxu0 %v1806
    %v4694 = vpop.f32.mrb[0].mxu0
    %v4695 = vadd.f32 %v4610, %v4694
    %v4696 = vpop.f32.mrb[0].mxu0
    %4697 = vdwg.mxu0
    %v4698 = vmax.f32 %v4680, 0.0
    %v4699 = vmax.f32 %v4685, 0.0
    %v4700 = vmax.f32 %v4690, 0.0
    %v4701 = vmax.f32 %v4695, 0.0
    %v4703 = vsel %vm166, %v4698, 0
    %v4706 = vsel %vm166, %v4699, 0
    %v4709 = vsel %vm166, %v4700, 0
    %v4712 = vsel %vm166, %v4701, 0
    %4714 = vmatprep.subr.mxu0 0.0
    %4715 = vmatpush1.msra.mxu0 %v86
    %4716 = vmatprep.subr.mxu0 0.0
    %4717 = vmatpush1.msra.mxu0 %v87
    %4718 = vmatprep.subr.mxu0 0.0
    %4719 = vmatpush1.msra.mxu0 %v88
    %4720 = vmatprep.subr.mxu0 0.0
    %4721 = vmatpush1.msra.mxu0 %v89
    %4722 = vmatprep.subr.mxu0 0.0
    %4723 = vmatpush1.msra.mxu0 %v90
    %4724 = vmatprep.subr.mxu0 0.0
    %4725 = vmatpush1.msra.mxu0 %v91
    %4726 = vmatprep.subr.mxu0 0.0
    %4727 = vmatpush1.msra.mxu0 %v92
    %4728 = vmatprep.subr.mxu0 0.0
    %4729 = vmatpush1.msra.mxu0 %v93
    %4730 = vmatprep.subr.mxu0 0.0
    %4731 = vmatpush1.msra.mxu0 0.0
    %4732 = vmatprep.subr.mxu0 0.0
    %4733 = vmatpush1.msra.mxu0 0.0
    %4734 = vmatprep.subr.mxu0 0.0
    %4735 = vmatpush1.msra.mxu0 0.0
    %4736 = vmatprep.subr.mxu0 0.0
    %4737 = vmatpush1.msra.mxu0 0.0
    %4738 = vmatprep.subr.mxu0 0.0
    %4739 = vmatpush1.msra.mxu0 0.0
    %4740 = vmatprep.subr.mxu0 0.0
    %4741 = vmatpush1.msra.mxu0 0.0
    %4742 = vmatprep.subr.mxu0 0.0
    %4743 = vmatpush1.msra.mxu0 0.0
    %4744 = vmatprep.subr.mxu0 0.0
    %4745 = vmatpush1.msra.mxu0 0.0
    %4746 = vmatprep.subr.mxu0 0.0
    %4747 = vmatpush1.msra.mxu0 0.0
    %4748 = vmatprep.subr.mxu0 0.0
    %4749 = vmatpush1.msra.mxu0 0.0
    %4750 = vmatprep.subr.mxu0 0.0
    %4751 = vmatpush1.msra.mxu0 0.0
    %4752 = vmatprep.subr.mxu0 0.0
    %4753 = vmatpush1.msra.mxu0 0.0
    %4754 = vmatprep.subr.mxu0 0.0
    %4755 = vmatpush1.msra.mxu0 0.0
    %4756 = vmatprep.subr.mxu0 0.0
    %4757 = vmatpush1.msra.mxu0 0.0
    %4758 = vmatprep.subr.mxu0 0.0
    %4759 = vmatpush1.msra.mxu0 0.0
    %4760 = vmatprep.subr.mxu0 0.0
    %4761 = vmatpush1.msra.mxu0 0.0
    %4762 = vmatprep.subr.mxu0 0.0
    %4763 = vmatpush1.msra.mxu0 0.0
    %4764 = vmatprep.subr.mxu0 0.0
    %4765 = vmatpush1.msra.mxu0 0.0
    %4766 = vmatprep.subr.mxu0 0.0
    %4767 = vmatpush1.msra.mxu0 0.0
    %4768 = vmatprep.subr.mxu0 0.0
    %4769 = vmatpush1.msra.mxu0 0.0
    %4770 = vmatprep.subr.mxu0 0.0
    %4771 = vmatpush1.msra.mxu0 0.0
    %4772 = vmatprep.subr.mxu0 0.0
    %4773 = vmatpush1.msra.mxu0 0.0
    %4774 = vmatprep.subr.mxu0 0.0
    %4775 = vmatpush1.msra.mxu0 0.0
    %4776 = vmatprep.subr.mxu0 0.0
    %4777 = vmatpush1.msra.mxu0 0.0
    %4778 = vmatprep.mubr.f32.mxu0 0.0
    %4779 = vmatmul.mubr.f32.gmra.mrb[0].mxu0 %v4703
    %v4780 = vpop.f32.mrb[0].mxu0
    %v4781 = vadd.f32 0.0, %v4780
    %v4782 = vpop.f32.mrb[0].mxu0
    %4783 = vmatprep.mubr.f32.mxu0 0.0
    %4784 = vmatmul.mubr.f32.gmra.mrb[0].mxu0 %v4706
    %v4785 = vpop.f32.mrb[0].mxu0
    %v4786 = vadd.f32 0.0, %v4785
    %v4787 = vpop.f32.mrb[0].mxu0
    %4788 = vmatprep.mubr.f32.mxu0 0.0
    %4789 = vmatmul.mubr.f32.gmra.mrb[0].mxu0 %v4709
    %v4790 = vpop.f32.mrb[0].mxu0
    %v4791 = vadd.f32 0.0, %v4790
    %v4792 = vpop.f32.mrb[0].mxu0
    %4793 = vmatprep.mubr.f32.mxu0 0.0
    %4794 = vmatmul.mubr.f32.gmra.mrb[0].mxu0 %v4712
    %v4795 = vpop.f32.mrb[0].mxu0
    %v4796 = vadd.f32 0.0, %v4795
    %v4797 = vpop.f32.mrb[0].mxu0
    %4798 = vdwg.mxu0
    %4799 = vmatprep.subr.mxu0 0.0
    %4800 = vmatpush1.msra.mxu0 %v95
    %4801 = vmatprep.subr.mxu0 0.0
    %4802 = vmatpush1.msra.mxu0 %v96
    %4803 = vmatprep.subr.mxu0 0.0
    %4804 = vmatpush1.msra.mxu0 %v97
    %4805 = vmatprep.subr.mxu0 0.0
    %4806 = vmatpush1.msra.mxu0 %v98
    %4807 = vmatprep.subr.mxu0 0.0
    %4808 = vmatpush1.msra.mxu0 %v99
    %4809 = vmatprep.subr.mxu0 0.0
    %4810 = vmatpush1.msra.mxu0 %v100
    %4811 = vmatprep.subr.mxu0 0.0
    %4812 = vmatpush1.msra.mxu0 %v101
    %4813 = vmatprep.subr.mxu0 0.0
    %4814 = vmatpush1.msra.mxu0 %v102
    %4815 = vmatprep.subr.mxu0 0.0
    %4816 = vmatpush1.msra.mxu0 0.0
    %4817 = vmatprep.subr.mxu0 0.0
    %4818 = vmatpush1.msra.mxu0 0.0
    %4819 = vmatprep.subr.mxu0 0.0
    %4820 = vmatpush1.msra.mxu0 0.0
    %4821 = vmatprep.subr.mxu0 0.0
    %4822 = vmatpush1.msra.mxu0 0.0
    %4823 = vmatprep.subr.mxu0 0.0
    %4824 = vmatpush1.msra.mxu0 0.0
    %4825 = vmatprep.subr.mxu0 0.0
    %4826 = vmatpush1.msra.mxu0 0.0
    %4827 = vmatprep.subr.mxu0 0.0
    %4828 = vmatpush1.msra.mxu0 0.0
    %4829 = vmatprep.subr.mxu0 0.0
    %4830 = vmatpush1.msra.mxu0 0.0
    %4831 = vmatprep.subr.mxu0 0.0
    %4832 = vmatpush1.msra.mxu0 0.0
    %4833 = vmatprep.subr.mxu0 0.0
    %4834 = vmatpush1.msra.mxu0 0.0
    %4835 = vmatprep.subr.mxu0 0.0
    %4836 = vmatpush1.msra.mxu0 0.0
    %4837 = vmatprep.subr.mxu0 0.0
    %4838 = vmatpush1.msra.mxu0 0.0
    %4839 = vmatprep.subr.mxu0 0.0
    %4840 = vmatpush1.msra.mxu0 0.0
    %4841 = vmatprep.subr.mxu0 0.0
    %4842 = vmatpush1.msra.mxu0 0.0
    %4843 = vmatprep.subr.mxu0 0.0
    %4844 = vmatpush1.msra.mxu0 0.0
    %4845 = vmatprep.subr.mxu0 0.0
    %4846 = vmatpush1.msra.mxu0 0.0
    %4847 = vmatprep.subr.mxu0 0.0
    %4848 = vmatpush1.msra.mxu0 0.0
    %4849 = vmatprep.subr.mxu0 0.0
    %4850 = vmatpush1.msra.mxu0 0.0
    %4851 = vmatprep.subr.mxu0 0.0
    %4852 = vmatpush1.msra.mxu0 0.0
    %4853 = vmatprep.subr.mxu0 0.0
    %4854 = vmatpush1.msra.mxu0 0.0
    %4855 = vmatprep.subr.mxu0 0.0
    %4856 = vmatpush1.msra.mxu0 0.0
    %4857 = vmatprep.subr.mxu0 0.0
    %4858 = vmatpush1.msra.mxu0 0.0
    %4859 = vmatprep.subr.mxu0 0.0
    %4860 = vmatpush1.msra.mxu0 0.0
    %4861 = vmatprep.subr.mxu0 0.0
    %4862 = vmatpush1.msra.mxu0 0.0
    %4863 = vmatprep.mubr.f32.mxu0 0.0
    %4864 = vmatmul.mubr.f32.gmra.mrb[0].mxu0 %v4703
    %v4865 = vpop.f32.mrb[0].mxu0
    %v4866 = vadd.f32 0.0, %v4865
    %v4867 = vpop.f32.mrb[0].mxu0
    %4868 = vmatprep.mubr.f32.mxu0 0.0
    %4869 = vmatmul.mubr.f32.gmra.mrb[0].mxu0 %v4706
    %v4870 = vpop.f32.mrb[0].mxu0
    %v4871 = vadd.f32 0.0, %v4870
    %v4872 = vpop.f32.mrb[0].mxu0
    %4873 = vmatprep.mubr.f32.mxu0 0.0
    %4874 = vmatmul.mubr.f32.gmra.mrb[0].mxu0 %v4709
    %v4875 = vpop.f32.mrb[0].mxu0
    %v4876 = vadd.f32 0.0, %v4875
    %v4877 = vpop.f32.mrb[0].mxu0
    %4878 = vmatprep.mubr.f32.mxu0 0.0
    %4879 = vmatmul.mubr.f32.gmra.mrb[0].mxu0 %v4712
    %v4880 = vpop.f32.mrb[0].mxu0
    %v4881 = vadd.f32 0.0, %v4880
    %v4882 = vpop.f32.mrb[0].mxu0
    %4883 = vdwg.mxu0
    %4884 = vmatprep.subr.mxu0 0.0
    %4885 = vmatpush1.msra.mxu0 %v104
    %4886 = vmatprep.subr.mxu0 0.0
    %4887 = vmatpush1.msra.mxu0 %v105
    %4888 = vmatprep.subr.mxu0 0.0
    %4889 = vmatpush1.msra.mxu0 %v106
    %4890 = vmatprep.subr.mxu0 0.0
    %4891 = vmatpush1.msra.mxu0 %v107
    %4892 = vmatprep.subr.mxu0 0.0
    %4893 = vmatpush1.msra.mxu0 %v108
    %4894 = vmatprep.subr.mxu0 0.0
    %4895 = vmatpush1.msra.mxu0 %v109
    %4896 = vmatprep.subr.mxu0 0.0
    %4897 = vmatpush1.msra.mxu0 %v110
    %4898 = vmatprep.subr.mxu0 0.0
    %4899 = vmatpush1.msra.mxu0 %v111
    %4900 = vmatprep.subr.mxu0 0.0
    %4901 = vmatpush1.msra.mxu0 0.0
    %4902 = vmatprep.subr.mxu0 0.0
    %4903 = vmatpush1.msra.mxu0 0.0
    %4904 = vmatprep.subr.mxu0 0.0
    %4905 = vmatpush1.msra.mxu0 0.0
    %4906 = vmatprep.subr.mxu0 0.0
    %4907 = vmatpush1.msra.mxu0 0.0
    %4908 = vmatprep.subr.mxu0 0.0
    %4909 = vmatpush1.msra.mxu0 0.0
    %4910 = vmatprep.subr.mxu0 0.0
    %4911 = vmatpush1.msra.mxu0 0.0
    %4912 = vmatprep.subr.mxu0 0.0
    %4913 = vmatpush1.msra.mxu0 0.0
    %4914 = vmatprep.subr.mxu0 0.0
    %4915 = vmatpush1.msra.mxu0 0.0
    %4916 = vmatprep.subr.mxu0 0.0
    %4917 = vmatpush1.msra.mxu0 0.0
    %4918 = vmatprep.subr.mxu0 0.0
    %4919 = vmatpush1.msra.mxu0 0.0
    %4920 = vmatprep.subr.mxu0 0.0
    %4921 = vmatpush1.msra.mxu0 0.0
    %4922 = vmatprep.subr.mxu0 0.0
    %4923 = vmatpush1.msra.mxu0 0.0
    %4924 = vmatprep.subr.mxu0 0.0
    %4925 = vmatpush1.msra.mxu0 0.0
    %4926 = vmatprep.subr.mxu0 0.0
    %4927 = vmatpush1.msra.mxu0 0.0
    %4928 = vmatprep.subr.mxu0 0.0
    %4929 = vmatpush1.msra.mxu0 0.0
    %4930 = vmatprep.subr.mxu0 0.0
    %4931 = vmatpush1.msra.mxu0 0.0
    %4932 = vmatprep.subr.mxu0 0.0
    %4933 = vmatpush1.msra.mxu0 0.0
    %4934 = vmatprep.subr.mxu0 0.0
    %4935 = vmatpush1.msra.mxu0 0.0
    %4936 = vmatprep.subr.mxu0 0.0
    %4937 = vmatpush1.msra.mxu0 0.0
    %4938 = vmatprep.subr.mxu0 0.0
    %4939 = vmatpush1.msra.mxu0 0.0
    %4940 = vmatprep.subr.mxu0 0.0
    %4941 = vmatpush1.msra.mxu0 0.0
    %4942 = vmatprep.subr.mxu0 0.0
    %4943 = vmatpush1.msra.mxu0 0.0
    %4944 = vmatprep.subr.mxu0 0.0
    %4945 = vmatpush1.msra.mxu0 0.0
    %4946 = vmatprep.subr.mxu0 0.0
    %4947 = vmatpush1.msra.mxu0 0.0
    %4948 = vmatprep.mubr.f32.mxu0 0.0
    %4949 = vmatmul.mubr.f32.gmra.mrb[0].mxu0 %v4703
    %v4950 = vpop.f32.mrb[0].mxu0
    %v4951 = vadd.f32 0.0, %v4950
    %v4952 = vpop.f32.mrb[0].mxu0
    %4953 = vmatprep.mubr.f32.mxu0 0.0
    %4954 = vmatmul.mubr.f32.gmra.mrb[0].mxu0 %v4706
    %v4955 = vpop.f32.mrb[0].mxu0
    %v4956 = vadd.f32 0.0, %v4955
    %v4957 = vpop.f32.mrb[0].mxu0
    %4958 = vmatprep.mubr.f32.mxu0 0.0
    %4959 = vmatmul.mubr.f32.gmra.mrb[0].mxu0 %v4709
    %v4960 = vpop.f32.mrb[0].mxu0
    %v4961 = vadd.f32 0.0, %v4960
    %v4962 = vpop.f32.mrb[0].mxu0
    %4963 = vmatprep.mubr.f32.mxu0 0.0
    %4964 = vmatmul.mubr.f32.gmra.mrb[0].mxu0 %v4712
    %v4965 = vpop.f32.mrb[0].mxu0
    %v4966 = vadd.f32 0.0, %v4965
    %v4967 = vpop.f32.mrb[0].mxu0
    %4968 = vdwg.mxu0
    %4969 = vmatprep.subr.mxu0 0.0
    %4970 = vmatpush1.msra.mxu0 %v113
    %4971 = vmatprep.subr.mxu0 0.0
    %4972 = vmatpush1.msra.mxu0 %v114
    %4973 = vmatprep.subr.mxu0 0.0
    %4974 = vmatpush1.msra.mxu0 %v115
    %4975 = vmatprep.subr.mxu0 0.0
    %4976 = vmatpush1.msra.mxu0 %v116
    %4977 = vmatprep.subr.mxu0 0.0
    %4978 = vmatpush1.msra.mxu0 %v117
    %4979 = vmatprep.subr.mxu0 0.0
    %4980 = vmatpush1.msra.mxu0 %v118
    %4981 = vmatprep.subr.mxu0 0.0
    %4982 = vmatpush1.msra.mxu0 %v119
    %4983 = vmatprep.subr.mxu0 0.0
    %4984 = vmatpush1.msra.mxu0 %v120
    %4985 = vmatprep.subr.mxu0 0.0
    %4986 = vmatpush1.msra.mxu0 0.0
    %4987 = vmatprep.subr.mxu0 0.0
    %4988 = vmatpush1.msra.mxu0 0.0
    %4989 = vmatprep.subr.mxu0 0.0
    %4990 = vmatpush1.msra.mxu0 0.0
    %4991 = vmatprep.subr.mxu0 0.0
    %4992 = vmatpush1.msra.mxu0 0.0
    %4993 = vmatprep.subr.mxu0 0.0
    %4994 = vmatpush1.msra.mxu0 0.0
    %4995 = vmatprep.subr.mxu0 0.0
    %4996 = vmatpush1.msra.mxu0 0.0
    %4997 = vmatprep.subr.mxu0 0.0
    %4998 = vmatpush1.msra.mxu0 0.0
    %4999 = vmatprep.subr.mxu0 0.0
    %5000 = vmatpush1.msra.mxu0 0.0
    %5001 = vmatprep.subr.mxu0 0.0
    %5002 = vmatpush1.msra.mxu0 0.0
    %5003 = vmatprep.subr.mxu0 0.0
    %5004 = vmatpush1.msra.mxu0 0.0
    %5005 = vmatprep.subr.mxu0 0.0
    %5006 = vmatpush1.msra.mxu0 0.0
    %5007 = vmatprep.subr.mxu0 0.0
    %5008 = vmatpush1.msra.mxu0 0.0
    %5009 = vmatprep.subr.mxu0 0.0
    %5010 = vmatpush1.msra.mxu0 0.0
    %5011 = vmatprep.subr.mxu0 0.0
    %5012 = vmatpush1.msra.mxu0 0.0
    %5013 = vmatprep.subr.mxu0 0.0
    %5014 = vmatpush1.msra.mxu0 0.0
    %5015 = vmatprep.subr.mxu0 0.0
    %5016 = vmatpush1.msra.mxu0 0.0
    %5017 = vmatprep.subr.mxu0 0.0
    %5018 = vmatpush1.msra.mxu0 0.0
    %5019 = vmatprep.subr.mxu0 0.0
    %5020 = vmatpush1.msra.mxu0 0.0
    %5021 = vmatprep.subr.mxu0 0.0
    %5022 = vmatpush1.msra.mxu0 0.0
    %5023 = vmatprep.subr.mxu0 0.0
    %5024 = vmatpush1.msra.mxu0 0.0
    %5025 = vmatprep.subr.mxu0 0.0
    %5026 = vmatpush1.msra.mxu0 0.0
    %5027 = vmatprep.subr.mxu0 0.0
    %5028 = vmatpush1.msra.mxu0 0.0
    %5029 = vmatprep.subr.mxu0 0.0
    %5030 = vmatpush1.msra.mxu0 0.0
    %5031 = vmatprep.subr.mxu0 0.0
    %5032 = vmatpush1.msra.mxu0 0.0
    %5033 = vmatprep.mubr.f32.mxu0 0.0
    %5034 = vmatmul.mubr.f32.gmra.mrb[0].mxu0 %v4703
    %v5035 = vpop.f32.mrb[0].mxu0
    %v5036 = vadd.f32 0.0, %v5035
    %v5037 = vpop.f32.mrb[0].mxu0
    %5038 = vmatprep.mubr.f32.mxu0 0.0
    %5039 = vmatmul.mubr.f32.gmra.mrb[0].mxu0 %v4706
    %v5040 = vpop.f32.mrb[0].mxu0
    %v5041 = vadd.f32 0.0, %v5040
    %v5042 = vpop.f32.mrb[0].mxu0
    %5043 = vmatprep.mubr.f32.mxu0 0.0
    %5044 = vmatmul.mubr.f32.gmra.mrb[0].mxu0 %v4709
    %v5045 = vpop.f32.mrb[0].mxu0
    %v5046 = vadd.f32 0.0, %v5045
    %v5047 = vpop.f32.mrb[0].mxu0
    %5048 = vmatprep.mubr.f32.mxu0 0.0
    %5049 = vmatmul.mubr.f32.gmra.mrb[0].mxu0 %v4712
    %v5050 = vpop.f32.mrb[0].mxu0
    %v5051 = vadd.f32 0.0, %v5050
    %v5052 = vpop.f32.mrb[0].mxu0
    %5053 = vdwg.mxu0
    %5054 = vmatprep.subr.mxu0 0.0
    %5055 = vmatpush1.msra.mxu0 %v122
    %5056 = vmatprep.subr.mxu0 0.0
    %5057 = vmatpush1.msra.mxu0 %v123
    %5058 = vmatprep.subr.mxu0 0.0
    %5059 = vmatpush1.msra.mxu0 %v124
    %5060 = vmatprep.subr.mxu0 0.0
    %5061 = vmatpush1.msra.mxu0 %v125
    %5062 = vmatprep.subr.mxu0 0.0
    %5063 = vmatpush1.msra.mxu0 %v126
    %5064 = vmatprep.subr.mxu0 0.0
    %5065 = vmatpush1.msra.mxu0 %v127
    %5066 = vmatprep.subr.mxu0 0.0
    %5067 = vmatpush1.msra.mxu0 %v128
    %5068 = vmatprep.subr.mxu0 0.0
    %5069 = vmatpush1.msra.mxu0 %v129
    %5070 = vmatprep.subr.mxu0 0.0
    %5071 = vmatpush1.msra.mxu0 0.0
    %5072 = vmatprep.subr.mxu0 0.0
    %5073 = vmatpush1.msra.mxu0 0.0
    %5074 = vmatprep.subr.mxu0 0.0
    %5075 = vmatpush1.msra.mxu0 0.0
    %5076 = vmatprep.subr.mxu0 0.0
    %5077 = vmatpush1.msra.mxu0 0.0
    %5078 = vmatprep.subr.mxu0 0.0
    %5079 = vmatpush1.msra.mxu0 0.0
    %5080 = vmatprep.subr.mxu0 0.0
    %5081 = vmatpush1.msra.mxu0 0.0
    %5082 = vmatprep.subr.mxu0 0.0
    %5083 = vmatpush1.msra.mxu0 0.0
    %5084 = vmatprep.subr.mxu0 0.0
    %5085 = vmatpush1.msra.mxu0 0.0
    %5086 = vmatprep.subr.mxu0 0.0
    %5087 = vmatpush1.msra.mxu0 0.0
    %5088 = vmatprep.subr.mxu0 0.0
    %5089 = vmatpush1.msra.mxu0 0.0
    %5090 = vmatprep.subr.mxu0 0.0
    %5091 = vmatpush1.msra.mxu0 0.0
    %5092 = vmatprep.subr.mxu0 0.0
    %5093 = vmatpush1.msra.mxu0 0.0
    %5094 = vmatprep.subr.mxu0 0.0
    %5095 = vmatpush1.msra.mxu0 0.0
    %5096 = vmatprep.subr.mxu0 0.0
    %5097 = vmatpush1.msra.mxu0 0.0
    %5098 = vmatprep.subr.mxu0 0.0
    %5099 = vmatpush1.msra.mxu0 0.0
    %5100 = vmatprep.subr.mxu0 0.0
    %5101 = vmatpush1.msra.mxu0 0.0
    %5102 = vmatprep.subr.mxu0 0.0
    %5103 = vmatpush1.msra.mxu0 0.0
    %5104 = vmatprep.subr.mxu0 0.0
    %5105 = vmatpush1.msra.mxu0 0.0
    %5106 = vmatprep.subr.mxu0 0.0
    %5107 = vmatpush1.msra.mxu0 0.0
    %5108 = vmatprep.subr.mxu0 0.0
    %5109 = vmatpush1.msra.mxu0 0.0
    %5110 = vmatprep.subr.mxu0 0.0
    %5111 = vmatpush1.msra.mxu0 0.0
    %5112 = vmatprep.subr.mxu0 0.0
    %5113 = vmatpush1.msra.mxu0 0.0
    %5114 = vmatprep.subr.mxu0 0.0
    %5115 = vmatpush1.msra.mxu0 0.0
    %5116 = vmatprep.subr.mxu0 0.0
    %5117 = vmatpush1.msra.mxu0 0.0
    %5118 = vmatprep.mubr.f32.mxu0 0.0
    %5119 = vmatmul.mubr.f32.gmra.mrb[0].mxu0 %v4703
    %v5120 = vpop.f32.mrb[0].mxu0
    %v5121 = vadd.f32 0.0, %v5120
    %v5122 = vpop.f32.mrb[0].mxu0
    %5123 = vmatprep.mubr.f32.mxu0 0.0
    %5124 = vmatmul.mubr.f32.gmra.mrb[0].mxu0 %v4706
    %v5125 = vpop.f32.mrb[0].mxu0
    %v5126 = vadd.f32 0.0, %v5125
    %v5127 = vpop.f32.mrb[0].mxu0
    %5128 = vmatprep.mubr.f32.mxu0 0.0
    %5129 = vmatmul.mubr.f32.gmra.mrb[0].mxu0 %v4709
    %v5130 = vpop.f32.mrb[0].mxu0
    %v5131 = vadd.f32 0.0, %v5130
    %v5132 = vpop.f32.mrb[0].mxu0
    %5133 = vmatprep.mubr.f32.mxu0 0.0
    %5134 = vmatmul.mubr.f32.gmra.mrb[0].mxu0 %v4712
    %v5135 = vpop.f32.mrb[0].mxu0
    %v5136 = vadd.f32 0.0, %v5135
    %v5137 = vpop.f32.mrb[0].mxu0
    %5138 = vdwg.mxu0
    %5139 = vmatprep.subr.mxu0 0.0
    %5140 = vmatpush1.msra.mxu0 %v131
    %5141 = vmatprep.subr.mxu0 0.0
    %5142 = vmatpush1.msra.mxu0 %v132
    %5143 = vmatprep.subr.mxu0 0.0
    %5144 = vmatpush1.msra.mxu0 %v133
    %5145 = vmatprep.subr.mxu0 0.0
    %5146 = vmatpush1.msra.mxu0 %v134
    %5147 = vmatprep.subr.mxu0 0.0
    %5148 = vmatpush1.msra.mxu0 %v135
    %5149 = vmatprep.subr.mxu0 0.0
    %5150 = vmatpush1.msra.mxu0 %v136
    %5151 = vmatprep.subr.mxu0 0.0
    %5152 = vmatpush1.msra.mxu0 %v137
    %5153 = vmatprep.subr.mxu0 0.0
    %5154 = vmatpush1.msra.mxu0 %v138
    %5155 = vmatprep.subr.mxu0 0.0
    %5156 = vmatpush1.msra.mxu0 0.0
    %5157 = vmatprep.subr.mxu0 0.0
    %5158 = vmatpush1.msra.mxu0 0.0
    %5159 = vmatprep.subr.mxu0 0.0
    %5160 = vmatpush1.msra.mxu0 0.0
    %5161 = vmatprep.subr.mxu0 0.0
    %5162 = vmatpush1.msra.mxu0 0.0
    %5163 = vmatprep.subr.mxu0 0.0
    %5164 = vmatpush1.msra.mxu0 0.0
    %5165 = vmatprep.subr.mxu0 0.0
    %5166 = vmatpush1.msra.mxu0 0.0
    %5167 = vmatprep.subr.mxu0 0.0
    %5168 = vmatpush1.msra.mxu0 0.0
    %5169 = vmatprep.subr.mxu0 0.0
    %5170 = vmatpush1.msra.mxu0 0.0
    %5171 = vmatprep.subr.mxu0 0.0
    %5172 = vmatpush1.msra.mxu0 0.0
    %5173 = vmatprep.subr.mxu0 0.0
    %5174 = vmatpush1.msra.mxu0 0.0
    %5175 = vmatprep.subr.mxu0 0.0
    %5176 = vmatpush1.msra.mxu0 0.0
    %5177 = vmatprep.subr.mxu0 0.0
    %5178 = vmatpush1.msra.mxu0 0.0
    %5179 = vmatprep.subr.mxu0 0.0
    %5180 = vmatpush1.msra.mxu0 0.0
    %5181 = vmatprep.subr.mxu0 0.0
    %5182 = vmatpush1.msra.mxu0 0.0
    %5183 = vmatprep.subr.mxu0 0.0
    %5184 = vmatpush1.msra.mxu0 0.0
    %5185 = vmatprep.subr.mxu0 0.0
    %5186 = vmatpush1.msra.mxu0 0.0
    %5187 = vmatprep.subr.mxu0 0.0
    %5188 = vmatpush1.msra.mxu0 0.0
    %5189 = vmatprep.subr.mxu0 0.0
    %5190 = vmatpush1.msra.mxu0 0.0
    %5191 = vmatprep.subr.mxu0 0.0
    %5192 = vmatpush1.msra.mxu0 0.0
    %5193 = vmatprep.subr.mxu0 0.0
    %5194 = vmatpush1.msra.mxu0 0.0
    %5195 = vmatprep.subr.mxu0 0.0
    %5196 = vmatpush1.msra.mxu0 0.0
    %5197 = vmatprep.subr.mxu0 0.0
    %5198 = vmatpush1.msra.mxu0 0.0
    %5199 = vmatprep.subr.mxu0 0.0
    %5200 = vmatpush1.msra.mxu0 0.0
    %5201 = vmatprep.subr.mxu0 0.0
    %5202 = vmatpush1.msra.mxu0 0.0
    %5203 = vmatprep.mubr.f32.mxu0 0.0
    %5204 = vmatmul.mubr.f32.gmra.mrb[0].mxu0 %v4703
    %v5205 = vpop.f32.mrb[0].mxu0
    %v5206 = vadd.f32 0.0, %v5205
    %v5207 = vpop.f32.mrb[0].mxu0
    %5208 = vmatprep.mubr.f32.mxu0 0.0
    %5209 = vmatmul.mubr.f32.gmra.mrb[0].mxu0 %v4706
    %v5210 = vpop.f32.mrb[0].mxu0
    %v5211 = vadd.f32 0.0, %v5210
    %v5212 = vpop.f32.mrb[0].mxu0
    %5213 = vmatprep.mubr.f32.mxu0 0.0
    %5214 = vmatmul.mubr.f32.gmra.mrb[0].mxu0 %v4709
    %v5215 = vpop.f32.mrb[0].mxu0
    %v5216 = vadd.f32 0.0, %v5215
    %v5217 = vpop.f32.mrb[0].mxu0
    %5218 = vmatprep.mubr.f32.mxu0 0.0
    %5219 = vmatmul.mubr.f32.gmra.mrb[0].mxu0 %v4712
    %v5220 = vpop.f32.mrb[0].mxu0
    %v5221 = vadd.f32 0.0, %v5220
    %v5222 = vpop.f32.mrb[0].mxu0
    %5223 = vdwg.mxu0
    %5224 = vmatprep.subr.mxu0 0.0
    %5225 = vmatpush1.msra.mxu0 %v140
    %5226 = vmatprep.subr.mxu0 0.0
    %5227 = vmatpush1.msra.mxu0 %v141
    %5228 = vmatprep.subr.mxu0 0.0
    %5229 = vmatpush1.msra.mxu0 %v142
    %5230 = vmatprep.subr.mxu0 0.0
    %5231 = vmatpush1.msra.mxu0 %v143
    %5232 = vmatprep.subr.mxu0 0.0
    %5233 = vmatpush1.msra.mxu0 %v144
    %5234 = vmatprep.subr.mxu0 0.0
    %5235 = vmatpush1.msra.mxu0 %v145
    %5236 = vmatprep.subr.mxu0 0.0
    %5237 = vmatpush1.msra.mxu0 %v146
    %5238 = vmatprep.subr.mxu0 0.0
    %5239 = vmatpush1.msra.mxu0 %v147
    %5240 = vmatprep.subr.mxu0 0.0
    %5241 = vmatpush1.msra.mxu0 0.0
    %5242 = vmatprep.subr.mxu0 0.0
    %5243 = vmatpush1.msra.mxu0 0.0
    %5244 = vmatprep.subr.mxu0 0.0
    %5245 = vmatpush1.msra.mxu0 0.0
    %5246 = vmatprep.subr.mxu0 0.0
    %5247 = vmatpush1.msra.mxu0 0.0
    %5248 = vmatprep.subr.mxu0 0.0
    %5249 = vmatpush1.msra.mxu0 0.0
    %5250 = vmatprep.subr.mxu0 0.0
    %5251 = vmatpush1.msra.mxu0 0.0
    %5252 = vmatprep.subr.mxu0 0.0
    %5253 = vmatpush1.msra.mxu0 0.0
    %5254 = vmatprep.subr.mxu0 0.0
    %5255 = vmatpush1.msra.mxu0 0.0
    %5256 = vmatprep.subr.mxu0 0.0
    %5257 = vmatpush1.msra.mxu0 0.0
    %5258 = vmatprep.subr.mxu0 0.0
    %5259 = vmatpush1.msra.mxu0 0.0
    %5260 = vmatprep.subr.mxu0 0.0
    %5261 = vmatpush1.msra.mxu0 0.0
    %5262 = vmatprep.subr.mxu0 0.0
    %5263 = vmatpush1.msra.mxu0 0.0
    %5264 = vmatprep.subr.mxu0 0.0
    %5265 = vmatpush1.msra.mxu0 0.0
    %5266 = vmatprep.subr.mxu0 0.0
    %5267 = vmatpush1.msra.mxu0 0.0
    %5268 = vmatprep.subr.mxu0 0.0
    %5269 = vmatpush1.msra.mxu0 0.0
    %5270 = vmatprep.subr.mxu0 0.0
    %5271 = vmatpush1.msra.mxu0 0.0
    %5272 = vmatprep.subr.mxu0 0.0
    %5273 = vmatpush1.msra.mxu0 0.0
    %5274 = vmatprep.subr.mxu0 0.0
    %5275 = vmatpush1.msra.mxu0 0.0
    %5276 = vmatprep.subr.mxu0 0.0
    %5277 = vmatpush1.msra.mxu0 0.0
    %5278 = vmatprep.subr.mxu0 0.0
    %5279 = vmatpush1.msra.mxu0 0.0
    %5280 = vmatprep.subr.mxu0 0.0
    %5281 = vmatpush1.msra.mxu0 0.0
    %5282 = vmatprep.subr.mxu0 0.0
    %5283 = vmatpush1.msra.mxu0 0.0
    %5284 = vmatprep.subr.mxu0 0.0
    %5285 = vmatpush1.msra.mxu0 0.0
    %5286 = vmatprep.subr.mxu0 0.0
    %5287 = vmatpush1.msra.mxu0 0.0
    %5288 = vmatprep.mubr.f32.mxu0 0.0
    %5289 = vmatmul.mubr.f32.gmra.mrb[0].mxu0 %v4703
    %v5290 = vpop.f32.mrb[0].mxu0
    %v5291 = vadd.f32 0.0, %v5290
    %v5292 = vpop.f32.mrb[0].mxu0
    %5293 = vmatprep.mubr.f32.mxu0 0.0
    %5294 = vmatmul.mubr.f32.gmra.mrb[0].mxu0 %v4706
    %v5295 = vpop.f32.mrb[0].mxu0
    %v5296 = vadd.f32 0.0, %v5295
    %v5297 = vpop.f32.mrb[0].mxu0
    %5298 = vmatprep.mubr.f32.mxu0 0.0
    %5299 = vmatmul.mubr.f32.gmra.mrb[0].mxu0 %v4709
    %v5300 = vpop.f32.mrb[0].mxu0
    %v5301 = vadd.f32 0.0, %v5300
    %v5302 = vpop.f32.mrb[0].mxu0
    %5303 = vmatprep.mubr.f32.mxu0 0.0
    %5304 = vmatmul.mubr.f32.gmra.mrb[0].mxu0 %v4712
    %v5305 = vpop.f32.mrb[0].mxu0
    %v5306 = vadd.f32 0.0, %v5305
    %v5307 = vpop.f32.mrb[0].mxu0
    %5308 = vdwg.mxu0
    %5309 = vmatprep.subr.mxu0 0.0
    %5310 = vmatpush1.msra.mxu0 %v149
    %5311 = vmatprep.subr.mxu0 0.0
    %5312 = vmatpush1.msra.mxu0 %v150
    %5313 = vmatprep.subr.mxu0 0.0
    %5314 = vmatpush1.msra.mxu0 %v151
    %5315 = vmatprep.subr.mxu0 0.0
    %5316 = vmatpush1.msra.mxu0 %v152
    %5317 = vmatprep.subr.mxu0 0.0
    %5318 = vmatpush1.msra.mxu0 %v153
    %5319 = vmatprep.subr.mxu0 0.0
    %5320 = vmatpush1.msra.mxu0 %v154
    %5321 = vmatprep.subr.mxu0 0.0
    %5322 = vmatpush1.msra.mxu0 %v155
    %5323 = vmatprep.subr.mxu0 0.0
    %5324 = vmatpush1.msra.mxu0 %v156
    %5325 = vmatprep.subr.mxu0 0.0
    %5326 = vmatpush1.msra.mxu0 0.0
    %5327 = vmatprep.subr.mxu0 0.0
    %5328 = vmatpush1.msra.mxu0 0.0
    %5329 = vmatprep.subr.mxu0 0.0
    %5330 = vmatpush1.msra.mxu0 0.0
    %5331 = vmatprep.subr.mxu0 0.0
    %5332 = vmatpush1.msra.mxu0 0.0
    %5333 = vmatprep.subr.mxu0 0.0
    %5334 = vmatpush1.msra.mxu0 0.0
    %5335 = vmatprep.subr.mxu0 0.0
    %5336 = vmatpush1.msra.mxu0 0.0
    %5337 = vmatprep.subr.mxu0 0.0
    %5338 = vmatpush1.msra.mxu0 0.0
    %5339 = vmatprep.subr.mxu0 0.0
    %5340 = vmatpush1.msra.mxu0 0.0
    %5341 = vmatprep.subr.mxu0 0.0
    %5342 = vmatpush1.msra.mxu0 0.0
    %5343 = vmatprep.subr.mxu0 0.0
    %5344 = vmatpush1.msra.mxu0 0.0
    %5345 = vmatprep.subr.mxu0 0.0
    %5346 = vmatpush1.msra.mxu0 0.0
    %5347 = vmatprep.subr.mxu0 0.0
    %5348 = vmatpush1.msra.mxu0 0.0
    %5349 = vmatprep.subr.mxu0 0.0
    %5350 = vmatpush1.msra.mxu0 0.0
    %5351 = vmatprep.subr.mxu0 0.0
    %5352 = vmatpush1.msra.mxu0 0.0
    %5353 = vmatprep.subr.mxu0 0.0
    %5354 = vmatpush1.msra.mxu0 0.0
    %5355 = vmatprep.subr.mxu0 0.0
    %5356 = vmatpush1.msra.mxu0 0.0
    %5357 = vmatprep.subr.mxu0 0.0
    %5358 = vmatpush1.msra.mxu0 0.0
    %5359 = vmatprep.subr.mxu0 0.0
    %5360 = vmatpush1.msra.mxu0 0.0
    %5361 = vmatprep.subr.mxu0 0.0
    %5362 = vmatpush1.msra.mxu0 0.0
    %5363 = vmatprep.subr.mxu0 0.0
    %5364 = vmatpush1.msra.mxu0 0.0
    %5365 = vmatprep.subr.mxu0 0.0
    %5366 = vmatpush1.msra.mxu0 0.0
    %5367 = vmatprep.subr.mxu0 0.0
    %5368 = vmatpush1.msra.mxu0 0.0
    %5369 = vmatprep.subr.mxu0 0.0
    %5370 = vmatpush1.msra.mxu0 0.0
    %5371 = vmatprep.subr.mxu0 0.0
    %5372 = vmatpush1.msra.mxu0 0.0
    %5373 = vmatprep.mubr.f32.mxu0 0.0
    %5374 = vmatmul.mubr.f32.gmra.mrb[0].mxu0 %v4703
    %v5375 = vpop.f32.mrb[0].mxu0
    %v5376 = vadd.f32 0.0, %v5375
    %v5377 = vpop.f32.mrb[0].mxu0
    %5378 = vmatprep.mubr.f32.mxu0 0.0
    %5379 = vmatmul.mubr.f32.gmra.mrb[0].mxu0 %v4706
    %v5380 = vpop.f32.mrb[0].mxu0
    %v5381 = vadd.f32 0.0, %v5380
    %v5382 = vpop.f32.mrb[0].mxu0
    %5383 = vmatprep.mubr.f32.mxu0 0.0
    %5384 = vmatmul.mubr.f32.gmra.mrb[0].mxu0 %v4709
    %v5385 = vpop.f32.mrb[0].mxu0
    %v5386 = vadd.f32 0.0, %v5385
    %v5387 = vpop.f32.mrb[0].mxu0
    %5388 = vmatprep.mubr.f32.mxu0 0.0
    %5389 = vmatmul.mubr.f32.gmra.mrb[0].mxu0 %v4712
    %v5390 = vpop.f32.mrb[0].mxu0
    %v5391 = vadd.f32 0.0, %v5390
    %v5392 = vpop.f32.mrb[0].mxu0
    %5393 = vdwg.mxu0
    %5394 = vmatprep.subr.mxu0 0.0
    %5395 = vmatpush1.msra.mxu0 %v158
    %5396 = vmatprep.subr.mxu0 0.0
    %5397 = vmatpush1.msra.mxu0 %v159
    %5398 = vmatprep.subr.mxu0 0.0
    %5399 = vmatpush1.msra.mxu0 %v160
    %5400 = vmatprep.subr.mxu0 0.0
    %5401 = vmatpush1.msra.mxu0 %v161
    %5402 = vmatprep.subr.mxu0 0.0
    %5403 = vmatpush1.msra.mxu0 %v162
    %5404 = vmatprep.subr.mxu0 0.0
    %5405 = vmatpush1.msra.mxu0 %v163
    %5406 = vmatprep.subr.mxu0 0.0
    %5407 = vmatpush1.msra.mxu0 %v164
    %5408 = vmatprep.subr.mxu0 0.0
    %5409 = vmatpush1.msra.mxu0 %v165
    %5410 = vmatprep.subr.mxu0 0.0
    %5411 = vmatpush1.msra.mxu0 0.0
    %5412 = vmatprep.subr.mxu0 0.0
    %5413 = vmatpush1.msra.mxu0 0.0
    %5414 = vmatprep.subr.mxu0 0.0
    %5415 = vmatpush1.msra.mxu0 0.0
    %5416 = vmatprep.subr.mxu0 0.0
    %5417 = vmatpush1.msra.mxu0 0.0
    %5418 = vmatprep.subr.mxu0 0.0
    %5419 = vmatpush1.msra.mxu0 0.0
    %5420 = vmatprep.subr.mxu0 0.0
    %5421 = vmatpush1.msra.mxu0 0.0
    %5422 = vmatprep.subr.mxu0 0.0
    %5423 = vmatpush1.msra.mxu0 0.0
    %5424 = vmatprep.subr.mxu0 0.0
    %5425 = vmatpush1.msra.mxu0 0.0
    %5426 = vmatprep.subr.mxu0 0.0
    %5427 = vmatpush1.msra.mxu0 0.0
    %5428 = vmatprep.subr.mxu0 0.0
    %5429 = vmatpush1.msra.mxu0 0.0
    %5430 = vmatprep.subr.mxu0 0.0
    %5431 = vmatpush1.msra.mxu0 0.0
    %5432 = vmatprep.subr.mxu0 0.0
    %5433 = vmatpush1.msra.mxu0 0.0
    %5434 = vmatprep.subr.mxu0 0.0
    %5435 = vmatpush1.msra.mxu0 0.0
    %5436 = vmatprep.subr.mxu0 0.0
    %5437 = vmatpush1.msra.mxu0 0.0
    %5438 = vmatprep.subr.mxu0 0.0
    %5439 = vmatpush1.msra.mxu0 0.0
    %5440 = vmatprep.subr.mxu0 0.0
    %5441 = vmatpush1.msra.mxu0 0.0
    %5442 = vmatprep.subr.mxu0 0.0
    %5443 = vmatpush1.msra.mxu0 0.0
    %5444 = vmatprep.subr.mxu0 0.0
    %5445 = vmatpush1.msra.mxu0 0.0
    %5446 = vmatprep.subr.mxu0 0.0
    %5447 = vmatpush1.msra.mxu0 0.0
    %5448 = vmatprep.subr.mxu0 0.0
    %5449 = vmatpush1.msra.mxu0 0.0
    %5450 = vmatprep.subr.mxu0 0.0
    %5451 = vmatpush1.msra.mxu0 0.0
    %5452 = vmatprep.subr.mxu0 0.0
    %5453 = vmatpush1.msra.mxu0 0.0
    %5454 = vmatprep.subr.mxu0 0.0
    %5455 = vmatpush1.msra.mxu0 0.0
    %5456 = vmatprep.subr.mxu0 0.0
    %5457 = vmatpush1.msra.mxu0 0.0
    %5458 = vmatprep.mubr.f32.mxu0 0.0
    %5459 = vmatmul.mubr.f32.gmra.mrb[0].mxu0 %v4703
    %v5460 = vpop.f32.mrb[0].mxu0
    %v5461 = vadd.f32 0.0, %v5460
    %v5462 = vpop.f32.mrb[0].mxu0
    %5463 = vmatprep.mubr.f32.mxu0 0.0
    %5464 = vmatmul.mubr.f32.gmra.mrb[0].mxu0 %v4706
    %v5465 = vpop.f32.mrb[0].mxu0
    %v5466 = vadd.f32 0.0, %v5465
    %v5467 = vpop.f32.mrb[0].mxu0
    %5468 = vmatprep.mubr.f32.mxu0 0.0
    %5469 = vmatmul.mubr.f32.gmra.mrb[0].mxu0 %v4709
    %v5470 = vpop.f32.mrb[0].mxu0
    %v5471 = vadd.f32 0.0, %v5470
    %v5472 = vpop.f32.mrb[0].mxu0
    %5473 = vmatprep.mubr.f32.mxu0 0.0
    %5474 = vmatmul.mubr.f32.gmra.mrb[0].mxu0 %v4712
    %v5475 = vpop.f32.mrb[0].mxu0
    %v5476 = vadd.f32 0.0, %v5475
    %v5477 = vpop.f32.mrb[0].mxu0
    %5478 = vdwg.mxu0
    %5479 = vmatprep.subr.mxu0 0.0
    %5480 = vmatpush1.msra.mxu0 %v4781
    %5481 = vmatprep.subr.mxu0 0.0
    %5482 = vmatpush1.msra.mxu0 %v4786
    %5483 = vmatprep.subr.mxu0 0.0
    %5484 = vmatpush1.msra.mxu0 %v4791
    %5485 = vmatprep.subr.mxu0 0.0
    %5486 = vmatpush1.msra.mxu0 %v4796
    %5487 = vmatprep.subr.mxu0 0.0
    %5488 = vmatpush1.msra.mxu0 %v4866
    %5489 = vmatprep.subr.mxu0 0.0
    %5490 = vmatpush1.msra.mxu0 %v4871
    %5491 = vmatprep.subr.mxu0 0.0
    %5492 = vmatpush1.msra.mxu0 %v4876
    %5493 = vmatprep.subr.mxu0 0.0
    %5494 = vmatpush1.msra.mxu0 %v4881
    %5495 = vmatprep.subr.mxu0 0.0
    %5496 = vmatpush1.msra.mxu0 %v4951
    %5497 = vmatprep.subr.mxu0 0.0
    %5498 = vmatpush1.msra.mxu0 %v4956
    %5499 = vmatprep.subr.mxu0 0.0
    %5500 = vmatpush1.msra.mxu0 %v4961
    %5501 = vmatprep.subr.mxu0 0.0
    %5502 = vmatpush1.msra.mxu0 %v4966
    %5503 = vmatprep.subr.mxu0 0.0
    %5504 = vmatpush1.msra.mxu0 %v5036
    %5505 = vmatprep.subr.mxu0 0.0
    %5506 = vmatpush1.msra.mxu0 %v5041
    %5507 = vmatprep.subr.mxu0 0.0
    %5508 = vmatpush1.msra.mxu0 %v5046
    %5509 = vmatprep.subr.mxu0 0.0
    %5510 = vmatpush1.msra.mxu0 %v5051
    %5511 = vmatprep.subr.mxu0 0.0
    %5512 = vmatpush1.msra.mxu0 %v5121
    %5513 = vmatprep.subr.mxu0 0.0
    %5514 = vmatpush1.msra.mxu0 %v5126
    %5515 = vmatprep.subr.mxu0 0.0
    %5516 = vmatpush1.msra.mxu0 %v5131
    %5517 = vmatprep.subr.mxu0 0.0
    %5518 = vmatpush1.msra.mxu0 %v5136
    %5519 = vmatprep.subr.mxu0 0.0
    %5520 = vmatpush1.msra.mxu0 %v5206
    %5521 = vmatprep.subr.mxu0 0.0
    %5522 = vmatpush1.msra.mxu0 %v5211
    %5523 = vmatprep.subr.mxu0 0.0
    %5524 = vmatpush1.msra.mxu0 %v5216
    %5525 = vmatprep.subr.mxu0 0.0
    %5526 = vmatpush1.msra.mxu0 %v5221
    %5527 = vmatprep.subr.mxu0 0.0
    %5528 = vmatpush1.msra.mxu0 %v5291
    %5529 = vmatprep.subr.mxu0 0.0
    %5530 = vmatpush1.msra.mxu0 %v5296
    %5531 = vmatprep.subr.mxu0 0.0
    %5532 = vmatpush1.msra.mxu0 %v5301
    %5533 = vmatprep.subr.mxu0 0.0
    %5534 = vmatpush1.msra.mxu0 %v5306
    %5535 = vmatprep.subr.mxu0 0.0
    %5536 = vmatpush1.msra.mxu0 %v5376
    %5537 = vmatprep.subr.mxu0 0.0
    %5538 = vmatpush1.msra.mxu0 %v5381
    %5539 = vmatprep.subr.mxu0 0.0
    %5540 = vmatpush1.msra.mxu0 %v5386
    %5541 = vmatprep.subr.mxu0 0.0
    %5542 = vmatpush1.msra.mxu0 %v5391
    %5543 = vmatprep.mubr.f32.mxu0 %v2760
    %5544 = vmatmul.mubr.f32.gmra.mrb[0].mxu0 %v2759
    %v5545 = vpop.f32.mrb[0].mxu0
    %v5546 = vadd.f32 %v2778, %v5545
    %v5547 = vpop.f32.mrb[0].mxu0
    %5548 = vmatprep.mubr.f32.mxu0 %v2763
    %5549 = vmatmul.mubr.f32.gmra.mrb[0].mxu0 %v2762
    %v5550 = vpop.f32.mrb[0].mxu0
    %v5551 = vadd.f32 %v2783, %v5550
    %v5552 = vpop.f32.mrb[0].mxu0
    %5553 = vmatprep.mubr.f32.mxu0 %v2766
    %5554 = vmatmul.mubr.f32.gmra.mrb[0].mxu0 %v2765
    %v5555 = vpop.f32.mrb[0].mxu0
    %v5556 = vadd.f32 %v2788, %v5555
    %v5557 = vpop.f32.mrb[0].mxu0
    %5558 = vmatprep.mubr.f32.mxu0 %v2769
    %5559 = vmatmul.mubr.f32.gmra.mrb[0].mxu0 %v2768
    %v5560 = vpop.f32.mrb[0].mxu0
    %v5561 = vadd.f32 %v2793, %v5560
    %v5562 = vpop.f32.mrb[0].mxu0
    %5563 = vdwg.mxu0
    %5564 = vmatprep.subr.mxu0 0.0
    %5565 = vmatpush1.msra.mxu0 %v5461
    %5566 = vmatprep.subr.mxu0 0.0
    %5567 = vmatpush1.msra.mxu0 %v5466
    %5568 = vmatprep.subr.mxu0 0.0
    %5569 = vmatpush1.msra.mxu0 %v5471
    %5570 = vmatprep.subr.mxu0 0.0
    %5571 = vmatpush1.msra.mxu0 %v5476
    %5572 = vmatprep.subr.mxu0 0.0
    %5573 = vmatpush1.msra.mxu0 0.0
    %5574 = vmatprep.subr.mxu0 0.0
    %5575 = vmatpush1.msra.mxu0 0.0
    %5576 = vmatprep.subr.mxu0 0.0
    %5577 = vmatpush1.msra.mxu0 0.0
    %5578 = vmatprep.subr.mxu0 0.0
    %5579 = vmatpush1.msra.mxu0 0.0
    %5580 = vmatprep.subr.mxu0 0.0
    %5581 = vmatpush1.msra.mxu0 0.0
    %5582 = vmatprep.subr.mxu0 0.0
    %5583 = vmatpush1.msra.mxu0 0.0
    %5584 = vmatprep.subr.mxu0 0.0
    %5585 = vmatpush1.msra.mxu0 0.0
    %5586 = vmatprep.subr.mxu0 0.0
    %5587 = vmatpush1.msra.mxu0 0.0
    %5588 = vmatprep.subr.mxu0 0.0
    %5589 = vmatpush1.msra.mxu0 0.0
    %5590 = vmatprep.subr.mxu0 0.0
    %5591 = vmatpush1.msra.mxu0 0.0
    %5592 = vmatprep.subr.mxu0 0.0
    %5593 = vmatpush1.msra.mxu0 0.0
    %5594 = vmatprep.subr.mxu0 0.0
    %5595 = vmatpush1.msra.mxu0 0.0
    %5596 = vmatprep.subr.mxu0 0.0
    %5597 = vmatpush1.msra.mxu0 0.0
    %5598 = vmatprep.subr.mxu0 0.0
    %5599 = vmatpush1.msra.mxu0 0.0
    %5600 = vmatprep.subr.mxu0 0.0
    %5601 = vmatpush1.msra.mxu0 0.0
    %5602 = vmatprep.subr.mxu0 0.0
    %5603 = vmatpush1.msra.mxu0 0.0
    %5604 = vmatprep.subr.mxu0 0.0
    %5605 = vmatpush1.msra.mxu0 0.0
    %5606 = vmatprep.subr.mxu0 0.0
    %5607 = vmatpush1.msra.mxu0 0.0
    %5608 = vmatprep.subr.mxu0 0.0
    %5609 = vmatpush1.msra.mxu0 0.0
    %5610 = vmatprep.subr.mxu0 0.0
    %5611 = vmatpush1.msra.mxu0 0.0
    %5612 = vmatprep.subr.mxu0 0.0
    %5613 = vmatpush1.msra.mxu0 0.0
    %5614 = vmatprep.subr.mxu0 0.0
    %5615 = vmatpush1.msra.mxu0 0.0
    %5616 = vmatprep.subr.mxu0 0.0
    %5617 = vmatpush1.msra.mxu0 0.0
    %5618 = vmatprep.subr.mxu0 0.0
    %5619 = vmatpush1.msra.mxu0 0.0
    %5620 = vmatprep.subr.mxu0 0.0
    %5621 = vmatpush1.msra.mxu0 0.0
    %5622 = vmatprep.subr.mxu0 0.0
    %5623 = vmatpush1.msra.mxu0 0.0
    %5624 = vmatprep.subr.mxu0 0.0
    %5625 = vmatpush1.msra.mxu0 0.0
    %5626 = vmatprep.subr.mxu0 0.0
    %5627 = vmatpush1.msra.mxu0 0.0
    %5628 = vmatprep.mubr.f32.mxu0 0.0
    %5629 = vmatmul.mubr.f32.gmra.mrb[0].mxu0 %v2796
    %v5630 = vpop.f32.mrb[0].mxu0
    %v5631 = vadd.f32 %v5546, %v5630
    %v5632 = vpop.f32.mrb[0].mxu0
    %5633 = vmatprep.mubr.f32.mxu0 0.0
    %5634 = vmatmul.mubr.f32.gmra.mrb[0].mxu0 %v2799
    %v5635 = vpop.f32.mrb[0].mxu0
    %v5636 = vadd.f32 %v5551, %v5635
    %v5637 = vpop.f32.mrb[0].mxu0
    %5638 = vmatprep.mubr.f32.mxu0 0.0
    %5639 = vmatmul.mubr.f32.gmra.mrb[0].mxu0 %v2802
    %v5640 = vpop.f32.mrb[0].mxu0
    %v5641 = vadd.f32 %v5556, %v5640
    %v5642 = vpop.f32.mrb[0].mxu0
    %5643 = vmatprep.mubr.f32.mxu0 0.0
    %5644 = vmatmul.mubr.f32.gmra.mrb[0].mxu0 %v2805
    %v5645 = vpop.f32.mrb[0].mxu0
    %v5646 = vadd.f32 %v5561, %v5645
    %v5647 = vpop.f32.mrb[0].mxu0
    %5648 = vdwg.mxu0
    %v5649 = vmax.f32 %v5631, 0.0
    %v5650 = vmax.f32 %v5636, 0.0
    %v5651 = vmax.f32 %v5641, 0.0
    %v5652 = vmax.f32 %v5646, 0.0
    %v5653 = vld [vmem:[%s10] sm:$0xff]
    %v5654 = vld [vmem:[%s10 + $0x8] sm:$0xff]
    %v5655 = vld [vmem:[%s10 + $0x10] sm:$0xff]
    %v5656 = vld [vmem:[%s10 + $0x18] sm:$0xff]
    %v5657 = vld [vmem:[%s10 + $0x20] sm:$0xff]
    %v5658 = vld [vmem:[%s10 + $0x28] sm:$0xff]
    %v5659 = vld [vmem:[%s10 + $0x30] sm:$0xff]
    %v5660 = vld [vmem:[%s10 + $0x38] sm:$0xff]
    %s5661 = scalar_lea.vmem %s10, 64
    %v5662 = vld [vmem:[%s5661] sm:$0xff]
    %v5663 = vld [vmem:[%s5661 + $0x8] sm:$0xff]
    %v5664 = vld [vmem:[%s5661 + $0x10] sm:$0xff]
    %v5665 = vld [vmem:[%s5661 + $0x18] sm:$0xff]
    %v5666 = vld [vmem:[%s5661 + $0x20] sm:$0xff]
    %v5667 = vld [vmem:[%s5661 + $0x28] sm:$0xff]
    %v5668 = vld [vmem:[%s5661 + $0x30] sm:$0xff]
    %v5669 = vld [vmem:[%s5661 + $0x38] sm:$0xff]
    %v5672 = vrot.slane %v2977, 1
    %vm5673 = vcmask 1041409
    %v5674 = vsel %vm5673, %v5649, %v5672
    %v5675 = vsel %vm166, %v5674, 0
    %5677 = vmatprep.subr.mxu0 0.0
    %5678 = vmatpush1.msra.mxu0 %v5662
    %5679 = vmatprep.subr.mxu0 0.0
    %5680 = vmatpush1.msra.mxu0 %v5663
    %5681 = vmatprep.subr.mxu0 0.0
    %5682 = vmatpush1.msra.mxu0 %v5664
    %5683 = vmatprep.subr.mxu0 0.0
    %5684 = vmatpush1.msra.mxu0 %v5665
    %5685 = vmatprep.subr.mxu0 0.0
    %5686 = vmatpush1.msra.mxu0 %v5666
    %5687 = vmatprep.subr.mxu0 0.0
    %5688 = vmatpush1.msra.mxu0 %v5667
    %5689 = vmatprep.subr.mxu0 0.0
    %5690 = vmatpush1.msra.mxu0 %v5668
    %5691 = vmatprep.subr.mxu0 0.0
    %5692 = vmatpush1.msra.mxu0 %v5669
    %5693 = vmatprep.subr.mxu0 0.0
    %5694 = vmatpush1.msra.mxu0 0.0
    %5695 = vmatprep.subr.mxu0 0.0
    %5696 = vmatpush1.msra.mxu0 0.0
    %5697 = vmatprep.subr.mxu0 0.0
    %5698 = vmatpush1.msra.mxu0 0.0
    %5699 = vmatprep.subr.mxu0 0.0
    %5700 = vmatpush1.msra.mxu0 0.0
    %5701 = vmatprep.subr.mxu0 0.0
    %5702 = vmatpush1.msra.mxu0 0.0
    %5703 = vmatprep.subr.mxu0 0.0
    %5704 = vmatpush1.msra.mxu0 0.0
    %5705 = vmatprep.subr.mxu0 0.0
    %5706 = vmatpush1.msra.mxu0 0.0
    %5707 = vmatprep.subr.mxu0 0.0
    %5708 = vmatpush1.msra.mxu0 0.0
    %5709 = vmatprep.subr.mxu0 0.0
    %5710 = vmatpush1.msra.mxu0 0.0
    %5711 = vmatprep.subr.mxu0 0.0
    %5712 = vmatpush1.msra.mxu0 0.0
    %5713 = vmatprep.subr.mxu0 0.0
    %5714 = vmatpush1.msra.mxu0 0.0
    %5715 = vmatprep.subr.mxu0 0.0
    %5716 = vmatpush1.msra.mxu0 0.0
    %5717 = vmatprep.subr.mxu0 0.0
    %5718 = vmatpush1.msra.mxu0 0.0
    %5719 = vmatprep.subr.mxu0 0.0
    %5720 = vmatpush1.msra.mxu0 0.0
    %5721 = vmatprep.subr.mxu0 0.0
    %5722 = vmatpush1.msra.mxu0 0.0
    %5723 = vmatprep.subr.mxu0 0.0
    %5724 = vmatpush1.msra.mxu0 0.0
    %5725 = vmatprep.subr.mxu0 0.0
    %5726 = vmatpush1.msra.mxu0 0.0
    %5727 = vmatprep.subr.mxu0 0.0
    %5728 = vmatpush1.msra.mxu0 0.0
    %5729 = vmatprep.subr.mxu0 0.0
    %5730 = vmatpush1.msra.mxu0 0.0
    %5731 = vmatprep.subr.mxu0 0.0
    %5732 = vmatpush1.msra.mxu0 0.0
    %5733 = vmatprep.subr.mxu0 0.0
    %5734 = vmatpush1.msra.mxu0 0.0
    %5735 = vmatprep.subr.mxu0 0.0
    %5736 = vmatpush1.msra.mxu0 0.0
    %5737 = vmatprep.subr.mxu0 0.0
    %5738 = vmatpush1.msra.mxu0 0.0
    %5739 = vmatprep.subr.mxu0 0.0
    %5740 = vmatpush1.msra.mxu0 0.0
    %5741 = vmatprep.mubr.f32.mxu0 0.0
    %5742 = vmatmul.mubr.f32.gmra.mrb[0].mxu0 %v5675
    %v5743 = vpop.f32.mrb[0].mxu0
    %v5744 = vadd.f32 0.0, %v5743
    %v5745 = vpop.f32.mrb[0].mxu0
    %5746 = vdwg.mxu0
    %v5747 = vrot.slane %v5649, 7
    %v5748 = vsel %vm5673, %v5747, %v2977
    %v5749 = vsel %vm166, %v5748, 0
    %5751 = vmatprep.subr.mxu0 0.0
    %5752 = vmatpush1.msra.mxu0 %v5653
    %5753 = vmatprep.subr.mxu0 0.0
    %5754 = vmatpush1.msra.mxu0 %v5654
    %5755 = vmatprep.subr.mxu0 0.0
    %5756 = vmatpush1.msra.mxu0 %v5655
    %5757 = vmatprep.subr.mxu0 0.0
    %5758 = vmatpush1.msra.mxu0 %v5656
    %5759 = vmatprep.subr.mxu0 0.0
    %5760 = vmatpush1.msra.mxu0 %v5657
    %5761 = vmatprep.subr.mxu0 0.0
    %5762 = vmatpush1.msra.mxu0 %v5658
    %5763 = vmatprep.subr.mxu0 0.0
    %5764 = vmatpush1.msra.mxu0 %v5659
    %5765 = vmatprep.subr.mxu0 0.0
    %5766 = vmatpush1.msra.mxu0 %v5660
    %5767 = vmatprep.subr.mxu0 0.0
    %5768 = vmatpush1.msra.mxu0 0.0
    %5769 = vmatprep.subr.mxu0 0.0
    %5770 = vmatpush1.msra.mxu0 0.0
    %5771 = vmatprep.subr.mxu0 0.0
    %5772 = vmatpush1.msra.mxu0 0.0
    %5773 = vmatprep.subr.mxu0 0.0
    %5774 = vmatpush1.msra.mxu0 0.0
    %5775 = vmatprep.subr.mxu0 0.0
    %5776 = vmatpush1.msra.mxu0 0.0
    %5777 = vmatprep.subr.mxu0 0.0
    %5778 = vmatpush1.msra.mxu0 0.0
    %5779 = vmatprep.subr.mxu0 0.0
    %5780 = vmatpush1.msra.mxu0 0.0
    %5781 = vmatprep.subr.mxu0 0.0
    %5782 = vmatpush1.msra.mxu0 0.0
    %5783 = vmatprep.subr.mxu0 0.0
    %5784 = vmatpush1.msra.mxu0 0.0
    %5785 = vmatprep.subr.mxu0 0.0
    %5786 = vmatpush1.msra.mxu0 0.0
    %5787 = vmatprep.subr.mxu0 0.0
    %5788 = vmatpush1.msra.mxu0 0.0
    %5789 = vmatprep.subr.mxu0 0.0
    %5790 = vmatpush1.msra.mxu0 0.0
    %5791 = vmatprep.subr.mxu0 0.0
    %5792 = vmatpush1.msra.mxu0 0.0
    %5793 = vmatprep.subr.mxu0 0.0
    %5794 = vmatpush1.msra.mxu0 0.0
    %5795 = vmatprep.subr.mxu0 0.0
    %5796 = vmatpush1.msra.mxu0 0.0
    %5797 = vmatprep.subr.mxu0 0.0
    %5798 = vmatpush1.msra.mxu0 0.0
    %5799 = vmatprep.subr.mxu0 0.0
    %5800 = vmatpush1.msra.mxu0 0.0
    %5801 = vmatprep.subr.mxu0 0.0
    %5802 = vmatpush1.msra.mxu0 0.0
    %5803 = vmatprep.subr.mxu0 0.0
    %5804 = vmatpush1.msra.mxu0 0.0
    %5805 = vmatprep.subr.mxu0 0.0
    %5806 = vmatpush1.msra.mxu0 0.0
    %5807 = vmatprep.subr.mxu0 0.0
    %5808 = vmatpush1.msra.mxu0 0.0
    %5809 = vmatprep.subr.mxu0 0.0
    %5810 = vmatpush1.msra.mxu0 0.0
    %5811 = vmatprep.subr.mxu0 0.0
    %5812 = vmatpush1.msra.mxu0 0.0
    %5813 = vmatprep.subr.mxu0 0.0
    %5814 = vmatpush1.msra.mxu0 0.0
    %5815 = vmatprep.mubr.f32.mxu0 0.0
    %5816 = vmatmul.mubr.f32.gmra.mrb[0].mxu0 %v5749
    %v5817 = vpop.f32.mrb[0].mxu0
    %v5818 = vadd.f32 %v5744, %v5817
    %v5819 = vpop.f32.mrb[0].mxu0
    %5820 = vdwg.mxu0
    %s5821 = scalar_lea.vmem %s10, 128
    %v5822 = vld [vmem:[%s5821] sm:$0xff]
    %v5823 = vld [vmem:[%s5821 + $0x8] sm:$0xff]
    %v5824 = vld [vmem:[%s5821 + $0x10] sm:$0xff]
    %v5825 = vld [vmem:[%s5821 + $0x18] sm:$0xff]
    %v5826 = vld [vmem:[%s5821 + $0x20] sm:$0xff]
    %v5827 = vld [vmem:[%s5821 + $0x28] sm:$0xff]
    %v5828 = vld [vmem:[%s5821 + $0x30] sm:$0xff]
    %v5829 = vld [vmem:[%s5821 + $0x38] sm:$0xff]
    %v5830 = vrot.slane %v2977, 2
    %v5831 = vrot.slane %v5649, 1
    %v5832 = vsel %vm5673, %v5831, %v5830
    %v5833 = vsel %vm166, %v5832, 0
    %5835 = vmatprep.subr.mxu0 0.0
    %5836 = vmatpush1.msra.mxu0 %v5822
    %5837 = vmatprep.subr.mxu0 0.0
    %5838 = vmatpush1.msra.mxu0 %v5823
    %5839 = vmatprep.subr.mxu0 0.0
    %5840 = vmatpush1.msra.mxu0 %v5824
    %5841 = vmatprep.subr.mxu0 0.0
    %5842 = vmatpush1.msra.mxu0 %v5825
    %5843 = vmatprep.subr.mxu0 0.0
    %5844 = vmatpush1.msra.mxu0 %v5826
    %5845 = vmatprep.subr.mxu0 0.0
    %5846 = vmatpush1.msra.mxu0 %v5827
    %5847 = vmatprep.subr.mxu0 0.0
    %5848 = vmatpush1.msra.mxu0 %v5828
    %5849 = vmatprep.subr.mxu0 0.0
    %5850 = vmatpush1.msra.mxu0 %v5829
    %5851 = vmatprep.subr.mxu0 0.0
    %5852 = vmatpush1.msra.mxu0 0.0
    %5853 = vmatprep.subr.mxu0 0.0
    %5854 = vmatpush1.msra.mxu0 0.0
    %5855 = vmatprep.subr.mxu0 0.0
    %5856 = vmatpush1.msra.mxu0 0.0
    %5857 = vmatprep.subr.mxu0 0.0
    %5858 = vmatpush1.msra.mxu0 0.0
    %5859 = vmatprep.subr.mxu0 0.0
    %5860 = vmatpush1.msra.mxu0 0.0
    %5861 = vmatprep.subr.mxu0 0.0
    %5862 = vmatpush1.msra.mxu0 0.0
    %5863 = vmatprep.subr.mxu0 0.0
    %5864 = vmatpush1.msra.mxu0 0.0
    %5865 = vmatprep.subr.mxu0 0.0
    %5866 = vmatpush1.msra.mxu0 0.0
    %5867 = vmatprep.subr.mxu0 0.0
    %5868 = vmatpush1.msra.mxu0 0.0
    %5869 = vmatprep.subr.mxu0 0.0
    %5870 = vmatpush1.msra.mxu0 0.0
    %5871 = vmatprep.subr.mxu0 0.0
    %5872 = vmatpush1.msra.mxu0 0.0
    %5873 = vmatprep.subr.mxu0 0.0
    %5874 = vmatpush1.msra.mxu0 0.0
    %5875 = vmatprep.subr.mxu0 0.0
    %5876 = vmatpush1.msra.mxu0 0.0
    %5877 = vmatprep.subr.mxu0 0.0
    %5878 = vmatpush1.msra.mxu0 0.0
    %5879 = vmatprep.subr.mxu0 0.0
    %5880 = vmatpush1.msra.mxu0 0.0
    %5881 = vmatprep.subr.mxu0 0.0
    %5882 = vmatpush1.msra.mxu0 0.0
    %5883 = vmatprep.subr.mxu0 0.0
    %5884 = vmatpush1.msra.mxu0 0.0
    %5885 = vmatprep.subr.mxu0 0.0
    %5886 = vmatpush1.msra.mxu0 0.0
    %5887 = vmatprep.subr.mxu0 0.0
    %5888 = vmatpush1.msra.mxu0 0.0
    %5889 = vmatprep.subr.mxu0 0.0
    %5890 = vmatpush1.msra.mxu0 0.0
    %5891 = vmatprep.subr.mxu0 0.0
    %5892 = vmatpush1.msra.mxu0 0.0
    %5893 = vmatprep.subr.mxu0 0.0
    %5894 = vmatpush1.msra.mxu0 0.0
    %5895 = vmatprep.subr.mxu0 0.0
    %5896 = vmatpush1.msra.mxu0 0.0
    %5897 = vmatprep.subr.mxu0 0.0
    %5898 = vmatpush1.msra.mxu0 0.0
    %5899 = vmatprep.mubr.f32.mxu0 0.0
    %5900 = vmatmul.mubr.f32.gmra.mrb[0].mxu0 %v5833
    %v5901 = vpop.f32.mrb[0].mxu0
    %v5902 = vadd.f32 0.0, %v5901
    %v5903 = vpop.f32.mrb[0].mxu0
    %5904 = vdwg.mxu0
    %v5905 = vadd.f32 %v5818, %v5902
    %s5906 = scalar_lea.vmem %s10, 192
    %v5907 = vld [vmem:[%s5906] sm:$0xff]
    %v5908 = vld [vmem:[%s5906 + $0x8] sm:$0xff]
    %v5909 = vld [vmem:[%s5906 + $0x10] sm:$0xff]
    %v5910 = vld [vmem:[%s5906 + $0x18] sm:$0xff]
    %v5911 = vld [vmem:[%s5906 + $0x20] sm:$0xff]
    %v5912 = vld [vmem:[%s5906 + $0x28] sm:$0xff]
    %v5913 = vld [vmem:[%s5906 + $0x30] sm:$0xff]
    %v5914 = vld [vmem:[%s5906 + $0x38] sm:$0xff]
    %v5915 = vrot.slane %v2977, 3
    %v5916 = vrot.slane %v5649, 2
    %v5917 = vsel %vm5673, %v5916, %v5915
    %v5918 = vsel %vm166, %v5917, 0
    %5920 = vmatprep.subr.mxu0 0.0
    %5921 = vmatpush1.msra.mxu0 %v5907
    %5922 = vmatprep.subr.mxu0 0.0
    %5923 = vmatpush1.msra.mxu0 %v5908
    %5924 = vmatprep.subr.mxu0 0.0
    %5925 = vmatpush1.msra.mxu0 %v5909
    %5926 = vmatprep.subr.mxu0 0.0
    %5927 = vmatpush1.msra.mxu0 %v5910
    %5928 = vmatprep.subr.mxu0 0.0
    %5929 = vmatpush1.msra.mxu0 %v5911
    %5930 = vmatprep.subr.mxu0 0.0
    %5931 = vmatpush1.msra.mxu0 %v5912
    %5932 = vmatprep.subr.mxu0 0.0
    %5933 = vmatpush1.msra.mxu0 %v5913
    %5934 = vmatprep.subr.mxu0 0.0
    %5935 = vmatpush1.msra.mxu0 %v5914
    %5936 = vmatprep.subr.mxu0 0.0
    %5937 = vmatpush1.msra.mxu0 0.0
    %5938 = vmatprep.subr.mxu0 0.0
    %5939 = vmatpush1.msra.mxu0 0.0
    %5940 = vmatprep.subr.mxu0 0.0
    %5941 = vmatpush1.msra.mxu0 0.0
    %5942 = vmatprep.subr.mxu0 0.0
    %5943 = vmatpush1.msra.mxu0 0.0
    %5944 = vmatprep.subr.mxu0 0.0
    %5945 = vmatpush1.msra.mxu0 0.0
    %5946 = vmatprep.subr.mxu0 0.0
    %5947 = vmatpush1.msra.mxu0 0.0
    %5948 = vmatprep.subr.mxu0 0.0
    %5949 = vmatpush1.msra.mxu0 0.0
    %5950 = vmatprep.subr.mxu0 0.0
    %5951 = vmatpush1.msra.mxu0 0.0
    %5952 = vmatprep.subr.mxu0 0.0
    %5953 = vmatpush1.msra.mxu0 0.0
    %5954 = vmatprep.subr.mxu0 0.0
    %5955 = vmatpush1.msra.mxu0 0.0
    %5956 = vmatprep.subr.mxu0 0.0
    %5957 = vmatpush1.msra.mxu0 0.0
    %5958 = vmatprep.subr.mxu0 0.0
    %5959 = vmatpush1.msra.mxu0 0.0
    %5960 = vmatprep.subr.mxu0 0.0
    %5961 = vmatpush1.msra.mxu0 0.0
    %5962 = vmatprep.subr.mxu0 0.0
    %5963 = vmatpush1.msra.mxu0 0.0
    %5964 = vmatprep.subr.mxu0 0.0
    %5965 = vmatpush1.msra.mxu0 0.0
    %5966 = vmatprep.subr.mxu0 0.0
    %5967 = vmatpush1.msra.mxu0 0.0
    %5968 = vmatprep.subr.mxu0 0.0
    %5969 = vmatpush1.msra.mxu0 0.0
    %5970 = vmatprep.subr.mxu0 0.0
    %5971 = vmatpush1.msra.mxu0 0.0
    %5972 = vmatprep.subr.mxu0 0.0
    %5973 = vmatpush1.msra.mxu0 0.0
    %5974 = vmatprep.subr.mxu0 0.0
    %5975 = vmatpush1.msra.mxu0 0.0
    %5976 = vmatprep.subr.mxu0 0.0
    %5977 = vmatpush1.msra.mxu0 0.0
    %5978 = vmatprep.subr.mxu0 0.0
    %5979 = vmatpush1.msra.mxu0 0.0
    %5980 = vmatprep.subr.mxu0 0.0
    %5981 = vmatpush1.msra.mxu0 0.0
    %5982 = vmatprep.subr.mxu0 0.0
    %5983 = vmatpush1.msra.mxu0 0.0
    %5984 = vmatprep.mubr.f32.mxu0 0.0
    %5985 = vmatmul.mubr.f32.gmra.mrb[0].mxu0 %v5918
    %v5986 = vpop.f32.mrb[0].mxu0
    %v5987 = vadd.f32 0.0, %v5986
    %v5988 = vpop.f32.mrb[0].mxu0
    %5989 = vdwg.mxu0
    %v5990 = vadd.f32 %v5905, %v5987
    %s5991 = scalar_lea.vmem %s10, 256
    %v5992 = vld [vmem:[%s5991] sm:$0xff]
    %v5993 = vld [vmem:[%s5991 + $0x8] sm:$0xff]
    %v5994 = vld [vmem:[%s5991 + $0x10] sm:$0xff]
    %v5995 = vld [vmem:[%s5991 + $0x18] sm:$0xff]
    %v5996 = vld [vmem:[%s5991 + $0x20] sm:$0xff]
    %v5997 = vld [vmem:[%s5991 + $0x28] sm:$0xff]
    %v5998 = vld [vmem:[%s5991 + $0x30] sm:$0xff]
    %v5999 = vld [vmem:[%s5991 + $0x38] sm:$0xff]
    %v6000 = vrot.slane %v2977, 4
    %v6001 = vrot.slane %v5649, 3
    %v6002 = vsel %vm5673, %v6001, %v6000
    %v6003 = vsel %vm166, %v6002, 0
    %6005 = vmatprep.subr.mxu0 0.0
    %6006 = vmatpush1.msra.mxu0 %v5992
    %6007 = vmatprep.subr.mxu0 0.0
    %6008 = vmatpush1.msra.mxu0 %v5993
    %6009 = vmatprep.subr.mxu0 0.0
    %6010 = vmatpush1.msra.mxu0 %v5994
    %6011 = vmatprep.subr.mxu0 0.0
    %6012 = vmatpush1.msra.mxu0 %v5995
    %6013 = vmatprep.subr.mxu0 0.0
    %6014 = vmatpush1.msra.mxu0 %v5996
    %6015 = vmatprep.subr.mxu0 0.0
    %6016 = vmatpush1.msra.mxu0 %v5997
    %6017 = vmatprep.subr.mxu0 0.0
    %6018 = vmatpush1.msra.mxu0 %v5998
    %6019 = vmatprep.subr.mxu0 0.0
    %6020 = vmatpush1.msra.mxu0 %v5999
    %6021 = vmatprep.subr.mxu0 0.0
    %6022 = vmatpush1.msra.mxu0 0.0
    %6023 = vmatprep.subr.mxu0 0.0
    %6024 = vmatpush1.msra.mxu0 0.0
    %6025 = vmatprep.subr.mxu0 0.0
    %6026 = vmatpush1.msra.mxu0 0.0
    %6027 = vmatprep.subr.mxu0 0.0
    %6028 = vmatpush1.msra.mxu0 0.0
    %6029 = vmatprep.subr.mxu0 0.0
    %6030 = vmatpush1.msra.mxu0 0.0
    %6031 = vmatprep.subr.mxu0 0.0
    %6032 = vmatpush1.msra.mxu0 0.0
    %6033 = vmatprep.subr.mxu0 0.0
    %6034 = vmatpush1.msra.mxu0 0.0
    %6035 = vmatprep.subr.mxu0 0.0
    %6036 = vmatpush1.msra.mxu0 0.0
    %6037 = vmatprep.subr.mxu0 0.0
    %6038 = vmatpush1.msra.mxu0 0.0
    %6039 = vmatprep.subr.mxu0 0.0
    %6040 = vmatpush1.msra.mxu0 0.0
    %6041 = vmatprep.subr.mxu0 0.0
    %6042 = vmatpush1.msra.mxu0 0.0
    %6043 = vmatprep.subr.mxu0 0.0
    %6044 = vmatpush1.msra.mxu0 0.0
    %6045 = vmatprep.subr.mxu0 0.0
    %6046 = vmatpush1.msra.mxu0 0.0
    %6047 = vmatprep.subr.mxu0 0.0
    %6048 = vmatpush1.msra.mxu0 0.0
    %6049 = vmatprep.subr.mxu0 0.0
    %6050 = vmatpush1.msra.mxu0 0.0
    %6051 = vmatprep.subr.mxu0 0.0
    %6052 = vmatpush1.msra.mxu0 0.0
    %6053 = vmatprep.subr.mxu0 0.0
    %6054 = vmatpush1.msra.mxu0 0.0
    %6055 = vmatprep.subr.mxu0 0.0
    %6056 = vmatpush1.msra.mxu0 0.0
    %6057 = vmatprep.subr.mxu0 0.0
    %6058 = vmatpush1.msra.mxu0 0.0
    %6059 = vmatprep.subr.mxu0 0.0
    %6060 = vmatpush1.msra.mxu0 0.0
    %6061 = vmatprep.subr.mxu0 0.0
    %6062 = vmatpush1.msra.mxu0 0.0
    %6063 = vmatprep.subr.mxu0 0.0
    %6064 = vmatpush1.msra.mxu0 0.0
    %6065 = vmatprep.subr.mxu0 0.0
    %6066 = vmatpush1.msra.mxu0 0.0
    %6067 = vmatprep.subr.mxu0 0.0
    %6068 = vmatpush1.msra.mxu0 0.0
    %6069 = vmatprep.mubr.f32.mxu0 0.0
    %6070 = vmatmul.mubr.f32.gmra.mrb[0].mxu0 %v6003
    %v6071 = vpop.f32.mrb[0].mxu0
    %v6072 = vadd.f32 0.0, %v6071
    %v6073 = vpop.f32.mrb[0].mxu0
    %6074 = vdwg.mxu0
    %v6075 = vadd.f32 %v5990, %v6072
    %s6076 = scalar_lea.vmem %s10, 320
    %v6077 = vld [vmem:[%s6076] sm:$0xff]
    %v6078 = vld [vmem:[%s6076 + $0x8] sm:$0xff]
    %v6079 = vld [vmem:[%s6076 + $0x10] sm:$0xff]
    %v6080 = vld [vmem:[%s6076 + $0x18] sm:$0xff]
    %v6081 = vld [vmem:[%s6076 + $0x20] sm:$0xff]
    %v6082 = vld [vmem:[%s6076 + $0x28] sm:$0xff]
    %v6083 = vld [vmem:[%s6076 + $0x30] sm:$0xff]
    %v6084 = vld [vmem:[%s6076 + $0x38] sm:$0xff]
    %v6085 = vrot.slane %v2977, 5
    %v6086 = vrot.slane %v5649, 4
    %v6087 = vsel %vm5673, %v6086, %v6085
    %v6088 = vsel %vm166, %v6087, 0
    %6090 = vmatprep.subr.mxu0 0.0
    %6091 = vmatpush1.msra.mxu0 %v6077
    %6092 = vmatprep.subr.mxu0 0.0
    %6093 = vmatpush1.msra.mxu0 %v6078
    %6094 = vmatprep.subr.mxu0 0.0
    %6095 = vmatpush1.msra.mxu0 %v6079
    %6096 = vmatprep.subr.mxu0 0.0
    %6097 = vmatpush1.msra.mxu0 %v6080
    %6098 = vmatprep.subr.mxu0 0.0
    %6099 = vmatpush1.msra.mxu0 %v6081
    %6100 = vmatprep.subr.mxu0 0.0
    %6101 = vmatpush1.msra.mxu0 %v6082
    %6102 = vmatprep.subr.mxu0 0.0
    %6103 = vmatpush1.msra.mxu0 %v6083
    %6104 = vmatprep.subr.mxu0 0.0
    %6105 = vmatpush1.msra.mxu0 %v6084
    %6106 = vmatprep.subr.mxu0 0.0
    %6107 = vmatpush1.msra.mxu0 0.0
    %6108 = vmatprep.subr.mxu0 0.0
    %6109 = vmatpush1.msra.mxu0 0.0
    %6110 = vmatprep.subr.mxu0 0.0
    %6111 = vmatpush1.msra.mxu0 0.0
    %6112 = vmatprep.subr.mxu0 0.0
    %6113 = vmatpush1.msra.mxu0 0.0
    %6114 = vmatprep.subr.mxu0 0.0
    %6115 = vmatpush1.msra.mxu0 0.0
    %6116 = vmatprep.subr.mxu0 0.0
    %6117 = vmatpush1.msra.mxu0 0.0
    %6118 = vmatprep.subr.mxu0 0.0
    %6119 = vmatpush1.msra.mxu0 0.0
    %6120 = vmatprep.subr.mxu0 0.0
    %6121 = vmatpush1.msra.mxu0 0.0
    %6122 = vmatprep.subr.mxu0 0.0
    %6123 = vmatpush1.msra.mxu0 0.0
    %6124 = vmatprep.subr.mxu0 0.0
    %6125 = vmatpush1.msra.mxu0 0.0
    %6126 = vmatprep.subr.mxu0 0.0
    %6127 = vmatpush1.msra.mxu0 0.0
    %6128 = vmatprep.subr.mxu0 0.0
    %6129 = vmatpush1.msra.mxu0 0.0
    %6130 = vmatprep.subr.mxu0 0.0
    %6131 = vmatpush1.msra.mxu0 0.0
    %6132 = vmatprep.subr.mxu0 0.0
    %6133 = vmatpush1.msra.mxu0 0.0
    %6134 = vmatprep.subr.mxu0 0.0
    %6135 = vmatpush1.msra.mxu0 0.0
    %6136 = vmatprep.subr.mxu0 0.0
    %6137 = vmatpush1.msra.mxu0 0.0
    %6138 = vmatprep.subr.mxu0 0.0
    %6139 = vmatpush1.msra.mxu0 0.0
    %6140 = vmatprep.subr.mxu0 0.0
    %6141 = vmatpush1.msra.mxu0 0.0
    %6142 = vmatprep.subr.mxu0 0.0
    %6143 = vmatpush1.msra.mxu0 0.0
    %6144 = vmatprep.subr.mxu0 0.0
    %6145 = vmatpush1.msra.mxu0 0.0
    %6146 = vmatprep.subr.mxu0 0.0
    %6147 = vmatpush1.msra.mxu0 0.0
    %6148 = vmatprep.subr.mxu0 0.0
    %6149 = vmatpush1.msra.mxu0 0.0
    %6150 = vmatprep.subr.mxu0 0.0
    %6151 = vmatpush1.msra.mxu0 0.0
    %6152 = vmatprep.subr.mxu0 0.0
    %6153 = vmatpush1.msra.mxu0 0.0
    %6154 = vmatprep.mubr.f32.mxu0 0.0
    %6155 = vmatmul.mubr.f32.gmra.mrb[0].mxu0 %v6088
    %v6156 = vpop.f32.mrb[0].mxu0
    %v6157 = vadd.f32 0.0, %v6156
    %v6158 = vpop.f32.mrb[0].mxu0
    %6159 = vdwg.mxu0
    %v6160 = vadd.f32 %v6075, %v6157
    %s6161 = scalar_lea.vmem %s10, 384
    %v6162 = vld [vmem:[%s6161] sm:$0xff]
    %v6163 = vld [vmem:[%s6161 + $0x8] sm:$0xff]
    %v6164 = vld [vmem:[%s6161 + $0x10] sm:$0xff]
    %v6165 = vld [vmem:[%s6161 + $0x18] sm:$0xff]
    %v6166 = vld [vmem:[%s6161 + $0x20] sm:$0xff]
    %v6167 = vld [vmem:[%s6161 + $0x28] sm:$0xff]
    %v6168 = vld [vmem:[%s6161 + $0x30] sm:$0xff]
    %v6169 = vld [vmem:[%s6161 + $0x38] sm:$0xff]
    %v6170 = vrot.slane %v2977, 6
    %v6171 = vrot.slane %v5649, 5
    %v6172 = vsel %vm5673, %v6171, %v6170
    %v6173 = vsel %vm166, %v6172, 0
    %6175 = vmatprep.subr.mxu0 0.0
    %6176 = vmatpush1.msra.mxu0 %v6162
    %6177 = vmatprep.subr.mxu0 0.0
    %6178 = vmatpush1.msra.mxu0 %v6163
    %6179 = vmatprep.subr.mxu0 0.0
    %6180 = vmatpush1.msra.mxu0 %v6164
    %6181 = vmatprep.subr.mxu0 0.0
    %6182 = vmatpush1.msra.mxu0 %v6165
    %6183 = vmatprep.subr.mxu0 0.0
    %6184 = vmatpush1.msra.mxu0 %v6166
    %6185 = vmatprep.subr.mxu0 0.0
    %6186 = vmatpush1.msra.mxu0 %v6167
    %6187 = vmatprep.subr.mxu0 0.0
    %6188 = vmatpush1.msra.mxu0 %v6168
    %6189 = vmatprep.subr.mxu0 0.0
    %6190 = vmatpush1.msra.mxu0 %v6169
    %6191 = vmatprep.subr.mxu0 0.0
    %6192 = vmatpush1.msra.mxu0 0.0
    %6193 = vmatprep.subr.mxu0 0.0
    %6194 = vmatpush1.msra.mxu0 0.0
    %6195 = vmatprep.subr.mxu0 0.0
    %6196 = vmatpush1.msra.mxu0 0.0
    %6197 = vmatprep.subr.mxu0 0.0
    %6198 = vmatpush1.msra.mxu0 0.0
    %6199 = vmatprep.subr.mxu0 0.0
    %6200 = vmatpush1.msra.mxu0 0.0
    %6201 = vmatprep.subr.mxu0 0.0
    %6202 = vmatpush1.msra.mxu0 0.0
    %6203 = vmatprep.subr.mxu0 0.0
    %6204 = vmatpush1.msra.mxu0 0.0
    %6205 = vmatprep.subr.mxu0 0.0
    %6206 = vmatpush1.msra.mxu0 0.0
    %6207 = vmatprep.subr.mxu0 0.0
    %6208 = vmatpush1.msra.mxu0 0.0
    %6209 = vmatprep.subr.mxu0 0.0
    %6210 = vmatpush1.msra.mxu0 0.0
    %6211 = vmatprep.subr.mxu0 0.0
    %6212 = vmatpush1.msra.mxu0 0.0
    %6213 = vmatprep.subr.mxu0 0.0
    %6214 = vmatpush1.msra.mxu0 0.0
    %6215 = vmatprep.subr.mxu0 0.0
    %6216 = vmatpush1.msra.mxu0 0.0
    %6217 = vmatprep.subr.mxu0 0.0
    %6218 = vmatpush1.msra.mxu0 0.0
    %6219 = vmatprep.subr.mxu0 0.0
    %6220 = vmatpush1.msra.mxu0 0.0
    %6221 = vmatprep.subr.mxu0 0.0
    %6222 = vmatpush1.msra.mxu0 0.0
    %6223 = vmatprep.subr.mxu0 0.0
    %6224 = vmatpush1.msra.mxu0 0.0
    %6225 = vmatprep.subr.mxu0 0.0
    %6226 = vmatpush1.msra.mxu0 0.0
    %6227 = vmatprep.subr.mxu0 0.0
    %6228 = vmatpush1.msra.mxu0 0.0
    %6229 = vmatprep.subr.mxu0 0.0
    %6230 = vmatpush1.msra.mxu0 0.0
    %6231 = vmatprep.subr.mxu0 0.0
    %6232 = vmatpush1.msra.mxu0 0.0
    %6233 = vmatprep.subr.mxu0 0.0
    %6234 = vmatpush1.msra.mxu0 0.0
    %6235 = vmatprep.subr.mxu0 0.0
    %6236 = vmatpush1.msra.mxu0 0.0
    %6237 = vmatprep.subr.mxu0 0.0
    %6238 = vmatpush1.msra.mxu0 0.0
    %6239 = vmatprep.mubr.f32.mxu0 0.0
    %6240 = vmatmul.mubr.f32.gmra.mrb[0].mxu0 %v6173
    %v6241 = vpop.f32.mrb[0].mxu0
    %v6242 = vadd.f32 0.0, %v6241
    %v6243 = vpop.f32.mrb[0].mxu0
    %6244 = vdwg.mxu0
    %v6245 = vadd.f32 %v6160, %v6242
    %s6246 = scalar_lea.vmem %s10, 448
    %v6247 = vld [vmem:[%s6246] sm:$0xff]
    %v6248 = vld [vmem:[%s6246 + $0x8] sm:$0xff]
    %v6249 = vld [vmem:[%s6246 + $0x10] sm:$0xff]
    %v6250 = vld [vmem:[%s6246 + $0x18] sm:$0xff]
    %v6251 = vld [vmem:[%s6246 + $0x20] sm:$0xff]
    %v6252 = vld [vmem:[%s6246 + $0x28] sm:$0xff]
    %v6253 = vld [vmem:[%s6246 + $0x30] sm:$0xff]
    %v6254 = vld [vmem:[%s6246 + $0x38] sm:$0xff]
    %v6255 = vrot.slane %v2977, 7
    %v6256 = vrot.slane %v5649, 6
    %v6257 = vsel %vm5673, %v6256, %v6255
    %v6258 = vsel %vm166, %v6257, 0
    %6260 = vmatprep.subr.mxu0 0.0
    %6261 = vmatpush1.msra.mxu0 %v6247
    %6262 = vmatprep.subr.mxu0 0.0
    %6263 = vmatpush1.msra.mxu0 %v6248
    %6264 = vmatprep.subr.mxu0 0.0
    %6265 = vmatpush1.msra.mxu0 %v6249
    %6266 = vmatprep.subr.mxu0 0.0
    %6267 = vmatpush1.msra.mxu0 %v6250
    %6268 = vmatprep.subr.mxu0 0.0
    %6269 = vmatpush1.msra.mxu0 %v6251
    %6270 = vmatprep.subr.mxu0 0.0
    %6271 = vmatpush1.msra.mxu0 %v6252
    %6272 = vmatprep.subr.mxu0 0.0
    %6273 = vmatpush1.msra.mxu0 %v6253
    %6274 = vmatprep.subr.mxu0 0.0
    %6275 = vmatpush1.msra.mxu0 %v6254
    %6276 = vmatprep.subr.mxu0 0.0
    %6277 = vmatpush1.msra.mxu0 0.0
    %6278 = vmatprep.subr.mxu0 0.0
    %6279 = vmatpush1.msra.mxu0 0.0
    %6280 = vmatprep.subr.mxu0 0.0
    %6281 = vmatpush1.msra.mxu0 0.0
    %6282 = vmatprep.subr.mxu0 0.0
    %6283 = vmatpush1.msra.mxu0 0.0
    %6284 = vmatprep.subr.mxu0 0.0
    %6285 = vmatpush1.msra.mxu0 0.0
    %6286 = vmatprep.subr.mxu0 0.0
    %6287 = vmatpush1.msra.mxu0 0.0
    %6288 = vmatprep.subr.mxu0 0.0
    %6289 = vmatpush1.msra.mxu0 0.0
    %6290 = vmatprep.subr.mxu0 0.0
    %6291 = vmatpush1.msra.mxu0 0.0
    %6292 = vmatprep.subr.mxu0 0.0
    %6293 = vmatpush1.msra.mxu0 0.0
    %6294 = vmatprep.subr.mxu0 0.0
    %6295 = vmatpush1.msra.mxu0 0.0
    %6296 = vmatprep.subr.mxu0 0.0
    %6297 = vmatpush1.msra.mxu0 0.0
    %6298 = vmatprep.subr.mxu0 0.0
    %6299 = vmatpush1.msra.mxu0 0.0
    %6300 = vmatprep.subr.mxu0 0.0
    %6301 = vmatpush1.msra.mxu0 0.0
    %6302 = vmatprep.subr.mxu0 0.0
    %6303 = vmatpush1.msra.mxu0 0.0
    %6304 = vmatprep.subr.mxu0 0.0
    %6305 = vmatpush1.msra.mxu0 0.0
    %6306 = vmatprep.subr.mxu0 0.0
    %6307 = vmatpush1.msra.mxu0 0.0
    %6308 = vmatprep.subr.mxu0 0.0
    %6309 = vmatpush1.msra.mxu0 0.0
    %6310 = vmatprep.subr.mxu0 0.0
    %6311 = vmatpush1.msra.mxu0 0.0
    %6312 = vmatprep.subr.mxu0 0.0
    %6313 = vmatpush1.msra.mxu0 0.0
    %6314 = vmatprep.subr.mxu0 0.0
    %6315 = vmatpush1.msra.mxu0 0.0
    %6316 = vmatprep.subr.mxu0 0.0
    %6317 = vmatpush1.msra.mxu0 0.0
    %6318 = vmatprep.subr.mxu0 0.0
    %6319 = vmatpush1.msra.mxu0 0.0
    %6320 = vmatprep.subr.mxu0 0.0
    %6321 = vmatpush1.msra.mxu0 0.0
    %6322 = vmatprep.subr.mxu0 0.0
    %6323 = vmatpush1.msra.mxu0 0.0
    %6324 = vmatprep.mubr.f32.mxu0 0.0
    %6325 = vmatmul.mubr.f32.gmra.mrb[0].mxu0 %v6258
    %v6326 = vpop.f32.mrb[0].mxu0
    %v6327 = vadd.f32 0.0, %v6326
    %v6328 = vpop.f32.mrb[0].mxu0
    %6329 = vdwg.mxu0
    %v6330 = vadd.f32 %v6245, %v6327
    %s6331 = scalar_lea.vmem %s10, 512
    %v6332 = vld [vmem:[%s6331] sm:$0xff]
    %v6333 = vld [vmem:[%s6331 + $0x8] sm:$0xff]
    %v6334 = vld [vmem:[%s6331 + $0x10] sm:$0xff]
    %v6335 = vld [vmem:[%s6331 + $0x18] sm:$0xff]
    %v6336 = vld [vmem:[%s6331 + $0x20] sm:$0xff]
    %v6337 = vld [vmem:[%s6331 + $0x28] sm:$0xff]
    %v6338 = vld [vmem:[%s6331 + $0x30] sm:$0xff]
    %v6339 = vld [vmem:[%s6331 + $0x38] sm:$0xff]
    %v6342 = vrot.slane %v5650, 7
    %v6343 = vsel %vm5673, %v6342, %v2978
    %v6344 = vsel %vm166, %v6343, 0
    %6346 = vmatprep.subr.mxu0 0.0
    %6347 = vmatpush1.msra.mxu0 %v6332
    %6348 = vmatprep.subr.mxu0 0.0
    %6349 = vmatpush1.msra.mxu0 %v6333
    %6350 = vmatprep.subr.mxu0 0.0
    %6351 = vmatpush1.msra.mxu0 %v6334
    %6352 = vmatprep.subr.mxu0 0.0
    %6353 = vmatpush1.msra.mxu0 %v6335
    %6354 = vmatprep.subr.mxu0 0.0
    %6355 = vmatpush1.msra.mxu0 %v6336
    %6356 = vmatprep.subr.mxu0 0.0
    %6357 = vmatpush1.msra.mxu0 %v6337
    %6358 = vmatprep.subr.mxu0 0.0
    %6359 = vmatpush1.msra.mxu0 %v6338
    %6360 = vmatprep.subr.mxu0 0.0
    %6361 = vmatpush1.msra.mxu0 %v6339
    %6362 = vmatprep.subr.mxu0 0.0
    %6363 = vmatpush1.msra.mxu0 0.0
    %6364 = vmatprep.subr.mxu0 0.0
    %6365 = vmatpush1.msra.mxu0 0.0
    %6366 = vmatprep.subr.mxu0 0.0
    %6367 = vmatpush1.msra.mxu0 0.0
    %6368 = vmatprep.subr.mxu0 0.0
    %6369 = vmatpush1.msra.mxu0 0.0
    %6370 = vmatprep.subr.mxu0 0.0
    %6371 = vmatpush1.msra.mxu0 0.0
    %6372 = vmatprep.subr.mxu0 0.0
    %6373 = vmatpush1.msra.mxu0 0.0
    %6374 = vmatprep.subr.mxu0 0.0
    %6375 = vmatpush1.msra.mxu0 0.0
    %6376 = vmatprep.subr.mxu0 0.0
    %6377 = vmatpush1.msra.mxu0 0.0
    %6378 = vmatprep.subr.mxu0 0.0
    %6379 = vmatpush1.msra.mxu0 0.0
    %6380 = vmatprep.subr.mxu0 0.0
    %6381 = vmatpush1.msra.mxu0 0.0
    %6382 = vmatprep.subr.mxu0 0.0
    %6383 = vmatpush1.msra.mxu0 0.0
    %6384 = vmatprep.subr.mxu0 0.0
    %6385 = vmatpush1.msra.mxu0 0.0
    %6386 = vmatprep.subr.mxu0 0.0
    %6387 = vmatpush1.msra.mxu0 0.0
    %6388 = vmatprep.subr.mxu0 0.0
    %6389 = vmatpush1.msra.mxu0 0.0
    %6390 = vmatprep.subr.mxu0 0.0
    %6391 = vmatpush1.msra.mxu0 0.0
    %6392 = vmatprep.subr.mxu0 0.0
    %6393 = vmatpush1.msra.mxu0 0.0
    %6394 = vmatprep.subr.mxu0 0.0
    %6395 = vmatpush1.msra.mxu0 0.0
    %6396 = vmatprep.subr.mxu0 0.0
    %6397 = vmatpush1.msra.mxu0 0.0
    %6398 = vmatprep.subr.mxu0 0.0
    %6399 = vmatpush1.msra.mxu0 0.0
    %6400 = vmatprep.subr.mxu0 0.0
    %6401 = vmatpush1.msra.mxu0 0.0
    %6402 = vmatprep.subr.mxu0 0.0
    %6403 = vmatpush1.msra.mxu0 0.0
    %6404 = vmatprep.subr.mxu0 0.0
    %6405 = vmatpush1.msra.mxu0 0.0
    %6406 = vmatprep.subr.mxu0 0.0
    %6407 = vmatpush1.msra.mxu0 0.0
    %6408 = vmatprep.subr.mxu0 0.0
    %6409 = vmatpush1.msra.mxu0 0.0
    %6410 = vmatprep.mubr.f32.mxu0 0.0
    %6411 = vmatmul.mubr.f32.gmra.mrb[0].mxu0 %v6344
    %v6412 = vpop.f32.mrb[0].mxu0
    %v6413 = vadd.f32 0.0, %v6412
    %v6414 = vpop.f32.mrb[0].mxu0
    %6415 = vdwg.mxu0
    %v6416 = vadd.f32 %v6330, %v6413
    %s6417 = scalar_lea.vmem %s10, 576
    %v6418 = vld [vmem:[%s6417] sm:$0xff]
    %v6419 = vld [vmem:[%s6417 + $0x8] sm:$0xff]
    %v6420 = vld [vmem:[%s6417 + $0x10] sm:$0xff]
    %v6421 = vld [vmem:[%s6417 + $0x18] sm:$0xff]
    %v6422 = vld [vmem:[%s6417 + $0x20] sm:$0xff]
    %v6423 = vld [vmem:[%s6417 + $0x28] sm:$0xff]
    %v6424 = vld [vmem:[%s6417 + $0x30] sm:$0xff]
    %v6425 = vld [vmem:[%s6417 + $0x38] sm:$0xff]
    %v6426 = vrot.slane %v2978, 1
    %v6427 = vsel %vm5673, %v5650, %v6426
    %v6428 = vsel %vm166, %v6427, 0
    %6430 = vmatprep.subr.mxu0 0.0
    %6431 = vmatpush1.msra.mxu0 %v6418
    %6432 = vmatprep.subr.mxu0 0.0
    %6433 = vmatpush1.msra.mxu0 %v6419
    %6434 = vmatprep.subr.mxu0 0.0
    %6435 = vmatpush1.msra.mxu0 %v6420
    %6436 = vmatprep.subr.mxu0 0.0
    %6437 = vmatpush1.msra.mxu0 %v6421
    %6438 = vmatprep.subr.mxu0 0.0
    %6439 = vmatpush1.msra.mxu0 %v6422
    %6440 = vmatprep.subr.mxu0 0.0
    %6441 = vmatpush1.msra.mxu0 %v6423
    %6442 = vmatprep.subr.mxu0 0.0
    %6443 = vmatpush1.msra.mxu0 %v6424
    %6444 = vmatprep.subr.mxu0 0.0
    %6445 = vmatpush1.msra.mxu0 %v6425
    %6446 = vmatprep.subr.mxu0 0.0
    %6447 = vmatpush1.msra.mxu0 0.0
    %6448 = vmatprep.subr.mxu0 0.0
    %6449 = vmatpush1.msra.mxu0 0.0
    %6450 = vmatprep.subr.mxu0 0.0
    %6451 = vmatpush1.msra.mxu0 0.0
    %6452 = vmatprep.subr.mxu0 0.0
    %6453 = vmatpush1.msra.mxu0 0.0
    %6454 = vmatprep.subr.mxu0 0.0
    %6455 = vmatpush1.msra.mxu0 0.0
    %6456 = vmatprep.subr.mxu0 0.0
    %6457 = vmatpush1.msra.mxu0 0.0
    %6458 = vmatprep.subr.mxu0 0.0
    %6459 = vmatpush1.msra.mxu0 0.0
    %6460 = vmatprep.subr.mxu0 0.0
    %6461 = vmatpush1.msra.mxu0 0.0
    %6462 = vmatprep.subr.mxu0 0.0
    %6463 = vmatpush1.msra.mxu0 0.0
    %6464 = vmatprep.subr.mxu0 0.0
    %6465 = vmatpush1.msra.mxu0 0.0
    %6466 = vmatprep.subr.mxu0 0.0
    %6467 = vmatpush1.msra.mxu0 0.0
    %6468 = vmatprep.subr.mxu0 0.0
    %6469 = vmatpush1.msra.mxu0 0.0
    %6470 = vmatprep.subr.mxu0 0.0
    %6471 = vmatpush1.msra.mxu0 0.0
    %6472 = vmatprep.subr.mxu0 0.0
    %6473 = vmatpush1.msra.mxu0 0.0
    %6474 = vmatprep.subr.mxu0 0.0
    %6475 = vmatpush1.msra.mxu0 0.0
    %6476 = vmatprep.subr.mxu0 0.0
    %6477 = vmatpush1.msra.mxu0 0.0
    %6478 = vmatprep.subr.mxu0 0.0
    %6479 = vmatpush1.msra.mxu0 0.0
    %6480 = vmatprep.subr.mxu0 0.0
    %6481 = vmatpush1.msra.mxu0 0.0
    %6482 = vmatprep.subr.mxu0 0.0
    %6483 = vmatpush1.msra.mxu0 0.0
    %6484 = vmatprep.subr.mxu0 0.0
    %6485 = vmatpush1.msra.mxu0 0.0
    %6486 = vmatprep.subr.mxu0 0.0
    %6487 = vmatpush1.msra.mxu0 0.0
    %6488 = vmatprep.subr.mxu0 0.0
    %6489 = vmatpush1.msra.mxu0 0.0
    %6490 = vmatprep.subr.mxu0 0.0
    %6491 = vmatpush1.msra.mxu0 0.0
    %6492 = vmatprep.subr.mxu0 0.0
    %6493 = vmatpush1.msra.mxu0 0.0
    %6494 = vmatprep.mubr.f32.mxu0 0.0
    %6495 = vmatmul.mubr.f32.gmra.mrb[0].mxu0 %v6428
    %v6496 = vpop.f32.mrb[0].mxu0
    %v6497 = vadd.f32 0.0, %v6496
    %v6498 = vpop.f32.mrb[0].mxu0
    %6499 = vdwg.mxu0
    %v6500 = vadd.f32 %v6416, %v6497
    %s6501 = scalar_lea.vmem %s10, 640
    %v6502 = vld [vmem:[%s6501] sm:$0xff]
    %v6503 = vld [vmem:[%s6501 + $0x8] sm:$0xff]
    %v6504 = vld [vmem:[%s6501 + $0x10] sm:$0xff]
    %v6505 = vld [vmem:[%s6501 + $0x18] sm:$0xff]
    %v6506 = vld [vmem:[%s6501 + $0x20] sm:$0xff]
    %v6507 = vld [vmem:[%s6501 + $0x28] sm:$0xff]
    %v6508 = vld [vmem:[%s6501 + $0x30] sm:$0xff]
    %v6509 = vld [vmem:[%s6501 + $0x38] sm:$0xff]
    %v6510 = vrot.slane %v2978, 2
    %v6511 = vrot.slane %v5650, 1
    %v6512 = vsel %vm5673, %v6511, %v6510
    %v6513 = vsel %vm166, %v6512, 0
    %6515 = vmatprep.subr.mxu0 0.0
    %6516 = vmatpush1.msra.mxu0 %v6502
    %6517 = vmatprep.subr.mxu0 0.0
    %6518 = vmatpush1.msra.mxu0 %v6503
    %6519 = vmatprep.subr.mxu0 0.0
    %6520 = vmatpush1.msra.mxu0 %v6504
    %6521 = vmatprep.subr.mxu0 0.0
    %6522 = vmatpush1.msra.mxu0 %v6505
    %6523 = vmatprep.subr.mxu0 0.0
    %6524 = vmatpush1.msra.mxu0 %v6506
    %6525 = vmatprep.subr.mxu0 0.0
    %6526 = vmatpush1.msra.mxu0 %v6507
    %6527 = vmatprep.subr.mxu0 0.0
    %6528 = vmatpush1.msra.mxu0 %v6508
    %6529 = vmatprep.subr.mxu0 0.0
    %6530 = vmatpush1.msra.mxu0 %v6509
    %6531 = vmatprep.subr.mxu0 0.0
    %6532 = vmatpush1.msra.mxu0 0.0
    %6533 = vmatprep.subr.mxu0 0.0
    %6534 = vmatpush1.msra.mxu0 0.0
    %6535 = vmatprep.subr.mxu0 0.0
    %6536 = vmatpush1.msra.mxu0 0.0
    %6537 = vmatprep.subr.mxu0 0.0
    %6538 = vmatpush1.msra.mxu0 0.0
    %6539 = vmatprep.subr.mxu0 0.0
    %6540 = vmatpush1.msra.mxu0 0.0
    %6541 = vmatprep.subr.mxu0 0.0
    %6542 = vmatpush1.msra.mxu0 0.0
    %6543 = vmatprep.subr.mxu0 0.0
    %6544 = vmatpush1.msra.mxu0 0.0
    %6545 = vmatprep.subr.mxu0 0.0
    %6546 = vmatpush1.msra.mxu0 0.0
    %6547 = vmatprep.subr.mxu0 0.0
    %6548 = vmatpush1.msra.mxu0 0.0
    %6549 = vmatprep.subr.mxu0 0.0
    %6550 = vmatpush1.msra.mxu0 0.0
    %6551 = vmatprep.subr.mxu0 0.0
    %6552 = vmatpush1.msra.mxu0 0.0
    %6553 = vmatprep.subr.mxu0 0.0
    %6554 = vmatpush1.msra.mxu0 0.0
    %6555 = vmatprep.subr.mxu0 0.0
    %6556 = vmatpush1.msra.mxu0 0.0
    %6557 = vmatprep.subr.mxu0 0.0
    %6558 = vmatpush1.msra.mxu0 0.0
    %6559 = vmatprep.subr.mxu0 0.0
    %6560 = vmatpush1.msra.mxu0 0.0
    %6561 = vmatprep.subr.mxu0 0.0
    %6562 = vmatpush1.msra.mxu0 0.0
    %6563 = vmatprep.subr.mxu0 0.0
    %6564 = vmatpush1.msra.mxu0 0.0
    %6565 = vmatprep.subr.mxu0 0.0
    %6566 = vmatpush1.msra.mxu0 0.0
    %6567 = vmatprep.subr.mxu0 0.0
    %6568 = vmatpush1.msra.mxu0 0.0
    %6569 = vmatprep.subr.mxu0 0.0
    %6570 = vmatpush1.msra.mxu0 0.0
    %6571 = vmatprep.subr.mxu0 0.0
    %6572 = vmatpush1.msra.mxu0 0.0
    %6573 = vmatprep.subr.mxu0 0.0
    %6574 = vmatpush1.msra.mxu0 0.0
    %6575 = vmatprep.subr.mxu0 0.0
    %6576 = vmatpush1.msra.mxu0 0.0
    %6577 = vmatprep.subr.mxu0 0.0
    %6578 = vmatpush1.msra.mxu0 0.0
    %6579 = vmatprep.mubr.f32.mxu0 0.0
    %6580 = vmatmul.mubr.f32.gmra.mrb[0].mxu0 %v6513
    %v6581 = vpop.f32.mrb[0].mxu0
    %v6582 = vadd.f32 0.0, %v6581
    %v6583 = vpop.f32.mrb[0].mxu0
    %6584 = vdwg.mxu0
    %v6585 = vadd.f32 %v6500, %v6582
    %s6586 = scalar_lea.vmem %s10, 704
    %v6587 = vld [vmem:[%s6586] sm:$0xff]
    %v6588 = vld [vmem:[%s6586 + $0x8] sm:$0xff]
    %v6589 = vld [vmem:[%s6586 + $0x10] sm:$0xff]
    %v6590 = vld [vmem:[%s6586 + $0x18] sm:$0xff]
    %v6591 = vld [vmem:[%s6586 + $0x20] sm:$0xff]
    %v6592 = vld [vmem:[%s6586 + $0x28] sm:$0xff]
    %v6593 = vld [vmem:[%s6586 + $0x30] sm:$0xff]
    %v6594 = vld [vmem:[%s6586 + $0x38] sm:$0xff]
    %v6595 = vrot.slane %v2978, 3
    %v6596 = vrot.slane %v5650, 2
    %v6597 = vsel %vm5673, %v6596, %v6595
    %v6598 = vsel %vm166, %v6597, 0
    %6600 = vmatprep.subr.mxu0 0.0
    %6601 = vmatpush1.msra.mxu0 %v6587
    %6602 = vmatprep.subr.mxu0 0.0
    %6603 = vmatpush1.msra.mxu0 %v6588
    %6604 = vmatprep.subr.mxu0 0.0
    %6605 = vmatpush1.msra.mxu0 %v6589
    %6606 = vmatprep.subr.mxu0 0.0
    %6607 = vmatpush1.msra.mxu0 %v6590
    %6608 = vmatprep.subr.mxu0 0.0
    %6609 = vmatpush1.msra.mxu0 %v6591
    %6610 = vmatprep.subr.mxu0 0.0
    %6611 = vmatpush1.msra.mxu0 %v6592
    %6612 = vmatprep.subr.mxu0 0.0
    %6613 = vmatpush1.msra.mxu0 %v6593
    %6614 = vmatprep.subr.mxu0 0.0
    %6615 = vmatpush1.msra.mxu0 %v6594
    %6616 = vmatprep.subr.mxu0 0.0
    %6617 = vmatpush1.msra.mxu0 0.0
    %6618 = vmatprep.subr.mxu0 0.0
    %6619 = vmatpush1.msra.mxu0 0.0
    %6620 = vmatprep.subr.mxu0 0.0
    %6621 = vmatpush1.msra.mxu0 0.0
    %6622 = vmatprep.subr.mxu0 0.0
    %6623 = vmatpush1.msra.mxu0 0.0
    %6624 = vmatprep.subr.mxu0 0.0
    %6625 = vmatpush1.msra.mxu0 0.0
    %6626 = vmatprep.subr.mxu0 0.0
    %6627 = vmatpush1.msra.mxu0 0.0
    %6628 = vmatprep.subr.mxu0 0.0
    %6629 = vmatpush1.msra.mxu0 0.0
    %6630 = vmatprep.subr.mxu0 0.0
    %6631 = vmatpush1.msra.mxu0 0.0
    %6632 = vmatprep.subr.mxu0 0.0
    %6633 = vmatpush1.msra.mxu0 0.0
    %6634 = vmatprep.subr.mxu0 0.0
    %6635 = vmatpush1.msra.mxu0 0.0
    %6636 = vmatprep.subr.mxu0 0.0
    %6637 = vmatpush1.msra.mxu0 0.0
    %6638 = vmatprep.subr.mxu0 0.0
    %6639 = vmatpush1.msra.mxu0 0.0
    %6640 = vmatprep.subr.mxu0 0.0
    %6641 = vmatpush1.msra.mxu0 0.0
    %6642 = vmatprep.subr.mxu0 0.0
    %6643 = vmatpush1.msra.mxu0 0.0
    %6644 = vmatprep.subr.mxu0 0.0
    %6645 = vmatpush1.msra.mxu0 0.0
    %6646 = vmatprep.subr.mxu0 0.0
    %6647 = vmatpush1.msra.mxu0 0.0
    %6648 = vmatprep.subr.mxu0 0.0
    %6649 = vmatpush1.msra.mxu0 0.0
    %6650 = vmatprep.subr.mxu0 0.0
    %6651 = vmatpush1.msra.mxu0 0.0
    %6652 = vmatprep.subr.mxu0 0.0
    %6653 = vmatpush1.msra.mxu0 0.0
    %6654 = vmatprep.subr.mxu0 0.0
    %6655 = vmatpush1.msra.mxu0 0.0
    %6656 = vmatprep.subr.mxu0 0.0
    %6657 = vmatpush1.msra.mxu0 0.0
    %6658 = vmatprep.subr.mxu0 0.0
    %6659 = vmatpush1.msra.mxu0 0.0
    %6660 = vmatprep.subr.mxu0 0.0
    %6661 = vmatpush1.msra.mxu0 0.0
    %6662 = vmatprep.subr.mxu0 0.0
    %6663 = vmatpush1.msra.mxu0 0.0
    %6664 = vmatprep.mubr.f32.mxu0 0.0
    %6665 = vmatmul.mubr.f32.gmra.mrb[0].mxu0 %v6598
    %v6666 = vpop.f32.mrb[0].mxu0
    %v6667 = vadd.f32 0.0, %v6666
    %v6668 = vpop.f32.mrb[0].mxu0
    %6669 = vdwg.mxu0
    %v6670 = vadd.f32 %v6585, %v6667
    %s6671 = scalar_lea.vmem %s10, 768
    %v6672 = vld [vmem:[%s6671] sm:$0xff]
    %v6673 = vld [vmem:[%s6671 + $0x8] sm:$0xff]
    %v6674 = vld [vmem:[%s6671 + $0x10] sm:$0xff]
    %v6675 = vld [vmem:[%s6671 + $0x18] sm:$0xff]
    %v6676 = vld [vmem:[%s6671 + $0x20] sm:$0xff]
    %v6677 = vld [vmem:[%s6671 + $0x28] sm:$0xff]
    %v6678 = vld [vmem:[%s6671 + $0x30] sm:$0xff]
    %v6679 = vld [vmem:[%s6671 + $0x38] sm:$0xff]
    %v6680 = vrot.slane %v2978, 4
    %v6681 = vrot.slane %v5650, 3
    %v6682 = vsel %vm5673, %v6681, %v6680
    %v6683 = vsel %vm166, %v6682, 0
    %6685 = vmatprep.subr.mxu0 0.0
    %6686 = vmatpush1.msra.mxu0 %v6672
    %6687 = vmatprep.subr.mxu0 0.0
    %6688 = vmatpush1.msra.mxu0 %v6673
    %6689 = vmatprep.subr.mxu0 0.0
    %6690 = vmatpush1.msra.mxu0 %v6674
    %6691 = vmatprep.subr.mxu0 0.0
    %6692 = vmatpush1.msra.mxu0 %v6675
    %6693 = vmatprep.subr.mxu0 0.0
    %6694 = vmatpush1.msra.mxu0 %v6676
    %6695 = vmatprep.subr.mxu0 0.0
    %6696 = vmatpush1.msra.mxu0 %v6677
    %6697 = vmatprep.subr.mxu0 0.0
    %6698 = vmatpush1.msra.mxu0 %v6678
    %6699 = vmatprep.subr.mxu0 0.0
    %6700 = vmatpush1.msra.mxu0 %v6679
    %6701 = vmatprep.subr.mxu0 0.0
    %6702 = vmatpush1.msra.mxu0 0.0
    %6703 = vmatprep.subr.mxu0 0.0
    %6704 = vmatpush1.msra.mxu0 0.0
    %6705 = vmatprep.subr.mxu0 0.0
    %6706 = vmatpush1.msra.mxu0 0.0
    %6707 = vmatprep.subr.mxu0 0.0
    %6708 = vmatpush1.msra.mxu0 0.0
    %6709 = vmatprep.subr.mxu0 0.0
    %6710 = vmatpush1.msra.mxu0 0.0
    %6711 = vmatprep.subr.mxu0 0.0
    %6712 = vmatpush1.msra.mxu0 0.0
    %6713 = vmatprep.subr.mxu0 0.0
    %6714 = vmatpush1.msra.mxu0 0.0
    %6715 = vmatprep.subr.mxu0 0.0
    %6716 = vmatpush1.msra.mxu0 0.0
    %6717 = vmatprep.subr.mxu0 0.0
    %6718 = vmatpush1.msra.mxu0 0.0
    %6719 = vmatprep.subr.mxu0 0.0
    %6720 = vmatpush1.msra.mxu0 0.0
    %6721 = vmatprep.subr.mxu0 0.0
    %6722 = vmatpush1.msra.mxu0 0.0
    %6723 = vmatprep.subr.mxu0 0.0
    %6724 = vmatpush1.msra.mxu0 0.0
    %6725 = vmatprep.subr.mxu0 0.0
    %6726 = vmatpush1.msra.mxu0 0.0
    %6727 = vmatprep.subr.mxu0 0.0
    %6728 = vmatpush1.msra.mxu0 0.0
    %6729 = vmatprep.subr.mxu0 0.0
    %6730 = vmatpush1.msra.mxu0 0.0
    %6731 = vmatprep.subr.mxu0 0.0
    %6732 = vmatpush1.msra.mxu0 0.0
    %6733 = vmatprep.subr.mxu0 0.0
    %6734 = vmatpush1.msra.mxu0 0.0
    %6735 = vmatprep.subr.mxu0 0.0
    %6736 = vmatpush1.msra.mxu0 0.0
    %6737 = vmatprep.subr.mxu0 0.0
    %6738 = vmatpush1.msra.mxu0 0.0
    %6739 = vmatprep.subr.mxu0 0.0
    %6740 = vmatpush1.msra.mxu0 0.0
    %6741 = vmatprep.subr.mxu0 0.0
    %6742 = vmatpush1.msra.mxu0 0.0
    %6743 = vmatprep.subr.mxu0 0.0
    %6744 = vmatpush1.msra.mxu0 0.0
    %6745 = vmatprep.subr.mxu0 0.0
    %6746 = vmatpush1.msra.mxu0 0.0
    %6747 = vmatprep.subr.mxu0 0.0
    %6748 = vmatpush1.msra.mxu0 0.0
    %6749 = vmatprep.mubr.f32.mxu0 0.0
    %6750 = vmatmul.mubr.f32.gmra.mrb[0].mxu0 %v6683
    %v6751 = vpop.f32.mrb[0].mxu0
    %v6752 = vadd.f32 0.0, %v6751
    %v6753 = vpop.f32.mrb[0].mxu0
    %6754 = vdwg.mxu0
    %v6755 = vadd.f32 %v6670, %v6752
    %s6756 = scalar_lea.vmem %s10, 832
    %v6757 = vld [vmem:[%s6756] sm:$0xff]
    %v6758 = vld [vmem:[%s6756 + $0x8] sm:$0xff]
    %v6759 = vld [vmem:[%s6756 + $0x10] sm:$0xff]
    %v6760 = vld [vmem:[%s6756 + $0x18] sm:$0xff]
    %v6761 = vld [vmem:[%s6756 + $0x20] sm:$0xff]
    %v6762 = vld [vmem:[%s6756 + $0x28] sm:$0xff]
    %v6763 = vld [vmem:[%s6756 + $0x30] sm:$0xff]
    %v6764 = vld [vmem:[%s6756 + $0x38] sm:$0xff]
    %v6765 = vrot.slane %v2978, 5
    %v6766 = vrot.slane %v5650, 4
    %v6767 = vsel %vm5673, %v6766, %v6765
    %v6768 = vsel %vm166, %v6767, 0
    %6770 = vmatprep.subr.mxu0 0.0
    %6771 = vmatpush1.msra.mxu0 %v6757
    %6772 = vmatprep.subr.mxu0 0.0
    %6773 = vmatpush1.msra.mxu0 %v6758
    %6774 = vmatprep.subr.mxu0 0.0
    %6775 = vmatpush1.msra.mxu0 %v6759
    %6776 = vmatprep.subr.mxu0 0.0
    %6777 = vmatpush1.msra.mxu0 %v6760
    %6778 = vmatprep.subr.mxu0 0.0
    %6779 = vmatpush1.msra.mxu0 %v6761
    %6780 = vmatprep.subr.mxu0 0.0
    %6781 = vmatpush1.msra.mxu0 %v6762
    %6782 = vmatprep.subr.mxu0 0.0
    %6783 = vmatpush1.msra.mxu0 %v6763
    %6784 = vmatprep.subr.mxu0 0.0
    %6785 = vmatpush1.msra.mxu0 %v6764
    %6786 = vmatprep.subr.mxu0 0.0
    %6787 = vmatpush1.msra.mxu0 0.0
    %6788 = vmatprep.subr.mxu0 0.0
    %6789 = vmatpush1.msra.mxu0 0.0
    %6790 = vmatprep.subr.mxu0 0.0
    %6791 = vmatpush1.msra.mxu0 0.0
    %6792 = vmatprep.subr.mxu0 0.0
    %6793 = vmatpush1.msra.mxu0 0.0
    %6794 = vmatprep.subr.mxu0 0.0
    %6795 = vmatpush1.msra.mxu0 0.0
    %6796 = vmatprep.subr.mxu0 0.0
    %6797 = vmatpush1.msra.mxu0 0.0
    %6798 = vmatprep.subr.mxu0 0.0
    %6799 = vmatpush1.msra.mxu0 0.0
    %6800 = vmatprep.subr.mxu0 0.0
    %6801 = vmatpush1.msra.mxu0 0.0
    %6802 = vmatprep.subr.mxu0 0.0
    %6803 = vmatpush1.msra.mxu0 0.0
    %6804 = vmatprep.subr.mxu0 0.0
    %6805 = vmatpush1.msra.mxu0 0.0
    %6806 = vmatprep.subr.mxu0 0.0
    %6807 = vmatpush1.msra.mxu0 0.0
    %6808 = vmatprep.subr.mxu0 0.0
    %6809 = vmatpush1.msra.mxu0 0.0
    %6810 = vmatprep.subr.mxu0 0.0
    %6811 = vmatpush1.msra.mxu0 0.0
    %6812 = vmatprep.subr.mxu0 0.0
    %6813 = vmatpush1.msra.mxu0 0.0
    %6814 = vmatprep.subr.mxu0 0.0
    %6815 = vmatpush1.msra.mxu0 0.0
    %6816 = vmatprep.subr.mxu0 0.0
    %6817 = vmatpush1.msra.mxu0 0.0
    %6818 = vmatprep.subr.mxu0 0.0
    %6819 = vmatpush1.msra.mxu0 0.0
    %6820 = vmatprep.subr.mxu0 0.0
    %6821 = vmatpush1.msra.mxu0 0.0
    %6822 = vmatprep.subr.mxu0 0.0
    %6823 = vmatpush1.msra.mxu0 0.0
    %6824 = vmatprep.subr.mxu0 0.0
    %6825 = vmatpush1.msra.mxu0 0.0
    %6826 = vmatprep.subr.mxu0 0.0
    %6827 = vmatpush1.msra.mxu0 0.0
    %6828 = vmatprep.subr.mxu0 0.0
    %6829 = vmatpush1.msra.mxu0 0.0
    %6830 = vmatprep.subr.mxu0 0.0
    %6831 = vmatpush1.msra.mxu0 0.0
    %6832 = vmatprep.subr.mxu0 0.0
    %6833 = vmatpush1.msra.mxu0 0.0
    %6834 = vmatprep.mubr.f32.mxu0 0.0
    %6835 = vmatmul.mubr.f32.gmra.mrb[0].mxu0 %v6768
    %v6836 = vpop.f32.mrb[0].mxu0
    %v6837 = vadd.f32 0.0, %v6836
    %v6838 = vpop.f32.mrb[0].mxu0
    %6839 = vdwg.mxu0
    %v6840 = vadd.f32 %v6755, %v6837
    %s6841 = scalar_lea.vmem %s10, 896
    %v6842 = vld [vmem:[%s6841] sm:$0xff]
    %v6843 = vld [vmem:[%s6841 + $0x8] sm:$0xff]
    %v6844 = vld [vmem:[%s6841 + $0x10] sm:$0xff]
    %v6845 = vld [vmem:[%s6841 + $0x18] sm:$0xff]
    %v6846 = vld [vmem:[%s6841 + $0x20] sm:$0xff]
    %v6847 = vld [vmem:[%s6841 + $0x28] sm:$0xff]
    %v6848 = vld [vmem:[%s6841 + $0x30] sm:$0xff]
    %v6849 = vld [vmem:[%s6841 + $0x38] sm:$0xff]
    %v6850 = vrot.slane %v2978, 6
    %v6851 = vrot.slane %v5650, 5
    %v6852 = vsel %vm5673, %v6851, %v6850
    %v6853 = vsel %vm166, %v6852, 0
    %6855 = vmatprep.subr.mxu0 0.0
    %6856 = vmatpush1.msra.mxu0 %v6842
    %6857 = vmatprep.subr.mxu0 0.0
    %6858 = vmatpush1.msra.mxu0 %v6843
    %6859 = vmatprep.subr.mxu0 0.0
    %6860 = vmatpush1.msra.mxu0 %v6844
    %6861 = vmatprep.subr.mxu0 0.0
    %6862 = vmatpush1.msra.mxu0 %v6845
    %6863 = vmatprep.subr.mxu0 0.0
    %6864 = vmatpush1.msra.mxu0 %v6846
    %6865 = vmatprep.subr.mxu0 0.0
    %6866 = vmatpush1.msra.mxu0 %v6847
    %6867 = vmatprep.subr.mxu0 0.0
    %6868 = vmatpush1.msra.mxu0 %v6848
    %6869 = vmatprep.subr.mxu0 0.0
    %6870 = vmatpush1.msra.mxu0 %v6849
    %6871 = vmatprep.subr.mxu0 0.0
    %6872 = vmatpush1.msra.mxu0 0.0
    %6873 = vmatprep.subr.mxu0 0.0
    %6874 = vmatpush1.msra.mxu0 0.0
    %6875 = vmatprep.subr.mxu0 0.0
    %6876 = vmatpush1.msra.mxu0 0.0
    %6877 = vmatprep.subr.mxu0 0.0
    %6878 = vmatpush1.msra.mxu0 0.0
    %6879 = vmatprep.subr.mxu0 0.0
    %6880 = vmatpush1.msra.mxu0 0.0
    %6881 = vmatprep.subr.mxu0 0.0
    %6882 = vmatpush1.msra.mxu0 0.0
    %6883 = vmatprep.subr.mxu0 0.0
    %6884 = vmatpush1.msra.mxu0 0.0
    %6885 = vmatprep.subr.mxu0 0.0
    %6886 = vmatpush1.msra.mxu0 0.0
    %6887 = vmatprep.subr.mxu0 0.0
    %6888 = vmatpush1.msra.mxu0 0.0
    %6889 = vmatprep.subr.mxu0 0.0
    %6890 = vmatpush1.msra.mxu0 0.0
    %6891 = vmatprep.subr.mxu0 0.0
    %6892 = vmatpush1.msra.mxu0 0.0
    %6893 = vmatprep.subr.mxu0 0.0
    %6894 = vmatpush1.msra.mxu0 0.0
    %6895 = vmatprep.subr.mxu0 0.0
    %6896 = vmatpush1.msra.mxu0 0.0
    %6897 = vmatprep.subr.mxu0 0.0
    %6898 = vmatpush1.msra.mxu0 0.0
    %6899 = vmatprep.subr.mxu0 0.0
    %6900 = vmatpush1.msra.mxu0 0.0
    %6901 = vmatprep.subr.mxu0 0.0
    %6902 = vmatpush1.msra.mxu0 0.0
    %6903 = vmatprep.subr.mxu0 0.0
    %6904 = vmatpush1.msra.mxu0 0.0
    %6905 = vmatprep.subr.mxu0 0.0
    %6906 = vmatpush1.msra.mxu0 0.0
    %6907 = vmatprep.subr.mxu0 0.0
    %6908 = vmatpush1.msra.mxu0 0.0
    %6909 = vmatprep.subr.mxu0 0.0
    %6910 = vmatpush1.msra.mxu0 0.0
    %6911 = vmatprep.subr.mxu0 0.0
    %6912 = vmatpush1.msra.mxu0 0.0
    %6913 = vmatprep.subr.mxu0 0.0
    %6914 = vmatpush1.msra.mxu0 0.0
    %6915 = vmatprep.subr.mxu0 0.0
    %6916 = vmatpush1.msra.mxu0 0.0
    %6917 = vmatprep.subr.mxu0 0.0
    %6918 = vmatpush1.msra.mxu0 0.0
    %6919 = vmatprep.mubr.f32.mxu0 0.0
    %6920 = vmatmul.mubr.f32.gmra.mrb[0].mxu0 %v6853
    %v6921 = vpop.f32.mrb[0].mxu0
    %v6922 = vadd.f32 0.0, %v6921
    %v6923 = vpop.f32.mrb[0].mxu0
    %6924 = vdwg.mxu0
    %v6925 = vadd.f32 %v6840, %v6922
    %s6926 = scalar_lea.vmem %s10, 960
    %v6927 = vld [vmem:[%s6926] sm:$0xff]
    %v6928 = vld [vmem:[%s6926 + $0x8] sm:$0xff]
    %v6929 = vld [vmem:[%s6926 + $0x10] sm:$0xff]
    %v6930 = vld [vmem:[%s6926 + $0x18] sm:$0xff]
    %v6931 = vld [vmem:[%s6926 + $0x20] sm:$0xff]
    %v6932 = vld [vmem:[%s6926 + $0x28] sm:$0xff]
    %v6933 = vld [vmem:[%s6926 + $0x30] sm:$0xff]
    %v6934 = vld [vmem:[%s6926 + $0x38] sm:$0xff]
    %v6935 = vrot.slane %v2978, 7
    %v6936 = vrot.slane %v5650, 6
    %v6937 = vsel %vm5673, %v6936, %v6935
    %v6938 = vsel %vm166, %v6937, 0
    %6940 = vmatprep.subr.mxu0 0.0
    %6941 = vmatpush1.msra.mxu0 %v6927
    %6942 = vmatprep.subr.mxu0 0.0
    %6943 = vmatpush1.msra.mxu0 %v6928
    %6944 = vmatprep.subr.mxu0 0.0
    %6945 = vmatpush1.msra.mxu0 %v6929
    %6946 = vmatprep.subr.mxu0 0.0
    %6947 = vmatpush1.msra.mxu0 %v6930
    %6948 = vmatprep.subr.mxu0 0.0
    %6949 = vmatpush1.msra.mxu0 %v6931
    %6950 = vmatprep.subr.mxu0 0.0
    %6951 = vmatpush1.msra.mxu0 %v6932
    %6952 = vmatprep.subr.mxu0 0.0
    %6953 = vmatpush1.msra.mxu0 %v6933
    %6954 = vmatprep.subr.mxu0 0.0
    %6955 = vmatpush1.msra.mxu0 %v6934
    %6956 = vmatprep.subr.mxu0 0.0
    %6957 = vmatpush1.msra.mxu0 0.0
    %6958 = vmatprep.subr.mxu0 0.0
    %6959 = vmatpush1.msra.mxu0 0.0
    %6960 = vmatprep.subr.mxu0 0.0
    %6961 = vmatpush1.msra.mxu0 0.0
    %6962 = vmatprep.subr.mxu0 0.0
    %6963 = vmatpush1.msra.mxu0 0.0
    %6964 = vmatprep.subr.mxu0 0.0
    %6965 = vmatpush1.msra.mxu0 0.0
    %6966 = vmatprep.subr.mxu0 0.0
    %6967 = vmatpush1.msra.mxu0 0.0
    %6968 = vmatprep.subr.mxu0 0.0
    %6969 = vmatpush1.msra.mxu0 0.0
    %6970 = vmatprep.subr.mxu0 0.0
    %6971 = vmatpush1.msra.mxu0 0.0
    %6972 = vmatprep.subr.mxu0 0.0
    %6973 = vmatpush1.msra.mxu0 0.0
    %6974 = vmatprep.subr.mxu0 0.0
    %6975 = vmatpush1.msra.mxu0 0.0
    %6976 = vmatprep.subr.mxu0 0.0
    %6977 = vmatpush1.msra.mxu0 0.0
    %6978 = vmatprep.subr.mxu0 0.0
    %6979 = vmatpush1.msra.mxu0 0.0
    %6980 = vmatprep.subr.mxu0 0.0
    %6981 = vmatpush1.msra.mxu0 0.0
    %6982 = vmatprep.subr.mxu0 0.0
    %6983 = vmatpush1.msra.mxu0 0.0
    %6984 = vmatprep.subr.mxu0 0.0
    %6985 = vmatpush1.msra.mxu0 0.0
    %6986 = vmatprep.subr.mxu0 0.0
    %6987 = vmatpush1.msra.mxu0 0.0
    %6988 = vmatprep.subr.mxu0 0.0
    %6989 = vmatpush1.msra.mxu0 0.0
    %6990 = vmatprep.subr.mxu0 0.0
    %6991 = vmatpush1.msra.mxu0 0.0
    %6992 = vmatprep.subr.mxu0 0.0
    %6993 = vmatpush1.msra.mxu0 0.0
    %6994 = vmatprep.subr.mxu0 0.0
    %6995 = vmatpush1.msra.mxu0 0.0
    %6996 = vmatprep.subr.mxu0 0.0
    %6997 = vmatpush1.msra.mxu0 0.0
    %6998 = vmatprep.subr.mxu0 0.0
    %6999 = vmatpush1.msra.mxu0 0.0
    %7000 = vmatprep.subr.mxu0 0.0
    %7001 = vmatpush1.msra.mxu0 0.0
    %7002 = vmatprep.subr.mxu0 0.0
    %7003 = vmatpush1.msra.mxu0 0.0
    %7004 = vmatprep.mubr.f32.mxu0 0.0
    %7005 = vmatmul.mubr.f32.gmra.mrb[0].mxu0 %v6938
    %v7006 = vpop.f32.mrb[0].mxu0
    %v7007 = vadd.f32 0.0, %v7006
    %v7008 = vpop.f32.mrb[0].mxu0
    %7009 = vdwg.mxu0
    %v7010 = vadd.f32 %v6925, %v7007
    %s7011 = scalar_lea.vmem %s10, 1024
    %v7012 = vld [vmem:[%s7011] sm:$0xff]
    %v7013 = vld [vmem:[%s7011 + $0x8] sm:$0xff]
    %v7014 = vld [vmem:[%s7011 + $0x10] sm:$0xff]
    %v7015 = vld [vmem:[%s7011 + $0x18] sm:$0xff]
    %v7016 = vld [vmem:[%s7011 + $0x20] sm:$0xff]
    %v7017 = vld [vmem:[%s7011 + $0x28] sm:$0xff]
    %v7018 = vld [vmem:[%s7011 + $0x30] sm:$0xff]
    %v7019 = vld [vmem:[%s7011 + $0x38] sm:$0xff]
    %v7022 = vrot.slane %v5651, 7
    %v7023 = vsel %vm5673, %v7022, %v2979
    %v7024 = vsel %vm166, %v7023, 0
    %7026 = vmatprep.subr.mxu0 0.0
    %7027 = vmatpush1.msra.mxu0 %v7012
    %7028 = vmatprep.subr.mxu0 0.0
    %7029 = vmatpush1.msra.mxu0 %v7013
    %7030 = vmatprep.subr.mxu0 0.0
    %7031 = vmatpush1.msra.mxu0 %v7014
    %7032 = vmatprep.subr.mxu0 0.0
    %7033 = vmatpush1.msra.mxu0 %v7015
    %7034 = vmatprep.subr.mxu0 0.0
    %7035 = vmatpush1.msra.mxu0 %v7016
    %7036 = vmatprep.subr.mxu0 0.0
    %7037 = vmatpush1.msra.mxu0 %v7017
    %7038 = vmatprep.subr.mxu0 0.0
    %7039 = vmatpush1.msra.mxu0 %v7018
    %7040 = vmatprep.subr.mxu0 0.0
    %7041 = vmatpush1.msra.mxu0 %v7019
    %7042 = vmatprep.subr.mxu0 0.0
    %7043 = vmatpush1.msra.mxu0 0.0
    %7044 = vmatprep.subr.mxu0 0.0
    %7045 = vmatpush1.msra.mxu0 0.0
    %7046 = vmatprep.subr.mxu0 0.0
    %7047 = vmatpush1.msra.mxu0 0.0
    %7048 = vmatprep.subr.mxu0 0.0
    %7049 = vmatpush1.msra.mxu0 0.0
    %7050 = vmatprep.subr.mxu0 0.0
    %7051 = vmatpush1.msra.mxu0 0.0
    %7052 = vmatprep.subr.mxu0 0.0
    %7053 = vmatpush1.msra.mxu0 0.0
    %7054 = vmatprep.subr.mxu0 0.0
    %7055 = vmatpush1.msra.mxu0 0.0
    %7056 = vmatprep.subr.mxu0 0.0
    %7057 = vmatpush1.msra.mxu0 0.0
    %7058 = vmatprep.subr.mxu0 0.0
    %7059 = vmatpush1.msra.mxu0 0.0
    %7060 = vmatprep.subr.mxu0 0.0
    %7061 = vmatpush1.msra.mxu0 0.0
    %7062 = vmatprep.subr.mxu0 0.0
    %7063 = vmatpush1.msra.mxu0 0.0
    %7064 = vmatprep.subr.mxu0 0.0
    %7065 = vmatpush1.msra.mxu0 0.0
    %7066 = vmatprep.subr.mxu0 0.0
    %7067 = vmatpush1.msra.mxu0 0.0
    %7068 = vmatprep.subr.mxu0 0.0
    %7069 = vmatpush1.msra.mxu0 0.0
    %7070 = vmatprep.subr.mxu0 0.0
    %7071 = vmatpush1.msra.mxu0 0.0
    %7072 = vmatprep.subr.mxu0 0.0
    %7073 = vmatpush1.msra.mxu0 0.0
    %7074 = vmatprep.subr.mxu0 0.0
    %7075 = vmatpush1.msra.mxu0 0.0
    %7076 = vmatprep.subr.mxu0 0.0
    %7077 = vmatpush1.msra.mxu0 0.0
    %7078 = vmatprep.subr.mxu0 0.0
    %7079 = vmatpush1.msra.mxu0 0.0
    %7080 = vmatprep.subr.mxu0 0.0
    %7081 = vmatpush1.msra.mxu0 0.0
    %7082 = vmatprep.subr.mxu0 0.0
    %7083 = vmatpush1.msra.mxu0 0.0
    %7084 = vmatprep.subr.mxu0 0.0
    %7085 = vmatpush1.msra.mxu0 0.0
    %7086 = vmatprep.subr.mxu0 0.0
    %7087 = vmatpush1.msra.mxu0 0.0
    %7088 = vmatprep.subr.mxu0 0.0
    %7089 = vmatpush1.msra.mxu0 0.0
    %7090 = vmatprep.mubr.f32.mxu0 0.0
    %7091 = vmatmul.mubr.f32.gmra.mrb[0].mxu0 %v7024
    %v7092 = vpop.f32.mrb[0].mxu0
    %v7093 = vadd.f32 0.0, %v7092
    %v7094 = vpop.f32.mrb[0].mxu0
    %7095 = vdwg.mxu0
    %v7096 = vadd.f32 %v7010, %v7093
    %s7097 = scalar_lea.vmem %s10, 1088
    %v7098 = vld [vmem:[%s7097] sm:$0xff]
    %v7099 = vld [vmem:[%s7097 + $0x8] sm:$0xff]
    %v7100 = vld [vmem:[%s7097 + $0x10] sm:$0xff]
    %v7101 = vld [vmem:[%s7097 + $0x18] sm:$0xff]
    %v7102 = vld [vmem:[%s7097 + $0x20] sm:$0xff]
    %v7103 = vld [vmem:[%s7097 + $0x28] sm:$0xff]
    %v7104 = vld [vmem:[%s7097 + $0x30] sm:$0xff]
    %v7105 = vld [vmem:[%s7097 + $0x38] sm:$0xff]
    %v7106 = vrot.slane %v2979, 1
    %v7107 = vsel %vm5673, %v5651, %v7106
    %v7108 = vsel %vm166, %v7107, 0
    %7110 = vmatprep.subr.mxu0 0.0
    %7111 = vmatpush1.msra.mxu0 %v7098
    %7112 = vmatprep.subr.mxu0 0.0
    %7113 = vmatpush1.msra.mxu0 %v7099
    %7114 = vmatprep.subr.mxu0 0.0
    %7115 = vmatpush1.msra.mxu0 %v7100
    %7116 = vmatprep.subr.mxu0 0.0
    %7117 = vmatpush1.msra.mxu0 %v7101
    %7118 = vmatprep.subr.mxu0 0.0
    %7119 = vmatpush1.msra.mxu0 %v7102
    %7120 = vmatprep.subr.mxu0 0.0
    %7121 = vmatpush1.msra.mxu0 %v7103
    %7122 = vmatprep.subr.mxu0 0.0
    %7123 = vmatpush1.msra.mxu0 %v7104
    %7124 = vmatprep.subr.mxu0 0.0
    %7125 = vmatpush1.msra.mxu0 %v7105
    %7126 = vmatprep.subr.mxu0 0.0
    %7127 = vmatpush1.msra.mxu0 0.0
    %7128 = vmatprep.subr.mxu0 0.0
    %7129 = vmatpush1.msra.mxu0 0.0
    %7130 = vmatprep.subr.mxu0 0.0
    %7131 = vmatpush1.msra.mxu0 0.0
    %7132 = vmatprep.subr.mxu0 0.0
    %7133 = vmatpush1.msra.mxu0 0.0
    %7134 = vmatprep.subr.mxu0 0.0
    %7135 = vmatpush1.msra.mxu0 0.0
    %7136 = vmatprep.subr.mxu0 0.0
    %7137 = vmatpush1.msra.mxu0 0.0
    %7138 = vmatprep.subr.mxu0 0.0
    %7139 = vmatpush1.msra.mxu0 0.0
    %7140 = vmatprep.subr.mxu0 0.0
    %7141 = vmatpush1.msra.mxu0 0.0
    %7142 = vmatprep.subr.mxu0 0.0
    %7143 = vmatpush1.msra.mxu0 0.0
    %7144 = vmatprep.subr.mxu0 0.0
    %7145 = vmatpush1.msra.mxu0 0.0
    %7146 = vmatprep.subr.mxu0 0.0
    %7147 = vmatpush1.msra.mxu0 0.0
    %7148 = vmatprep.subr.mxu0 0.0
    %7149 = vmatpush1.msra.mxu0 0.0
    %7150 = vmatprep.subr.mxu0 0.0
    %7151 = vmatpush1.msra.mxu0 0.0
    %7152 = vmatprep.subr.mxu0 0.0
    %7153 = vmatpush1.msra.mxu0 0.0
    %7154 = vmatprep.subr.mxu0 0.0
    %7155 = vmatpush1.msra.mxu0 0.0
    %7156 = vmatprep.subr.mxu0 0.0
    %7157 = vmatpush1.msra.mxu0 0.0
    %7158 = vmatprep.subr.mxu0 0.0
    %7159 = vmatpush1.msra.mxu0 0.0
    %7160 = vmatprep.subr.mxu0 0.0
    %7161 = vmatpush1.msra.mxu0 0.0
    %7162 = vmatprep.subr.mxu0 0.0
    %7163 = vmatpush1.msra.mxu0 0.0
    %7164 = vmatprep.subr.mxu0 0.0
    %7165 = vmatpush1.msra.mxu0 0.0
    %7166 = vmatprep.subr.mxu0 0.0
    %7167 = vmatpush1.msra.mxu0 0.0
    %7168 = vmatprep.subr.mxu0 0.0
    %7169 = vmatpush1.msra.mxu0 0.0
    %7170 = vmatprep.subr.mxu0 0.0
    %7171 = vmatpush1.msra.mxu0 0.0
    %7172 = vmatprep.subr.mxu0 0.0
    %7173 = vmatpush1.msra.mxu0 0.0
    %7174 = vmatprep.mubr.f32.mxu0 0.0
    %7175 = vmatmul.mubr.f32.gmra.mrb[0].mxu0 %v7108
    %v7176 = vpop.f32.mrb[0].mxu0
    %v7177 = vadd.f32 0.0, %v7176
    %v7178 = vpop.f32.mrb[0].mxu0
    %7179 = vdwg.mxu0
    %v7180 = vadd.f32 %v7096, %v7177
    %s7181 = scalar_lea.vmem %s10, 1152
    %v7182 = vld [vmem:[%s7181] sm:$0xff]
    %v7183 = vld [vmem:[%s7181 + $0x8] sm:$0xff]
    %v7184 = vld [vmem:[%s7181 + $0x10] sm:$0xff]
    %v7185 = vld [vmem:[%s7181 + $0x18] sm:$0xff]
    %v7186 = vld [vmem:[%s7181 + $0x20] sm:$0xff]
    %v7187 = vld [vmem:[%s7181 + $0x28] sm:$0xff]
    %v7188 = vld [vmem:[%s7181 + $0x30] sm:$0xff]
    %v7189 = vld [vmem:[%s7181 + $0x38] sm:$0xff]
    %v7190 = vrot.slane %v2979, 2
    %v7191 = vrot.slane %v5651, 1
    %v7192 = vsel %vm5673, %v7191, %v7190
    %v7193 = vsel %vm166, %v7192, 0
    %7195 = vmatprep.subr.mxu0 0.0
    %7196 = vmatpush1.msra.mxu0 %v7182
    %7197 = vmatprep.subr.mxu0 0.0
    %7198 = vmatpush1.msra.mxu0 %v7183
    %7199 = vmatprep.subr.mxu0 0.0
    %7200 = vmatpush1.msra.mxu0 %v7184
    %7201 = vmatprep.subr.mxu0 0.0
    %7202 = vmatpush1.msra.mxu0 %v7185
    %7203 = vmatprep.subr.mxu0 0.0
    %7204 = vmatpush1.msra.mxu0 %v7186
    %7205 = vmatprep.subr.mxu0 0.0
    %7206 = vmatpush1.msra.mxu0 %v7187
    %7207 = vmatprep.subr.mxu0 0.0
    %7208 = vmatpush1.msra.mxu0 %v7188
    %7209 = vmatprep.subr.mxu0 0.0
    %7210 = vmatpush1.msra.mxu0 %v7189
    %7211 = vmatprep.subr.mxu0 0.0
    %7212 = vmatpush1.msra.mxu0 0.0
    %7213 = vmatprep.subr.mxu0 0.0
    %7214 = vmatpush1.msra.mxu0 0.0
    %7215 = vmatprep.subr.mxu0 0.0
    %7216 = vmatpush1.msra.mxu0 0.0
    %7217 = vmatprep.subr.mxu0 0.0
    %7218 = vmatpush1.msra.mxu0 0.0
    %7219 = vmatprep.subr.mxu0 0.0
    %7220 = vmatpush1.msra.mxu0 0.0
    %7221 = vmatprep.subr.mxu0 0.0
    %7222 = vmatpush1.msra.mxu0 0.0
    %7223 = vmatprep.subr.mxu0 0.0
    %7224 = vmatpush1.msra.mxu0 0.0
    %7225 = vmatprep.subr.mxu0 0.0
    %7226 = vmatpush1.msra.mxu0 0.0
    %7227 = vmatprep.subr.mxu0 0.0
    %7228 = vmatpush1.msra.mxu0 0.0
    %7229 = vmatprep.subr.mxu0 0.0
    %7230 = vmatpush1.msra.mxu0 0.0
    %7231 = vmatprep.subr.mxu0 0.0
    %7232 = vmatpush1.msra.mxu0 0.0
    %7233 = vmatprep.subr.mxu0 0.0
    %7234 = vmatpush1.msra.mxu0 0.0
    %7235 = vmatprep.subr.mxu0 0.0
    %7236 = vmatpush1.msra.mxu0 0.0
    %7237 = vmatprep.subr.mxu0 0.0
    %7238 = vmatpush1.msra.mxu0 0.0
    %7239 = vmatprep.subr.mxu0 0.0
    %7240 = vmatpush1.msra.mxu0 0.0
    %7241 = vmatprep.subr.mxu0 0.0
    %7242 = vmatpush1.msra.mxu0 0.0
    %7243 = vmatprep.subr.mxu0 0.0
    %7244 = vmatpush1.msra.mxu0 0.0
    %7245 = vmatprep.subr.mxu0 0.0
    %7246 = vmatpush1.msra.mxu0 0.0
    %7247 = vmatprep.subr.mxu0 0.0
    %7248 = vmatpush1.msra.mxu0 0.0
    %7249 = vmatprep.subr.mxu0 0.0
    %7250 = vmatpush1.msra.mxu0 0.0
    %7251 = vmatprep.subr.mxu0 0.0
    %7252 = vmatpush1.msra.mxu0 0.0
    %7253 = vmatprep.subr.mxu0 0.0
    %7254 = vmatpush1.msra.mxu0 0.0
    %7255 = vmatprep.subr.mxu0 0.0
    %7256 = vmatpush1.msra.mxu0 0.0
    %7257 = vmatprep.subr.mxu0 0.0
    %7258 = vmatpush1.msra.mxu0 0.0
    %7259 = vmatprep.mubr.f32.mxu0 0.0
    %7260 = vmatmul.mubr.f32.gmra.mrb[0].mxu0 %v7193
    %v7261 = vpop.f32.mrb[0].mxu0
    %v7262 = vadd.f32 0.0, %v7261
    %v7263 = vpop.f32.mrb[0].mxu0
    %7264 = vdwg.mxu0
    %v7265 = vadd.f32 %v7180, %v7262
    %s7266 = scalar_lea.vmem %s10, 1216
    %v7267 = vld [vmem:[%s7266] sm:$0xff]
    %v7268 = vld [vmem:[%s7266 + $0x8] sm:$0xff]
    %v7269 = vld [vmem:[%s7266 + $0x10] sm:$0xff]
    %v7270 = vld [vmem:[%s7266 + $0x18] sm:$0xff]
    %v7271 = vld [vmem:[%s7266 + $0x20] sm:$0xff]
    %v7272 = vld [vmem:[%s7266 + $0x28] sm:$0xff]
    %v7273 = vld [vmem:[%s7266 + $0x30] sm:$0xff]
    %v7274 = vld [vmem:[%s7266 + $0x38] sm:$0xff]
    %v7275 = vrot.slane %v2979, 3
    %v7276 = vrot.slane %v5651, 2
    %v7277 = vsel %vm5673, %v7276, %v7275
    %v7278 = vsel %vm166, %v7277, 0
    %7280 = vmatprep.subr.mxu0 0.0
    %7281 = vmatpush1.msra.mxu0 %v7267
    %7282 = vmatprep.subr.mxu0 0.0
    %7283 = vmatpush1.msra.mxu0 %v7268
    %7284 = vmatprep.subr.mxu0 0.0
    %7285 = vmatpush1.msra.mxu0 %v7269
    %7286 = vmatprep.subr.mxu0 0.0
    %7287 = vmatpush1.msra.mxu0 %v7270
    %7288 = vmatprep.subr.mxu0 0.0
    %7289 = vmatpush1.msra.mxu0 %v7271
    %7290 = vmatprep.subr.mxu0 0.0
    %7291 = vmatpush1.msra.mxu0 %v7272
    %7292 = vmatprep.subr.mxu0 0.0
    %7293 = vmatpush1.msra.mxu0 %v7273
    %7294 = vmatprep.subr.mxu0 0.0
    %7295 = vmatpush1.msra.mxu0 %v7274
    %7296 = vmatprep.subr.mxu0 0.0
    %7297 = vmatpush1.msra.mxu0 0.0
    %7298 = vmatprep.subr.mxu0 0.0
    %7299 = vmatpush1.msra.mxu0 0.0
    %7300 = vmatprep.subr.mxu0 0.0
    %7301 = vmatpush1.msra.mxu0 0.0
    %7302 = vmatprep.subr.mxu0 0.0
    %7303 = vmatpush1.msra.mxu0 0.0
    %7304 = vmatprep.subr.mxu0 0.0
    %7305 = vmatpush1.msra.mxu0 0.0
    %7306 = vmatprep.subr.mxu0 0.0
    %7307 = vmatpush1.msra.mxu0 0.0
    %7308 = vmatprep.subr.mxu0 0.0
    %7309 = vmatpush1.msra.mxu0 0.0
    %7310 = vmatprep.subr.mxu0 0.0
    %7311 = vmatpush1.msra.mxu0 0.0
    %7312 = vmatprep.subr.mxu0 0.0
    %7313 = vmatpush1.msra.mxu0 0.0
    %7314 = vmatprep.subr.mxu0 0.0
    %7315 = vmatpush1.msra.mxu0 0.0
    %7316 = vmatprep.subr.mxu0 0.0
    %7317 = vmatpush1.msra.mxu0 0.0
    %7318 = vmatprep.subr.mxu0 0.0
    %7319 = vmatpush1.msra.mxu0 0.0
    %7320 = vmatprep.subr.mxu0 0.0
    %7321 = vmatpush1.msra.mxu0 0.0
    %7322 = vmatprep.subr.mxu0 0.0
    %7323 = vmatpush1.msra.mxu0 0.0
    %7324 = vmatprep.subr.mxu0 0.0
    %7325 = vmatpush1.msra.mxu0 0.0
    %7326 = vmatprep.subr.mxu0 0.0
    %7327 = vmatpush1.msra.mxu0 0.0
    %7328 = vmatprep.subr.mxu0 0.0
    %7329 = vmatpush1.msra.mxu0 0.0
    %7330 = vmatprep.subr.mxu0 0.0
    %7331 = vmatpush1.msra.mxu0 0.0
    %7332 = vmatprep.subr.mxu0 0.0
    %7333 = vmatpush1.msra.mxu0 0.0
    %7334 = vmatprep.subr.mxu0 0.0
    %7335 = vmatpush1.msra.mxu0 0.0
    %7336 = vmatprep.subr.mxu0 0.0
    %7337 = vmatpush1.msra.mxu0 0.0
    %7338 = vmatprep.subr.mxu0 0.0
    %7339 = vmatpush1.msra.mxu0 0.0
    %7340 = vmatprep.subr.mxu0 0.0
    %7341 = vmatpush1.msra.mxu0 0.0
    %7342 = vmatprep.subr.mxu0 0.0
    %7343 = vmatpush1.msra.mxu0 0.0
    %7344 = vmatprep.mubr.f32.mxu0 0.0
    %7345 = vmatmul.mubr.f32.gmra.mrb[0].mxu0 %v7278
    %v7346 = vpop.f32.mrb[0].mxu0
    %v7347 = vadd.f32 0.0, %v7346
    %v7348 = vpop.f32.mrb[0].mxu0
    %7349 = vdwg.mxu0
    %v7350 = vadd.f32 %v7265, %v7347
    %s7351 = scalar_lea.vmem %s10, 1280
    %v7352 = vld [vmem:[%s7351] sm:$0xff]
    %v7353 = vld [vmem:[%s7351 + $0x8] sm:$0xff]
    %v7354 = vld [vmem:[%s7351 + $0x10] sm:$0xff]
    %v7355 = vld [vmem:[%s7351 + $0x18] sm:$0xff]
    %v7356 = vld [vmem:[%s7351 + $0x20] sm:$0xff]
    %v7357 = vld [vmem:[%s7351 + $0x28] sm:$0xff]
    %v7358 = vld [vmem:[%s7351 + $0x30] sm:$0xff]
    %v7359 = vld [vmem:[%s7351 + $0x38] sm:$0xff]
    %v7360 = vrot.slane %v2979, 4
    %v7361 = vrot.slane %v5651, 3
    %v7362 = vsel %vm5673, %v7361, %v7360
    %v7363 = vsel %vm166, %v7362, 0
    %7365 = vmatprep.subr.mxu0 0.0
    %7366 = vmatpush1.msra.mxu0 %v7352
    %7367 = vmatprep.subr.mxu0 0.0
    %7368 = vmatpush1.msra.mxu0 %v7353
    %7369 = vmatprep.subr.mxu0 0.0
    %7370 = vmatpush1.msra.mxu0 %v7354
    %7371 = vmatprep.subr.mxu0 0.0
    %7372 = vmatpush1.msra.mxu0 %v7355
    %7373 = vmatprep.subr.mxu0 0.0
    %7374 = vmatpush1.msra.mxu0 %v7356
    %7375 = vmatprep.subr.mxu0 0.0
    %7376 = vmatpush1.msra.mxu0 %v7357
    %7377 = vmatprep.subr.mxu0 0.0
    %7378 = vmatpush1.msra.mxu0 %v7358
    %7379 = vmatprep.subr.mxu0 0.0
    %7380 = vmatpush1.msra.mxu0 %v7359
    %7381 = vmatprep.subr.mxu0 0.0
    %7382 = vmatpush1.msra.mxu0 0.0
    %7383 = vmatprep.subr.mxu0 0.0
    %7384 = vmatpush1.msra.mxu0 0.0
    %7385 = vmatprep.subr.mxu0 0.0
    %7386 = vmatpush1.msra.mxu0 0.0
    %7387 = vmatprep.subr.mxu0 0.0
    %7388 = vmatpush1.msra.mxu0 0.0
    %7389 = vmatprep.subr.mxu0 0.0
    %7390 = vmatpush1.msra.mxu0 0.0
    %7391 = vmatprep.subr.mxu0 0.0
    %7392 = vmatpush1.msra.mxu0 0.0
    %7393 = vmatprep.subr.mxu0 0.0
    %7394 = vmatpush1.msra.mxu0 0.0
    %7395 = vmatprep.subr.mxu0 0.0
    %7396 = vmatpush1.msra.mxu0 0.0
    %7397 = vmatprep.subr.mxu0 0.0
    %7398 = vmatpush1.msra.mxu0 0.0
    %7399 = vmatprep.subr.mxu0 0.0
    %7400 = vmatpush1.msra.mxu0 0.0
    %7401 = vmatprep.subr.mxu0 0.0
    %7402 = vmatpush1.msra.mxu0 0.0
    %7403 = vmatprep.subr.mxu0 0.0
    %7404 = vmatpush1.msra.mxu0 0.0
    %7405 = vmatprep.subr.mxu0 0.0
    %7406 = vmatpush1.msra.mxu0 0.0
    %7407 = vmatprep.subr.mxu0 0.0
    %7408 = vmatpush1.msra.mxu0 0.0
    %7409 = vmatprep.subr.mxu0 0.0
    %7410 = vmatpush1.msra.mxu0 0.0
    %7411 = vmatprep.subr.mxu0 0.0
    %7412 = vmatpush1.msra.mxu0 0.0
    %7413 = vmatprep.subr.mxu0 0.0
    %7414 = vmatpush1.msra.mxu0 0.0
    %7415 = vmatprep.subr.mxu0 0.0
    %7416 = vmatpush1.msra.mxu0 0.0
    %7417 = vmatprep.subr.mxu0 0.0
    %7418 = vmatpush1.msra.mxu0 0.0
    %7419 = vmatprep.subr.mxu0 0.0
    %7420 = vmatpush1.msra.mxu0 0.0
    %7421 = vmatprep.subr.mxu0 0.0
    %7422 = vmatpush1.msra.mxu0 0.0
    %7423 = vmatprep.subr.mxu0 0.0
    %7424 = vmatpush1.msra.mxu0 0.0
    %7425 = vmatprep.subr.mxu0 0.0
    %7426 = vmatpush1.msra.mxu0 0.0
    %7427 = vmatprep.subr.mxu0 0.0
    %7428 = vmatpush1.msra.mxu0 0.0
    %7429 = vmatprep.mubr.f32.mxu0 0.0
    %7430 = vmatmul.mubr.f32.gmra.mrb[0].mxu0 %v7363
    %v7431 = vpop.f32.mrb[0].mxu0
    %v7432 = vadd.f32 0.0, %v7431
    %v7433 = vpop.f32.mrb[0].mxu0
    %7434 = vdwg.mxu0
    %v7435 = vadd.f32 %v7350, %v7432
    %s7436 = scalar_lea.vmem %s10, 1344
    %v7437 = vld [vmem:[%s7436] sm:$0xff]
    %v7438 = vld [vmem:[%s7436 + $0x8] sm:$0xff]
    %v7439 = vld [vmem:[%s7436 + $0x10] sm:$0xff]
    %v7440 = vld [vmem:[%s7436 + $0x18] sm:$0xff]
    %v7441 = vld [vmem:[%s7436 + $0x20] sm:$0xff]
    %v7442 = vld [vmem:[%s7436 + $0x28] sm:$0xff]
    %v7443 = vld [vmem:[%s7436 + $0x30] sm:$0xff]
    %v7444 = vld [vmem:[%s7436 + $0x38] sm:$0xff]
    %v7445 = vrot.slane %v2979, 5
    %v7446 = vrot.slane %v5651, 4
    %v7447 = vsel %vm5673, %v7446, %v7445
    %v7448 = vsel %vm166, %v7447, 0
    %7450 = vmatprep.subr.mxu0 0.0
    %7451 = vmatpush1.msra.mxu0 %v7437
    %7452 = vmatprep.subr.mxu0 0.0
    %7453 = vmatpush1.msra.mxu0 %v7438
    %7454 = vmatprep.subr.mxu0 0.0
    %7455 = vmatpush1.msra.mxu0 %v7439
    %7456 = vmatprep.subr.mxu0 0.0
    %7457 = vmatpush1.msra.mxu0 %v7440
    %7458 = vmatprep.subr.mxu0 0.0
    %7459 = vmatpush1.msra.mxu0 %v7441
    %7460 = vmatprep.subr.mxu0 0.0
    %7461 = vmatpush1.msra.mxu0 %v7442
    %7462 = vmatprep.subr.mxu0 0.0
    %7463 = vmatpush1.msra.mxu0 %v7443
    %7464 = vmatprep.subr.mxu0 0.0
    %7465 = vmatpush1.msra.mxu0 %v7444
    %7466 = vmatprep.subr.mxu0 0.0
    %7467 = vmatpush1.msra.mxu0 0.0
    %7468 = vmatprep.subr.mxu0 0.0
    %7469 = vmatpush1.msra.mxu0 0.0
    %7470 = vmatprep.subr.mxu0 0.0
    %7471 = vmatpush1.msra.mxu0 0.0
    %7472 = vmatprep.subr.mxu0 0.0
    %7473 = vmatpush1.msra.mxu0 0.0
    %7474 = vmatprep.subr.mxu0 0.0
    %7475 = vmatpush1.msra.mxu0 0.0
    %7476 = vmatprep.subr.mxu0 0.0
    %7477 = vmatpush1.msra.mxu0 0.0
    %7478 = vmatprep.subr.mxu0 0.0
    %7479 = vmatpush1.msra.mxu0 0.0
    %7480 = vmatprep.subr.mxu0 0.0
    %7481 = vmatpush1.msra.mxu0 0.0
    %7482 = vmatprep.subr.mxu0 0.0
    %7483 = vmatpush1.msra.mxu0 0.0
    %7484 = vmatprep.subr.mxu0 0.0
    %7485 = vmatpush1.msra.mxu0 0.0
    %7486 = vmatprep.subr.mxu0 0.0
    %7487 = vmatpush1.msra.mxu0 0.0
    %7488 = vmatprep.subr.mxu0 0.0
    %7489 = vmatpush1.msra.mxu0 0.0
    %7490 = vmatprep.subr.mxu0 0.0
    %7491 = vmatpush1.msra.mxu0 0.0
    %7492 = vmatprep.subr.mxu0 0.0
    %7493 = vmatpush1.msra.mxu0 0.0
    %7494 = vmatprep.subr.mxu0 0.0
    %7495 = vmatpush1.msra.mxu0 0.0
    %7496 = vmatprep.subr.mxu0 0.0
    %7497 = vmatpush1.msra.mxu0 0.0
    %7498 = vmatprep.subr.mxu0 0.0
    %7499 = vmatpush1.msra.mxu0 0.0
    %7500 = vmatprep.subr.mxu0 0.0
    %7501 = vmatpush1.msra.mxu0 0.0
    %7502 = vmatprep.subr.mxu0 0.0
    %7503 = vmatpush1.msra.mxu0 0.0
    %7504 = vmatprep.subr.mxu0 0.0
    %7505 = vmatpush1.msra.mxu0 0.0
    %7506 = vmatprep.subr.mxu0 0.0
    %7507 = vmatpush1.msra.mxu0 0.0
    %7508 = vmatprep.subr.mxu0 0.0
    %7509 = vmatpush1.msra.mxu0 0.0
    %7510 = vmatprep.subr.mxu0 0.0
    %7511 = vmatpush1.msra.mxu0 0.0
    %7512 = vmatprep.subr.mxu0 0.0
    %7513 = vmatpush1.msra.mxu0 0.0
    %7514 = vmatprep.mubr.f32.mxu0 0.0
    %7515 = vmatmul.mubr.f32.gmra.mrb[0].mxu0 %v7448
    %v7516 = vpop.f32.mrb[0].mxu0
    %v7517 = vadd.f32 0.0, %v7516
    %v7518 = vpop.f32.mrb[0].mxu0
    %7519 = vdwg.mxu0
    %v7520 = vadd.f32 %v7435, %v7517
    %s7521 = scalar_lea.vmem %s10, 1408
    %v7522 = vld [vmem:[%s7521] sm:$0xff]
    %v7523 = vld [vmem:[%s7521 + $0x8] sm:$0xff]
    %v7524 = vld [vmem:[%s7521 + $0x10] sm:$0xff]
    %v7525 = vld [vmem:[%s7521 + $0x18] sm:$0xff]
    %v7526 = vld [vmem:[%s7521 + $0x20] sm:$0xff]
    %v7527 = vld [vmem:[%s7521 + $0x28] sm:$0xff]
    %v7528 = vld [vmem:[%s7521 + $0x30] sm:$0xff]
    %v7529 = vld [vmem:[%s7521 + $0x38] sm:$0xff]
    %v7530 = vrot.slane %v2979, 6
    %v7531 = vrot.slane %v5651, 5
    %v7532 = vsel %vm5673, %v7531, %v7530
    %v7533 = vsel %vm166, %v7532, 0
    %7535 = vmatprep.subr.mxu0 0.0
    %7536 = vmatpush1.msra.mxu0 %v7522
    %7537 = vmatprep.subr.mxu0 0.0
    %7538 = vmatpush1.msra.mxu0 %v7523
    %7539 = vmatprep.subr.mxu0 0.0
    %7540 = vmatpush1.msra.mxu0 %v7524
    %7541 = vmatprep.subr.mxu0 0.0
    %7542 = vmatpush1.msra.mxu0 %v7525
    %7543 = vmatprep.subr.mxu0 0.0
    %7544 = vmatpush1.msra.mxu0 %v7526
    %7545 = vmatprep.subr.mxu0 0.0
    %7546 = vmatpush1.msra.mxu0 %v7527
    %7547 = vmatprep.subr.mxu0 0.0
    %7548 = vmatpush1.msra.mxu0 %v7528
    %7549 = vmatprep.subr.mxu0 0.0
    %7550 = vmatpush1.msra.mxu0 %v7529
    %7551 = vmatprep.subr.mxu0 0.0
    %7552 = vmatpush1.msra.mxu0 0.0
    %7553 = vmatprep.subr.mxu0 0.0
    %7554 = vmatpush1.msra.mxu0 0.0
    %7555 = vmatprep.subr.mxu0 0.0
    %7556 = vmatpush1.msra.mxu0 0.0
    %7557 = vmatprep.subr.mxu0 0.0
    %7558 = vmatpush1.msra.mxu0 0.0
    %7559 = vmatprep.subr.mxu0 0.0
    %7560 = vmatpush1.msra.mxu0 0.0
    %7561 = vmatprep.subr.mxu0 0.0
    %7562 = vmatpush1.msra.mxu0 0.0
    %7563 = vmatprep.subr.mxu0 0.0
    %7564 = vmatpush1.msra.mxu0 0.0
    %7565 = vmatprep.subr.mxu0 0.0
    %7566 = vmatpush1.msra.mxu0 0.0
    %7567 = vmatprep.subr.mxu0 0.0
    %7568 = vmatpush1.msra.mxu0 0.0
    %7569 = vmatprep.subr.mxu0 0.0
    %7570 = vmatpush1.msra.mxu0 0.0
    %7571 = vmatprep.subr.mxu0 0.0
    %7572 = vmatpush1.msra.mxu0 0.0
    %7573 = vmatprep.subr.mxu0 0.0
    %7574 = vmatpush1.msra.mxu0 0.0
    %7575 = vmatprep.subr.mxu0 0.0
    %7576 = vmatpush1.msra.mxu0 0.0
    %7577 = vmatprep.subr.mxu0 0.0
    %7578 = vmatpush1.msra.mxu0 0.0
    %7579 = vmatprep.subr.mxu0 0.0
    %7580 = vmatpush1.msra.mxu0 0.0
    %7581 = vmatprep.subr.mxu0 0.0
    %7582 = vmatpush1.msra.mxu0 0.0
    %7583 = vmatprep.subr.mxu0 0.0
    %7584 = vmatpush1.msra.mxu0 0.0
    %7585 = vmatprep.subr.mxu0 0.0
    %7586 = vmatpush1.msra.mxu0 0.0
    %7587 = vmatprep.subr.mxu0 0.0
    %7588 = vmatpush1.msra.mxu0 0.0
    %7589 = vmatprep.subr.mxu0 0.0
    %7590 = vmatpush1.msra.mxu0 0.0
    %7591 = vmatprep.subr.mxu0 0.0
    %7592 = vmatpush1.msra.mxu0 0.0
    %7593 = vmatprep.subr.mxu0 0.0
    %7594 = vmatpush1.msra.mxu0 0.0
    %7595 = vmatprep.subr.mxu0 0.0
    %7596 = vmatpush1.msra.mxu0 0.0
    %7597 = vmatprep.subr.mxu0 0.0
    %7598 = vmatpush1.msra.mxu0 0.0
    %7599 = vmatprep.mubr.f32.mxu0 0.0
    %7600 = vmatmul.mubr.f32.gmra.mrb[0].mxu0 %v7533
    %v7601 = vpop.f32.mrb[0].mxu0
    %v7602 = vadd.f32 0.0, %v7601
    %v7603 = vpop.f32.mrb[0].mxu0
    %7604 = vdwg.mxu0
    %v7605 = vadd.f32 %v7520, %v7602
    %s7606 = scalar_lea.vmem %s10, 1472
    %v7607 = vld [vmem:[%s7606] sm:$0xff]
    %v7608 = vld [vmem:[%s7606 + $0x8] sm:$0xff]
    %v7609 = vld [vmem:[%s7606 + $0x10] sm:$0xff]
    %v7610 = vld [vmem:[%s7606 + $0x18] sm:$0xff]
    %v7611 = vld [vmem:[%s7606 + $0x20] sm:$0xff]
    %v7612 = vld [vmem:[%s7606 + $0x28] sm:$0xff]
    %v7613 = vld [vmem:[%s7606 + $0x30] sm:$0xff]
    %v7614 = vld [vmem:[%s7606 + $0x38] sm:$0xff]
    %v7615 = vrot.slane %v2979, 7
    %v7616 = vrot.slane %v5651, 6
    %v7617 = vsel %vm5673, %v7616, %v7615
    %v7618 = vsel %vm166, %v7617, 0
    %7620 = vmatprep.subr.mxu0 0.0
    %7621 = vmatpush1.msra.mxu0 %v7607
    %7622 = vmatprep.subr.mxu0 0.0
    %7623 = vmatpush1.msra.mxu0 %v7608
    %7624 = vmatprep.subr.mxu0 0.0
    %7625 = vmatpush1.msra.mxu0 %v7609
    %7626 = vmatprep.subr.mxu0 0.0
    %7627 = vmatpush1.msra.mxu0 %v7610
    %7628 = vmatprep.subr.mxu0 0.0
    %7629 = vmatpush1.msra.mxu0 %v7611
    %7630 = vmatprep.subr.mxu0 0.0
    %7631 = vmatpush1.msra.mxu0 %v7612
    %7632 = vmatprep.subr.mxu0 0.0
    %7633 = vmatpush1.msra.mxu0 %v7613
    %7634 = vmatprep.subr.mxu0 0.0
    %7635 = vmatpush1.msra.mxu0 %v7614
    %7636 = vmatprep.subr.mxu0 0.0
    %7637 = vmatpush1.msra.mxu0 0.0
    %7638 = vmatprep.subr.mxu0 0.0
    %7639 = vmatpush1.msra.mxu0 0.0
    %7640 = vmatprep.subr.mxu0 0.0
    %7641 = vmatpush1.msra.mxu0 0.0
    %7642 = vmatprep.subr.mxu0 0.0
    %7643 = vmatpush1.msra.mxu0 0.0
    %7644 = vmatprep.subr.mxu0 0.0
    %7645 = vmatpush1.msra.mxu0 0.0
    %7646 = vmatprep.subr.mxu0 0.0
    %7647 = vmatpush1.msra.mxu0 0.0
    %7648 = vmatprep.subr.mxu0 0.0
    %7649 = vmatpush1.msra.mxu0 0.0
    %7650 = vmatprep.subr.mxu0 0.0
    %7651 = vmatpush1.msra.mxu0 0.0
    %7652 = vmatprep.subr.mxu0 0.0
    %7653 = vmatpush1.msra.mxu0 0.0
    %7654 = vmatprep.subr.mxu0 0.0
    %7655 = vmatpush1.msra.mxu0 0.0
    %7656 = vmatprep.subr.mxu0 0.0
    %7657 = vmatpush1.msra.mxu0 0.0
    %7658 = vmatprep.subr.mxu0 0.0
    %7659 = vmatpush1.msra.mxu0 0.0
    %7660 = vmatprep.subr.mxu0 0.0
    %7661 = vmatpush1.msra.mxu0 0.0
    %7662 = vmatprep.subr.mxu0 0.0
    %7663 = vmatpush1.msra.mxu0 0.0
    %7664 = vmatprep.subr.mxu0 0.0
    %7665 = vmatpush1.msra.mxu0 0.0
    %7666 = vmatprep.subr.mxu0 0.0
    %7667 = vmatpush1.msra.mxu0 0.0
    %7668 = vmatprep.subr.mxu0 0.0
    %7669 = vmatpush1.msra.mxu0 0.0
    %7670 = vmatprep.subr.mxu0 0.0
    %7671 = vmatpush1.msra.mxu0 0.0
    %7672 = vmatprep.subr.mxu0 0.0
    %7673 = vmatpush1.msra.mxu0 0.0
    %7674 = vmatprep.subr.mxu0 0.0
    %7675 = vmatpush1.msra.mxu0 0.0
    %7676 = vmatprep.subr.mxu0 0.0
    %7677 = vmatpush1.msra.mxu0 0.0
    %7678 = vmatprep.subr.mxu0 0.0
    %7679 = vmatpush1.msra.mxu0 0.0
    %7680 = vmatprep.subr.mxu0 0.0
    %7681 = vmatpush1.msra.mxu0 0.0
    %7682 = vmatprep.subr.mxu0 0.0
    %7683 = vmatpush1.msra.mxu0 0.0
    %7684 = vmatprep.mubr.f32.mxu0 0.0
    %7685 = vmatmul.mubr.f32.gmra.mrb[0].mxu0 %v7618
    %v7686 = vpop.f32.mrb[0].mxu0
    %v7687 = vadd.f32 0.0, %v7686
    %v7688 = vpop.f32.mrb[0].mxu0
    %7689 = vdwg.mxu0
    %v7690 = vadd.f32 %v7605, %v7687
    %s7691 = scalar_lea.vmem %s10, 1536
    %v7692 = vld [vmem:[%s7691] sm:$0xff]
    %v7693 = vld [vmem:[%s7691 + $0x8] sm:$0xff]
    %v7694 = vld [vmem:[%s7691 + $0x10] sm:$0xff]
    %v7695 = vld [vmem:[%s7691 + $0x18] sm:$0xff]
    %v7696 = vld [vmem:[%s7691 + $0x20] sm:$0xff]
    %v7697 = vld [vmem:[%s7691 + $0x28] sm:$0xff]
    %v7698 = vld [vmem:[%s7691 + $0x30] sm:$0xff]
    %v7699 = vld [vmem:[%s7691 + $0x38] sm:$0xff]
    %v7702 = vrot.slane %v5652, 7
    %v7703 = vsel %vm5673, %v7702, %v2980
    %v7704 = vsel %vm166, %v7703, 0
    %7706 = vmatprep.subr.mxu0 0.0
    %7707 = vmatpush1.msra.mxu0 %v7692
    %7708 = vmatprep.subr.mxu0 0.0
    %7709 = vmatpush1.msra.mxu0 %v7693
    %7710 = vmatprep.subr.mxu0 0.0
    %7711 = vmatpush1.msra.mxu0 %v7694
    %7712 = vmatprep.subr.mxu0 0.0
    %7713 = vmatpush1.msra.mxu0 %v7695
    %7714 = vmatprep.subr.mxu0 0.0
    %7715 = vmatpush1.msra.mxu0 %v7696
    %7716 = vmatprep.subr.mxu0 0.0
    %7717 = vmatpush1.msra.mxu0 %v7697
    %7718 = vmatprep.subr.mxu0 0.0
    %7719 = vmatpush1.msra.mxu0 %v7698
    %7720 = vmatprep.subr.mxu0 0.0
    %7721 = vmatpush1.msra.mxu0 %v7699
    %7722 = vmatprep.subr.mxu0 0.0
    %7723 = vmatpush1.msra.mxu0 0.0
    %7724 = vmatprep.subr.mxu0 0.0
    %7725 = vmatpush1.msra.mxu0 0.0
    %7726 = vmatprep.subr.mxu0 0.0
    %7727 = vmatpush1.msra.mxu0 0.0
    %7728 = vmatprep.subr.mxu0 0.0
    %7729 = vmatpush1.msra.mxu0 0.0
    %7730 = vmatprep.subr.mxu0 0.0
    %7731 = vmatpush1.msra.mxu0 0.0
    %7732 = vmatprep.subr.mxu0 0.0
    %7733 = vmatpush1.msra.mxu0 0.0
    %7734 = vmatprep.subr.mxu0 0.0
    %7735 = vmatpush1.msra.mxu0 0.0
    %7736 = vmatprep.subr.mxu0 0.0
    %7737 = vmatpush1.msra.mxu0 0.0
    %7738 = vmatprep.subr.mxu0 0.0
    %7739 = vmatpush1.msra.mxu0 0.0
    %7740 = vmatprep.subr.mxu0 0.0
    %7741 = vmatpush1.msra.mxu0 0.0
    %7742 = vmatprep.subr.mxu0 0.0
    %7743 = vmatpush1.msra.mxu0 0.0
    %7744 = vmatprep.subr.mxu0 0.0
    %7745 = vmatpush1.msra.mxu0 0.0
    %7746 = vmatprep.subr.mxu0 0.0
    %7747 = vmatpush1.msra.mxu0 0.0
    %7748 = vmatprep.subr.mxu0 0.0
    %7749 = vmatpush1.msra.mxu0 0.0
    %7750 = vmatprep.subr.mxu0 0.0
    %7751 = vmatpush1.msra.mxu0 0.0
    %7752 = vmatprep.subr.mxu0 0.0
    %7753 = vmatpush1.msra.mxu0 0.0
    %7754 = vmatprep.subr.mxu0 0.0
    %7755 = vmatpush1.msra.mxu0 0.0
    %7756 = vmatprep.subr.mxu0 0.0
    %7757 = vmatpush1.msra.mxu0 0.0
    %7758 = vmatprep.subr.mxu0 0.0
    %7759 = vmatpush1.msra.mxu0 0.0
    %7760 = vmatprep.subr.mxu0 0.0
    %7761 = vmatpush1.msra.mxu0 0.0
    %7762 = vmatprep.subr.mxu0 0.0
    %7763 = vmatpush1.msra.mxu0 0.0
    %7764 = vmatprep.subr.mxu0 0.0
    %7765 = vmatpush1.msra.mxu0 0.0
    %7766 = vmatprep.subr.mxu0 0.0
    %7767 = vmatpush1.msra.mxu0 0.0
    %7768 = vmatprep.subr.mxu0 0.0
    %7769 = vmatpush1.msra.mxu0 0.0
    %7770 = vmatprep.mubr.f32.mxu0 0.0
    %7771 = vmatmul.mubr.f32.gmra.mrb[0].mxu0 %v7704
    %v7772 = vpop.f32.mrb[0].mxu0
    %v7773 = vadd.f32 0.0, %v7772
    %v7774 = vpop.f32.mrb[0].mxu0
    %7775 = vdwg.mxu0
    %v7776 = vadd.f32 %v7690, %v7773
    %s7777 = scalar_lea.vmem %s10, 1600
    %v7778 = vld [vmem:[%s7777] sm:$0xff]
    %v7779 = vld [vmem:[%s7777 + $0x8] sm:$0xff]
    %v7780 = vld [vmem:[%s7777 + $0x10] sm:$0xff]
    %v7781 = vld [vmem:[%s7777 + $0x18] sm:$0xff]
    %v7782 = vld [vmem:[%s7777 + $0x20] sm:$0xff]
    %v7783 = vld [vmem:[%s7777 + $0x28] sm:$0xff]
    %v7784 = vld [vmem:[%s7777 + $0x30] sm:$0xff]
    %v7785 = vld [vmem:[%s7777 + $0x38] sm:$0xff]
    %v7786 = vrot.slane %v2980, 1
    %v7787 = vsel %vm5673, %v5652, %v7786
    %v7788 = vsel %vm166, %v7787, 0
    %7790 = vmatprep.subr.mxu0 0.0
    %7791 = vmatpush1.msra.mxu0 %v7778
    %7792 = vmatprep.subr.mxu0 0.0
    %7793 = vmatpush1.msra.mxu0 %v7779
    %7794 = vmatprep.subr.mxu0 0.0
    %7795 = vmatpush1.msra.mxu0 %v7780
    %7796 = vmatprep.subr.mxu0 0.0
    %7797 = vmatpush1.msra.mxu0 %v7781
    %7798 = vmatprep.subr.mxu0 0.0
    %7799 = vmatpush1.msra.mxu0 %v7782
    %7800 = vmatprep.subr.mxu0 0.0
    %7801 = vmatpush1.msra.mxu0 %v7783
    %7802 = vmatprep.subr.mxu0 0.0
    %7803 = vmatpush1.msra.mxu0 %v7784
    %7804 = vmatprep.subr.mxu0 0.0
    %7805 = vmatpush1.msra.mxu0 %v7785
    %7806 = vmatprep.subr.mxu0 0.0
    %7807 = vmatpush1.msra.mxu0 0.0
    %7808 = vmatprep.subr.mxu0 0.0
    %7809 = vmatpush1.msra.mxu0 0.0
    %7810 = vmatprep.subr.mxu0 0.0
    %7811 = vmatpush1.msra.mxu0 0.0
    %7812 = vmatprep.subr.mxu0 0.0
    %7813 = vmatpush1.msra.mxu0 0.0
    %7814 = vmatprep.subr.mxu0 0.0
    %7815 = vmatpush1.msra.mxu0 0.0
    %7816 = vmatprep.subr.mxu0 0.0
    %7817 = vmatpush1.msra.mxu0 0.0
    %7818 = vmatprep.subr.mxu0 0.0
    %7819 = vmatpush1.msra.mxu0 0.0
    %7820 = vmatprep.subr.mxu0 0.0
    %7821 = vmatpush1.msra.mxu0 0.0
    %7822 = vmatprep.subr.mxu0 0.0
    %7823 = vmatpush1.msra.mxu0 0.0
    %7824 = vmatprep.subr.mxu0 0.0
    %7825 = vmatpush1.msra.mxu0 0.0
    %7826 = vmatprep.subr.mxu0 0.0
    %7827 = vmatpush1.msra.mxu0 0.0
    %7828 = vmatprep.subr.mxu0 0.0
    %7829 = vmatpush1.msra.mxu0 0.0
    %7830 = vmatprep.subr.mxu0 0.0
    %7831 = vmatpush1.msra.mxu0 0.0
    %7832 = vmatprep.subr.mxu0 0.0
    %7833 = vmatpush1.msra.mxu0 0.0
    %7834 = vmatprep.subr.mxu0 0.0
    %7835 = vmatpush1.msra.mxu0 0.0
    %7836 = vmatprep.subr.mxu0 0.0
    %7837 = vmatpush1.msra.mxu0 0.0
    %7838 = vmatprep.subr.mxu0 0.0
    %7839 = vmatpush1.msra.mxu0 0.0
    %7840 = vmatprep.subr.mxu0 0.0
    %7841 = vmatpush1.msra.mxu0 0.0
    %7842 = vmatprep.subr.mxu0 0.0
    %7843 = vmatpush1.msra.mxu0 0.0
    %7844 = vmatprep.subr.mxu0 0.0
    %7845 = vmatpush1.msra.mxu0 0.0
    %7846 = vmatprep.subr.mxu0 0.0
    %7847 = vmatpush1.msra.mxu0 0.0
    %7848 = vmatprep.subr.mxu0 0.0
    %7849 = vmatpush1.msra.mxu0 0.0
    %7850 = vmatprep.subr.mxu0 0.0
    %7851 = vmatpush1.msra.mxu0 0.0
    %7852 = vmatprep.subr.mxu0 0.0
    %7853 = vmatpush1.msra.mxu0 0.0
    %7854 = vmatprep.mubr.f32.mxu0 0.0
    %7855 = vmatmul.mubr.f32.gmra.mrb[0].mxu0 %v7788
    %v7856 = vpop.f32.mrb[0].mxu0
    %v7857 = vadd.f32 0.0, %v7856
    %v7858 = vpop.f32.mrb[0].mxu0
    %7859 = vdwg.mxu0
    %v7860 = vadd.f32 %v7776, %v7857
    %s7861 = scalar_lea.vmem %s10, 1664
    %v7862 = vld [vmem:[%s7861] sm:$0xff]
    %v7863 = vld [vmem:[%s7861 + $0x8] sm:$0xff]
    %v7864 = vld [vmem:[%s7861 + $0x10] sm:$0xff]
    %v7865 = vld [vmem:[%s7861 + $0x18] sm:$0xff]
    %v7866 = vld [vmem:[%s7861 + $0x20] sm:$0xff]
    %v7867 = vld [vmem:[%s7861 + $0x28] sm:$0xff]
    %v7868 = vld [vmem:[%s7861 + $0x30] sm:$0xff]
    %v7869 = vld [vmem:[%s7861 + $0x38] sm:$0xff]
    %v7870 = vrot.slane %v2980, 2
    %v7871 = vrot.slane %v5652, 1
    %v7872 = vsel %vm5673, %v7871, %v7870
    %v7873 = vsel %vm166, %v7872, 0
    %7875 = vmatprep.subr.mxu0 0.0
    %7876 = vmatpush1.msra.mxu0 %v7862
    %7877 = vmatprep.subr.mxu0 0.0
    %7878 = vmatpush1.msra.mxu0 %v7863
    %7879 = vmatprep.subr.mxu0 0.0
    %7880 = vmatpush1.msra.mxu0 %v7864
    %7881 = vmatprep.subr.mxu0 0.0
    %7882 = vmatpush1.msra.mxu0 %v7865
    %7883 = vmatprep.subr.mxu0 0.0
    %7884 = vmatpush1.msra.mxu0 %v7866
    %7885 = vmatprep.subr.mxu0 0.0
    %7886 = vmatpush1.msra.mxu0 %v7867
    %7887 = vmatprep.subr.mxu0 0.0
    %7888 = vmatpush1.msra.mxu0 %v7868
    %7889 = vmatprep.subr.mxu0 0.0
    %7890 = vmatpush1.msra.mxu0 %v7869
    %7891 = vmatprep.subr.mxu0 0.0
    %7892 = vmatpush1.msra.mxu0 0.0
    %7893 = vmatprep.subr.mxu0 0.0
    %7894 = vmatpush1.msra.mxu0 0.0
    %7895 = vmatprep.subr.mxu0 0.0
    %7896 = vmatpush1.msra.mxu0 0.0
    %7897 = vmatprep.subr.mxu0 0.0
    %7898 = vmatpush1.msra.mxu0 0.0
    %7899 = vmatprep.subr.mxu0 0.0
    %7900 = vmatpush1.msra.mxu0 0.0
    %7901 = vmatprep.subr.mxu0 0.0
    %7902 = vmatpush1.msra.mxu0 0.0
    %7903 = vmatprep.subr.mxu0 0.0
    %7904 = vmatpush1.msra.mxu0 0.0
    %7905 = vmatprep.subr.mxu0 0.0
    %7906 = vmatpush1.msra.mxu0 0.0
    %7907 = vmatprep.subr.mxu0 0.0
    %7908 = vmatpush1.msra.mxu0 0.0
    %7909 = vmatprep.subr.mxu0 0.0
    %7910 = vmatpush1.msra.mxu0 0.0
    %7911 = vmatprep.subr.mxu0 0.0
    %7912 = vmatpush1.msra.mxu0 0.0
    %7913 = vmatprep.subr.mxu0 0.0
    %7914 = vmatpush1.msra.mxu0 0.0
    %7915 = vmatprep.subr.mxu0 0.0
    %7916 = vmatpush1.msra.mxu0 0.0
    %7917 = vmatprep.subr.mxu0 0.0
    %7918 = vmatpush1.msra.mxu0 0.0
    %7919 = vmatprep.subr.mxu0 0.0
    %7920 = vmatpush1.msra.mxu0 0.0
    %7921 = vmatprep.subr.mxu0 0.0
    %7922 = vmatpush1.msra.mxu0 0.0
    %7923 = vmatprep.subr.mxu0 0.0
    %7924 = vmatpush1.msra.mxu0 0.0
    %7925 = vmatprep.subr.mxu0 0.0
    %7926 = vmatpush1.msra.mxu0 0.0
    %7927 = vmatprep.subr.mxu0 0.0
    %7928 = vmatpush1.msra.mxu0 0.0
    %7929 = vmatprep.subr.mxu0 0.0
    %7930 = vmatpush1.msra.mxu0 0.0
    %7931 = vmatprep.subr.mxu0 0.0
    %7932 = vmatpush1.msra.mxu0 0.0
    %7933 = vmatprep.subr.mxu0 0.0
    %7934 = vmatpush1.msra.mxu0 0.0
    %7935 = vmatprep.subr.mxu0 0.0
    %7936 = vmatpush1.msra.mxu0 0.0
    %7937 = vmatprep.subr.mxu0 0.0
    %7938 = vmatpush1.msra.mxu0 0.0
    %7939 = vmatprep.mubr.f32.mxu0 0.0
    %7940 = vmatmul.mubr.f32.gmra.mrb[0].mxu0 %v7873
    %v7941 = vpop.f32.mrb[0].mxu0
    %v7942 = vadd.f32 0.0, %v7941
    %v7943 = vpop.f32.mrb[0].mxu0
    %7944 = vdwg.mxu0
    %v7945 = vadd.f32 %v7860, %v7942
    %s7946 = scalar_lea.vmem %s10, 1728
    %v7947 = vld [vmem:[%s7946] sm:$0xff]
    %v7948 = vld [vmem:[%s7946 + $0x8] sm:$0xff]
    %v7949 = vld [vmem:[%s7946 + $0x10] sm:$0xff]
    %v7950 = vld [vmem:[%s7946 + $0x18] sm:$0xff]
    %v7951 = vld [vmem:[%s7946 + $0x20] sm:$0xff]
    %v7952 = vld [vmem:[%s7946 + $0x28] sm:$0xff]
    %v7953 = vld [vmem:[%s7946 + $0x30] sm:$0xff]
    %v7954 = vld [vmem:[%s7946 + $0x38] sm:$0xff]
    %v7955 = vrot.slane %v2980, 3
    %v7956 = vrot.slane %v5652, 2
    %v7957 = vsel %vm5673, %v7956, %v7955
    %v7958 = vsel %vm166, %v7957, 0
    %7960 = vmatprep.subr.mxu0 0.0
    %7961 = vmatpush1.msra.mxu0 %v7947
    %7962 = vmatprep.subr.mxu0 0.0
    %7963 = vmatpush1.msra.mxu0 %v7948
    %7964 = vmatprep.subr.mxu0 0.0
    %7965 = vmatpush1.msra.mxu0 %v7949
    %7966 = vmatprep.subr.mxu0 0.0
    %7967 = vmatpush1.msra.mxu0 %v7950
    %7968 = vmatprep.subr.mxu0 0.0
    %7969 = vmatpush1.msra.mxu0 %v7951
    %7970 = vmatprep.subr.mxu0 0.0
    %7971 = vmatpush1.msra.mxu0 %v7952
    %7972 = vmatprep.subr.mxu0 0.0
    %7973 = vmatpush1.msra.mxu0 %v7953
    %7974 = vmatprep.subr.mxu0 0.0
    %7975 = vmatpush1.msra.mxu0 %v7954
    %7976 = vmatprep.subr.mxu0 0.0
    %7977 = vmatpush1.msra.mxu0 0.0
    %7978 = vmatprep.subr.mxu0 0.0
    %7979 = vmatpush1.msra.mxu0 0.0
    %7980 = vmatprep.subr.mxu0 0.0
    %7981 = vmatpush1.msra.mxu0 0.0
    %7982 = vmatprep.subr.mxu0 0.0
    %7983 = vmatpush1.msra.mxu0 0.0
    %7984 = vmatprep.subr.mxu0 0.0
    %7985 = vmatpush1.msra.mxu0 0.0
    %7986 = vmatprep.subr.mxu0 0.0
    %7987 = vmatpush1.msra.mxu0 0.0
    %7988 = vmatprep.subr.mxu0 0.0
    %7989 = vmatpush1.msra.mxu0 0.0
    %7990 = vmatprep.subr.mxu0 0.0
    %7991 = vmatpush1.msra.mxu0 0.0
    %7992 = vmatprep.subr.mxu0 0.0
    %7993 = vmatpush1.msra.mxu0 0.0
    %7994 = vmatprep.subr.mxu0 0.0
    %7995 = vmatpush1.msra.mxu0 0.0
    %7996 = vmatprep.subr.mxu0 0.0
    %7997 = vmatpush1.msra.mxu0 0.0
    %7998 = vmatprep.subr.mxu0 0.0
    %7999 = vmatpush1.msra.mxu0 0.0
    %8000 = vmatprep.subr.mxu0 0.0
    %8001 = vmatpush1.msra.mxu0 0.0
    %8002 = vmatprep.subr.mxu0 0.0
    %8003 = vmatpush1.msra.mxu0 0.0
    %8004 = vmatprep.subr.mxu0 0.0
    %8005 = vmatpush1.msra.mxu0 0.0
    %8006 = vmatprep.subr.mxu0 0.0
    %8007 = vmatpush1.msra.mxu0 0.0
    %8008 = vmatprep.subr.mxu0 0.0
    %8009 = vmatpush1.msra.mxu0 0.0
    %8010 = vmatprep.subr.mxu0 0.0
    %8011 = vmatpush1.msra.mxu0 0.0
    %8012 = vmatprep.subr.mxu0 0.0
    %8013 = vmatpush1.msra.mxu0 0.0
    %8014 = vmatprep.subr.mxu0 0.0
    %8015 = vmatpush1.msra.mxu0 0.0
    %8016 = vmatprep.subr.mxu0 0.0
    %8017 = vmatpush1.msra.mxu0 0.0
    %8018 = vmatprep.subr.mxu0 0.0
    %8019 = vmatpush1.msra.mxu0 0.0
    %8020 = vmatprep.subr.mxu0 0.0
    %8021 = vmatpush1.msra.mxu0 0.0
    %8022 = vmatprep.subr.mxu0 0.0
    %8023 = vmatpush1.msra.mxu0 0.0
    %8024 = vmatprep.mubr.f32.mxu0 0.0
    %8025 = vmatmul.mubr.f32.gmra.mrb[0].mxu0 %v7958
    %v8026 = vpop.f32.mrb[0].mxu0
    %v8027 = vadd.f32 0.0, %v8026
    %v8028 = vpop.f32.mrb[0].mxu0
    %8029 = vdwg.mxu0
    %v8030 = vadd.f32 %v7945, %v8027
    %s8031 = scalar_lea.vmem %s10, 1792
    %v8032 = vld [vmem:[%s8031] sm:$0xff]
    %v8033 = vld [vmem:[%s8031 + $0x8] sm:$0xff]
    %v8034 = vld [vmem:[%s8031 + $0x10] sm:$0xff]
    %v8035 = vld [vmem:[%s8031 + $0x18] sm:$0xff]
    %v8036 = vld [vmem:[%s8031 + $0x20] sm:$0xff]
    %v8037 = vld [vmem:[%s8031 + $0x28] sm:$0xff]
    %v8038 = vld [vmem:[%s8031 + $0x30] sm:$0xff]
    %v8039 = vld [vmem:[%s8031 + $0x38] sm:$0xff]
    %v8040 = vrot.slane %v2980, 4
    %v8041 = vrot.slane %v5652, 3
    %v8042 = vsel %vm5673, %v8041, %v8040
    %v8043 = vsel %vm166, %v8042, 0
    %8045 = vmatprep.subr.mxu0 0.0
    %8046 = vmatpush1.msra.mxu0 %v8032
    %8047 = vmatprep.subr.mxu0 0.0
    %8048 = vmatpush1.msra.mxu0 %v8033
    %8049 = vmatprep.subr.mxu0 0.0
    %8050 = vmatpush1.msra.mxu0 %v8034
    %8051 = vmatprep.subr.mxu0 0.0
    %8052 = vmatpush1.msra.mxu0 %v8035
    %8053 = vmatprep.subr.mxu0 0.0
    %8054 = vmatpush1.msra.mxu0 %v8036
    %8055 = vmatprep.subr.mxu0 0.0
    %8056 = vmatpush1.msra.mxu0 %v8037
    %8057 = vmatprep.subr.mxu0 0.0
    %8058 = vmatpush1.msra.mxu0 %v8038
    %8059 = vmatprep.subr.mxu0 0.0
    %8060 = vmatpush1.msra.mxu0 %v8039
    %8061 = vmatprep.subr.mxu0 0.0
    %8062 = vmatpush1.msra.mxu0 0.0
    %8063 = vmatprep.subr.mxu0 0.0
    %8064 = vmatpush1.msra.mxu0 0.0
    %8065 = vmatprep.subr.mxu0 0.0
    %8066 = vmatpush1.msra.mxu0 0.0
    %8067 = vmatprep.subr.mxu0 0.0
    %8068 = vmatpush1.msra.mxu0 0.0
    %8069 = vmatprep.subr.mxu0 0.0
    %8070 = vmatpush1.msra.mxu0 0.0
    %8071 = vmatprep.subr.mxu0 0.0
    %8072 = vmatpush1.msra.mxu0 0.0
    %8073 = vmatprep.subr.mxu0 0.0
    %8074 = vmatpush1.msra.mxu0 0.0
    %8075 = vmatprep.subr.mxu0 0.0
    %8076 = vmatpush1.msra.mxu0 0.0
    %8077 = vmatprep.subr.mxu0 0.0
    %8078 = vmatpush1.msra.mxu0 0.0
    %8079 = vmatprep.subr.mxu0 0.0
    %8080 = vmatpush1.msra.mxu0 0.0
    %8081 = vmatprep.subr.mxu0 0.0
    %8082 = vmatpush1.msra.mxu0 0.0
    %8083 = vmatprep.subr.mxu0 0.0
    %8084 = vmatpush1.msra.mxu0 0.0
    %8085 = vmatprep.subr.mxu0 0.0
    %8086 = vmatpush1.msra.mxu0 0.0
    %8087 = vmatprep.subr.mxu0 0.0
    %8088 = vmatpush1.msra.mxu0 0.0
    %8089 = vmatprep.subr.mxu0 0.0
    %8090 = vmatpush1.msra.mxu0 0.0
    %8091 = vmatprep.subr.mxu0 0.0
    %8092 = vmatpush1.msra.mxu0 0.0
    %8093 = vmatprep.subr.mxu0 0.0
    %8094 = vmatpush1.msra.mxu0 0.0
    %8095 = vmatprep.subr.mxu0 0.0
    %8096 = vmatpush1.msra.mxu0 0.0
    %8097 = vmatprep.subr.mxu0 0.0
    %8098 = vmatpush1.msra.mxu0 0.0
    %8099 = vmatprep.subr.mxu0 0.0
    %8100 = vmatpush1.msra.mxu0 0.0
    %8101 = vmatprep.subr.mxu0 0.0
    %8102 = vmatpush1.msra.mxu0 0.0
    %8103 = vmatprep.subr.mxu0 0.0
    %8104 = vmatpush1.msra.mxu0 0.0
    %8105 = vmatprep.subr.mxu0 0.0
    %8106 = vmatpush1.msra.mxu0 0.0
    %8107 = vmatprep.subr.mxu0 0.0
    %8108 = vmatpush1.msra.mxu0 0.0
    %8109 = vmatprep.mubr.f32.mxu0 0.0
    %8110 = vmatmul.mubr.f32.gmra.mrb[0].mxu0 %v8043
    %v8111 = vpop.f32.mrb[0].mxu0
    %v8112 = vadd.f32 0.0, %v8111
    %v8113 = vpop.f32.mrb[0].mxu0
    %8114 = vdwg.mxu0
    %v8115 = vadd.f32 %v8030, %v8112
    %s8116 = scalar_lea.vmem %s10, 1856
    %v8117 = vld [vmem:[%s8116] sm:$0xff]
    %v8118 = vld [vmem:[%s8116 + $0x8] sm:$0xff]
    %v8119 = vld [vmem:[%s8116 + $0x10] sm:$0xff]
    %v8120 = vld [vmem:[%s8116 + $0x18] sm:$0xff]
    %v8121 = vld [vmem:[%s8116 + $0x20] sm:$0xff]
    %v8122 = vld [vmem:[%s8116 + $0x28] sm:$0xff]
    %v8123 = vld [vmem:[%s8116 + $0x30] sm:$0xff]
    %v8124 = vld [vmem:[%s8116 + $0x38] sm:$0xff]
    %v8125 = vrot.slane %v2980, 5
    %v8126 = vrot.slane %v5652, 4
    %v8127 = vsel %vm5673, %v8126, %v8125
    %v8128 = vsel %vm166, %v8127, 0
    %8130 = vmatprep.subr.mxu0 0.0
    %8131 = vmatpush1.msra.mxu0 %v8117
    %8132 = vmatprep.subr.mxu0 0.0
    %8133 = vmatpush1.msra.mxu0 %v8118
    %8134 = vmatprep.subr.mxu0 0.0
    %8135 = vmatpush1.msra.mxu0 %v8119
    %8136 = vmatprep.subr.mxu0 0.0
    %8137 = vmatpush1.msra.mxu0 %v8120
    %8138 = vmatprep.subr.mxu0 0.0
    %8139 = vmatpush1.msra.mxu0 %v8121
    %8140 = vmatprep.subr.mxu0 0.0
    %8141 = vmatpush1.msra.mxu0 %v8122
    %8142 = vmatprep.subr.mxu0 0.0
    %8143 = vmatpush1.msra.mxu0 %v8123
    %8144 = vmatprep.subr.mxu0 0.0
    %8145 = vmatpush1.msra.mxu0 %v8124
    %8146 = vmatprep.subr.mxu0 0.0
    %8147 = vmatpush1.msra.mxu0 0.0
    %8148 = vmatprep.subr.mxu0 0.0
    %8149 = vmatpush1.msra.mxu0 0.0
    %8150 = vmatprep.subr.mxu0 0.0
    %8151 = vmatpush1.msra.mxu0 0.0
    %8152 = vmatprep.subr.mxu0 0.0
    %8153 = vmatpush1.msra.mxu0 0.0
    %8154 = vmatprep.subr.mxu0 0.0
    %8155 = vmatpush1.msra.mxu0 0.0
    %8156 = vmatprep.subr.mxu0 0.0
    %8157 = vmatpush1.msra.mxu0 0.0
    %8158 = vmatprep.subr.mxu0 0.0
    %8159 = vmatpush1.msra.mxu0 0.0
    %8160 = vmatprep.subr.mxu0 0.0
    %8161 = vmatpush1.msra.mxu0 0.0
    %8162 = vmatprep.subr.mxu0 0.0
    %8163 = vmatpush1.msra.mxu0 0.0
    %8164 = vmatprep.subr.mxu0 0.0
    %8165 = vmatpush1.msra.mxu0 0.0
    %8166 = vmatprep.subr.mxu0 0.0
    %8167 = vmatpush1.msra.mxu0 0.0
    %8168 = vmatprep.subr.mxu0 0.0
    %8169 = vmatpush1.msra.mxu0 0.0
    %8170 = vmatprep.subr.mxu0 0.0
    %8171 = vmatpush1.msra.mxu0 0.0
    %8172 = vmatprep.subr.mxu0 0.0
    %8173 = vmatpush1.msra.mxu0 0.0
    %8174 = vmatprep.subr.mxu0 0.0
    %8175 = vmatpush1.msra.mxu0 0.0
    %8176 = vmatprep.subr.mxu0 0.0
    %8177 = vmatpush1.msra.mxu0 0.0
    %8178 = vmatprep.subr.mxu0 0.0
    %8179 = vmatpush1.msra.mxu0 0.0
    %8180 = vmatprep.subr.mxu0 0.0
    %8181 = vmatpush1.msra.mxu0 0.0
    %8182 = vmatprep.subr.mxu0 0.0
    %8183 = vmatpush1.msra.mxu0 0.0
    %8184 = vmatprep.subr.mxu0 0.0
    %8185 = vmatpush1.msra.mxu0 0.0
    %8186 = vmatprep.subr.mxu0 0.0
    %8187 = vmatpush1.msra.mxu0 0.0
    %8188 = vmatprep.subr.mxu0 0.0
    %8189 = vmatpush1.msra.mxu0 0.0
    %8190 = vmatprep.subr.mxu0 0.0
    %8191 = vmatpush1.msra.mxu0 0.0
    %8192 = vmatprep.subr.mxu0 0.0
    %8193 = vmatpush1.msra.mxu0 0.0
    %8194 = vmatprep.mubr.f32.mxu0 0.0
    %8195 = vmatmul.mubr.f32.gmra.mrb[0].mxu0 %v8128
    %v8196 = vpop.f32.mrb[0].mxu0
    %v8197 = vadd.f32 0.0, %v8196
    %v8198 = vpop.f32.mrb[0].mxu0
    %8199 = vdwg.mxu0
    %v8200 = vadd.f32 %v8115, %v8197
    %s8201 = scalar_lea.vmem %s10, 1920
    %v8202 = vld [vmem:[%s8201] sm:$0xff]
    %v8203 = vld [vmem:[%s8201 + $0x8] sm:$0xff]
    %v8204 = vld [vmem:[%s8201 + $0x10] sm:$0xff]
    %v8205 = vld [vmem:[%s8201 + $0x18] sm:$0xff]
    %v8206 = vld [vmem:[%s8201 + $0x20] sm:$0xff]
    %v8207 = vld [vmem:[%s8201 + $0x28] sm:$0xff]
    %v8208 = vld [vmem:[%s8201 + $0x30] sm:$0xff]
    %v8209 = vld [vmem:[%s8201 + $0x38] sm:$0xff]
    %v8210 = vrot.slane %v2980, 6
    %v8211 = vrot.slane %v5652, 5
    %v8212 = vsel %vm5673, %v8211, %v8210
    %v8213 = vsel %vm166, %v8212, 0
    %8215 = vmatprep.subr.mxu0 0.0
    %8216 = vmatpush1.msra.mxu0 %v8202
    %8217 = vmatprep.subr.mxu0 0.0
    %8218 = vmatpush1.msra.mxu0 %v8203
    %8219 = vmatprep.subr.mxu0 0.0
    %8220 = vmatpush1.msra.mxu0 %v8204
    %8221 = vmatprep.subr.mxu0 0.0
    %8222 = vmatpush1.msra.mxu0 %v8205
    %8223 = vmatprep.subr.mxu0 0.0
    %8224 = vmatpush1.msra.mxu0 %v8206
    %8225 = vmatprep.subr.mxu0 0.0
    %8226 = vmatpush1.msra.mxu0 %v8207
    %8227 = vmatprep.subr.mxu0 0.0
    %8228 = vmatpush1.msra.mxu0 %v8208
    %8229 = vmatprep.subr.mxu0 0.0
    %8230 = vmatpush1.msra.mxu0 %v8209
    %8231 = vmatprep.subr.mxu0 0.0
    %8232 = vmatpush1.msra.mxu0 0.0
    %8233 = vmatprep.subr.mxu0 0.0
    %8234 = vmatpush1.msra.mxu0 0.0
    %8235 = vmatprep.subr.mxu0 0.0
    %8236 = vmatpush1.msra.mxu0 0.0
    %8237 = vmatprep.subr.mxu0 0.0
    %8238 = vmatpush1.msra.mxu0 0.0
    %8239 = vmatprep.subr.mxu0 0.0
    %8240 = vmatpush1.msra.mxu0 0.0
    %8241 = vmatprep.subr.mxu0 0.0
    %8242 = vmatpush1.msra.mxu0 0.0
    %8243 = vmatprep.subr.mxu0 0.0
    %8244 = vmatpush1.msra.mxu0 0.0
    %8245 = vmatprep.subr.mxu0 0.0
    %8246 = vmatpush1.msra.mxu0 0.0
    %8247 = vmatprep.subr.mxu0 0.0
    %8248 = vmatpush1.msra.mxu0 0.0
    %8249 = vmatprep.subr.mxu0 0.0
    %8250 = vmatpush1.msra.mxu0 0.0
    %8251 = vmatprep.subr.mxu0 0.0
    %8252 = vmatpush1.msra.mxu0 0.0
    %8253 = vmatprep.subr.mxu0 0.0
    %8254 = vmatpush1.msra.mxu0 0.0
    %8255 = vmatprep.subr.mxu0 0.0
    %8256 = vmatpush1.msra.mxu0 0.0
    %8257 = vmatprep.subr.mxu0 0.0
    %8258 = vmatpush1.msra.mxu0 0.0
    %8259 = vmatprep.subr.mxu0 0.0
    %8260 = vmatpush1.msra.mxu0 0.0
    %8261 = vmatprep.subr.mxu0 0.0
    %8262 = vmatpush1.msra.mxu0 0.0
    %8263 = vmatprep.subr.mxu0 0.0
    %8264 = vmatpush1.msra.mxu0 0.0
    %8265 = vmatprep.subr.mxu0 0.0
    %8266 = vmatpush1.msra.mxu0 0.0
    %8267 = vmatprep.subr.mxu0 0.0
    %8268 = vmatpush1.msra.mxu0 0.0
    %8269 = vmatprep.subr.mxu0 0.0
    %8270 = vmatpush1.msra.mxu0 0.0
    %8271 = vmatprep.subr.mxu0 0.0
    %8272 = vmatpush1.msra.mxu0 0.0
    %8273 = vmatprep.subr.mxu0 0.0
    %8274 = vmatpush1.msra.mxu0 0.0
    %8275 = vmatprep.subr.mxu0 0.0
    %8276 = vmatpush1.msra.mxu0 0.0
    %8277 = vmatprep.subr.mxu0 0.0
    %8278 = vmatpush1.msra.mxu0 0.0
    %8279 = vmatprep.mubr.f32.mxu0 0.0
    %8280 = vmatmul.mubr.f32.gmra.mrb[0].mxu0 %v8213
    %v8281 = vpop.f32.mrb[0].mxu0
    %v8282 = vadd.f32 0.0, %v8281
    %v8283 = vpop.f32.mrb[0].mxu0
    %8284 = vdwg.mxu0
    %v8285 = vadd.f32 %v8200, %v8282
    %s8286 = scalar_lea.vmem %s10, 1984
    %v8287 = vld [vmem:[%s8286] sm:$0xff]
    %v8288 = vld [vmem:[%s8286 + $0x8] sm:$0xff]
    %v8289 = vld [vmem:[%s8286 + $0x10] sm:$0xff]
    %v8290 = vld [vmem:[%s8286 + $0x18] sm:$0xff]
    %v8291 = vld [vmem:[%s8286 + $0x20] sm:$0xff]
    %v8292 = vld [vmem:[%s8286 + $0x28] sm:$0xff]
    %v8293 = vld [vmem:[%s8286 + $0x30] sm:$0xff]
    %v8294 = vld [vmem:[%s8286 + $0x38] sm:$0xff]
    %v8295 = vrot.slane %v2980, 7
    %v8296 = vrot.slane %v5652, 6
    %v8297 = vsel %vm5673, %v8296, %v8295
    %v8298 = vsel %vm166, %v8297, 0
    %8300 = vmatprep.subr.mxu0 0.0
    %8301 = vmatpush1.msra.mxu0 %v8287
    %8302 = vmatprep.subr.mxu0 0.0
    %8303 = vmatpush1.msra.mxu0 %v8288
    %8304 = vmatprep.subr.mxu0 0.0
    %8305 = vmatpush1.msra.mxu0 %v8289
    %8306 = vmatprep.subr.mxu0 0.0
    %8307 = vmatpush1.msra.mxu0 %v8290
    %8308 = vmatprep.subr.mxu0 0.0
    %8309 = vmatpush1.msra.mxu0 %v8291
    %8310 = vmatprep.subr.mxu0 0.0
    %8311 = vmatpush1.msra.mxu0 %v8292
    %8312 = vmatprep.subr.mxu0 0.0
    %8313 = vmatpush1.msra.mxu0 %v8293
    %8314 = vmatprep.subr.mxu0 0.0
    %8315 = vmatpush1.msra.mxu0 %v8294
    %8316 = vmatprep.subr.mxu0 0.0
    %8317 = vmatpush1.msra.mxu0 0.0
    %8318 = vmatprep.subr.mxu0 0.0
    %8319 = vmatpush1.msra.mxu0 0.0
    %8320 = vmatprep.subr.mxu0 0.0
    %8321 = vmatpush1.msra.mxu0 0.0
    %8322 = vmatprep.subr.mxu0 0.0
    %8323 = vmatpush1.msra.mxu0 0.0
    %8324 = vmatprep.subr.mxu0 0.0
    %8325 = vmatpush1.msra.mxu0 0.0
    %8326 = vmatprep.subr.mxu0 0.0
    %8327 = vmatpush1.msra.mxu0 0.0
    %8328 = vmatprep.subr.mxu0 0.0
    %8329 = vmatpush1.msra.mxu0 0.0
    %8330 = vmatprep.subr.mxu0 0.0
    %8331 = vmatpush1.msra.mxu0 0.0
    %8332 = vmatprep.subr.mxu0 0.0
    %8333 = vmatpush1.msra.mxu0 0.0
    %8334 = vmatprep.subr.mxu0 0.0
    %8335 = vmatpush1.msra.mxu0 0.0
    %8336 = vmatprep.subr.mxu0 0.0
    %8337 = vmatpush1.msra.mxu0 0.0
    %8338 = vmatprep.subr.mxu0 0.0
    %8339 = vmatpush1.msra.mxu0 0.0
    %8340 = vmatprep.subr.mxu0 0.0
    %8341 = vmatpush1.msra.mxu0 0.0
    %8342 = vmatprep.subr.mxu0 0.0
    %8343 = vmatpush1.msra.mxu0 0.0
    %8344 = vmatprep.subr.mxu0 0.0
    %8345 = vmatpush1.msra.mxu0 0.0
    %8346 = vmatprep.subr.mxu0 0.0
    %8347 = vmatpush1.msra.mxu0 0.0
    %8348 = vmatprep.subr.mxu0 0.0
    %8349 = vmatpush1.msra.mxu0 0.0
    %8350 = vmatprep.subr.mxu0 0.0
    %8351 = vmatpush1.msra.mxu0 0.0
    %8352 = vmatprep.subr.mxu0 0.0
    %8353 = vmatpush1.msra.mxu0 0.0
    %8354 = vmatprep.subr.mxu0 0.0
    %8355 = vmatpush1.msra.mxu0 0.0
    %8356 = vmatprep.subr.mxu0 0.0
    %8357 = vmatpush1.msra.mxu0 0.0
    %8358 = vmatprep.subr.mxu0 0.0
    %8359 = vmatpush1.msra.mxu0 0.0
    %8360 = vmatprep.subr.mxu0 0.0
    %8361 = vmatpush1.msra.mxu0 0.0
    %8362 = vmatprep.subr.mxu0 0.0
    %8363 = vmatpush1.msra.mxu0 0.0
    %8364 = vmatprep.mubr.f32.mxu0 0.0
    %8365 = vmatmul.mubr.f32.gmra.mrb[0].mxu0 %v8298
    %v8366 = vpop.f32.mrb[0].mxu0
    %v8367 = vadd.f32 0.0, %v8366
    %v8368 = vpop.f32.mrb[0].mxu0
    %8369 = vdwg.mxu0
    %v8370 = vadd.f32 %v8285, %v8367
    %v8371 = vld [vmem:[%s11] sm:$0x1]
    %v8373 = vlaneseq
    %v8374 = vshrl.u32 %v8373, 7
    %v8375 = vsub.s32 0, %v8374
    %v8376 = vrot.slane %v8371, %v8375
    %v8378 = vadd.f32 %v8370, %v8376
    %v8379 = vmax.f32 %v8378, 0.0
    %v8380 = vld [vmem:[%s12] sm:$0xff]
    %v8381 = vld [vmem:[%s13] sm:$0xff]
    %v8382 = vld [vmem:[%s13 + $0x8] sm:$0xff]
    %v8384 = vsel %vm880, %v8379, 0
    %8386 = vmatprep.subr.mxu0 0.0
    %8387 = vmatpush1.msra.mxu0 %v8381
    %8388 = vmatprep.subr.mxu0 0.0
    %8389 = vmatpush1.msra.mxu0 %v8382
    %8390 = vmatprep.subr.mxu0 0.0
    %8391 = vmatpush1.msra.mxu0 0.0
    %8392 = vmatprep.subr.mxu0 0.0
    %8393 = vmatpush1.msra.mxu0 0.0
    %8394 = vmatprep.subr.mxu0 0.0
    %8395 = vmatpush1.msra.mxu0 0.0
    %8396 = vmatprep.subr.mxu0 0.0
    %8397 = vmatpush1.msra.mxu0 0.0
    %8398 = vmatprep.subr.mxu0 0.0
    %8399 = vmatpush1.msra.mxu0 0.0
    %8400 = vmatprep.subr.mxu0 0.0
    %8401 = vmatpush1.msra.mxu0 0.0
    %8402 = vmatprep.subr.mxu0 0.0
    %8403 = vmatpush1.msra.mxu0 0.0
    %8404 = vmatprep.subr.mxu0 0.0
    %8405 = vmatpush1.msra.mxu0 0.0
    %8406 = vmatprep.subr.mxu0 0.0
    %8407 = vmatpush1.msra.mxu0 0.0
    %8408 = vmatprep.subr.mxu0 0.0
    %8409 = vmatpush1.msra.mxu0 0.0
    %8410 = vmatprep.subr.mxu0 0.0
    %8411 = vmatpush1.msra.mxu0 0.0
    %8412 = vmatprep.subr.mxu0 0.0
    %8413 = vmatpush1.msra.mxu0 0.0
    %8414 = vmatprep.subr.mxu0 0.0
    %8415 = vmatpush1.msra.mxu0 0.0
    %8416 = vmatprep.subr.mxu0 0.0
    %8417 = vmatpush1.msra.mxu0 0.0
    %8418 = vmatprep.subr.mxu0 0.0
    %8419 = vmatpush1.msra.mxu0 0.0
    %8420 = vmatprep.subr.mxu0 0.0
    %8421 = vmatpush1.msra.mxu0 0.0
    %8422 = vmatprep.subr.mxu0 0.0
    %8423 = vmatpush1.msra.mxu0 0.0
    %8424 = vmatprep.subr.mxu0 0.0
    %8425 = vmatpush1.msra.mxu0 0.0
    %8426 = vmatprep.subr.mxu0 0.0
    %8427 = vmatpush1.msra.mxu0 0.0
    %8428 = vmatprep.subr.mxu0 0.0
    %8429 = vmatpush1.msra.mxu0 0.0
    %8430 = vmatprep.subr.mxu0 0.0
    %8431 = vmatpush1.msra.mxu0 0.0
    %8432 = vmatprep.subr.mxu0 0.0
    %8433 = vmatpush1.msra.mxu0 0.0
    %8434 = vmatprep.subr.mxu0 0.0
    %8435 = vmatpush1.msra.mxu0 0.0
    %8436 = vmatprep.subr.mxu0 0.0
    %8437 = vmatpush1.msra.mxu0 0.0
    %8438 = vmatprep.subr.mxu0 0.0
    %8439 = vmatpush1.msra.mxu0 0.0
    %8440 = vmatprep.subr.mxu0 0.0
    %8441 = vmatpush1.msra.mxu0 0.0
    %8442 = vmatprep.subr.mxu0 0.0
    %8443 = vmatpush1.msra.mxu0 0.0
    %8444 = vmatprep.subr.mxu0 0.0
    %8445 = vmatpush1.msra.mxu0 0.0
    %8446 = vmatprep.subr.mxu0 0.0
    %8447 = vmatpush1.msra.mxu0 0.0
    %8448 = vmatprep.subr.mxu0 0.0
    %8449 = vmatpush1.msra.mxu0 0.0
    %8450 = vmatprep.mubr.f32.mxu0 0.0
    %8451 = vmatmul.mubr.f32.gmra.mrb[0].mxu0 %v8384
    %v8452 = vpop.f32.mrb[0].mxu0
    %v8453 = vadd.f32 0.0, %v8452
    %v8454 = vpop.f32.mrb[0].mxu0
    %8455 = vdwg.mxu0
    %vm8456 = vcmask 64512
    %v8458 = vsel %vm8456, %v85, 0
    %8460 = vmatprep.subr.mxu0 0.0
    %8461 = vmatpush1.msra.mxu0 %v8380
    %8462 = vmatprep.subr.mxu0 0.0
    %8463 = vmatpush1.msra.mxu0 0.0
    %8464 = vmatprep.subr.mxu0 0.0
    %8465 = vmatpush1.msra.mxu0 0.0
    %8466 = vmatprep.subr.mxu0 0.0
    %8467 = vmatpush1.msra.mxu0 0.0
    %8468 = vmatprep.subr.mxu0 0.0
    %8469 = vmatpush1.msra.mxu0 0.0
    %8470 = vmatprep.subr.mxu0 0.0
    %8471 = vmatpush1.msra.mxu0 0.0
    %8472 = vmatprep.subr.mxu0 0.0
    %8473 = vmatpush1.msra.mxu0 0.0
    %8474 = vmatprep.subr.mxu0 0.0
    %8475 = vmatpush1.msra.mxu0 0.0
    %8476 = vmatprep.subr.mxu0 0.0
    %8477 = vmatpush1.msra.mxu0 0.0
    %8478 = vmatprep.subr.mxu0 0.0
    %8479 = vmatpush1.msra.mxu0 0.0
    %8480 = vmatprep.subr.mxu0 0.0
    %8481 = vmatpush1.msra.mxu0 0.0
    %8482 = vmatprep.subr.mxu0 0.0
    %8483 = vmatpush1.msra.mxu0 0.0
    %8484 = vmatprep.subr.mxu0 0.0
    %8485 = vmatpush1.msra.mxu0 0.0
    %8486 = vmatprep.subr.mxu0 0.0
    %8487 = vmatpush1.msra.mxu0 0.0
    %8488 = vmatprep.subr.mxu0 0.0
    %8489 = vmatpush1.msra.mxu0 0.0
    %8490 = vmatprep.subr.mxu0 0.0
    %8491 = vmatpush1.msra.mxu0 0.0
    %8492 = vmatprep.subr.mxu0 0.0
    %8493 = vmatpush1.msra.mxu0 0.0
    %8494 = vmatprep.subr.mxu0 0.0
    %8495 = vmatpush1.msra.mxu0 0.0
    %8496 = vmatprep.subr.mxu0 0.0
    %8497 = vmatpush1.msra.mxu0 0.0
    %8498 = vmatprep.subr.mxu0 0.0
    %8499 = vmatpush1.msra.mxu0 0.0
    %8500 = vmatprep.subr.mxu0 0.0
    %8501 = vmatpush1.msra.mxu0 0.0
    %8502 = vmatprep.subr.mxu0 0.0
    %8503 = vmatpush1.msra.mxu0 0.0
    %8504 = vmatprep.subr.mxu0 0.0
    %8505 = vmatpush1.msra.mxu0 0.0
    %8506 = vmatprep.subr.mxu0 0.0
    %8507 = vmatpush1.msra.mxu0 0.0
    %8508 = vmatprep.subr.mxu0 0.0
    %8509 = vmatpush1.msra.mxu0 0.0
    %8510 = vmatprep.subr.mxu0 0.0
    %8511 = vmatpush1.msra.mxu0 0.0
    %8512 = vmatprep.subr.mxu0 0.0
    %8513 = vmatpush1.msra.mxu0 0.0
    %8514 = vmatprep.subr.mxu0 0.0
    %8515 = vmatpush1.msra.mxu0 0.0
    %8516 = vmatprep.subr.mxu0 0.0
    %8517 = vmatpush1.msra.mxu0 0.0
    %8518 = vmatprep.subr.mxu0 0.0
    %8519 = vmatpush1.msra.mxu0 0.0
    %8520 = vmatprep.subr.mxu0 0.0
    %8521 = vmatpush1.msra.mxu0 0.0
    %8522 = vmatprep.subr.mxu0 0.0
    %8523 = vmatpush1.msra.mxu0 0.0
    %8524 = vmatprep.mubr.f32.mxu0 0.0
    %8525 = vmatmul.mubr.f32.gmra.mrb[0].mxu0 %v8458
    %v8526 = vpop.f32.mrb[0].mxu0
    %v8527 = vadd.f32 %v8453, %v8526
    %v8528 = vpop.f32.mrb[0].mxu0
    %8529 = vdwg.mxu0
    %v8530 = vld [vmem:[%s14] sm:$0x1]
    %v8532 = vlaneseq
    %v8533 = vshrl.u32 %v8532, 7
    %v8534 = vsub.s32 0, %v8533
    %v8535 = vrot.slane %v8530, %v8534
    %v8537 = vadd.f32 %v8527, %v8535
    %v8538 = vlaneseq
    %v8539 = vshrl.u32 %v8538, 7
    %v8540 = vsub.s32 0, %v8539
    %v8541 = vrot.slane %v8537, %v8540
    %8543 = vbcast.lane.b32.xlu0 %v8541, 256
    %v8544 = vpop.permute.xlu0 %8543
    %s8546 = sor.u32 256, 8
    %8547 = vbcast.lane.b32.xlu0 %v8541, %s8546
    %v8548 = vpop.permute.xlu0 %8547
    %v8549 = vlaneseq
    %v8550 = vshrl.u32 %v8549, 7
    %v8551 = vsub.s32 1, %v8550
    %v8552 = vrot.slane %v8537, %v8551
    %8554 = vbcast.lane.b32.xlu0 %v8552, 256
    %v8555 = vpop.permute.xlu0 %8554
    %s8557 = sor.u32 256, 8
    %8558 = vbcast.lane.b32.xlu0 %v8552, %s8557
    %v8559 = vpop.permute.xlu0 %8558
    %v8560 = vmul.f32 %v8544, %v81
    %v8561 = vmul.f32 %v8548, %v82
    %v8562 = vmul.f32 %v8555, %v83
    %v8563 = vmul.f32 %v8559, %v84
    %v8564 = vsel %vm166, %v8560, 0.0
    %v8565 = vsel %vm166, %v8561, 0.0
    %v8566 = vadd.f32 %v8564, %v8565
    %v8567 = vrot.slane %v8566, 4
    %v8568 = vadd.f32 %v8566, %v8567
    %v8569 = vrot.slane %v8568, 2
    %v8570 = vadd.f32 %v8568, %v8569
    %v8571 = vrot.slane %v8570, 1
    %v8572 = vadd.f32 %v8570, %v8571
    %v8573 = vsel %vm166, %v8562, 0.0
    %v8574 = vsel %vm166, %v8563, 0.0
    %v8575 = vadd.f32 %v8573, %v8574
    %v8576 = vrot.slane %v8575, 4
    %v8577 = vadd.f32 %v8575, %v8576
    %v8578 = vrot.slane %v8577, 2
    %v8579 = vadd.f32 %v8577, %v8578
    %v8580 = vrot.slane %v8579, 1
    %v8581 = vadd.f32 %v8579, %v8580
    %v8584 = vsel %vm5673, %v8581, %v8572
    %vm8586 = vcmask 517120
    %v8587 = vsel %vm8586, %v8584, -inf
    %8588 = vmax.xlane.f32.xlu0 %v8587
    %v8589 = vpop.xlane.xlu0 %8588
    %v8591 = vrot.slane %v8589, 1
    %v8594 = vsub.f32 %v8572, %v8589
    %v8595 = vsub.f32 %v8581, %v8591
    %v8596 = vmul.f32 %v8594, 1.442695
    %v8597 = vpow.pop %v8596
    %v8598 = vmul.f32 %v8595, 1.442695
    %v8599 = vpow.pop %v8598
    %v8602 = vrot.slane %v8599, 7
    %v8603 = vsel %vm5673, %v8602, %v8597
    %v8605 = vsel %vm8586, %v8603, 0.0
    %8606 = vadd.xlane.f32.xlu0 %v8605
    %v8607 = vpop.xlane.xlu0 %8606
    %v8608 = vrcp.pop %v8607
    %v8610 = vrot.slane %v8608, 1
    %v8613 = vmul.f32 %v8597, %v8608
    %v8614 = vmul.f32 %v8599, %v8610
    %v8615 = vlaneseq
    %v8616 = vshrl.u32 %v8615, 7
    %v8617 = vsub.s32 0, %v8616
    %v8618 = vrot.slane %v8613, %v8617
    %v8619 = vlaneseq
    %v8620 = vshrl.u32 %v8619, 7
    %v8621 = vsub.s32 0, %v8620
    %v8622 = vrot.slane %v8614, %v8621
    %v8623 = vmul.f32 %v8618, %v81
    %v8624 = vmul.f32 %v8618, %v82
    %v8625 = vmul.f32 %v8622, %v83
    %v8626 = vmul.f32 %v8622, %v84
    %v8627 = vsel %vm166, %v8623, 0.0
    %8628 = vadd.xlane.f32.xlu0 %v8627
    %v8629 = vpop.xlane.xlu0 %8628
    %v8630 = vsel %vm166, %v8624, 0.0
    %8631 = vadd.xlane.f32.xlu0 %v8630
    %v8632 = vpop.xlane.xlu0 %8631
    %v8633 = vsel %vm166, %v8625, 0.0
    %8634 = vadd.xlane.f32.xlu0 %v8633
    %v8635 = vpop.xlane.xlu0 %8634
    %v8636 = vsel %vm166, %v8626, 0.0
    %8637 = vadd.xlane.f32.xlu0 %v8636
    %v8638 = vpop.xlane.xlu0 %8637
    %v8639 = vlaneseq
    %v8640 = vand.u32 %v8639, 127
    %s8641 = sld [smem:[#allocation2]]
    %s8642 = smul.u32 %s8641, 8
    %s8643 = sld [smem:[#allocation2 + $0x1]]
    %s8644 = sadd.s32 %s8642, %s8643
    %v8645 = vstv %s8644
    %s8646 = sld [smem:[#allocation2 + $0x80]]
    %s8647 = smul.u32 %s8646, 8
    %s8648 = sld [smem:[#allocation2 + $0x81]]
    %s8649 = sadd.s32 %s8647, %s8648
    %v8650 = vstv %s8649
    %vm8651 = vcmp.eq.s32.totalorder %v8640, %v8645
    %vm8652 = vcmp.eq.s32.totalorder %v8640, %v8650
    %v8653 = vsel %vm8651, 1, 0
    %v8654 = vsel %vm8652, 1, 0
    %v8655 = vcvt.s32.f32 %v8653
    %v8656 = vcvt.s32.f32 %v8654
    %v8657 = vmul.f32 %v81, %v8655
    %v8658 = vmul.f32 %v82, %v8655
    %v8659 = vmul.f32 %v83, %v8656
    %v8660 = vmul.f32 %v84, %v8656
    %v8661 = vsel %vm166, %v8657, 0.0
    %8662 = vadd.xlane.f32.xlu0 %v8661
    %v8663 = vpop.xlane.xlu0 %8662
    %v8664 = vsel %vm166, %v8658, 0.0
    %8665 = vadd.xlane.f32.xlu0 %v8664
    %v8666 = vpop.xlane.xlu0 %8665
    %v8667 = vsel %vm166, %v8659, 0.0
    %8668 = vadd.xlane.f32.xlu0 %v8667
    %v8669 = vpop.xlane.xlu0 %8668
    %v8670 = vsel %vm166, %v8660, 0.0
    %8671 = vadd.xlane.f32.xlu0 %v8670
    %v8672 = vpop.xlane.xlu0 %8671
    %v8673 = vld [vmem:[%s15] sm:$0xff]
    %v8674 = vld [vmem:[%s16] sm:$0xff]
    %v8675 = vld [vmem:[%s16 + $0x8] sm:$0xff]
    %8676 = vmatprep.subr.mxu0 0.0
    %8677 = vmatpush1.msra.mxu0 %v8674
    %8678 = vmatprep.subr.mxu0 0.0
    %8679 = vmatpush1.msra.mxu0 %v8675
    %8680 = vmatprep.subr.mxu0 0.0
    %8681 = vmatpush1.msra.mxu0 0.0
    %8682 = vmatprep.subr.mxu0 0.0
    %8683 = vmatpush1.msra.mxu0 0.0
    %8684 = vmatprep.subr.mxu0 0.0
    %8685 = vmatpush1.msra.mxu0 0.0
    %8686 = vmatprep.subr.mxu0 0.0
    %8687 = vmatpush1.msra.mxu0 0.0
    %8688 = vmatprep.subr.mxu0 0.0
    %8689 = vmatpush1.msra.mxu0 0.0
    %8690 = vmatprep.subr.mxu0 0.0
    %8691 = vmatpush1.msra.mxu0 0.0
    %8692 = vmatprep.subr.mxu0 0.0
    %8693 = vmatpush1.msra.mxu0 0.0
    %8694 = vmatprep.subr.mxu0 0.0
    %8695 = vmatpush1.msra.mxu0 0.0
    %8696 = vmatprep.subr.mxu0 0.0
    %8697 = vmatpush1.msra.mxu0 0.0
    %8698 = vmatprep.subr.mxu0 0.0
    %8699 = vmatpush1.msra.mxu0 0.0
    %8700 = vmatprep.subr.mxu0 0.0
    %8701 = vmatpush1.msra.mxu0 0.0
    %8702 = vmatprep.subr.mxu0 0.0
    %8703 = vmatpush1.msra.mxu0 0.0
    %8704 = vmatprep.subr.mxu0 0.0
    %8705 = vmatpush1.msra.mxu0 0.0
    %8706 = vmatprep.subr.mxu0 0.0
    %8707 = vmatpush1.msra.mxu0 0.0
    %8708 = vmatprep.subr.mxu0 0.0
    %8709 = vmatpush1.msra.mxu0 0.0
    %8710 = vmatprep.subr.mxu0 0.0
    %8711 = vmatpush1.msra.mxu0 0.0
    %8712 = vmatprep.subr.mxu0 0.0
    %8713 = vmatpush1.msra.mxu0 0.0
    %8714 = vmatprep.subr.mxu0 0.0
    %8715 = vmatpush1.msra.mxu0 0.0
    %8716 = vmatprep.subr.mxu0 0.0
    %8717 = vmatpush1.msra.mxu0 0.0
    %8718 = vmatprep.subr.mxu0 0.0
    %8719 = vmatpush1.msra.mxu0 0.0
    %8720 = vmatprep.subr.mxu0 0.0
    %8721 = vmatpush1.msra.mxu0 0.0
    %8722 = vmatprep.subr.mxu0 0.0
    %8723 = vmatpush1.msra.mxu0 0.0
    %8724 = vmatprep.subr.mxu0 0.0
    %8725 = vmatpush1.msra.mxu0 0.0
    %8726 = vmatprep.subr.mxu0 0.0
    %8727 = vmatpush1.msra.mxu0 0.0
    %8728 = vmatprep.subr.mxu0 0.0
    %8729 = vmatpush1.msra.mxu0 0.0
    %8730 = vmatprep.subr.mxu0 0.0
    %8731 = vmatpush1.msra.mxu0 0.0
    %8732 = vmatprep.subr.mxu0 0.0
    %8733 = vmatpush1.msra.mxu0 0.0
    %8734 = vmatprep.subr.mxu0 0.0
    %8735 = vmatpush1.msra.mxu0 0.0
    %8736 = vmatprep.subr.mxu0 0.0
    %8737 = vmatpush1.msra.mxu0 0.0
    %8738 = vmatprep.subr.mxu0 0.0
    %8739 = vmatpush1.msra.mxu0 0.0
    %8740 = vmatprep.mubr.f32.mxu0 0.0
    %8741 = vmatmul.mubr.f32.gmra.mrb[0].mxu0 %v8384
    %v8742 = vpop.f32.mrb[0].mxu0
    %v8743 = vadd.f32 0.0, %v8742
    %v8744 = vpop.f32.mrb[0].mxu0
    %8745 = vdwg.mxu0
    %8746 = vmatprep.subr.mxu0 0.0
    %8747 = vmatpush1.msra.mxu0 %v8673
    %8748 = vmatprep.subr.mxu0 0.0
    %8749 = vmatpush1.msra.mxu0 0.0
    %8750 = vmatprep.subr.mxu0 0.0
    %8751 = vmatpush1.msra.mxu0 0.0
    %8752 = vmatprep.subr.mxu0 0.0
    %8753 = vmatpush1.msra.mxu0 0.0
    %8754 = vmatprep.subr.mxu0 0.0
    %8755 = vmatpush1.msra.mxu0 0.0
    %8756 = vmatprep.subr.mxu0 0.0
    %8757 = vmatpush1.msra.mxu0 0.0
    %8758 = vmatprep.subr.mxu0 0.0
    %8759 = vmatpush1.msra.mxu0 0.0
    %8760 = vmatprep.subr.mxu0 0.0
    %8761 = vmatpush1.msra.mxu0 0.0
    %8762 = vmatprep.subr.mxu0 0.0
    %8763 = vmatpush1.msra.mxu0 0.0
    %8764 = vmatprep.subr.mxu0 0.0
    %8765 = vmatpush1.msra.mxu0 0.0
    %8766 = vmatprep.subr.mxu0 0.0
    %8767 = vmatpush1.msra.mxu0 0.0
    %8768 = vmatprep.subr.mxu0 0.0
    %8769 = vmatpush1.msra.mxu0 0.0
    %8770 = vmatprep.subr.mxu0 0.0
    %8771 = vmatpush1.msra.mxu0 0.0
    %8772 = vmatprep.subr.mxu0 0.0
    %8773 = vmatpush1.msra.mxu0 0.0
    %8774 = vmatprep.subr.mxu0 0.0
    %8775 = vmatpush1.msra.mxu0 0.0
    %8776 = vmatprep.subr.mxu0 0.0
    %8777 = vmatpush1.msra.mxu0 0.0
    %8778 = vmatprep.subr.mxu0 0.0
    %8779 = vmatpush1.msra.mxu0 0.0
    %8780 = vmatprep.subr.mxu0 0.0
    %8781 = vmatpush1.msra.mxu0 0.0
    %8782 = vmatprep.subr.mxu0 0.0
    %8783 = vmatpush1.msra.mxu0 0.0
    %8784 = vmatprep.subr.mxu0 0.0
    %8785 = vmatpush1.msra.mxu0 0.0
    %8786 = vmatprep.subr.mxu0 0.0
    %8787 = vmatpush1.msra.mxu0 0.0
    %8788 = vmatprep.subr.mxu0 0.0
    %8789 = vmatpush1.msra.mxu0 0.0
    %8790 = vmatprep.subr.mxu0 0.0
    %8791 = vmatpush1.msra.mxu0 0.0
    %8792 = vmatprep.subr.mxu0 0.0
    %8793 = vmatpush1.msra.mxu0 0.0
    %8794 = vmatprep.subr.mxu0 0.0
    %8795 = vmatpush1.msra.mxu0 0.0
    %8796 = vmatprep.subr.mxu0 0.0
    %8797 = vmatpush1.msra.mxu0 0.0
    %8798 = vmatprep.subr.mxu0 0.0
    %8799 = vmatpush1.msra.mxu0 0.0
    %8800 = vmatprep.subr.mxu0 0.0
    %8801 = vmatpush1.msra.mxu0 0.0
    %8802 = vmatprep.subr.mxu0 0.0
    %8803 = vmatpush1.msra.mxu0 0.0
    %8804 = vmatprep.subr.mxu0 0.0
    %8805 = vmatpush1.msra.mxu0 0.0
    %8806 = vmatprep.subr.mxu0 0.0
    %8807 = vmatpush1.msra.mxu0 0.0
    %8808 = vmatprep.subr.mxu0 0.0
    %8809 = vmatpush1.msra.mxu0 0.0
    %8810 = vmatprep.mubr.f32.mxu0 0.0
    %8811 = vmatmul.mubr.f32.gmra.mrb[0].mxu0 %v8458
    %v8812 = vpop.f32.mrb[0].mxu0
    %v8813 = vadd.f32 %v8743, %v8812
    %v8814 = vpop.f32.mrb[0].mxu0
    %8815 = vdwg.mxu0
    %v8816 = vld [vmem:[%s17] sm:$0xff]
    %v8817 = vld [vmem:[%s17 + $0x8] sm:$0xff]
    %v8822 = vlaneseq
    %v8823 = vshrl.u32 %v8822, 7
    %v8824 = vsub.s32 %v8640, %v8823
    %v8825 = vrot.slane %v8629, %v8824
    %v8826 = vadd.s32 %v8640, 4294967288
    %v8827 = vlaneseq
    %v8828 = vshrl.u32 %v8827, 7
    %v8829 = vsub.s32 %v8826, %v8828
    %v8830 = vrot.slane %v8632, %v8829
    %vm8831 = vcmask 130112
    %v8832 = vsel %vm8831, %v8830, %v8825
    %v8833 = vlaneseq
    %v8834 = vshrl.u32 %v8833, 7
    %v8835 = vsub.s32 %v8640, %v8834
    %v8836 = vrot.slane %v8635, %v8835
    %v8837 = vlaneseq
    %v8838 = vshrl.u32 %v8837, 7
    %v8839 = vsub.s32 %v8826, %v8838
    %v8840 = vrot.slane %v8638, %v8839
    %v8841 = vsel %vm8831, %v8840, %v8836
    %v8842 = vsel %vm5673, %v8841, %v8832
    %v8843 = vsel %vm880, %v8842, 0
    %8845 = vmatprep.subr.mxu0 0.0
    %8846 = vmatpush1.msra.mxu0 %v8816
    %8847 = vmatprep.subr.mxu0 0.0
    %8848 = vmatpush1.msra.mxu0 %v8817
    %8849 = vmatprep.subr.mxu0 0.0
    %8850 = vmatpush1.msra.mxu0 0.0
    %8851 = vmatprep.subr.mxu0 0.0
    %8852 = vmatpush1.msra.mxu0 0.0
    %8853 = vmatprep.subr.mxu0 0.0
    %8854 = vmatpush1.msra.mxu0 0.0
    %8855 = vmatprep.subr.mxu0 0.0
    %8856 = vmatpush1.msra.mxu0 0.0
    %8857 = vmatprep.subr.mxu0 0.0
    %8858 = vmatpush1.msra.mxu0 0.0
    %8859 = vmatprep.subr.mxu0 0.0
    %8860 = vmatpush1.msra.mxu0 0.0
    %8861 = vmatprep.subr.mxu0 0.0
    %8862 = vmatpush1.msra.mxu0 0.0
    %8863 = vmatprep.subr.mxu0 0.0
    %8864 = vmatpush1.msra.mxu0 0.0
    %8865 = vmatprep.subr.mxu0 0.0
    %8866 = vmatpush1.msra.mxu0 0.0
    %8867 = vmatprep.subr.mxu0 0.0
    %8868 = vmatpush1.msra.mxu0 0.0
    %8869 = vmatprep.subr.mxu0 0.0
    %8870 = vmatpush1.msra.mxu0 0.0
    %8871 = vmatprep.subr.mxu0 0.0
    %8872 = vmatpush1.msra.mxu0 0.0
    %8873 = vmatprep.subr.mxu0 0.0
    %8874 = vmatpush1.msra.mxu0 0.0
    %8875 = vmatprep.subr.mxu0 0.0
    %8876 = vmatpush1.msra.mxu0 0.0
    %8877 = vmatprep.subr.mxu0 0.0
    %8878 = vmatpush1.msra.mxu0 0.0
    %8879 = vmatprep.subr.mxu0 0.0
    %8880 = vmatpush1.msra.mxu0 0.0
    %8881 = vmatprep.subr.mxu0 0.0
    %8882 = vmatpush1.msra.mxu0 0.0
    %8883 = vmatprep.subr.mxu0 0.0
    %8884 = vmatpush1.msra.mxu0 0.0
    %8885 = vmatprep.subr.mxu0 0.0
    %8886 = vmatpush1.msra.mxu0 0.0
    %8887 = vmatprep.subr.mxu0 0.0
    %8888 = vmatpush1.msra.mxu0 0.0
    %8889 = vmatprep.subr.mxu0 0.0
    %8890 = vmatpush1.msra.mxu0 0.0
    %8891 = vmatprep.subr.mxu0 0.0
    %8892 = vmatpush1.msra.mxu0 0.0
    %8893 = vmatprep.subr.mxu0 0.0
    %8894 = vmatpush1.msra.mxu0 0.0
    %8895 = vmatprep.subr.mxu0 0.0
    %8896 = vmatpush1.msra.mxu0 0.0
    %8897 = vmatprep.subr.mxu0 0.0
    %8898 = vmatpush1.msra.mxu0 0.0
    %8899 = vmatprep.subr.mxu0 0.0
    %8900 = vmatpush1.msra.mxu0 0.0
    %8901 = vmatprep.subr.mxu0 0.0
    %8902 = vmatpush1.msra.mxu0 0.0
    %8903 = vmatprep.subr.mxu0 0.0
    %8904 = vmatpush1.msra.mxu0 0.0
    %8905 = vmatprep.subr.mxu0 0.0
    %8906 = vmatpush1.msra.mxu0 0.0
    %8907 = vmatprep.subr.mxu0 0.0
    %8908 = vmatpush1.msra.mxu0 0.0
    %8909 = vmatprep.mubr.f32.mxu0 0.0
    %8910 = vmatmul.mubr.f32.gmra.mrb[0].mxu0 %v8843
    %v8911 = vpop.f32.mrb[0].mxu0
    %v8912 = vadd.f32 0.0, %v8911
    %v8913 = vpop.f32.mrb[0].mxu0
    %8914 = vdwg.mxu0
    %v8915 = vadd.f32 %v8813, %v8912
    %v8916 = vld [vmem:[%s18] sm:$0xff]
    %v8917 = vld [vmem:[%s18 + $0x8] sm:$0xff]
    %v8922 = vlaneseq
    %v8923 = vshrl.u32 %v8922, 7
    %v8924 = vsub.s32 %v8640, %v8923
    %v8925 = vrot.slane %v8663, %v8924
    %v8926 = vlaneseq
    %v8927 = vshrl.u32 %v8926, 7
    %v8928 = vsub.s32 %v8826, %v8927
    %v8929 = vrot.slane %v8666, %v8928
    %v8930 = vsel %vm8831, %v8929, %v8925
    %v8931 = vlaneseq
    %v8932 = vshrl.u32 %v8931, 7
    %v8933 = vsub.s32 %v8640, %v8932
    %v8934 = vrot.slane %v8669, %v8933
    %v8935 = vlaneseq
    %v8936 = vshrl.u32 %v8935, 7
    %v8937 = vsub.s32 %v8826, %v8936
    %v8938 = vrot.slane %v8672, %v8937
    %v8939 = vsel %vm8831, %v8938, %v8934
    %v8940 = vsel %vm5673, %v8939, %v8930
    %v8941 = vsel %vm880, %v8940, 0
    %8943 = vmatprep.subr.mxu0 0.0
    %8944 = vmatpush1.msra.mxu0 %v8916
    %8945 = vmatprep.subr.mxu0 0.0
    %8946 = vmatpush1.msra.mxu0 %v8917
    %8947 = vmatprep.subr.mxu0 0.0
    %8948 = vmatpush1.msra.mxu0 0.0
    %8949 = vmatprep.subr.mxu0 0.0
    %8950 = vmatpush1.msra.mxu0 0.0
    %8951 = vmatprep.subr.mxu0 0.0
    %8952 = vmatpush1.msra.mxu0 0.0
    %8953 = vmatprep.subr.mxu0 0.0
    %8954 = vmatpush1.msra.mxu0 0.0
    %8955 = vmatprep.subr.mxu0 0.0
    %8956 = vmatpush1.msra.mxu0 0.0
    %8957 = vmatprep.subr.mxu0 0.0
    %8958 = vmatpush1.msra.mxu0 0.0
    %8959 = vmatprep.subr.mxu0 0.0
    %8960 = vmatpush1.msra.mxu0 0.0
    %8961 = vmatprep.subr.mxu0 0.0
    %8962 = vmatpush1.msra.mxu0 0.0
    %8963 = vmatprep.subr.mxu0 0.0
    %8964 = vmatpush1.msra.mxu0 0.0
    %8965 = vmatprep.subr.mxu0 0.0
    %8966 = vmatpush1.msra.mxu0 0.0
    %8967 = vmatprep.subr.mxu0 0.0
    %8968 = vmatpush1.msra.mxu0 0.0
    %8969 = vmatprep.subr.mxu0 0.0
    %8970 = vmatpush1.msra.mxu0 0.0
    %8971 = vmatprep.subr.mxu0 0.0
    %8972 = vmatpush1.msra.mxu0 0.0
    %8973 = vmatprep.subr.mxu0 0.0
    %8974 = vmatpush1.msra.mxu0 0.0
    %8975 = vmatprep.subr.mxu0 0.0
    %8976 = vmatpush1.msra.mxu0 0.0
    %8977 = vmatprep.subr.mxu0 0.0
    %8978 = vmatpush1.msra.mxu0 0.0
    %8979 = vmatprep.subr.mxu0 0.0
    %8980 = vmatpush1.msra.mxu0 0.0
    %8981 = vmatprep.subr.mxu0 0.0
    %8982 = vmatpush1.msra.mxu0 0.0
    %8983 = vmatprep.subr.mxu0 0.0
    %8984 = vmatpush1.msra.mxu0 0.0
    %8985 = vmatprep.subr.mxu0 0.0
    %8986 = vmatpush1.msra.mxu0 0.0
    %8987 = vmatprep.subr.mxu0 0.0
    %8988 = vmatpush1.msra.mxu0 0.0
    %8989 = vmatprep.subr.mxu0 0.0
    %8990 = vmatpush1.msra.mxu0 0.0
    %8991 = vmatprep.subr.mxu0 0.0
    %8992 = vmatpush1.msra.mxu0 0.0
    %8993 = vmatprep.subr.mxu0 0.0
    %8994 = vmatpush1.msra.mxu0 0.0
    %8995 = vmatprep.subr.mxu0 0.0
    %8996 = vmatpush1.msra.mxu0 0.0
    %8997 = vmatprep.subr.mxu0 0.0
    %8998 = vmatpush1.msra.mxu0 0.0
    %8999 = vmatprep.subr.mxu0 0.0
    %9000 = vmatpush1.msra.mxu0 0.0
    %9001 = vmatprep.subr.mxu0 0.0
    %9002 = vmatpush1.msra.mxu0 0.0
    %9003 = vmatprep.subr.mxu0 0.0
    %9004 = vmatpush1.msra.mxu0 0.0
    %9005 = vmatprep.subr.mxu0 0.0
    %9006 = vmatpush1.msra.mxu0 0.0
    %9007 = vmatprep.mubr.f32.mxu0 0.0
    %9008 = vmatmul.mubr.f32.gmra.mrb[0].mxu0 %v8941
    %v9009 = vpop.f32.mrb[0].mxu0
    %v9010 = vadd.f32 0.0, %v9009
    %v9011 = vpop.f32.mrb[0].mxu0
    %9012 = vdwg.mxu0
    %v9013 = vadd.f32 %v8915, %v9010
    %v9014 = vld [vmem:[%s19] sm:$0x1]
    %v9016 = vlaneseq
    %v9017 = vshrl.u32 %v9016, 7
    %v9018 = vsub.s32 0, %v9017
    %v9019 = vrot.slane %v9014, %v9018
    %v9021 = vadd.f32 %v9013, %v9019
    %vm9022 = vcmask 123904
    %9023 = vst.msk [vmem:[#allocation5] sm:$0x3] %vm9022, %v8379
    %v9024 = vadd.s32 %v8640, 4294967280
    %v9025 = vlaneseq
    %v9026 = vshrl.u32 %v9025, 7
    %v9027 = vsub.s32 %v9024, %v9026
    %v9028 = vrot.slane %v8629, %v9027
    %v9029 = vadd.s32 %v8640, 4294967272
    %v9030 = vlaneseq
    %v9031 = vshrl.u32 %v9030, 7
    %v9032 = vsub.s32 %v9029, %v9031
    %v9033 = vrot.slane %v8632, %v9032
    %vm9034 = vcmask 261312
    %v9035 = vsel %vm9034, %v9033, %v9028
    %v9036 = vlaneseq
    %v9037 = vshrl.u32 %v9036, 7
    %v9038 = vsub.s32 %v9024, %v9037
    %v9039 = vrot.slane %v8635, %v9038
    %v9040 = vlaneseq
    %v9041 = vshrl.u32 %v9040, 7
    %v9042 = vsub.s32 %v9029, %v9041
    %v9043 = vrot.slane %v8638, %v9042
    %v9044 = vsel %vm9034, %v9043, %v9039
    %v9045 = vsel %vm5673, %v9044, %v9035
    %vm9047 = vcmask 255104
    %9048 = vst.msk [vmem:[#allocation5] sm:$0x3] %vm9047, %v9045
    %9050 = vrot.lane.b32.xlu0 %v9021, 32
    %v9051 = vpop.permute.xlu0 %9050
    %vm9053 = vcmask 386304
    %9054 = vst.msk [vmem:[#allocation5] sm:$0x3] %vm9053, %v9051
    %v9055 = vsub.f32 1.0, %v8655
    %v9056 = vsub.f32 1.0, %v8656
    %v9057 = vmul.f32 %v81, %v9055
    %v9058 = vmul.f32 %v82, %v9055
    %v9059 = vmul.f32 %v83, %v9056
    %v9060 = vmul.f32 %v84, %v9056
    %v9061 = vlaneseq
    %v9062 = vshrl.u32 %v9061, 7
    %v9063 = vsub.s32 0, %v9062
    %v9064 = vrot.slane %v9021, %v9063
    %9066 = vbcast.lane.b32.xlu0 %v9064, 256
    %v9067 = vpop.permute.xlu0 %9066
    %s9069 = sor.u32 256, 8
    %9070 = vbcast.lane.b32.xlu0 %v9064, %s9069
    %v9071 = vpop.permute.xlu0 %9070
    %v9072 = vlaneseq
    %v9073 = vshrl.u32 %v9072, 7
    %v9074 = vsub.s32 1, %v9073
    %v9075 = vrot.slane %v9021, %v9074
    %9077 = vbcast.lane.b32.xlu0 %v9075, 256
    %v9078 = vpop.permute.xlu0 %9077
    %s9080 = sor.u32 256, 8
    %9081 = vbcast.lane.b32.xlu0 %v9075, %s9080
    %v9082 = vpop.permute.xlu0 %9081
    %v9083 = vmul.f32 %v9067, %v8655
    %v9084 = vmul.f32 %v9071, %v8655
    %v9085 = vmul.f32 %v9078, %v8656
    %v9086 = vmul.f32 %v9082, %v8656
    %v9087 = vadd.f32 %v9057, %v9083
    %v9088 = vadd.f32 %v9058, %v9084
    %v9089 = vadd.f32 %v9059, %v9085
    %v9090 = vadd.f32 %v9060, %v9086
    %9091 = vst.msk [vmem:[%s21] sm:$0xff] %vm166, %v9087
    %9092 = vst.msk [vmem:[%s21 + $0x8] sm:$0xff] %vm166, %v9088
    %9093 = vst.msk [vmem:[%s21 + $0x10] sm:$0xff] %vm166, %v9089
    %9094 = vst.msk [vmem:[%s21 + $0x18] sm:$0xff] %vm166, %v9090
    // Predicated region
    $region86: #{neural_map_forward.1} parent=1 // pred_check
      _
    $region87: #{neural_map_forward.1} parent=1 // pred_check_branch
      %9096 = sbr.rel (0) target = $region89
    $region88: #{neural_map_forward.1} parent=1 // pred_region
      %s9098 = ssub.s32 32, 32
      %9099 = vsyncadd [#allocation3], %s9098
      %s9101 = sshll.u32 [#allocation5], 4
      %s9102 = int_to_ptr.vmem [resolvable:$true] %s9101
      %9104 = dma.vmem_to_hbm [thread:$0]  %s9102, 32, %s20, [#allocation3]
    $region89: #{neural_map_forward.1} parent=1 // pred_fallthru
      _
    // Predicated region
    $region90: #{neural_map_forward.1} parent=1 // pred_check
      _
    $region91: #{neural_map_forward.1} parent=1 // pred_check_branch
      %9106 = sbr.rel (0) target = $region93
    $region92: #{neural_map_forward.1} parent=1 // pred_region
      _
    $region93: #{neural_map_forward.1} parent=1 // pred_fallthru
      _
    // Predicated region
    $region94: #{neural_map_forward.1} parent=1 // pred_check
      _
    $region95: #{neural_map_forward.1} parent=1 // pred_check_branch
      %9108 = sbr.rel (0) target = $region97
    $region96: #{neural_map_forward.1} parent=1 // pred_region
      %9109 = dma.done [#allocation3], 32
    $region97: #{neural_map_forward.1} parent=1 // pred_fallthru
      _
    // Predicated region
    $region98: #{neural_map_forward.1} parent=1 // pred_check
      _
    $region99: #{neural_map_forward.1} parent=1 // pred_check_branch
      %9111 = sbr.rel (0) target = $region101
    $region100: #{neural_map_forward.1} parent=1 // pred_region
      _
    $region101: #{neural_map_forward.1} parent=1 // pred_fallthru
      _
    %9112 = vsyncpa [#allocation3], 1
    %9113 = vsyncpa [#allocation4], 1

</llo_original>
